<compile_context>
chip_gen: v6e
topology: v6e:2x2x1
jax: 0.10.0
libtpu: 0.0.40
codegen_flags: <defaults>
</compile_context>

<pallas_src>
import functools

import jax
import jax.numpy as jnp
from jax import lax
from jax.experimental import pallas as pl
from jax.experimental.pallas import tpu as pltpu

LANES = 128  # channel dims are padded to the lane width for lane-dense compute


# --------------------------- pass 1: conv a ----------------------------------
def _conv_a_kernel(x_ref, wa_ref, ya_ref, stats_ref, *, dims):
    T_out, Ho, Wo, Tk, stride = dims
    rows = T_out * Ho * Wo
    x = x_ref[...]                                    # (Tp, Hp, Wp, 128) bf16

    cols = []
    for kt in range(Tk):
        for kh in range(3):
            for kw in range(3):
                if stride == 1:
                    slab = x[kt:kt + T_out, kh:kh + Ho, kw:kw + Wo, :]
                else:
                    # TODO(synk): strided H/W window path is untested on HW.
                    slab = x[kt:kt + T_out,
                             kh:kh + stride * (Ho - 1) + 1:stride,
                             kw:kw + stride * (Wo - 1) + 1:stride, :]
                cols.append(slab)
    # im2col: lane-aligned concat (every piece is 128 lanes wide), then a
    # single tile-friendly collapse (second-minor dim Wo stays a multiple of 8).
    patch = jnp.concatenate(cols, axis=-1)            # (T_out, Ho, Wo, Tk*9*128)
    patch = patch.reshape(rows, Tk * 9 * LANES)

    acc = jnp.dot(patch, wa_ref[...],
                  preferred_element_type=jnp.float32)  # (rows, 128) f32
    ya_ref[...] = acc
    # per-sample partial sums for the two-pass batch norm (f32)
    stats_ref[0:1, :] = jnp.sum(acc, axis=0, keepdims=True)
    stats_ref[1:2, :] = jnp.sum(acc * acc, axis=0, keepdims=True)


# ------------------- pass 2: BN a + ReLU + conv b ----------------------------
def _conv_b_kernel(ya_ref, sa_ref, sh_ref, wb_ref, yb_ref, stats_ref, apad_ref,
                   *, dims):
    T_out, Ho, Wo = dims
    rows = T_out * Ho * Wo

    # BN a as a fused affine (scale/shift precomputed outside) + ReLU in f32,
    # then cast to bf16 as the MXU operand of conv b.
    a = jnp.maximum(ya_ref[...] * sa_ref[...] + sh_ref[...], 0.0)
    a = a.astype(jnp.bfloat16).reshape(T_out, Ho, Wo, LANES)

    # Zero-pad H by 1 in-register (untiled-axis concat), W by 1 via the VMEM
    # scratch: interior store + two thin zero columns (no full-slab zero fill).
    zh = jnp.zeros((T_out, 1, Wo, LANES), jnp.bfloat16)
    ah = jnp.concatenate([zh, a, zh], axis=1)          # (T_out, Ho+2, Wo, 128)
    zw = jnp.zeros((T_out, Ho + 2, 1, LANES), jnp.bfloat16)
    apad_ref[:, :, 1:Wo + 1, :] = ah
    apad_ref[:, :, 0:1, :] = zw
    apad_ref[:, :, Wo + 1:Wo + 2, :] = zw
    ap = apad_ref[...]                                 # (T_out, Ho+2, Wo+2, 128)

    cols = [ap[:, kh:kh + Ho, kw:kw + Wo, :]
            for kh in range(3) for kw in range(3)]
    patch = jnp.concatenate(cols, axis=-1).reshape(rows, 9 * LANES)

    acc = jnp.dot(patch, wb_ref[...],
                  preferred_element_type=jnp.float32)  # (rows, 128) f32
    yb_ref[...] = acc
    stats_ref[0:1, :] = jnp.sum(acc, axis=0, keepdims=True)
    stats_ref[1:2, :] = jnp.sum(acc * acc, axis=0, keepdims=True)


# ----------------------------- pass 3: BN b ----------------------------------
def _bn_affine_kernel(y_ref, s_ref, b_ref, o_ref):
    o_ref[...] = y_ref[...] * s_ref[...] + b_ref[...]


def _finalize_bn(stats, gamma_p, beta_p, count, eps):
    """Partial (sum, sumsq) per sample -> fused BN scale/shift, in f32."""
    mean = jnp.sum(stats[:, 0, :], axis=0) / count
    var = jnp.maximum(jnp.sum(stats[:, 1, :], axis=0) / count - mean * mean, 0.0)
    scale = gamma_p * lax.rsqrt(var + eps)
    shift = beta_p - mean * scale
    return scale.reshape(1, LANES), shift.reshape(1, LANES)


def basic_transform_pallas(x_ncthw, params, *, temp_kernel_size, stride,
                           eps=1e-5):
    wa, ga, ba, wb, gb, bb = (params[k] for k in
                              ("wa", "ga", "ba", "wb", "gb", "bb"))
    N, Cin, T, H, W = x_ncthw.shape
    Cout = wa.shape[0]
    Tk = temp_kernel_size
    pt = Tk // 2
    T_out = T + 2 * pt - Tk + 1
    Ho = (H + 2 - 3) // stride + 1
    Wo = (W + 2 - 3) // stride + 1
    rows = T_out * Ho * Wo
    count = N * rows
    pci, pco = LANES - Cin, LANES - Cout

    # NCTHW -> NTHWC, pad T by Tk//2, H/W by 1, channels to 128 lanes, cast bf16.
    # (H/W zero-padding could be moved into the kernel as masked boundary taps;
    #  kept here as a single cheap XLA op at these sizes.)
    x = jnp.transpose(x_ncthw, (0, 2, 3, 4, 1))
    x = jnp.pad(x, ((0, 0), (pt, pt), (1, 1), (1, 1), (0, pci)))
    x = x.astype(jnp.bfloat16)
    Tp, Hp, Wp = T + 2 * pt, H + 2, W + 2

    # conv-a weight (Cout, Cin, kt, kh, kw) -> (Tk*3*3*128, 128) bf16,
    # K ordered (kt, kh, kw, cin_padded) to match the im2col concat order.
    wa_r = jnp.transpose(wa, (2, 3, 4, 1, 0))                 # (kt,kh,kw,ci,co)
    wa_r = jnp.pad(wa_r, ((0, 0),) * 3 + ((0, pci), (0, pco)))
    wa_r = wa_r.reshape(Tk * 9 * LANES, LANES).astype(jnp.bfloat16)

    # conv-b weight (Cout, Cout, 1, 3, 3) -> (9*128, 128), K ordered (kh,kw,c).
    wb_r = jnp.transpose(wb, (2, 3, 4, 1, 0)).reshape(9, Cout, Cout)
    wb_r = jnp.pad(wb_r, ((0, 0), (0, pco), (0, pco)))
    wb_r = wb_r.reshape(9 * LANES, LANES).astype(jnp.bfloat16)

    ga_p, ba_p, gb_p, bb_p = (jnp.pad(v.astype(jnp.float32), (0, pco))
                              for v in (ga, ba, gb, bb))

    cparams = pltpu.CompilerParams(
        dimension_semantics=("parallel",),   # batch axis -> both v7x cores
        vmem_limit_bytes=32 * 1024 * 1024,
    )
    row_spec = pl.BlockSpec((None, rows, LANES), lambda i: (i, 0, 0))
    stat_spec = pl.BlockSpec((None, 2, LANES), lambda i: (i, 0, 0))
    vec_spec = pl.BlockSpec((1, LANES), lambda i: (0, 0))
    row_shape = jax.ShapeDtypeStruct((N, rows, LANES), jnp.float32)
    stat_shape = jax.ShapeDtypeStruct((N, 2, LANES), jnp.float32)

    # --------------------- pass 1: conv a + BN-a partials --------------------
    ya, stats_a = pl.pallas_call(
        functools.partial(_conv_a_kernel, dims=(T_out, Ho, Wo, Tk, stride)),
        grid=(N,),
        in_specs=[
            pl.BlockSpec((None, Tp, Hp, Wp, LANES),
                         lambda i: (i, 0, 0, 0, 0)),
            pl.BlockSpec((Tk * 9 * LANES, LANES), lambda i: (0, 0)),
        ],
        out_specs=(row_spec, stat_spec),
        out_shape=(row_shape, stat_shape),
        compiler_params=cparams,
    )(x, wa_r)

    scale_a, shift_a = _finalize_bn(stats_a, ga_p, ba_p, count, eps)

    # --------------- pass 2: BN a + ReLU + conv b + BN-b partials ------------
    yb, stats_b = pl.pallas_call(
        functools.partial(_conv_b_kernel, dims=(T_out, Ho, Wo)),
        grid=(N,),
        in_specs=[row_spec, vec_spec, vec_spec,
                  pl.BlockSpec((9 * LANES, LANES), lambda i: (0, 0))],
        out_specs=(row_spec, stat_spec),
        out_shape=(row_shape, stat_shape),
        scratch_shapes=[pltpu.VMEM((T_out, Ho + 2, Wo + 2, LANES),
                                   jnp.bfloat16)],
        compiler_params=cparams,
    )(ya, scale_a, shift_a, wb_r)

    scale_b, shift_b = _finalize_bn(stats_b, gb_p, bb_p, count, eps)

    # ----------------------------- pass 3: BN b ------------------------------
    out = pl.pallas_call(
        _bn_affine_kernel,
        grid=(N,),
        in_specs=[row_spec, vec_spec, vec_spec],
        out_specs=row_spec,
        out_shape=row_shape,
        compiler_params=cparams,
    )(yb, scale_b, shift_b)

    # (N, rows, 128) -> (N, T, H, W, Cout) -> PyTorch NCTHW
    out = out.reshape(N, T_out, Ho, Wo, LANES)[..., :Cout]
    return jnp.transpose(out, (0, 4, 1, 2, 3))


# ------------------------- pure-JAX reference (check) ------------------------
def basic_transform_ref(x, params, *, temp_kernel_size, stride, eps=1e-5):
    wa, ga, ba, wb, gb, bb = (params[k] for k in
                              ("wa", "ga", "ba", "wb", "gb", "bb"))
    pt = temp_kernel_size // 2

    def conv(h, w, strides, padding):
        return lax.conv_general_dilated(
            h, w, window_strides=strides, padding=padding,
            dimension_numbers=("NCDHW", "OIDHW", "NCDHW"))

    def bn(h, g, b):
        mean = jnp.mean(h, axis=(0, 2, 3, 4), keepdims=True)
        var = jnp.mean((h - mean) ** 2, axis=(0, 2, 3, 4), keepdims=True)
        return ((h - mean) * lax.rsqrt(var + eps)
                * g.reshape(1, -1, 1, 1, 1) + b.reshape(1, -1, 1, 1, 1))

    h = conv(x, wa, (1, stride, stride), [(pt, pt), (1, 1), (1, 1)])
    h = jnp.maximum(bn(h, ga, ba), 0.0)
    h = conv(h, wb, (1, 1, 1), [(0, 0), (1, 1), (1, 1)])
    return bn(h, gb, bb)


if __name__ == "__main__":
    # Small shapes consistent with the module: N=2, dim_in=8, dim_out=16,
    # T=4 frames, 8x8 spatial, temp_kernel_size=3, stride=1.
    N, Cin, Cout, T, H, W = 2, 8, 16, 4, 8, 8
    temp_kernel_size, stride = 3, 1

    key = jax.random.PRNGKey(0)
    k1, k2, k3, k4, k5, k6, kx = jax.random.split(key, 7)
    params = {
        "wa": 0.1 * jax.random.normal(k1, (Cout, Cin, temp_kernel_size, 3, 3),
                                      jnp.float32),
        "ga": 1.0 + 0.1 * jax.random.normal(k2, (Cout,), jnp.float32),
        "ba": 0.1 * jax.random.normal(k3, (Cout,), jnp.float32),
        "wb": 0.1 * jax.random.normal(k4, (Cout, Cout, 1, 3, 3), jnp.float32),
        "gb": 1.0 + 0.1 * jax.random.normal(k5, (Cout,), jnp.float32),
        "bb": 0.1 * jax.random.normal(k6, (Cout,), jnp.float32),
    }
    x = jax.random.normal(kx, (N, Cin, T, H, W), jnp.float32)

    fwd = jax.jit(functools.partial(basic_transform_pallas,
                                    temp_kernel_size=temp_kernel_size,
                                    stride=stride))
    out = jax.block_until_ready(fwd(x, params))

    ref = basic_transform_ref(x, params, temp_kernel_size=temp_kernel_size,
                              stride=stride)
    assert out.shape == ref.shape == (N, Cout, T, H, W), (out.shape, ref.shape)
    err = float(jnp.max(jnp.abs(out - ref)))
    # bf16 MXU operands with f32 accumulation / f32 BN, vs. an all-f32 reference.
    assert err < 2.5e-2, err
    print("KERNEL_OK")
</pallas_src>

<mosaic_0001>
module attributes {stable_mosaic.version = 11 : i64} {
  func.func @_conv_a_kernel(%arg0: i32, %arg1: memref<1x6x10x10x128xbf16, #tpu.memory_space<vmem>>, %arg2: memref<3456x128xbf16, #tpu.memory_space<vmem>>, %arg3: memref<1x256x128xf32, #tpu.memory_space<vmem>>, %arg4: memref<1x2x128xf32, #tpu.memory_space<vmem>>) attributes {dimension_semantics = [#tpu.dimension_semantics<parallel>], iteration_bounds = array<i64: 2>, scalar_prefetch = 0 : i64, scratch_operands = 0 : i64, tpu.core_type = #tpu.core_type<tc>, window_params = [{transform_indices = @transform_0, window_bounds = array<i64: 1, 6, 10, 10, 128>}, {pipeline_mode = #tpu.pipeline_mode<synchronous>, transform_indices = @transform_1, window_bounds = array<i64: 3456, 128>}, {transform_indices = @transform_2, window_bounds = array<i64: 1, 256, 128>}, {transform_indices = @transform_3, window_bounds = array<i64: 1, 2, 128>}]} {
    %c0 = arith.constant 0 : index
    %c0_0 = arith.constant 0 : index
    %c0_1 = arith.constant 0 : index
    %c0_2 = arith.constant 0 : index
    %c0_3 = arith.constant 0 : index
    %0 = vector.load %arg1[%c0, %c0_0, %c0_1, %c0_2, %c0_3] : memref<1x6x10x10x128xbf16, #tpu.memory_space<vmem>>, vector<1x6x10x10x128xbf16>
    %1 = vector.shape_cast %0 : vector<1x6x10x10x128xbf16> to vector<6x10x10x128xbf16>
    %2 = vector.extract_strided_slice %1 {offsets = [0, 0, 0, 0], sizes = [4, 8, 8, 128], strides = [1, 1, 1, 1]} : vector<6x10x10x128xbf16> to vector<4x8x8x128xbf16>
    %3 = vector.extract_strided_slice %1 {offsets = [0, 0, 1, 0], sizes = [4, 8, 8, 128], strides = [1, 1, 1, 1]} : vector<6x10x10x128xbf16> to vector<4x8x8x128xbf16>
    %4 = vector.extract_strided_slice %1 {offsets = [0, 0, 2, 0], sizes = [4, 8, 8, 128], strides = [1, 1, 1, 1]} : vector<6x10x10x128xbf16> to vector<4x8x8x128xbf16>
    %5 = vector.extract_strided_slice %1 {offsets = [0, 1, 0, 0], sizes = [4, 8, 8, 128], strides = [1, 1, 1, 1]} : vector<6x10x10x128xbf16> to vector<4x8x8x128xbf16>
    %6 = vector.extract_strided_slice %1 {offsets = [0, 1, 1, 0], sizes = [4, 8, 8, 128], strides = [1, 1, 1, 1]} : vector<6x10x10x128xbf16> to vector<4x8x8x128xbf16>
    %7 = vector.extract_strided_slice %1 {offsets = [0, 1, 2, 0], sizes = [4, 8, 8, 128], strides = [1, 1, 1, 1]} : vector<6x10x10x128xbf16> to vector<4x8x8x128xbf16>
    %8 = vector.extract_strided_slice %1 {offsets = [0, 2, 0, 0], sizes = [4, 8, 8, 128], strides = [1, 1, 1, 1]} : vector<6x10x10x128xbf16> to vector<4x8x8x128xbf16>
    %9 = vector.extract_strided_slice %1 {offsets = [0, 2, 1, 0], sizes = [4, 8, 8, 128], strides = [1, 1, 1, 1]} : vector<6x10x10x128xbf16> to vector<4x8x8x128xbf16>
    %10 = vector.extract_strided_slice %1 {offsets = [0, 2, 2, 0], sizes = [4, 8, 8, 128], strides = [1, 1, 1, 1]} : vector<6x10x10x128xbf16> to vector<4x8x8x128xbf16>
    %11 = vector.extract_strided_slice %1 {offsets = [1, 0, 0, 0], sizes = [4, 8, 8, 128], strides = [1, 1, 1, 1]} : vector<6x10x10x128xbf16> to vector<4x8x8x128xbf16>
    %12 = vector.extract_strided_slice %1 {offsets = [1, 0, 1, 0], sizes = [4, 8, 8, 128], strides = [1, 1, 1, 1]} : vector<6x10x10x128xbf16> to vector<4x8x8x128xbf16>
    %13 = vector.extract_strided_slice %1 {offsets = [1, 0, 2, 0], sizes = [4, 8, 8, 128], strides = [1, 1, 1, 1]} : vector<6x10x10x128xbf16> to vector<4x8x8x128xbf16>
    %14 = vector.extract_strided_slice %1 {offsets = [1, 1, 0, 0], sizes = [4, 8, 8, 128], strides = [1, 1, 1, 1]} : vector<6x10x10x128xbf16> to vector<4x8x8x128xbf16>
    %15 = vector.extract_strided_slice %1 {offsets = [1, 1, 1, 0], sizes = [4, 8, 8, 128], strides = [1, 1, 1, 1]} : vector<6x10x10x128xbf16> to vector<4x8x8x128xbf16>
    %16 = vector.extract_strided_slice %1 {offsets = [1, 1, 2, 0], sizes = [4, 8, 8, 128], strides = [1, 1, 1, 1]} : vector<6x10x10x128xbf16> to vector<4x8x8x128xbf16>
    %17 = vector.extract_strided_slice %1 {offsets = [1, 2, 0, 0], sizes = [4, 8, 8, 128], strides = [1, 1, 1, 1]} : vector<6x10x10x128xbf16> to vector<4x8x8x128xbf16>
    %18 = vector.extract_strided_slice %1 {offsets = [1, 2, 1, 0], sizes = [4, 8, 8, 128], strides = [1, 1, 1, 1]} : vector<6x10x10x128xbf16> to vector<4x8x8x128xbf16>
    %19 = vector.extract_strided_slice %1 {offsets = [1, 2, 2, 0], sizes = [4, 8, 8, 128], strides = [1, 1, 1, 1]} : vector<6x10x10x128xbf16> to vector<4x8x8x128xbf16>
    %20 = vector.extract_strided_slice %1 {offsets = [2, 0, 0, 0], sizes = [4, 8, 8, 128], strides = [1, 1, 1, 1]} : vector<6x10x10x128xbf16> to vector<4x8x8x128xbf16>
    %21 = vector.extract_strided_slice %1 {offsets = [2, 0, 1, 0], sizes = [4, 8, 8, 128], strides = [1, 1, 1, 1]} : vector<6x10x10x128xbf16> to vector<4x8x8x128xbf16>
    %22 = vector.extract_strided_slice %1 {offsets = [2, 0, 2, 0], sizes = [4, 8, 8, 128], strides = [1, 1, 1, 1]} : vector<6x10x10x128xbf16> to vector<4x8x8x128xbf16>
    %23 = vector.extract_strided_slice %1 {offsets = [2, 1, 0, 0], sizes = [4, 8, 8, 128], strides = [1, 1, 1, 1]} : vector<6x10x10x128xbf16> to vector<4x8x8x128xbf16>
    %24 = vector.extract_strided_slice %1 {offsets = [2, 1, 1, 0], sizes = [4, 8, 8, 128], strides = [1, 1, 1, 1]} : vector<6x10x10x128xbf16> to vector<4x8x8x128xbf16>
    %25 = vector.extract_strided_slice %1 {offsets = [2, 1, 2, 0], sizes = [4, 8, 8, 128], strides = [1, 1, 1, 1]} : vector<6x10x10x128xbf16> to vector<4x8x8x128xbf16>
    %26 = vector.extract_strided_slice %1 {offsets = [2, 2, 0, 0], sizes = [4, 8, 8, 128], strides = [1, 1, 1, 1]} : vector<6x10x10x128xbf16> to vector<4x8x8x128xbf16>
    %27 = vector.extract_strided_slice %1 {offsets = [2, 2, 1, 0], sizes = [4, 8, 8, 128], strides = [1, 1, 1, 1]} : vector<6x10x10x128xbf16> to vector<4x8x8x128xbf16>
    %28 = vector.extract_strided_slice %1 {offsets = [2, 2, 2, 0], sizes = [4, 8, 8, 128], strides = [1, 1, 1, 1]} : vector<6x10x10x128xbf16> to vector<4x8x8x128xbf16>
    %29 = tpu.concatenate %2, %3, %4, %5, %6, %7, %8, %9, %10, %11, %12, %13, %14, %15, %16, %17 in 3 : vector<4x8x8x128xbf16>, vector<4x8x8x128xbf16>, vector<4x8x8x128xbf16>, vector<4x8x8x128xbf16>, vector<4x8x8x128xbf16>, vector<4x8x8x128xbf16>, vector<4x8x8x128xbf16>, vector<4x8x8x128xbf16>, vector<4x8x8x128xbf16>, vector<4x8x8x128xbf16>, vector<4x8x8x128xbf16>, vector<4x8x8x128xbf16>, vector<4x8x8x128xbf16>, vector<4x8x8x128xbf16>, vector<4x8x8x128xbf16>, vector<4x8x8x128xbf16> -> vector<4x8x8x2048xbf16>
    %30 = tpu.concatenate %18, %19, %20, %21, %22, %23, %24, %25, %26, %27, %28 in 3 : vector<4x8x8x128xbf16>, vector<4x8x8x128xbf16>, vector<4x8x8x128xbf16>, vector<4x8x8x128xbf16>, vector<4x8x8x128xbf16>, vector<4x8x8x128xbf16>, vector<4x8x8x128xbf16>, vector<4x8x8x128xbf16>, vector<4x8x8x128xbf16>, vector<4x8x8x128xbf16>, vector<4x8x8x128xbf16> -> vector<4x8x8x1408xbf16>
    %31 = tpu.concatenate %29, %30 in 3 : vector<4x8x8x2048xbf16>, vector<4x8x8x1408xbf16> -> vector<4x8x8x3456xbf16>
    %32 = vector.shape_cast %31 : vector<4x8x8x3456xbf16> to vector<256x3456xbf16>
    %c0_4 = arith.constant 0 : index
    %c0_5 = arith.constant 0 : index
    %33 = vector.load %arg2[%c0_4, %c0_5] : memref<3456x128xbf16, #tpu.memory_space<vmem>>, vector<3456x128xbf16>
    %cst = arith.constant dense<0.000000e+00> : vector<256x128xf32>
    %34 = tpu.matmul %32, %33, %cst {dimension_numbers = #tpu.dot_dimension_numbers<[1], [0], [0], [1], [0, 0, 1, 1], [], []>} : vector<256x3456xbf16>, vector<3456x128xbf16>, vector<256x128xf32> -> vector<256x128xf32>
    %c0_6 = arith.constant 0 : index
    %c0_7 = arith.constant 0 : index
    %c0_8 = arith.constant 0 : index
    %35 = vector.load %arg3[%c0_6, %c0_7, %c0_8] : memref<1x256x128xf32, #tpu.memory_space<vmem>>, vector<1x256x128xf32>
    %36 = vector.shape_cast %35 : vector<1x256x128xf32> to vector<256x128xf32>
    %37 = vector.shape_cast %34 : vector<256x128xf32> to vector<1x256x128xf32>
    tpu.vector_store %arg3[%c0_6, %c0_7, %c0_8], %37 {strides = array<i32>} : memref<1x256x128xf32, #tpu.memory_space<vmem>>, vector<1x256x128xf32>,
    %cst_9 = arith.constant dense<0.000000e+00> : vector<128xf32>
    %38 = vector.multi_reduction <add>, %34, %cst_9 [0] : vector<256x128xf32> to vector<128xf32>
    %39 = vector.shape_cast %38 : vector<128xf32> to vector<1x128xf32>
    %c0_10 = arith.constant 0 : index
    %c0_11 = arith.constant 0 : index
    %c0_12 = arith.constant 0 : index
    %40 = vector.load %arg4[%c0_10, %c0_11, %c0_12] : memref<1x2x128xf32, #tpu.memory_space<vmem>>, vector<1x1x128xf32>
    %41 = vector.shape_cast %40 : vector<1x1x128xf32> to vector<1x128xf32>
    %42 = vector.shape_cast %39 : vector<1x128xf32> to vector<1x1x128xf32>
    tpu.vector_store %arg4[%c0_10, %c0_11, %c0_12], %42 {strides = array<i32>} : memref<1x2x128xf32, #tpu.memory_space<vmem>>, vector<1x1x128xf32>,
    %43 = arith.mulf %34, %34 : vector<256x128xf32>
    %cst_13 = arith.constant dense<0.000000e+00> : vector<128xf32>
    %44 = vector.multi_reduction <add>, %43, %cst_13 [0] : vector<256x128xf32> to vector<128xf32>
    %45 = vector.shape_cast %44 : vector<128xf32> to vector<1x128xf32>
    %c0_14 = arith.constant 0 : index
    %c1 = arith.constant 1 : index
    %c0_15 = arith.constant 0 : index
    %46 = vector.load %arg4[%c0_14, %c1, %c0_15] : memref<1x2x128xf32, #tpu.memory_space<vmem>>, vector<1x1x128xf32>
    %47 = vector.shape_cast %46 : vector<1x1x128xf32> to vector<1x128xf32>
    %48 = vector.shape_cast %45 : vector<1x128xf32> to vector<1x1x128xf32>
    tpu.vector_store %arg4[%c0_14, %c1, %c0_15], %48 {strides = array<i32>} : memref<1x2x128xf32, #tpu.memory_space<vmem>>, vector<1x1x128xf32>,
    return
  }
  func.func @transform_0(%arg0: i32) -> (i32, i32, i32, i32, i32) {
    %c0_i32 = arith.constant 0 : i32
    %c0_i32_0 = arith.constant 0 : i32
    %c0_i32_1 = arith.constant 0 : i32
    %c0_i32_2 = arith.constant 0 : i32
    %c0_i32_3 = arith.constant 0 : i32
    return %arg0, %c0_i32, %c0_i32_0, %c0_i32_1, %c0_i32_2 : i32, i32, i32, i32, i32
  }
  func.func @transform_1(%arg0: i32) -> (i32, i32) {
    %c0_i32 = arith.constant 0 : i32
    %c0_i32_0 = arith.constant 0 : i32
    %c0_i32_1 = arith.constant 0 : i32
    return %c0_i32, %c0_i32_0 : i32, i32
  }
  func.func @transform_2(%arg0: i32) -> (i32, i32, i32) {
    %c0_i32 = arith.constant 0 : i32
    %c0_i32_0 = arith.constant 0 : i32
    %c0_i32_1 = arith.constant 0 : i32
    return %arg0, %c0_i32, %c0_i32_0 : i32, i32, i32
  }
  func.func @transform_3(%arg0: i32) -> (i32, i32, i32) {
    %c0_i32 = arith.constant 0 : i32
    %c0_i32_0 = arith.constant 0 : i32
    %c0_i32_1 = arith.constant 0 : i32
    return %arg0, %c0_i32, %c0_i32_0 : i32, i32, i32
  }
}

module attributes {stable_mosaic.version = 11 : i64} {
  func.func @_bn_affine_kernel(%arg0: i32, %arg1: memref<1x256x128xf32, #tpu.memory_space<vmem>>, %arg2: memref<1x128xf32, #tpu.memory_space<vmem>>, %arg3: memref<1x128xf32, #tpu.memory_space<vmem>>, %arg4: memref<1x256x128xf32, #tpu.memory_space<vmem>>) attributes {dimension_semantics = [#tpu.dimension_semantics<parallel>], iteration_bounds = array<i64: 2>, scalar_prefetch = 0 : i64, scratch_operands = 0 : i64, tpu.core_type = #tpu.core_type<tc>, window_params = [{transform_indices = @transform_0, window_bounds = array<i64: 1, 256, 128>}, {pipeline_mode = #tpu.pipeline_mode<synchronous>, transform_indices = @transform_1, window_bounds = array<i64: 1, 128>}, {pipeline_mode = #tpu.pipeline_mode<synchronous>, transform_indices = @transform_2, window_bounds = array<i64: 1, 128>}, {transform_indices = @transform_3, window_bounds = array<i64: 1, 256, 128>}]} {
    %c0 = arith.constant 0 : index
    %c0_0 = arith.constant 0 : index
    %c0_1 = arith.constant 0 : index
    %0 = vector.load %arg1[%c0, %c0_0, %c0_1] : memref<1x256x128xf32, #tpu.memory_space<vmem>>, vector<1x256x128xf32>
    %1 = vector.shape_cast %0 : vector<1x256x128xf32> to vector<256x128xf32>
    %c0_2 = arith.constant 0 : index
    %c0_3 = arith.constant 0 : index
    %2 = vector.load %arg2[%c0_2, %c0_3] : memref<1x128xf32, #tpu.memory_space<vmem>>, vector<1x128xf32>
    %3 = vector.broadcast %2 : vector<1x128xf32> to vector<256x128xf32>
    %4 = arith.mulf %1, %3 : vector<256x128xf32>
    %c0_4 = arith.constant 0 : index
    %c0_5 = arith.constant 0 : index
    %5 = vector.load %arg3[%c0_4, %c0_5] : memref<1x128xf32, #tpu.memory_space<vmem>>, vector<1x128xf32>
    %6 = vector.broadcast %5 : vector<1x128xf32> to vector<256x128xf32>
    %7 = arith.addf %4, %6 : vector<256x128xf32>
    %c0_6 = arith.constant 0 : index
    %c0_7 = arith.constant 0 : index
    %c0_8 = arith.constant 0 : index
    %8 = vector.load %arg4[%c0_6, %c0_7, %c0_8] : memref<1x256x128xf32, #tpu.memory_space<vmem>>, vector<1x256x128xf32>
    %9 = vector.shape_cast %8 : vector<1x256x128xf32> to vector<256x128xf32>
    %10 = vector.shape_cast %7 : vector<256x128xf32> to vector<1x256x128xf32>
    tpu.vector_store %arg4[%c0_6, %c0_7, %c0_8], %10 {strides = array<i32>} : memref<1x256x128xf32, #tpu.memory_space<vmem>>, vector<1x256x128xf32>,
    return
  }
  func.func @transform_0(%arg0: i32) -> (i32, i32, i32) {
    %c0_i32 = arith.constant 0 : i32
    %c0_i32_0 = arith.constant 0 : i32
    %c0_i32_1 = arith.constant 0 : i32
    return %arg0, %c0_i32, %c0_i32_0 : i32, i32, i32
  }
  func.func @transform_1(%arg0: i32) -> (i32, i32) {
    %c0_i32 = arith.constant 0 : i32
    %c0_i32_0 = arith.constant 0 : i32
    %c0_i32_1 = arith.constant 0 : i32
    return %c0_i32, %c0_i32_0 : i32, i32
  }
  func.func @transform_2(%arg0: i32) -> (i32, i32) {
    %c0_i32 = arith.constant 0 : i32
    %c0_i32_0 = arith.constant 0 : i32
    %c0_i32_1 = arith.constant 0 : i32
    return %c0_i32, %c0_i32_0 : i32, i32
  }
  func.func @transform_3(%arg0: i32) -> (i32, i32, i32) {
    %c0_i32 = arith.constant 0 : i32
    %c0_i32_0 = arith.constant 0 : i32
    %c0_i32_1 = arith.constant 0 : i32
    return %arg0, %c0_i32, %c0_i32_0 : i32, i32, i32
  }
}

module attributes {stable_mosaic.version = 11 : i64} {
  func.func @_conv_b_kernel(%arg0: i32, %arg1: memref<1x256x128xf32, #tpu.memory_space<vmem>>, %arg2: memref<1x128xf32, #tpu.memory_space<vmem>>, %arg3: memref<1x128xf32, #tpu.memory_space<vmem>>, %arg4: memref<1152x128xbf16, #tpu.memory_space<vmem>>, %arg5: memref<1x256x128xf32, #tpu.memory_space<vmem>>, %arg6: memref<1x2x128xf32, #tpu.memory_space<vmem>>, %arg7: memref<4x10x10x128xbf16, #tpu.memory_space<vmem>>) attributes {dimension_semantics = [#tpu.dimension_semantics<parallel>], iteration_bounds = array<i64: 2>, scalar_prefetch = 0 : i64, scratch_operands = 1 : i64, tpu.core_type = #tpu.core_type<tc>, window_params = [{transform_indices = @transform_0, window_bounds = array<i64: 1, 256, 128>}, {pipeline_mode = #tpu.pipeline_mode<synchronous>, transform_indices = @transform_1, window_bounds = array<i64: 1, 128>}, {pipeline_mode = #tpu.pipeline_mode<synchronous>, transform_indices = @transform_2, window_bounds = array<i64: 1, 128>}, {pipeline_mode = #tpu.pipeline_mode<synchronous>, transform_indices = @transform_3, window_bounds = array<i64: 1152, 128>}, {transform_indices = @transform_4, window_bounds = array<i64: 1, 256, 128>}, {transform_indices = @transform_5, window_bounds = array<i64: 1, 2, 128>}]} {
    %c0 = arith.constant 0 : index
    %c0_0 = arith.constant 0 : index
    %c0_1 = arith.constant 0 : index
    %0 = vector.load %arg1[%c0, %c0_0, %c0_1] : memref<1x256x128xf32, #tpu.memory_space<vmem>>, vector<1x256x128xf32>
    %1 = vector.shape_cast %0 : vector<1x256x128xf32> to vector<256x128xf32>
    %c0_2 = arith.constant 0 : index
    %c0_3 = arith.constant 0 : index
    %2 = vector.load %arg2[%c0_2, %c0_3] : memref<1x128xf32, #tpu.memory_space<vmem>>, vector<1x128xf32>
    %3 = vector.broadcast %2 : vector<1x128xf32> to vector<256x128xf32>
    %4 = arith.mulf %1, %3 : vector<256x128xf32>
    %c0_4 = arith.constant 0 : index
    %c0_5 = arith.constant 0 : index
    %5 = vector.load %arg3[%c0_4, %c0_5] : memref<1x128xf32, #tpu.memory_space<vmem>>, vector<1x128xf32>
    %6 = vector.broadcast %5 : vector<1x128xf32> to vector<256x128xf32>
    %7 = arith.addf %4, %6 : vector<256x128xf32>
    %cst = arith.constant 0.000000e+00 : f32
    %8 = vector.broadcast %cst : f32 to vector<256x128xf32>
    %9 = arith.maximumf %7, %8 : vector<256x128xf32>
    %10 = arith.truncf %9 : vector<256x128xf32> to vector<256x128xbf16>
    %11 = vector.shape_cast %10 : vector<256x128xbf16> to vector<4x8x8x128xbf16>
    %cst_6 = arith.constant 0.000000e+00 : bf16
    %12 = vector.broadcast %cst_6 : bf16 to vector<4x1x8x128xbf16>
    %13 = tpu.concatenate %12, %11, %12 in 1 : vector<4x1x8x128xbf16>, vector<4x8x8x128xbf16>, vector<4x1x8x128xbf16> -> vector<4x10x8x128xbf16>
    %cst_7 = arith.constant 0.000000e+00 : bf16
    %14 = vector.broadcast %cst_7 : bf16 to vector<4x10x1x128xbf16>
    %c0_8 = arith.constant 0 : index
    %c0_9 = arith.constant 0 : index
    %c1 = arith.constant 1 : index
    %c0_10 = arith.constant 0 : index
    %15 = vector.load %arg7[%c0_8, %c0_9, %c1, %c0_10] : memref<4x10x10x128xbf16, #tpu.memory_space<vmem>>, vector<4x10x8x128xbf16>
    tpu.vector_store %arg7[%c0_8, %c0_9, %c1, %c0_10], %13 {strides = array<i32>} : memref<4x10x10x128xbf16, #tpu.memory_space<vmem>>, vector<4x10x8x128xbf16>,
    %c0_11 = arith.constant 0 : index
    %c0_12 = arith.constant 0 : index
    %c0_13 = arith.constant 0 : index
    %c0_14 = arith.constant 0 : index
    %16 = vector.load %arg7[%c0_11, %c0_12, %c0_13, %c0_14] : memref<4x10x10x128xbf16, #tpu.memory_space<vmem>>, vector<4x10x1x128xbf16>
    tpu.vector_store %arg7[%c0_11, %c0_12, %c0_13, %c0_14], %14 {strides = array<i32>} : memref<4x10x10x128xbf16, #tpu.memory_space<vmem>>, vector<4x10x1x128xbf16>,
    %c0_15 = arith.constant 0 : index
    %c0_16 = arith.constant 0 : index
    %c9 = arith.constant 9 : index
    %c0_17 = arith.constant 0 : index
    %17 = vector.load %arg7[%c0_15, %c0_16, %c9, %c0_17] : memref<4x10x10x128xbf16, #tpu.memory_space<vmem>>, vector<4x10x1x128xbf16>
    tpu.vector_store %arg7[%c0_15, %c0_16, %c9, %c0_17], %14 {strides = array<i32>} : memref<4x10x10x128xbf16, #tpu.memory_space<vmem>>, vector<4x10x1x128xbf16>,
    %c0_18 = arith.constant 0 : index
    %c0_19 = arith.constant 0 : index
    %c0_20 = arith.constant 0 : index
    %c0_21 = arith.constant 0 : index
    %18 = vector.load %arg7[%c0_18, %c0_19, %c0_20, %c0_21] : memref<4x10x10x128xbf16, #tpu.memory_space<vmem>>, vector<4x10x10x128xbf16>
    %19 = vector.extract_strided_slice %18 {offsets = [0, 0, 0, 0], sizes = [4, 8, 8, 128], strides = [1, 1, 1, 1]} : vector<4x10x10x128xbf16> to vector<4x8x8x128xbf16>
    %20 = vector.extract_strided_slice %18 {offsets = [0, 0, 1, 0], sizes = [4, 8, 8, 128], strides = [1, 1, 1, 1]} : vector<4x10x10x128xbf16> to vector<4x8x8x128xbf16>
    %21 = vector.extract_strided_slice %18 {offsets = [0, 0, 2, 0], sizes = [4, 8, 8, 128], strides = [1, 1, 1, 1]} : vector<4x10x10x128xbf16> to vector<4x8x8x128xbf16>
    %22 = vector.extract_strided_slice %18 {offsets = [0, 1, 0, 0], sizes = [4, 8, 8, 128], strides = [1, 1, 1, 1]} : vector<4x10x10x128xbf16> to vector<4x8x8x128xbf16>
    %23 = vector.extract_strided_slice %18 {offsets = [0, 1, 1, 0], sizes = [4, 8, 8, 128], strides = [1, 1, 1, 1]} : vector<4x10x10x128xbf16> to vector<4x8x8x128xbf16>
    %24 = vector.extract_strided_slice %18 {offsets = [0, 1, 2, 0], sizes = [4, 8, 8, 128], strides = [1, 1, 1, 1]} : vector<4x10x10x128xbf16> to vector<4x8x8x128xbf16>
    %25 = vector.extract_strided_slice %18 {offsets = [0, 2, 0, 0], sizes = [4, 8, 8, 128], strides = [1, 1, 1, 1]} : vector<4x10x10x128xbf16> to vector<4x8x8x128xbf16>
    %26 = vector.extract_strided_slice %18 {offsets = [0, 2, 1, 0], sizes = [4, 8, 8, 128], strides = [1, 1, 1, 1]} : vector<4x10x10x128xbf16> to vector<4x8x8x128xbf16>
    %27 = vector.extract_strided_slice %18 {offsets = [0, 2, 2, 0], sizes = [4, 8, 8, 128], strides = [1, 1, 1, 1]} : vector<4x10x10x128xbf16> to vector<4x8x8x128xbf16>
    %28 = tpu.concatenate %19, %20, %21, %22, %23, %24, %25, %26, %27 in 3 : vector<4x8x8x128xbf16>, vector<4x8x8x128xbf16>, vector<4x8x8x128xbf16>, vector<4x8x8x128xbf16>, vector<4x8x8x128xbf16>, vector<4x8x8x128xbf16>, vector<4x8x8x128xbf16>, vector<4x8x8x128xbf16>, vector<4x8x8x128xbf16> -> vector<4x8x8x1152xbf16>
    %29 = vector.shape_cast %28 : vector<4x8x8x1152xbf16> to vector<256x1152xbf16>
    %c0_22 = arith.constant 0 : index
    %c0_23 = arith.constant 0 : index
    %30 = vector.load %arg4[%c0_22, %c0_23] : memref<1152x128xbf16, #tpu.memory_space<vmem>>, vector<1152x128xbf16>
    %cst_24 = arith.constant dense<0.000000e+00> : vector<256x128xf32>
    %31 = tpu.matmul %29, %30, %cst_24 {dimension_numbers = #tpu.dot_dimension_numbers<[1], [0], [0], [1], [0, 0, 1, 1], [], []>} : vector<256x1152xbf16>, vector<1152x128xbf16>, vector<256x128xf32> -> vector<256x128xf32>
    %c0_25 = arith.constant 0 : index
    %c0_26 = arith.constant 0 : index
    %c0_27 = arith.constant 0 : index
    %32 = vector.load %arg5[%c0_25, %c0_26, %c0_27] : memref<1x256x128xf32, #tpu.memory_space<vmem>>, vector<1x256x128xf32>
    %33 = vector.shape_cast %32 : vector<1x256x128xf32> to vector<256x128xf32>
    %34 = vector.shape_cast %31 : vector<256x128xf32> to vector<1x256x128xf32>
    tpu.vector_store %arg5[%c0_25, %c0_26, %c0_27], %34 {strides = array<i32>} : memref<1x256x128xf32, #tpu.memory_space<vmem>>, vector<1x256x128xf32>,
    %cst_28 = arith.constant dense<0.000000e+00> : vector<128xf32>
    %35 = vector.multi_reduction <add>, %31, %cst_28 [0] : vector<256x128xf32> to vector<128xf32>
    %36 = vector.shape_cast %35 : vector<128xf32> to vector<1x128xf32>
    %c0_29 = arith.constant 0 : index
    %c0_30 = arith.constant 0 : index
    %c0_31 = arith.constant 0 : index
    %37 = vector.load %arg6[%c0_29, %c0_30, %c0_31] : memref<1x2x128xf32, #tpu.memory_space<vmem>>, vector<1x1x128xf32>
    %38 = vector.shape_cast %37 : vector<1x1x128xf32> to vector<1x128xf32>
    %39 = vector.shape_cast %36 : vector<1x128xf32> to vector<1x1x128xf32>
    tpu.vector_store %arg6[%c0_29, %c0_30, %c0_31], %39 {strides = array<i32>} : memref<1x2x128xf32, #tpu.memory_space<vmem>>, vector<1x1x128xf32>,
    %40 = arith.mulf %31, %31 : vector<256x128xf32>
    %cst_32 = arith.constant dense<0.000000e+00> : vector<128xf32>
    %41 = vector.multi_reduction <add>, %40, %cst_32 [0] : vector<256x128xf32> to vector<128xf32>
    %42 = vector.shape_cast %41 : vector<128xf32> to vector<1x128xf32>
    %c0_33 = arith.constant 0 : index
    %c1_34 = arith.constant 1 : index
    %c0_35 = arith.constant 0 : index
    %43 = vector.load %arg6[%c0_33, %c1_34, %c0_35] : memref<1x2x128xf32, #tpu.memory_space<vmem>>, vector<1x1x128xf32>
    %44 = vector.shape_cast %43 : vector<1x1x128xf32> to vector<1x128xf32>
    %45 = vector.shape_cast %42 : vector<1x128xf32> to vector<1x1x128xf32>
    tpu.vector_store %arg6[%c0_33, %c1_34, %c0_35], %45 {strides = array<i32>} : memref<1x2x128xf32, #tpu.memory_space<vmem>>, vector<1x1x128xf32>,
    return
  }
  func.func @transform_0(%arg0: i32) -> (i32, i32, i32) {
    %c0_i32 = arith.constant 0 : i32
    %c0_i32_0 = arith.constant 0 : i32
    %c0_i32_1 = arith.constant 0 : i32
    return %arg0, %c0_i32, %c0_i32_0 : i32, i32, i32
  }
  func.func @transform_1(%arg0: i32) -> (i32, i32) {
    %c0_i32 = arith.constant 0 : i32
    %c0_i32_0 = arith.constant 0 : i32
    %c0_i32_1 = arith.constant 0 : i32
    return %c0_i32, %c0_i32_0 : i32, i32
  }
  func.func @transform_2(%arg0: i32) -> (i32, i32) {
    %c0_i32 = arith.constant 0 : i32
    %c0_i32_0 = arith.constant 0 : i32
    %c0_i32_1 = arith.constant 0 : i32
    return %c0_i32, %c0_i32_0 : i32, i32
  }
  func.func @transform_3(%arg0: i32) -> (i32, i32) {
    %c0_i32 = arith.constant 0 : i32
    %c0_i32_0 = arith.constant 0 : i32
    %c0_i32_1 = arith.constant 0 : i32
    return %c0_i32, %c0_i32_0 : i32, i32
  }
  func.func @transform_4(%arg0: i32) -> (i32, i32, i32) {
    %c0_i32 = arith.constant 0 : i32
    %c0_i32_0 = arith.constant 0 : i32
    %c0_i32_1 = arith.constant 0 : i32
    return %arg0, %c0_i32, %c0_i32_0 : i32, i32, i32
  }
  func.func @transform_5(%arg0: i32) -> (i32, i32, i32) {
    %c0_i32 = arith.constant 0 : i32
    %c0_i32_0 = arith.constant 0 : i32
    %c0_i32_1 = arith.constant 0 : i32
    return %arg0, %c0_i32, %c0_i32_0 : i32, i32, i32
  }
}

</mosaic_0001>

<llo_original>
// kernel: basic_transform_pallas.5
$region0: #{basic_transform_pallas.5}
  #allocation0 [shape = 'u32[]', space=smem, size = 0x4, offset = 0x4, fixed_abs, tag = 'smem constant byte address 0x4 - core index']
  #allocation1 [shape = 'u32[144,128]{1,0:T(1,128)}', space=vmem, size = 0x12000, scoped, tag = 'internal scratch']
  %s0 = inlined_call_operand.vmem [shape: f32[2,256,128], index: 0, kind: input, shape index: {}]
  %s1 = inlined_call_operand.vmem [shape: f32[1,128], index: 1, kind: input, shape index: {}]
  %s2 = inlined_call_operand.vmem [shape: f32[1,128], index: 2, kind: input, shape index: {}]
  %s3 = inlined_call_operand.vmem [shape: f32[2,256,128], index: 3, kind: output, shape index: {}]
  %s4 = sld [smem:[#allocation0]]
  $region45: #{basic_transform_pallas.5} parent=0
    _
  %s6 = ssub.s32 1, %s4
  %s7 = scalar_select 0, %s6, %s4
  loop: start=0, step=1, limit=4
  $region2: #{basic_transform_pallas.5} parent=0 // loop_pre_header
    _
  $region3: #{basic_transform_pallas.5} parent=0 // loop_header
    %s9 = sphi 0, %s13
    %p10 = scmp.ge.s32.totalorder %s9, 4
    %s19 = sphi 0, %s21
    %s22 = sphi 0, %s19
    %s23 = sphi 0, %s22
    %s39 = sphi 0, %s23
    %s43 = sphi 0, %s43
    %s45 = sphi 0, %s43
    %s46 = sphi 0, %s45
    %s60 = sphi 0, %s46
    %s64 = sphi 0, %s64
    %s66 = sphi 0, %s64
    %s67 = sphi 0, %s66
    %s81 = sphi 0, %s67
    %s87 = sphi 0, %s89
    %s90 = sphi 0, %s87
    %s91 = sphi 0, %s90
    %s107 = sphi 0, %s91
  $region4: #{basic_transform_pallas.5} parent=0 // loop_header_branch
    %12 = sbr.rel (%p10) target = $region8
  $region5: #{basic_transform_pallas.5} parent=0 // loop_body
    %s14 = ssub.s32 %s9, 1
    %s15 = ssub.s32 %s9, 2
    %s16 = sadd.s32 %s9, 1
    %s17 = ssub.s32 %s9, %s16
    %p18 = scmp.eq.s32.totalorder %s17, 0
    %s20 = sadd.s32 %s19, 1
    %s21 = scalar_select %p18, %s19, %s20
    %p24 = pneg %p18
    %p25 = scmp.eq.s32.totalorder %s9, 1
    %p26 = por %p24, %p25
    %p27 = scmp.ne.s32.totalorder %s19, %s22
    %p28 = scmp.eq.s32.totalorder %s9, 0
    %p29 = por %p27, %p28
    %p30 = scmp.ne.s32.totalorder %s19, %s22
    %p31 = scmp.eq.s32.totalorder %s14, 1
    %p32 = por %p30, %p31
    %p33 = scmp.ne.s32.totalorder %s22, %s23
    %p34 = scmp.eq.s32.totalorder %s14, 0
    %p35 = por %p33, %p34
    %p36 = scmp.ne.s32.totalorder %s22, %s23
    %p37 = scmp.eq.s32.totalorder %s15, 1
    %p38 = por %p36, %p37
    %p40 = scmp.ne.s32.totalorder %s23, %s39
    %p41 = scmp.eq.s32.totalorder %s15, 0
    %p42 = por %p40, %p41
    %s44 = sadd.s32 %s43, 1
    %p47 = scmp.eq.s32.totalorder %s9, 1
    %p48 = scmp.ne.s32.totalorder %s43, %s45
    %p49 = scmp.eq.s32.totalorder %s9, 0
    %p50 = por %p48, %p49
    %p51 = scmp.ne.s32.totalorder %s43, %s45
    %p52 = scmp.eq.s32.totalorder %s14, 1
    %p53 = por %p51, %p52
    %p54 = scmp.ne.s32.totalorder %s45, %s46
    %p55 = scmp.eq.s32.totalorder %s14, 0
    %p56 = por %p54, %p55
    %p57 = scmp.ne.s32.totalorder %s45, %s46
    %p58 = scmp.eq.s32.totalorder %s15, 1
    %p59 = por %p57, %p58
    %p61 = scmp.ne.s32.totalorder %s46, %s60
    %p62 = scmp.eq.s32.totalorder %s15, 0
    %p63 = por %p61, %p62
    %s65 = sadd.s32 %s64, 1
    %p68 = scmp.eq.s32.totalorder %s9, 1
    %p69 = scmp.ne.s32.totalorder %s64, %s66
    %p70 = scmp.eq.s32.totalorder %s9, 0
    %p71 = por %p69, %p70
    %p72 = scmp.ne.s32.totalorder %s64, %s66
    %p73 = scmp.eq.s32.totalorder %s14, 1
    %p74 = por %p72, %p73
    %p75 = scmp.ne.s32.totalorder %s66, %s67
    %p76 = scmp.eq.s32.totalorder %s14, 0
    %p77 = por %p75, %p76
    %p78 = scmp.ne.s32.totalorder %s66, %s67
    %p79 = scmp.eq.s32.totalorder %s15, 1
    %p80 = por %p78, %p79
    %p82 = scmp.ne.s32.totalorder %s67, %s81
    %p83 = scmp.eq.s32.totalorder %s15, 0
    %p84 = por %p82, %p83
    %s85 = ssub.s32 %s9, %s16
    %p86 = scmp.eq.s32.totalorder %s85, 0
    %s88 = sadd.s32 %s87, 1
    %s89 = scalar_select %p86, %s87, %s88
    %p92 = pneg %p86
    %p93 = scmp.eq.s32.totalorder %s9, 1
    %p94 = por %p92, %p93
    %p95 = scmp.ne.s32.totalorder %s87, %s90
    %p96 = scmp.eq.s32.totalorder %s9, 0
    %p97 = por %p95, %p96
    %p98 = scmp.ne.s32.totalorder %s87, %s90
    %p99 = scmp.eq.s32.totalorder %s14, 1
    %p100 = por %p98, %p99
    %p101 = scmp.ne.s32.totalorder %s90, %s91
    %p102 = scmp.eq.s32.totalorder %s14, 0
    %p103 = por %p101, %p102
    %p104 = scmp.ne.s32.totalorder %s90, %s91
    %p105 = scmp.eq.s32.totalorder %s15, 1
    %p106 = por %p104, %p105
    %p108 = scmp.ne.s32.totalorder %s91, %s107
    %p109 = scmp.eq.s32.totalorder %s15, 0
    %p110 = por %p108, %p109
    %p111 = scmp.le.s32.totalorder 1, %s9
    %p112 = scmp.lt.s32.totalorder %s9, 3
    %p113 = pnand %p111, %p112
    %p114 = pneg %p113
    // Predicated region
    $region9: #{basic_transform_pallas.5} parent=5 // pred_check
      _
    $region10: #{basic_transform_pallas.5} parent=5 // pred_check_branch
      %116 = sbr.rel (%p113) target = $region12
    $region11: #{basic_transform_pallas.5} parent=5 // pred_region
      %s117 = ssub.s32 %s9, 1
      // Predicated region
      $region13: #{basic_transform_pallas.5} parent=11 // pred_check
        %p118 = pneg %p56
      $region14: #{basic_transform_pallas.5} parent=11 // pred_check_branch
        %120 = sbr.rel (%p118) target = $region16
      $region15: #{basic_transform_pallas.5} parent=11 // pred_region
        _
      $region16: #{basic_transform_pallas.5} parent=11 // pred_fallthru
        _
      // Predicated region
      $region17: #{basic_transform_pallas.5} parent=11 // pred_check
        %p121 = pneg %p77
      $region18: #{basic_transform_pallas.5} parent=11 // pred_check_branch
        %123 = sbr.rel (%p121) target = $region20
      $region19: #{basic_transform_pallas.5} parent=11 // pred_region
        _
      $region20: #{basic_transform_pallas.5} parent=11 // pred_fallthru
        _
    $region12: #{basic_transform_pallas.5} parent=5 // pred_fallthru
      _
    %p124 = scmp.lt.s32.totalorder %s9, 2
    // Predicated region
    $region21: #{basic_transform_pallas.5} parent=5 // pred_check
      %p125 = pneg %p124
    $region22: #{basic_transform_pallas.5} parent=5 // pred_check_branch
      %127 = sbr.rel (%p125) target = $region24
    $region23: #{basic_transform_pallas.5} parent=5 // pred_region
      // Predicated region
      $region25: #{basic_transform_pallas.5} parent=23 // pred_check
        %p128 = pneg %p29
      $region26: #{basic_transform_pallas.5} parent=23 // pred_check_branch
        %130 = sbr.rel (%p128) target = $region28
      $region27: #{basic_transform_pallas.5} parent=23 // pred_region
        %p131 = scmp.lt.s32.totalorder %s9, 1
        %s132 = scalar_select %p131, %s9, 1
        %s133 = smul.addr %s132, 32
        %s134 = smul.addr %s133, 8
        %s135 = scalar_lea.vmem %s0, %s134
      $region28: #{basic_transform_pallas.5} parent=23 // pred_fallthru
        _
    $region24: #{basic_transform_pallas.5} parent=5 // pred_fallthru
      _
    %p136 = scmp.le.s32.totalorder 1, %s9
    %p137 = scmp.lt.s32.totalorder %s9, 3
    %p138 = pnand %p136, %p137
    %p139 = pneg %p138
    // Predicated region
    $region29: #{basic_transform_pallas.5} parent=5 // pred_check
      _
    $region30: #{basic_transform_pallas.5} parent=5 // pred_check_branch
      %141 = sbr.rel (%p138) target = $region32
    $region31: #{basic_transform_pallas.5} parent=5 // pred_region
      %s142 = ssub.s32 %s9, 1
      %p143 = scmp.lt.s32.totalorder %s14, 1
      %s144 = scalar_select %p143, %s14, 1
      %s145 = smul.addr %s144, 32
      %s146 = smul.addr %s145, 8
      %s147 = scalar_lea.vmem %s0, %s146
      %p148 = pneg %p35
      %p149 = pneg %p32
      %p150 = pneg %p56
      %p151 = pneg %p53
      %p152 = pneg %p77
      %p153 = pneg %p74
      %p154 = pneg %p103
      %p155 = pneg %p100
      %p156 = scmp.lt.s32.totalorder %s14, 1
      %s157 = scalar_select %p156, %s14, 1
      %s158 = smul.addr %s157, 32
      %s159 = smul.addr %s158, 8
      %s160 = scalar_lea.vmem %s3, %s159
      %p161 = scmp.lt.s32.totalorder %s14, 1
      %s162 = scalar_select %p161, %s14, 1
      %s163 = smul.addr %s162, 32
      %s164 = smul.addr %s163, 8
      %s165 = scalar_lea.vmem %s0, %s164
      %p166 = scmp.lt.s32.totalorder %s14, 1
      %s167 = scalar_select %p166, %s14, 1
      %s168 = smul.addr %s167, 32
      %s169 = smul.addr %s168, 8
      %s170 = scalar_lea.vmem %s3, %s169
      %v171 = vld [vmem:[%s165] sm:$0xff]
      %v172 = vld [vmem:[%s165 + $0x8] sm:$0xff]
      %v173 = vld [vmem:[%s165 + $0x10] sm:$0xff]
      %v174 = vld [vmem:[%s165 + $0x18] sm:$0xff]
      %v175 = vld [vmem:[%s165 + $0x20] sm:$0xff]
      %v176 = vld [vmem:[%s165 + $0x28] sm:$0xff]
      %v177 = vld [vmem:[%s165 + $0x30] sm:$0xff]
      %v178 = vld [vmem:[%s165 + $0x38] sm:$0xff]
      %v179 = vld [vmem:[%s165 + $0x40] sm:$0xff]
      %v180 = vld [vmem:[%s165 + $0x48] sm:$0xff]
      %v181 = vld [vmem:[%s165 + $0x50] sm:$0xff]
      %v182 = vld [vmem:[%s165 + $0x58] sm:$0xff]
      %v183 = vld [vmem:[%s165 + $0x60] sm:$0xff]
      %v184 = vld [vmem:[%s165 + $0x68] sm:$0xff]
      %v185 = vld [vmem:[%s165 + $0x70] sm:$0xff]
      %v186 = vld [vmem:[%s165 + $0x78] sm:$0xff]
      %v187 = vld [vmem:[%s165 + $0x80] sm:$0xff]
      %v188 = vld [vmem:[%s165 + $0x88] sm:$0xff]
      %v189 = vld [vmem:[%s165 + $0x90] sm:$0xff]
      %v190 = vld [vmem:[%s165 + $0x98] sm:$0xff]
      %v191 = vld [vmem:[%s165 + $0xa0] sm:$0xff]
      %v192 = vld [vmem:[%s165 + $0xa8] sm:$0xff]
      %v193 = vld [vmem:[%s165 + $0xb0] sm:$0xff]
      %v194 = vld [vmem:[%s165 + $0xb8] sm:$0xff]
      %v195 = vld [vmem:[%s165 + $0xc0] sm:$0xff]
      %v196 = vld [vmem:[%s165 + $0xc8] sm:$0xff]
      %v197 = vld [vmem:[%s165 + $0xd0] sm:$0xff]
      %v198 = vld [vmem:[%s165 + $0xd8] sm:$0xff]
      %v199 = vld [vmem:[%s165 + $0xe0] sm:$0xff]
      %v200 = vld [vmem:[%s165 + $0xe8] sm:$0xff]
      %v201 = vld [vmem:[%s165 + $0xf0] sm:$0xff]
      %v202 = vld [vmem:[%s165 + $0xf8] sm:$0xff]
      %v203 = vld [vmem:[%s1] sm:$0x1]
      %v205 = vlaneseq
      %v206 = vshrl.u32 %v205, 7
      %v207 = vsub.s32 0, %v206
      %v208 = vrot.slane %v203, %v207
      %v210 = vmul.f32 %v171, %v208
      %v211 = vmul.f32 %v172, %v208
      %v212 = vmul.f32 %v173, %v208
      %v213 = vmul.f32 %v174, %v208
      %v214 = vmul.f32 %v175, %v208
      %v215 = vmul.f32 %v176, %v208
      %v216 = vmul.f32 %v177, %v208
      %v217 = vmul.f32 %v178, %v208
      %v218 = vmul.f32 %v179, %v208
      %v219 = vmul.f32 %v180, %v208
      %v220 = vmul.f32 %v181, %v208
      %v221 = vmul.f32 %v182, %v208
      %v222 = vmul.f32 %v183, %v208
      %v223 = vmul.f32 %v184, %v208
      %v224 = vmul.f32 %v185, %v208
      %v225 = vmul.f32 %v186, %v208
      %v226 = vmul.f32 %v187, %v208
      %v227 = vmul.f32 %v188, %v208
      %v228 = vmul.f32 %v189, %v208
      %v229 = vmul.f32 %v190, %v208
      %v230 = vmul.f32 %v191, %v208
      %v231 = vmul.f32 %v192, %v208
      %v232 = vmul.f32 %v193, %v208
      %v233 = vmul.f32 %v194, %v208
      %v234 = vmul.f32 %v195, %v208
      %v235 = vmul.f32 %v196, %v208
      %v236 = vmul.f32 %v197, %v208
      %v237 = vmul.f32 %v198, %v208
      %v238 = vmul.f32 %v199, %v208
      %v239 = vmul.f32 %v200, %v208
      %v240 = vmul.f32 %v201, %v208
      %v241 = vmul.f32 %v202, %v208
      %v242 = vld [vmem:[%s2] sm:$0x1]
      %v244 = vlaneseq
      %v245 = vshrl.u32 %v244, 7
      %v246 = vsub.s32 0, %v245
      %v247 = vrot.slane %v242, %v246
      %v249 = vadd.f32 %v210, %v247
      %v250 = vadd.f32 %v211, %v247
      %v251 = vadd.f32 %v212, %v247
      %v252 = vadd.f32 %v213, %v247
      %v253 = vadd.f32 %v214, %v247
      %v254 = vadd.f32 %v215, %v247
      %v255 = vadd.f32 %v216, %v247
      %v256 = vadd.f32 %v217, %v247
      %v257 = vadd.f32 %v218, %v247
      %v258 = vadd.f32 %v219, %v247
      %v259 = vadd.f32 %v220, %v247
      %v260 = vadd.f32 %v221, %v247
      %v261 = vadd.f32 %v222, %v247
      %v262 = vadd.f32 %v223, %v247
      %v263 = vadd.f32 %v224, %v247
      %v264 = vadd.f32 %v225, %v247
      %v265 = vadd.f32 %v226, %v247
      %v266 = vadd.f32 %v227, %v247
      %v267 = vadd.f32 %v228, %v247
      %v268 = vadd.f32 %v229, %v247
      %v269 = vadd.f32 %v230, %v247
      %v270 = vadd.f32 %v231, %v247
      %v271 = vadd.f32 %v232, %v247
      %v272 = vadd.f32 %v233, %v247
      %v273 = vadd.f32 %v234, %v247
      %v274 = vadd.f32 %v235, %v247
      %v275 = vadd.f32 %v236, %v247
      %v276 = vadd.f32 %v237, %v247
      %v277 = vadd.f32 %v238, %v247
      %v278 = vadd.f32 %v239, %v247
      %v279 = vadd.f32 %v240, %v247
      %v280 = vadd.f32 %v241, %v247
      %281 = vst [vmem:[%s170] sm:$0xff] %v249
      %282 = vst [vmem:[%s170 + $0x8] sm:$0xff] %v250
      %283 = vst [vmem:[%s170 + $0x10] sm:$0xff] %v251
      %284 = vst [vmem:[%s170 + $0x18] sm:$0xff] %v252
      %285 = vst [vmem:[%s170 + $0x20] sm:$0xff] %v253
      %286 = vst [vmem:[%s170 + $0x28] sm:$0xff] %v254
      %287 = vst [vmem:[%s170 + $0x30] sm:$0xff] %v255
      %288 = vst [vmem:[%s170 + $0x38] sm:$0xff] %v256
      %289 = vst [vmem:[%s170 + $0x40] sm:$0xff] %v257
      %290 = vst [vmem:[%s170 + $0x48] sm:$0xff] %v258
      %291 = vst [vmem:[%s170 + $0x50] sm:$0xff] %v259
      %292 = vst [vmem:[%s170 + $0x58] sm:$0xff] %v260
      %293 = vst [vmem:[%s170 + $0x60] sm:$0xff] %v261
      %294 = vst [vmem:[%s170 + $0x68] sm:$0xff] %v262
      %295 = vst [vmem:[%s170 + $0x70] sm:$0xff] %v263
      %296 = vst [vmem:[%s170 + $0x78] sm:$0xff] %v264
      %297 = vst [vmem:[%s170 + $0x80] sm:$0xff] %v265
      %298 = vst [vmem:[%s170 + $0x88] sm:$0xff] %v266
      %299 = vst [vmem:[%s170 + $0x90] sm:$0xff] %v267
      %300 = vst [vmem:[%s170 + $0x98] sm:$0xff] %v268
      %301 = vst [vmem:[%s170 + $0xa0] sm:$0xff] %v269
      %302 = vst [vmem:[%s170 + $0xa8] sm:$0xff] %v270
      %303 = vst [vmem:[%s170 + $0xb0] sm:$0xff] %v271
      %304 = vst [vmem:[%s170 + $0xb8] sm:$0xff] %v272
      %305 = vst [vmem:[%s170 + $0xc0] sm:$0xff] %v273
      %306 = vst [vmem:[%s170 + $0xc8] sm:$0xff] %v274
      %307 = vst [vmem:[%s170 + $0xd0] sm:$0xff] %v275
      %308 = vst [vmem:[%s170 + $0xd8] sm:$0xff] %v276
      %309 = vst [vmem:[%s170 + $0xe0] sm:$0xff] %v277
      %310 = vst [vmem:[%s170 + $0xe8] sm:$0xff] %v278
      %311 = vst [vmem:[%s170 + $0xf0] sm:$0xff] %v279
      %312 = vst [vmem:[%s170 + $0xf8] sm:$0xff] %v280
      %p313 = scmp.lt.s32.totalorder %s14, 1
      %s314 = scalar_select %p313, %s14, 1
      %s315 = smul.addr %s314, 32
      %s316 = smul.addr %s315, 8
      %s317 = scalar_lea.vmem %s3, %s316
      // Predicated region
      $region33: #{basic_transform_pallas.5} parent=31 // pred_check
        %p318 = pneg %p100
      $region34: #{basic_transform_pallas.5} parent=31 // pred_check_branch
        %320 = sbr.rel (%p318) target = $region36
      $region35: #{basic_transform_pallas.5} parent=31 // pred_region
        _
      $region36: #{basic_transform_pallas.5} parent=31 // pred_fallthru
        _
    $region32: #{basic_transform_pallas.5} parent=5 // pred_fallthru
      _
    %p321 = scmp.le.s32.totalorder 2, %s9
    // Predicated region
    $region37: #{basic_transform_pallas.5} parent=5 // pred_check
      %p322 = pneg %p321
    $region38: #{basic_transform_pallas.5} parent=5 // pred_check_branch
      %324 = sbr.rel (%p322) target = $region40
    $region39: #{basic_transform_pallas.5} parent=5 // pred_region
      %s325 = ssub.s32 %s9, 2
      // Predicated region
      $region41: #{basic_transform_pallas.5} parent=39 // pred_check
        %p326 = pneg %p106
      $region42: #{basic_transform_pallas.5} parent=39 // pred_check_branch
        %328 = sbr.rel (%p326) target = $region44
      $region43: #{basic_transform_pallas.5} parent=39 // pred_region
        %p329 = scmp.lt.s32.totalorder %s15, 1
        %s330 = scalar_select %p329, %s15, 1
        %s331 = smul.addr %s330, 32
        %s332 = smul.addr %s331, 8
        %s333 = scalar_lea.vmem %s3, %s332
      $region44: #{basic_transform_pallas.5} parent=39 // pred_fallthru
        _
    $region40: #{basic_transform_pallas.5} parent=5 // pred_fallthru
      _
  $region6: #{basic_transform_pallas.5} parent=0 // loop_footer
    %s13 = sadd.s32 1, %s9
  $region7: #{basic_transform_pallas.5} parent=0 // loop_footer_branch
    %8 = sbr.rel target = $region3
  $region8: #{basic_transform_pallas.5} parent=0 // loop_exit
    _

// kernel: basic_transform_pallas.4
$region0: #{basic_transform_pallas.4}
  #allocation0 [shape = 'u32[]', space=smem, size = 0x4, offset = 0x4, fixed_abs, tag = 'smem constant byte address 0x4 - core index']
  #allocation1 [shape = 'u32[144,128]{1,0:T(1,128)}', space=vmem, size = 0x12000, scoped, tag = 'internal scratch']
  #allocation2 [shape = 'bf16[4,10,10,128]{3,2,1,0:T(8,128)(2,1)}', space=vmem, size = 0x28000, scoped, tag = 'scratch operand']
  %s0 = inlined_call_operand.vmem [shape: f32[2,256,128], index: 0, kind: input, shape index: {}]
  %s1 = inlined_call_operand.vmem [shape: f32[1,128], index: 1, kind: input, shape index: {}]
  %s2 = inlined_call_operand.vmem [shape: f32[1,128], index: 2, kind: input, shape index: {}]
  %s3 = inlined_call_operand.vmem [shape: bf16[1152,128], index: 3, kind: input, shape index: {}]
  %s4 = inlined_call_operand.vmem [shape: f32[2,256,128], index: 4, kind: output, shape index: {0}]
  %s5 = inlined_call_operand.vmem [shape: f32[2,2,128], index: 5, kind: output, shape index: {1}]
  %6 = xla_tuple %s4, %s5
  %s7 = sld [smem:[#allocation0]]
  $region57: #{basic_transform_pallas.4} parent=0
    _
  %s9 = ssub.s32 1, %s7
  %s10 = scalar_select 0, %s9, %s7
  loop: start=0, step=1, limit=4
  $region2: #{basic_transform_pallas.4} parent=0 // loop_pre_header
    _
  $region3: #{basic_transform_pallas.4} parent=0 // loop_header
    %s12 = sphi 0, %s16
    %p13 = scmp.ge.s32.totalorder %s12, 4
    %s22 = sphi 0, %s24
    %s25 = sphi 0, %s22
    %s26 = sphi 0, %s25
    %s42 = sphi 0, %s26
    %s46 = sphi 0, %s46
    %s48 = sphi 0, %s46
    %s49 = sphi 0, %s48
    %s63 = sphi 0, %s49
    %s67 = sphi 0, %s67
    %s69 = sphi 0, %s67
    %s70 = sphi 0, %s69
    %s84 = sphi 0, %s70
    %s88 = sphi 0, %s88
    %s90 = sphi 0, %s88
    %s91 = sphi 0, %s90
    %s105 = sphi 0, %s91
    %s111 = sphi 0, %s113
    %s114 = sphi 0, %s111
    %s115 = sphi 0, %s114
    %s131 = sphi 0, %s115
    %s137 = sphi 0, %s139
    %s140 = sphi 0, %s137
    %s141 = sphi 0, %s140
    %s157 = sphi 0, %s141
  $region4: #{basic_transform_pallas.4} parent=0 // loop_header_branch
    %15 = sbr.rel (%p13) target = $region8
  $region5: #{basic_transform_pallas.4} parent=0 // loop_body
    %s17 = ssub.s32 %s12, 1
    %s18 = ssub.s32 %s12, 2
    %s19 = sadd.s32 %s12, 1
    %s20 = ssub.s32 %s12, %s19
    %p21 = scmp.eq.s32.totalorder %s20, 0
    %s23 = sadd.s32 %s22, 1
    %s24 = scalar_select %p21, %s22, %s23
    %p27 = pneg %p21
    %p28 = scmp.eq.s32.totalorder %s12, 1
    %p29 = por %p27, %p28
    %p30 = scmp.ne.s32.totalorder %s22, %s25
    %p31 = scmp.eq.s32.totalorder %s12, 0
    %p32 = por %p30, %p31
    %p33 = scmp.ne.s32.totalorder %s22, %s25
    %p34 = scmp.eq.s32.totalorder %s17, 1
    %p35 = por %p33, %p34
    %p36 = scmp.ne.s32.totalorder %s25, %s26
    %p37 = scmp.eq.s32.totalorder %s17, 0
    %p38 = por %p36, %p37
    %p39 = scmp.ne.s32.totalorder %s25, %s26
    %p40 = scmp.eq.s32.totalorder %s18, 1
    %p41 = por %p39, %p40
    %p43 = scmp.ne.s32.totalorder %s26, %s42
    %p44 = scmp.eq.s32.totalorder %s18, 0
    %p45 = por %p43, %p44
    %s47 = sadd.s32 %s46, 1
    %p50 = scmp.eq.s32.totalorder %s12, 1
    %p51 = scmp.ne.s32.totalorder %s46, %s48
    %p52 = scmp.eq.s32.totalorder %s12, 0
    %p53 = por %p51, %p52
    %p54 = scmp.ne.s32.totalorder %s46, %s48
    %p55 = scmp.eq.s32.totalorder %s17, 1
    %p56 = por %p54, %p55
    %p57 = scmp.ne.s32.totalorder %s48, %s49
    %p58 = scmp.eq.s32.totalorder %s17, 0
    %p59 = por %p57, %p58
    %p60 = scmp.ne.s32.totalorder %s48, %s49
    %p61 = scmp.eq.s32.totalorder %s18, 1
    %p62 = por %p60, %p61
    %p64 = scmp.ne.s32.totalorder %s49, %s63
    %p65 = scmp.eq.s32.totalorder %s18, 0
    %p66 = por %p64, %p65
    %s68 = sadd.s32 %s67, 1
    %p71 = scmp.eq.s32.totalorder %s12, 1
    %p72 = scmp.ne.s32.totalorder %s67, %s69
    %p73 = scmp.eq.s32.totalorder %s12, 0
    %p74 = por %p72, %p73
    %p75 = scmp.ne.s32.totalorder %s67, %s69
    %p76 = scmp.eq.s32.totalorder %s17, 1
    %p77 = por %p75, %p76
    %p78 = scmp.ne.s32.totalorder %s69, %s70
    %p79 = scmp.eq.s32.totalorder %s17, 0
    %p80 = por %p78, %p79
    %p81 = scmp.ne.s32.totalorder %s69, %s70
    %p82 = scmp.eq.s32.totalorder %s18, 1
    %p83 = por %p81, %p82
    %p85 = scmp.ne.s32.totalorder %s70, %s84
    %p86 = scmp.eq.s32.totalorder %s18, 0
    %p87 = por %p85, %p86
    %s89 = sadd.s32 %s88, 1
    %p92 = scmp.eq.s32.totalorder %s12, 1
    %p93 = scmp.ne.s32.totalorder %s88, %s90
    %p94 = scmp.eq.s32.totalorder %s12, 0
    %p95 = por %p93, %p94
    %p96 = scmp.ne.s32.totalorder %s88, %s90
    %p97 = scmp.eq.s32.totalorder %s17, 1
    %p98 = por %p96, %p97
    %p99 = scmp.ne.s32.totalorder %s90, %s91
    %p100 = scmp.eq.s32.totalorder %s17, 0
    %p101 = por %p99, %p100
    %p102 = scmp.ne.s32.totalorder %s90, %s91
    %p103 = scmp.eq.s32.totalorder %s18, 1
    %p104 = por %p102, %p103
    %p106 = scmp.ne.s32.totalorder %s91, %s105
    %p107 = scmp.eq.s32.totalorder %s18, 0
    %p108 = por %p106, %p107
    %s109 = ssub.s32 %s12, %s19
    %p110 = scmp.eq.s32.totalorder %s109, 0
    %s112 = sadd.s32 %s111, 1
    %s113 = scalar_select %p110, %s111, %s112
    %p116 = pneg %p110
    %p117 = scmp.eq.s32.totalorder %s12, 1
    %p118 = por %p116, %p117
    %p119 = scmp.ne.s32.totalorder %s111, %s114
    %p120 = scmp.eq.s32.totalorder %s12, 0
    %p121 = por %p119, %p120
    %p122 = scmp.ne.s32.totalorder %s111, %s114
    %p123 = scmp.eq.s32.totalorder %s17, 1
    %p124 = por %p122, %p123
    %p125 = scmp.ne.s32.totalorder %s114, %s115
    %p126 = scmp.eq.s32.totalorder %s17, 0
    %p127 = por %p125, %p126
    %p128 = scmp.ne.s32.totalorder %s114, %s115
    %p129 = scmp.eq.s32.totalorder %s18, 1
    %p130 = por %p128, %p129
    %p132 = scmp.ne.s32.totalorder %s115, %s131
    %p133 = scmp.eq.s32.totalorder %s18, 0
    %p134 = por %p132, %p133
    %s135 = ssub.s32 %s12, %s19
    %p136 = scmp.eq.s32.totalorder %s135, 0
    %s138 = sadd.s32 %s137, 1
    %s139 = scalar_select %p136, %s137, %s138
    %p142 = pneg %p136
    %p143 = scmp.eq.s32.totalorder %s12, 1
    %p144 = por %p142, %p143
    %p145 = scmp.ne.s32.totalorder %s137, %s140
    %p146 = scmp.eq.s32.totalorder %s12, 0
    %p147 = por %p145, %p146
    %p148 = scmp.ne.s32.totalorder %s137, %s140
    %p149 = scmp.eq.s32.totalorder %s17, 1
    %p150 = por %p148, %p149
    %p151 = scmp.ne.s32.totalorder %s140, %s141
    %p152 = scmp.eq.s32.totalorder %s17, 0
    %p153 = por %p151, %p152
    %p154 = scmp.ne.s32.totalorder %s140, %s141
    %p155 = scmp.eq.s32.totalorder %s18, 1
    %p156 = por %p154, %p155
    %p158 = scmp.ne.s32.totalorder %s141, %s157
    %p159 = scmp.eq.s32.totalorder %s18, 0
    %p160 = por %p158, %p159
    %p161 = scmp.le.s32.totalorder 1, %s12
    %p162 = scmp.lt.s32.totalorder %s12, 3
    %p163 = pnand %p161, %p162
    %p164 = pneg %p163
    // Predicated region
    $region9: #{basic_transform_pallas.4} parent=5 // pred_check
      _
    $region10: #{basic_transform_pallas.4} parent=5 // pred_check_branch
      %166 = sbr.rel (%p163) target = $region12
    $region11: #{basic_transform_pallas.4} parent=5 // pred_region
      %s167 = ssub.s32 %s12, 1
      // Predicated region
      $region13: #{basic_transform_pallas.4} parent=11 // pred_check
        %p168 = pneg %p59
      $region14: #{basic_transform_pallas.4} parent=11 // pred_check_branch
        %170 = sbr.rel (%p168) target = $region16
      $region15: #{basic_transform_pallas.4} parent=11 // pred_region
        _
      $region16: #{basic_transform_pallas.4} parent=11 // pred_fallthru
        _
      // Predicated region
      $region17: #{basic_transform_pallas.4} parent=11 // pred_check
        %p171 = pneg %p80
      $region18: #{basic_transform_pallas.4} parent=11 // pred_check_branch
        %173 = sbr.rel (%p171) target = $region20
      $region19: #{basic_transform_pallas.4} parent=11 // pred_region
        _
      $region20: #{basic_transform_pallas.4} parent=11 // pred_fallthru
        _
      // Predicated region
      $region21: #{basic_transform_pallas.4} parent=11 // pred_check
        %p174 = pneg %p101
      $region22: #{basic_transform_pallas.4} parent=11 // pred_check_branch
        %176 = sbr.rel (%p174) target = $region24
      $region23: #{basic_transform_pallas.4} parent=11 // pred_region
        _
      $region24: #{basic_transform_pallas.4} parent=11 // pred_fallthru
        _
    $region12: #{basic_transform_pallas.4} parent=5 // pred_fallthru
      _
    %p177 = scmp.lt.s32.totalorder %s12, 2
    // Predicated region
    $region25: #{basic_transform_pallas.4} parent=5 // pred_check
      %p178 = pneg %p177
    $region26: #{basic_transform_pallas.4} parent=5 // pred_check_branch
      %180 = sbr.rel (%p178) target = $region28
    $region27: #{basic_transform_pallas.4} parent=5 // pred_region
      // Predicated region
      $region29: #{basic_transform_pallas.4} parent=27 // pred_check
        %p181 = pneg %p32
      $region30: #{basic_transform_pallas.4} parent=27 // pred_check_branch
        %183 = sbr.rel (%p181) target = $region32
      $region31: #{basic_transform_pallas.4} parent=27 // pred_region
        %p184 = scmp.lt.s32.totalorder %s12, 1
        %s185 = scalar_select %p184, %s12, 1
        %s186 = smul.addr %s185, 32
        %s187 = smul.addr %s186, 8
        %s188 = scalar_lea.vmem %s0, %s187
      $region32: #{basic_transform_pallas.4} parent=27 // pred_fallthru
        _
    $region28: #{basic_transform_pallas.4} parent=5 // pred_fallthru
      _
    %p189 = scmp.le.s32.totalorder 1, %s12
    %p190 = scmp.lt.s32.totalorder %s12, 3
    %p191 = pnand %p189, %p190
    %p192 = pneg %p191
    // Predicated region
    $region33: #{basic_transform_pallas.4} parent=5 // pred_check
      _
    $region34: #{basic_transform_pallas.4} parent=5 // pred_check_branch
      %194 = sbr.rel (%p191) target = $region36
    $region35: #{basic_transform_pallas.4} parent=5 // pred_region
      %s195 = ssub.s32 %s12, 1
      %p196 = scmp.lt.s32.totalorder %s17, 1
      %s197 = scalar_select %p196, %s17, 1
      %s198 = smul.addr %s197, 32
      %s199 = smul.addr %s198, 8
      %s200 = scalar_lea.vmem %s0, %s199
      %p201 = pneg %p38
      %p202 = pneg %p35
      %p203 = pneg %p59
      %p204 = pneg %p56
      %p205 = pneg %p80
      %p206 = pneg %p77
      %p207 = pneg %p101
      %p208 = pneg %p98
      %p209 = pneg %p127
      %p210 = pneg %p124
      %p211 = scmp.lt.s32.totalorder %s17, 1
      %s212 = scalar_select %p211, %s17, 1
      %s213 = smul.addr %s212, 32
      %s214 = smul.addr %s213, 8
      %s215 = scalar_lea.vmem %s4, %s214
      %p216 = pneg %p153
      %p217 = pneg %p150
      %p218 = scmp.lt.s32.totalorder %s17, 1
      %s219 = scalar_select %p218, %s17, 1
      %s220 = smul.addr %s219, 2
      %s221 = scalar_lea.vmem %s5, %s220
      %p222 = scmp.lt.s32.totalorder %s17, 1
      %s223 = scalar_select %p222, %s17, 1
      %s224 = smul.addr %s223, 32
      %s225 = smul.addr %s224, 8
      %s226 = scalar_lea.vmem %s0, %s225
      %p227 = scmp.lt.s32.totalorder %s17, 1
      %s228 = scalar_select %p227, %s17, 1
      %s229 = smul.addr %s228, 32
      %s230 = smul.addr %s229, 8
      %s231 = scalar_lea.vmem %s4, %s230
      %p232 = scmp.lt.s32.totalorder %s17, 1
      %s233 = scalar_select %p232, %s17, 1
      %s234 = smul.addr %s233, 2
      %s235 = scalar_lea.vmem %s5, %s234
      %v237 = vld [vmem:[%s226] sm:$0xff]
      %v238 = vld [vmem:[%s226 + $0x8] sm:$0xff]
      %v239 = vld [vmem:[%s226 + $0x10] sm:$0xff]
      %v240 = vld [vmem:[%s226 + $0x18] sm:$0xff]
      %v241 = vld [vmem:[%s226 + $0x20] sm:$0xff]
      %v242 = vld [vmem:[%s226 + $0x28] sm:$0xff]
      %v243 = vld [vmem:[%s226 + $0x30] sm:$0xff]
      %v244 = vld [vmem:[%s226 + $0x38] sm:$0xff]
      %v245 = vld [vmem:[%s226 + $0x40] sm:$0xff]
      %v246 = vld [vmem:[%s226 + $0x48] sm:$0xff]
      %v247 = vld [vmem:[%s226 + $0x50] sm:$0xff]
      %v248 = vld [vmem:[%s226 + $0x58] sm:$0xff]
      %v249 = vld [vmem:[%s226 + $0x60] sm:$0xff]
      %v250 = vld [vmem:[%s226 + $0x68] sm:$0xff]
      %v251 = vld [vmem:[%s226 + $0x70] sm:$0xff]
      %v252 = vld [vmem:[%s226 + $0x78] sm:$0xff]
      %v253 = vld [vmem:[%s226 + $0x80] sm:$0xff]
      %v254 = vld [vmem:[%s226 + $0x88] sm:$0xff]
      %v255 = vld [vmem:[%s226 + $0x90] sm:$0xff]
      %v256 = vld [vmem:[%s226 + $0x98] sm:$0xff]
      %v257 = vld [vmem:[%s226 + $0xa0] sm:$0xff]
      %v258 = vld [vmem:[%s226 + $0xa8] sm:$0xff]
      %v259 = vld [vmem:[%s226 + $0xb0] sm:$0xff]
      %v260 = vld [vmem:[%s226 + $0xb8] sm:$0xff]
      %v261 = vld [vmem:[%s226 + $0xc0] sm:$0xff]
      %v262 = vld [vmem:[%s226 + $0xc8] sm:$0xff]
      %v263 = vld [vmem:[%s226 + $0xd0] sm:$0xff]
      %v264 = vld [vmem:[%s226 + $0xd8] sm:$0xff]
      %v265 = vld [vmem:[%s226 + $0xe0] sm:$0xff]
      %v266 = vld [vmem:[%s226 + $0xe8] sm:$0xff]
      %v267 = vld [vmem:[%s226 + $0xf0] sm:$0xff]
      %v268 = vld [vmem:[%s226 + $0xf8] sm:$0xff]
      %v269 = vld [vmem:[%s1] sm:$0x1]
      %v271 = vlaneseq
      %v272 = vshrl.u32 %v271, 7
      %v273 = vsub.s32 0, %v272
      %v274 = vrot.slane %v269, %v273
      %v276 = vmul.f32 %v237, %v274
      %v277 = vmul.f32 %v238, %v274
      %v278 = vmul.f32 %v239, %v274
      %v279 = vmul.f32 %v240, %v274
      %v280 = vmul.f32 %v241, %v274
      %v281 = vmul.f32 %v242, %v274
      %v282 = vmul.f32 %v243, %v274
      %v283 = vmul.f32 %v244, %v274
      %v284 = vmul.f32 %v245, %v274
      %v285 = vmul.f32 %v246, %v274
      %v286 = vmul.f32 %v247, %v274
      %v287 = vmul.f32 %v248, %v274
      %v288 = vmul.f32 %v249, %v274
      %v289 = vmul.f32 %v250, %v274
      %v290 = vmul.f32 %v251, %v274
      %v291 = vmul.f32 %v252, %v274
      %v292 = vmul.f32 %v253, %v274
      %v293 = vmul.f32 %v254, %v274
      %v294 = vmul.f32 %v255, %v274
      %v295 = vmul.f32 %v256, %v274
      %v296 = vmul.f32 %v257, %v274
      %v297 = vmul.f32 %v258, %v274
      %v298 = vmul.f32 %v259, %v274
      %v299 = vmul.f32 %v260, %v274
      %v300 = vmul.f32 %v261, %v274
      %v301 = vmul.f32 %v262, %v274
      %v302 = vmul.f32 %v263, %v274
      %v303 = vmul.f32 %v264, %v274
      %v304 = vmul.f32 %v265, %v274
      %v305 = vmul.f32 %v266, %v274
      %v306 = vmul.f32 %v267, %v274
      %v307 = vmul.f32 %v268, %v274
      %v308 = vld [vmem:[%s2] sm:$0x1]
      %v310 = vlaneseq
      %v311 = vshrl.u32 %v310, 7
      %v312 = vsub.s32 0, %v311
      %v313 = vrot.slane %v308, %v312
      %v315 = vadd.f32 %v276, %v313
      %v316 = vadd.f32 %v277, %v313
      %v317 = vadd.f32 %v278, %v313
      %v318 = vadd.f32 %v279, %v313
      %v319 = vadd.f32 %v280, %v313
      %v320 = vadd.f32 %v281, %v313
      %v321 = vadd.f32 %v282, %v313
      %v322 = vadd.f32 %v283, %v313
      %v323 = vadd.f32 %v284, %v313
      %v324 = vadd.f32 %v285, %v313
      %v325 = vadd.f32 %v286, %v313
      %v326 = vadd.f32 %v287, %v313
      %v327 = vadd.f32 %v288, %v313
      %v328 = vadd.f32 %v289, %v313
      %v329 = vadd.f32 %v290, %v313
      %v330 = vadd.f32 %v291, %v313
      %v331 = vadd.f32 %v292, %v313
      %v332 = vadd.f32 %v293, %v313
      %v333 = vadd.f32 %v294, %v313
      %v334 = vadd.f32 %v295, %v313
      %v335 = vadd.f32 %v296, %v313
      %v336 = vadd.f32 %v297, %v313
      %v337 = vadd.f32 %v298, %v313
      %v338 = vadd.f32 %v299, %v313
      %v339 = vadd.f32 %v300, %v313
      %v340 = vadd.f32 %v301, %v313
      %v341 = vadd.f32 %v302, %v313
      %v342 = vadd.f32 %v303, %v313
      %v343 = vadd.f32 %v304, %v313
      %v344 = vadd.f32 %v305, %v313
      %v345 = vadd.f32 %v306, %v313
      %v346 = vadd.f32 %v307, %v313
      %v347 = vmax.f32 %v315, 0.0
      %v348 = vmax.f32 %v316, 0.0
      %v349 = vmax.f32 %v317, 0.0
      %v350 = vmax.f32 %v318, 0.0
      %v351 = vmax.f32 %v319, 0.0
      %v352 = vmax.f32 %v320, 0.0
      %v353 = vmax.f32 %v321, 0.0
      %v354 = vmax.f32 %v322, 0.0
      %v355 = vmax.f32 %v323, 0.0
      %v356 = vmax.f32 %v324, 0.0
      %v357 = vmax.f32 %v325, 0.0
      %v358 = vmax.f32 %v326, 0.0
      %v359 = vmax.f32 %v327, 0.0
      %v360 = vmax.f32 %v328, 0.0
      %v361 = vmax.f32 %v329, 0.0
      %v362 = vmax.f32 %v330, 0.0
      %v363 = vmax.f32 %v331, 0.0
      %v364 = vmax.f32 %v332, 0.0
      %v365 = vmax.f32 %v333, 0.0
      %v366 = vmax.f32 %v334, 0.0
      %v367 = vmax.f32 %v335, 0.0
      %v368 = vmax.f32 %v336, 0.0
      %v369 = vmax.f32 %v337, 0.0
      %v370 = vmax.f32 %v338, 0.0
      %v371 = vmax.f32 %v339, 0.0
      %v372 = vmax.f32 %v340, 0.0
      %v373 = vmax.f32 %v341, 0.0
      %v374 = vmax.f32 %v342, 0.0
      %v375 = vmax.f32 %v343, 0.0
      %v376 = vmax.f32 %v344, 0.0
      %v377 = vmax.f32 %v345, 0.0
      %v378 = vmax.f32 %v346, 0.0
      %v379 = vpack.c.bf16 %v348, %v347
      %v380 = vpack.c.bf16 %v350, %v349
      %v381 = vpack.c.bf16 %v352, %v351
      %v382 = vpack.c.bf16 %v354, %v353
      %v383 = vpack.c.bf16 %v356, %v355
      %v384 = vpack.c.bf16 %v358, %v357
      %v385 = vpack.c.bf16 %v360, %v359
      %v386 = vpack.c.bf16 %v362, %v361
      %v387 = vpack.c.bf16 %v364, %v363
      %v388 = vpack.c.bf16 %v366, %v365
      %v389 = vpack.c.bf16 %v368, %v367
      %v390 = vpack.c.bf16 %v370, %v369
      %v391 = vpack.c.bf16 %v372, %v371
      %v392 = vpack.c.bf16 %v374, %v373
      %v393 = vpack.c.bf16 %v376, %v375
      %v394 = vpack.c.bf16 %v378, %v377
      %v411 = vunpack.c.l.b16 %v379
      %v412 = vunpack.c.h.b16 %v379
      %v413 = vunpack.c.l.b16 %v380
      %v414 = vunpack.c.h.b16 %v380
      %v415 = vunpack.c.l.b16 %v381
      %v416 = vunpack.c.h.b16 %v381
      %v417 = vunpack.c.l.b16 %v382
      %v418 = vunpack.c.h.b16 %v382
      %v419 = vunpack.c.l.b16 %v383
      %v420 = vunpack.c.h.b16 %v383
      %v421 = vunpack.c.l.b16 %v384
      %v422 = vunpack.c.h.b16 %v384
      %v423 = vunpack.c.l.b16 %v385
      %v424 = vunpack.c.h.b16 %v385
      %v425 = vunpack.c.l.b16 %v386
      %v426 = vunpack.c.h.b16 %v386
      %v427 = vunpack.c.l.b16 %v387
      %v428 = vunpack.c.h.b16 %v387
      %v429 = vunpack.c.l.b16 %v388
      %v430 = vunpack.c.h.b16 %v388
      %v431 = vunpack.c.l.b16 %v389
      %v432 = vunpack.c.h.b16 %v389
      %v433 = vunpack.c.l.b16 %v390
      %v434 = vunpack.c.h.b16 %v390
      %v435 = vunpack.c.l.b16 %v391
      %v436 = vunpack.c.h.b16 %v391
      %v437 = vunpack.c.l.b16 %v392
      %v438 = vunpack.c.h.b16 %v392
      %v439 = vunpack.c.l.b16 %v393
      %v440 = vunpack.c.h.b16 %v393
      %v441 = vunpack.c.l.b16 %v394
      %v442 = vunpack.c.h.b16 %v394
      %v444 = vunpack.c.l.b16 0
      %v445 = vpack.c.b16 %v444, %v444
      %v446 = vpack.c.b16 %v411, %v411
      %v447 = vpack.c.b16 %v412, %v412
      %v448 = vpack.c.b16 %v413, %v413
      %v449 = vpack.c.b16 %v414, %v414
      %v450 = vpack.c.b16 %v415, %v415
      %v451 = vpack.c.b16 %v416, %v416
      %v452 = vpack.c.b16 %v417, %v417
      %v453 = vpack.c.b16 %v418, %v418
      %v454 = vpack.c.b16 %v419, %v419
      %v455 = vpack.c.b16 %v420, %v420
      %v456 = vpack.c.b16 %v421, %v421
      %v457 = vpack.c.b16 %v422, %v422
      %v458 = vpack.c.b16 %v423, %v423
      %v459 = vpack.c.b16 %v424, %v424
      %v460 = vpack.c.b16 %v425, %v425
      %v461 = vpack.c.b16 %v426, %v426
      %v462 = vpack.c.b16 %v427, %v427
      %v463 = vpack.c.b16 %v428, %v428
      %v464 = vpack.c.b16 %v429, %v429
      %v465 = vpack.c.b16 %v430, %v430
      %v466 = vpack.c.b16 %v431, %v431
      %v467 = vpack.c.b16 %v432, %v432
      %v468 = vpack.c.b16 %v433, %v433
      %v469 = vpack.c.b16 %v434, %v434
      %v470 = vpack.c.b16 %v435, %v435
      %v471 = vpack.c.b16 %v436, %v436
      %v472 = vpack.c.b16 %v437, %v437
      %v473 = vpack.c.b16 %v438, %v438
      %v474 = vpack.c.b16 %v439, %v439
      %v475 = vpack.c.b16 %v440, %v440
      %v476 = vpack.c.b16 %v441, %v441
      %v477 = vpack.c.b16 %v442, %v442
      %v479 = vshrl.u32 %v445, 16
      %v481 = vrot.slane %v479, 7
      %v482 = vshll.u32 %v445, 16
      %v484 = vor.u32 %v481, %v482
      %v485 = vrot.slane %v481, 4
      %v487 = vshrl.u32 %v446, 16
      %v489 = vrot.slane %v487, 7
      %v490 = vshll.u32 %v446, 16
      %v492 = vor.u32 %v489, %v490
      %v493 = vrot.slane %v489, 4
      %v495 = vshrl.u32 %v447, 16
      %v497 = vrot.slane %v495, 7
      %v498 = vshll.u32 %v447, 16
      %v500 = vor.u32 %v497, %v498
      %v501 = vrot.slane %v497, 4
      %v503 = vshrl.u32 %v448, 16
      %v505 = vrot.slane %v503, 7
      %v506 = vshll.u32 %v448, 16
      %v508 = vor.u32 %v505, %v506
      %v509 = vrot.slane %v505, 4
      %v511 = vshrl.u32 %v449, 16
      %v513 = vrot.slane %v511, 7
      %v514 = vshll.u32 %v449, 16
      %v516 = vor.u32 %v513, %v514
      %v517 = vrot.slane %v513, 4
      %v519 = vshrl.u32 %v450, 16
      %v521 = vrot.slane %v519, 7
      %v522 = vshll.u32 %v450, 16
      %v524 = vor.u32 %v521, %v522
      %v525 = vrot.slane %v521, 4
      %v527 = vshrl.u32 %v451, 16
      %v529 = vrot.slane %v527, 7
      %v530 = vshll.u32 %v451, 16
      %v532 = vor.u32 %v529, %v530
      %v533 = vrot.slane %v529, 4
      %v535 = vshrl.u32 %v452, 16
      %v537 = vrot.slane %v535, 7
      %v538 = vshll.u32 %v452, 16
      %v540 = vor.u32 %v537, %v538
      %v541 = vrot.slane %v537, 4
      %v543 = vshrl.u32 %v453, 16
      %v545 = vrot.slane %v543, 7
      %v546 = vshll.u32 %v453, 16
      %v548 = vor.u32 %v545, %v546
      %v549 = vrot.slane %v545, 4
      %v551 = vshrl.u32 %v454, 16
      %v553 = vrot.slane %v551, 7
      %v554 = vshll.u32 %v454, 16
      %v556 = vor.u32 %v553, %v554
      %v557 = vrot.slane %v553, 4
      %v559 = vshrl.u32 %v455, 16
      %v561 = vrot.slane %v559, 7
      %v562 = vshll.u32 %v455, 16
      %v564 = vor.u32 %v561, %v562
      %v565 = vrot.slane %v561, 4
      %v567 = vshrl.u32 %v456, 16
      %v569 = vrot.slane %v567, 7
      %v570 = vshll.u32 %v456, 16
      %v572 = vor.u32 %v569, %v570
      %v573 = vrot.slane %v569, 4
      %v575 = vshrl.u32 %v457, 16
      %v577 = vrot.slane %v575, 7
      %v578 = vshll.u32 %v457, 16
      %v580 = vor.u32 %v577, %v578
      %v581 = vrot.slane %v577, 4
      %v583 = vshrl.u32 %v458, 16
      %v585 = vrot.slane %v583, 7
      %v586 = vshll.u32 %v458, 16
      %v588 = vor.u32 %v585, %v586
      %v589 = vrot.slane %v585, 4
      %v591 = vshrl.u32 %v459, 16
      %v593 = vrot.slane %v591, 7
      %v594 = vshll.u32 %v459, 16
      %v596 = vor.u32 %v593, %v594
      %v597 = vrot.slane %v593, 4
      %v599 = vshrl.u32 %v460, 16
      %v601 = vrot.slane %v599, 7
      %v602 = vshll.u32 %v460, 16
      %v604 = vor.u32 %v601, %v602
      %v605 = vrot.slane %v601, 4
      %v607 = vshrl.u32 %v461, 16
      %v609 = vrot.slane %v607, 7
      %v610 = vshll.u32 %v461, 16
      %v612 = vor.u32 %v609, %v610
      %v613 = vrot.slane %v609, 4
      %v615 = vshrl.u32 %v462, 16
      %v617 = vrot.slane %v615, 7
      %v618 = vshll.u32 %v462, 16
      %v620 = vor.u32 %v617, %v618
      %v621 = vrot.slane %v617, 4
      %v623 = vshrl.u32 %v463, 16
      %v625 = vrot.slane %v623, 7
      %v626 = vshll.u32 %v463, 16
      %v628 = vor.u32 %v625, %v626
      %v629 = vrot.slane %v625, 4
      %v631 = vshrl.u32 %v464, 16
      %v633 = vrot.slane %v631, 7
      %v634 = vshll.u32 %v464, 16
      %v636 = vor.u32 %v633, %v634
      %v637 = vrot.slane %v633, 4
      %v639 = vshrl.u32 %v465, 16
      %v641 = vrot.slane %v639, 7
      %v642 = vshll.u32 %v465, 16
      %v644 = vor.u32 %v641, %v642
      %v645 = vrot.slane %v641, 4
      %v647 = vshrl.u32 %v466, 16
      %v649 = vrot.slane %v647, 7
      %v650 = vshll.u32 %v466, 16
      %v652 = vor.u32 %v649, %v650
      %v653 = vrot.slane %v649, 4
      %v655 = vshrl.u32 %v467, 16
      %v657 = vrot.slane %v655, 7
      %v658 = vshll.u32 %v467, 16
      %v660 = vor.u32 %v657, %v658
      %v661 = vrot.slane %v657, 4
      %v663 = vshrl.u32 %v468, 16
      %v665 = vrot.slane %v663, 7
      %v666 = vshll.u32 %v468, 16
      %v668 = vor.u32 %v665, %v666
      %v669 = vrot.slane %v665, 4
      %v671 = vshrl.u32 %v469, 16
      %v673 = vrot.slane %v671, 7
      %v674 = vshll.u32 %v469, 16
      %v676 = vor.u32 %v673, %v674
      %v677 = vrot.slane %v673, 4
      %v679 = vshrl.u32 %v470, 16
      %v681 = vrot.slane %v679, 7
      %v682 = vshll.u32 %v470, 16
      %v684 = vor.u32 %v681, %v682
      %v685 = vrot.slane %v681, 4
      %v687 = vshrl.u32 %v471, 16
      %v689 = vrot.slane %v687, 7
      %v690 = vshll.u32 %v471, 16
      %v692 = vor.u32 %v689, %v690
      %v693 = vrot.slane %v689, 4
      %v695 = vshrl.u32 %v472, 16
      %v697 = vrot.slane %v695, 7
      %v698 = vshll.u32 %v472, 16
      %v700 = vor.u32 %v697, %v698
      %v701 = vrot.slane %v697, 4
      %v703 = vshrl.u32 %v473, 16
      %v705 = vrot.slane %v703, 7
      %v706 = vshll.u32 %v473, 16
      %v708 = vor.u32 %v705, %v706
      %v709 = vrot.slane %v705, 4
      %v711 = vshrl.u32 %v474, 16
      %v713 = vrot.slane %v711, 7
      %v714 = vshll.u32 %v474, 16
      %v716 = vor.u32 %v713, %v714
      %v717 = vrot.slane %v713, 4
      %v719 = vshrl.u32 %v475, 16
      %v721 = vrot.slane %v719, 7
      %v722 = vshll.u32 %v475, 16
      %v724 = vor.u32 %v721, %v722
      %v725 = vrot.slane %v721, 4
      %v727 = vshrl.u32 %v476, 16
      %v729 = vrot.slane %v727, 7
      %v730 = vshll.u32 %v476, 16
      %v732 = vor.u32 %v729, %v730
      %v733 = vrot.slane %v729, 4
      %v735 = vshrl.u32 %v477, 16
      %v737 = vrot.slane %v735, 7
      %v738 = vshll.u32 %v477, 16
      %v740 = vor.u32 %v737, %v738
      %v741 = vrot.slane %v737, 4
      %vm808 = vcmask 1043456
      %vm809 = vsmask.f32 7938
      %vm810 = vmand %vm808, %vm809
      %v811 = vld [vmem:[#allocation2] sm:$0xf]
      %v812 = vsel %vm810, %v484, %v811
      %813 = vst [vmem:[#allocation2] sm:$0xf] %v812
      %vm814 = vcmask 1040384
      %vm815 = vsmask.f32 256
      %vm816 = vmand %vm814, %vm815
      %v817 = vld [vmem:[#allocation2 + $0x4] sm:$0x1]
      %v818 = vsel %vm816, %v485, %v817
      %819 = vst [vmem:[#allocation2 + $0x4] sm:$0x1] %v818
      %v820 = vld [vmem:[#allocation2 + $0x8] sm:$0xf]
      %v821 = vsel %vm810, %v492, %v820
      %822 = vst [vmem:[#allocation2 + $0x8] sm:$0xf] %v821
      %v823 = vld [vmem:[#allocation2 + $0xc] sm:$0x1]
      %v824 = vsel %vm816, %v493, %v823
      %825 = vst [vmem:[#allocation2 + $0xc] sm:$0x1] %v824
      %v826 = vld [vmem:[#allocation2 + $0x10] sm:$0xf]
      %v827 = vsel %vm810, %v500, %v826
      %828 = vst [vmem:[#allocation2 + $0x10] sm:$0xf] %v827
      %v829 = vld [vmem:[#allocation2 + $0x14] sm:$0x1]
      %v830 = vsel %vm816, %v501, %v829
      %831 = vst [vmem:[#allocation2 + $0x14] sm:$0x1] %v830
      %v832 = vld [vmem:[#allocation2 + $0x18] sm:$0xf]
      %v833 = vsel %vm810, %v508, %v832
      %834 = vst [vmem:[#allocation2 + $0x18] sm:$0xf] %v833
      %v835 = vld [vmem:[#allocation2 + $0x1c] sm:$0x1]
      %v836 = vsel %vm816, %v509, %v835
      %837 = vst [vmem:[#allocation2 + $0x1c] sm:$0x1] %v836
      %v838 = vld [vmem:[#allocation2 + $0x20] sm:$0xf]
      %v839 = vsel %vm810, %v516, %v838
      %840 = vst [vmem:[#allocation2 + $0x20] sm:$0xf] %v839
      %v841 = vld [vmem:[#allocation2 + $0x24] sm:$0x1]
      %v842 = vsel %vm816, %v517, %v841
      %843 = vst [vmem:[#allocation2 + $0x24] sm:$0x1] %v842
      %v844 = vld [vmem:[#allocation2 + $0x28] sm:$0xf]
      %v845 = vsel %vm810, %v524, %v844
      %846 = vst [vmem:[#allocation2 + $0x28] sm:$0xf] %v845
      %v847 = vld [vmem:[#allocation2 + $0x2c] sm:$0x1]
      %v848 = vsel %vm816, %v525, %v847
      %849 = vst [vmem:[#allocation2 + $0x2c] sm:$0x1] %v848
      %v850 = vld [vmem:[#allocation2 + $0x30] sm:$0xf]
      %v851 = vsel %vm810, %v532, %v850
      %852 = vst [vmem:[#allocation2 + $0x30] sm:$0xf] %v851
      %v853 = vld [vmem:[#allocation2 + $0x34] sm:$0x1]
      %v854 = vsel %vm816, %v533, %v853
      %855 = vst [vmem:[#allocation2 + $0x34] sm:$0x1] %v854
      %v856 = vld [vmem:[#allocation2 + $0x38] sm:$0xf]
      %v857 = vsel %vm810, %v540, %v856
      %858 = vst [vmem:[#allocation2 + $0x38] sm:$0xf] %v857
      %v859 = vld [vmem:[#allocation2 + $0x3c] sm:$0x1]
      %v860 = vsel %vm816, %v541, %v859
      %861 = vst [vmem:[#allocation2 + $0x3c] sm:$0x1] %v860
      %v862 = vld [vmem:[#allocation2 + $0x40] sm:$0xf]
      %v863 = vsel %vm810, %v548, %v862
      %864 = vst [vmem:[#allocation2 + $0x40] sm:$0xf] %v863
      %v865 = vld [vmem:[#allocation2 + $0x44] sm:$0x1]
      %v866 = vsel %vm816, %v549, %v865
      %867 = vst [vmem:[#allocation2 + $0x44] sm:$0x1] %v866
      %v868 = vld [vmem:[#allocation2 + $0x48] sm:$0xf]
      %v869 = vsel %vm810, %v484, %v868
      %870 = vst [vmem:[#allocation2 + $0x48] sm:$0xf] %v869
      %v871 = vld [vmem:[#allocation2 + $0x4c] sm:$0x1]
      %v872 = vsel %vm816, %v485, %v871
      %873 = vst [vmem:[#allocation2 + $0x4c] sm:$0x1] %v872
      %v874 = vld [vmem:[#allocation2 + $0x50] sm:$0xf]
      %v875 = vsel %vm810, %v484, %v874
      %876 = vst [vmem:[#allocation2 + $0x50] sm:$0xf] %v875
      %v877 = vld [vmem:[#allocation2 + $0x54] sm:$0x1]
      %v878 = vsel %vm816, %v485, %v877
      %879 = vst [vmem:[#allocation2 + $0x54] sm:$0x1] %v878
      %v880 = vld [vmem:[#allocation2 + $0x58] sm:$0xf]
      %v881 = vsel %vm810, %v556, %v880
      %882 = vst [vmem:[#allocation2 + $0x58] sm:$0xf] %v881
      %v883 = vld [vmem:[#allocation2 + $0x5c] sm:$0x1]
      %v884 = vsel %vm816, %v557, %v883
      %885 = vst [vmem:[#allocation2 + $0x5c] sm:$0x1] %v884
      %v886 = vld [vmem:[#allocation2 + $0x60] sm:$0xf]
      %v887 = vsel %vm810, %v564, %v886
      %888 = vst [vmem:[#allocation2 + $0x60] sm:$0xf] %v887
      %v889 = vld [vmem:[#allocation2 + $0x64] sm:$0x1]
      %v890 = vsel %vm816, %v565, %v889
      %891 = vst [vmem:[#allocation2 + $0x64] sm:$0x1] %v890
      %v892 = vld [vmem:[#allocation2 + $0x68] sm:$0xf]
      %v893 = vsel %vm810, %v572, %v892
      %894 = vst [vmem:[#allocation2 + $0x68] sm:$0xf] %v893
      %v895 = vld [vmem:[#allocation2 + $0x6c] sm:$0x1]
      %v896 = vsel %vm816, %v573, %v895
      %897 = vst [vmem:[#allocation2 + $0x6c] sm:$0x1] %v896
      %v898 = vld [vmem:[#allocation2 + $0x70] sm:$0xf]
      %v899 = vsel %vm810, %v580, %v898
      %900 = vst [vmem:[#allocation2 + $0x70] sm:$0xf] %v899
      %v901 = vld [vmem:[#allocation2 + $0x74] sm:$0x1]
      %v902 = vsel %vm816, %v581, %v901
      %903 = vst [vmem:[#allocation2 + $0x74] sm:$0x1] %v902
      %v904 = vld [vmem:[#allocation2 + $0x78] sm:$0xf]
      %v905 = vsel %vm810, %v588, %v904
      %906 = vst [vmem:[#allocation2 + $0x78] sm:$0xf] %v905
      %v907 = vld [vmem:[#allocation2 + $0x7c] sm:$0x1]
      %v908 = vsel %vm816, %v589, %v907
      %909 = vst [vmem:[#allocation2 + $0x7c] sm:$0x1] %v908
      %v910 = vld [vmem:[#allocation2 + $0x80] sm:$0xf]
      %v911 = vsel %vm810, %v596, %v910
      %912 = vst [vmem:[#allocation2 + $0x80] sm:$0xf] %v911
      %v913 = vld [vmem:[#allocation2 + $0x84] sm:$0x1]
      %v914 = vsel %vm816, %v597, %v913
      %915 = vst [vmem:[#allocation2 + $0x84] sm:$0x1] %v914
      %v916 = vld [vmem:[#allocation2 + $0x88] sm:$0xf]
      %v917 = vsel %vm810, %v604, %v916
      %918 = vst [vmem:[#allocation2 + $0x88] sm:$0xf] %v917
      %v919 = vld [vmem:[#allocation2 + $0x8c] sm:$0x1]
      %v920 = vsel %vm816, %v605, %v919
      %921 = vst [vmem:[#allocation2 + $0x8c] sm:$0x1] %v920
      %v922 = vld [vmem:[#allocation2 + $0x90] sm:$0xf]
      %v923 = vsel %vm810, %v612, %v922
      %924 = vst [vmem:[#allocation2 + $0x90] sm:$0xf] %v923
      %v925 = vld [vmem:[#allocation2 + $0x94] sm:$0x1]
      %v926 = vsel %vm816, %v613, %v925
      %927 = vst [vmem:[#allocation2 + $0x94] sm:$0x1] %v926
      %v928 = vld [vmem:[#allocation2 + $0x98] sm:$0xf]
      %v929 = vsel %vm810, %v484, %v928
      %930 = vst [vmem:[#allocation2 + $0x98] sm:$0xf] %v929
      %v931 = vld [vmem:[#allocation2 + $0x9c] sm:$0x1]
      %v932 = vsel %vm816, %v485, %v931
      %933 = vst [vmem:[#allocation2 + $0x9c] sm:$0x1] %v932
      %v934 = vld [vmem:[#allocation2 + $0xa0] sm:$0xf]
      %v935 = vsel %vm810, %v484, %v934
      %936 = vst [vmem:[#allocation2 + $0xa0] sm:$0xf] %v935
      %v937 = vld [vmem:[#allocation2 + $0xa4] sm:$0x1]
      %v938 = vsel %vm816, %v485, %v937
      %939 = vst [vmem:[#allocation2 + $0xa4] sm:$0x1] %v938
      %v940 = vld [vmem:[#allocation2 + $0xa8] sm:$0xf]
      %v941 = vsel %vm810, %v620, %v940
      %942 = vst [vmem:[#allocation2 + $0xa8] sm:$0xf] %v941
      %v943 = vld [vmem:[#allocation2 + $0xac] sm:$0x1]
      %v944 = vsel %vm816, %v621, %v943
      %945 = vst [vmem:[#allocation2 + $0xac] sm:$0x1] %v944
      %v946 = vld [vmem:[#allocation2 + $0xb0] sm:$0xf]
      %v947 = vsel %vm810, %v628, %v946
      %948 = vst [vmem:[#allocation2 + $0xb0] sm:$0xf] %v947
      %v949 = vld [vmem:[#allocation2 + $0xb4] sm:$0x1]
      %v950 = vsel %vm816, %v629, %v949
      %951 = vst [vmem:[#allocation2 + $0xb4] sm:$0x1] %v950
      %v952 = vld [vmem:[#allocation2 + $0xb8] sm:$0xf]
      %v953 = vsel %vm810, %v636, %v952
      %954 = vst [vmem:[#allocation2 + $0xb8] sm:$0xf] %v953
      %v955 = vld [vmem:[#allocation2 + $0xbc] sm:$0x1]
      %v956 = vsel %vm816, %v637, %v955
      %957 = vst [vmem:[#allocation2 + $0xbc] sm:$0x1] %v956
      %v958 = vld [vmem:[#allocation2 + $0xc0] sm:$0xf]
      %v959 = vsel %vm810, %v644, %v958
      %960 = vst [vmem:[#allocation2 + $0xc0] sm:$0xf] %v959
      %v961 = vld [vmem:[#allocation2 + $0xc4] sm:$0x1]
      %v962 = vsel %vm816, %v645, %v961
      %963 = vst [vmem:[#allocation2 + $0xc4] sm:$0x1] %v962
      %v964 = vld [vmem:[#allocation2 + $0xc8] sm:$0xf]
      %v965 = vsel %vm810, %v652, %v964
      %966 = vst [vmem:[#allocation2 + $0xc8] sm:$0xf] %v965
      %v967 = vld [vmem:[#allocation2 + $0xcc] sm:$0x1]
      %v968 = vsel %vm816, %v653, %v967
      %969 = vst [vmem:[#allocation2 + $0xcc] sm:$0x1] %v968
      %v970 = vld [vmem:[#allocation2 + $0xd0] sm:$0xf]
      %v971 = vsel %vm810, %v660, %v970
      %972 = vst [vmem:[#allocation2 + $0xd0] sm:$0xf] %v971
      %v973 = vld [vmem:[#allocation2 + $0xd4] sm:$0x1]
      %v974 = vsel %vm816, %v661, %v973
      %975 = vst [vmem:[#allocation2 + $0xd4] sm:$0x1] %v974
      %v976 = vld [vmem:[#allocation2 + $0xd8] sm:$0xf]
      %v977 = vsel %vm810, %v668, %v976
      %978 = vst [vmem:[#allocation2 + $0xd8] sm:$0xf] %v977
      %v979 = vld [vmem:[#allocation2 + $0xdc] sm:$0x1]
      %v980 = vsel %vm816, %v669, %v979
      %981 = vst [vmem:[#allocation2 + $0xdc] sm:$0x1] %v980
      %v982 = vld [vmem:[#allocation2 + $0xe0] sm:$0xf]
      %v983 = vsel %vm810, %v676, %v982
      %984 = vst [vmem:[#allocation2 + $0xe0] sm:$0xf] %v983
      %v985 = vld [vmem:[#allocation2 + $0xe4] sm:$0x1]
      %v986 = vsel %vm816, %v677, %v985
      %987 = vst [vmem:[#allocation2 + $0xe4] sm:$0x1] %v986
      %v988 = vld [vmem:[#allocation2 + $0xe8] sm:$0xf]
      %v989 = vsel %vm810, %v484, %v988
      %990 = vst [vmem:[#allocation2 + $0xe8] sm:$0xf] %v989
      %v991 = vld [vmem:[#allocation2 + $0xec] sm:$0x1]
      %v992 = vsel %vm816, %v485, %v991
      %993 = vst [vmem:[#allocation2 + $0xec] sm:$0x1] %v992
      %v994 = vld [vmem:[#allocation2 + $0xf0] sm:$0xf]
      %v995 = vsel %vm810, %v484, %v994
      %996 = vst [vmem:[#allocation2 + $0xf0] sm:$0xf] %v995
      %v997 = vld [vmem:[#allocation2 + $0xf4] sm:$0x1]
      %v998 = vsel %vm816, %v485, %v997
      %999 = vst [vmem:[#allocation2 + $0xf4] sm:$0x1] %v998
      %v1000 = vld [vmem:[#allocation2 + $0xf8] sm:$0xf]
      %v1001 = vsel %vm810, %v684, %v1000
      %1002 = vst [vmem:[#allocation2 + $0xf8] sm:$0xf] %v1001
      %v1003 = vld [vmem:[#allocation2 + $0xfc] sm:$0x1]
      %v1004 = vsel %vm816, %v685, %v1003
      %1005 = vst [vmem:[#allocation2 + $0xfc] sm:$0x1] %v1004
      %v1006 = vld [vmem:[#allocation2 + $0x100] sm:$0xf]
      %v1007 = vsel %vm810, %v692, %v1006
      %1008 = vst [vmem:[#allocation2 + $0x100] sm:$0xf] %v1007
      %v1009 = vld [vmem:[#allocation2 + $0x104] sm:$0x1]
      %v1010 = vsel %vm816, %v693, %v1009
      %1011 = vst [vmem:[#allocation2 + $0x104] sm:$0x1] %v1010
      %v1012 = vld [vmem:[#allocation2 + $0x108] sm:$0xf]
      %v1013 = vsel %vm810, %v700, %v1012
      %1014 = vst [vmem:[#allocation2 + $0x108] sm:$0xf] %v1013
      %v1015 = vld [vmem:[#allocation2 + $0x10c] sm:$0x1]
      %v1016 = vsel %vm816, %v701, %v1015
      %1017 = vst [vmem:[#allocation2 + $0x10c] sm:$0x1] %v1016
      %v1018 = vld [vmem:[#allocation2 + $0x110] sm:$0xf]
      %v1019 = vsel %vm810, %v708, %v1018
      %1020 = vst [vmem:[#allocation2 + $0x110] sm:$0xf] %v1019
      %v1021 = vld [vmem:[#allocation2 + $0x114] sm:$0x1]
      %v1022 = vsel %vm816, %v709, %v1021
      %1023 = vst [vmem:[#allocation2 + $0x114] sm:$0x1] %v1022
      %v1024 = vld [vmem:[#allocation2 + $0x118] sm:$0xf]
      %v1025 = vsel %vm810, %v716, %v1024
      %1026 = vst [vmem:[#allocation2 + $0x118] sm:$0xf] %v1025
      %v1027 = vld [vmem:[#allocation2 + $0x11c] sm:$0x1]
      %v1028 = vsel %vm816, %v717, %v1027
      %1029 = vst [vmem:[#allocation2 + $0x11c] sm:$0x1] %v1028
      %v1030 = vld [vmem:[#allocation2 + $0x120] sm:$0xf]
      %v1031 = vsel %vm810, %v724, %v1030
      %1032 = vst [vmem:[#allocation2 + $0x120] sm:$0xf] %v1031
      %v1033 = vld [vmem:[#allocation2 + $0x124] sm:$0x1]
      %v1034 = vsel %vm816, %v725, %v1033
      %1035 = vst [vmem:[#allocation2 + $0x124] sm:$0x1] %v1034
      %v1036 = vld [vmem:[#allocation2 + $0x128] sm:$0xf]
      %v1037 = vsel %vm810, %v732, %v1036
      %1038 = vst [vmem:[#allocation2 + $0x128] sm:$0xf] %v1037
      %v1039 = vld [vmem:[#allocation2 + $0x12c] sm:$0x1]
      %v1040 = vsel %vm816, %v733, %v1039
      %1041 = vst [vmem:[#allocation2 + $0x12c] sm:$0x1] %v1040
      %v1042 = vld [vmem:[#allocation2 + $0x130] sm:$0xf]
      %v1043 = vsel %vm810, %v740, %v1042
      %1044 = vst [vmem:[#allocation2 + $0x130] sm:$0xf] %v1043
      %v1045 = vld [vmem:[#allocation2 + $0x134] sm:$0x1]
      %v1046 = vsel %vm816, %v741, %v1045
      %1047 = vst [vmem:[#allocation2 + $0x134] sm:$0x1] %v1046
      %v1048 = vld [vmem:[#allocation2 + $0x138] sm:$0xf]
      %v1049 = vsel %vm810, %v484, %v1048
      %1050 = vst [vmem:[#allocation2 + $0x138] sm:$0xf] %v1049
      %v1051 = vld [vmem:[#allocation2 + $0x13c] sm:$0x1]
      %v1052 = vsel %vm816, %v485, %v1051
      %1053 = vst [vmem:[#allocation2 + $0x13c] sm:$0x1] %v1052
      %v1054 = vld [vmem:[#allocation2] sm:$0x1]
      %v1055 = vsel %vm816, 0, %v1054
      %1056 = vst [vmem:[#allocation2] sm:$0x1] %v1055
      %v1057 = vld [vmem:[#allocation2 + $0x8] sm:$0x1]
      %v1058 = vsel %vm816, 0, %v1057
      %1059 = vst [vmem:[#allocation2 + $0x8] sm:$0x1] %v1058
      %v1060 = vld [vmem:[#allocation2 + $0x10] sm:$0x1]
      %v1061 = vsel %vm816, 0, %v1060
      %1062 = vst [vmem:[#allocation2 + $0x10] sm:$0x1] %v1061
      %v1063 = vld [vmem:[#allocation2 + $0x18] sm:$0x1]
      %v1064 = vsel %vm816, 0, %v1063
      %1065 = vst [vmem:[#allocation2 + $0x18] sm:$0x1] %v1064
      %v1066 = vld [vmem:[#allocation2 + $0x20] sm:$0x1]
      %v1067 = vsel %vm816, 0, %v1066
      %1068 = vst [vmem:[#allocation2 + $0x20] sm:$0x1] %v1067
      %v1069 = vld [vmem:[#allocation2 + $0x28] sm:$0x1]
      %v1070 = vsel %vm816, 0, %v1069
      %1071 = vst [vmem:[#allocation2 + $0x28] sm:$0x1] %v1070
      %v1072 = vld [vmem:[#allocation2 + $0x30] sm:$0x1]
      %v1073 = vsel %vm816, 0, %v1072
      %1074 = vst [vmem:[#allocation2 + $0x30] sm:$0x1] %v1073
      %v1075 = vld [vmem:[#allocation2 + $0x38] sm:$0x1]
      %v1076 = vsel %vm816, 0, %v1075
      %1077 = vst [vmem:[#allocation2 + $0x38] sm:$0x1] %v1076
      %v1078 = vld [vmem:[#allocation2 + $0x40] sm:$0x1]
      %v1079 = vsel %vm816, 0, %v1078
      %1080 = vst [vmem:[#allocation2 + $0x40] sm:$0x1] %v1079
      %v1081 = vld [vmem:[#allocation2 + $0x48] sm:$0x1]
      %v1082 = vsel %vm816, 0, %v1081
      %1083 = vst [vmem:[#allocation2 + $0x48] sm:$0x1] %v1082
      %v1084 = vld [vmem:[#allocation2 + $0x50] sm:$0x1]
      %v1085 = vsel %vm816, 0, %v1084
      %1086 = vst [vmem:[#allocation2 + $0x50] sm:$0x1] %v1085
      %v1087 = vld [vmem:[#allocation2 + $0x58] sm:$0x1]
      %v1088 = vsel %vm816, 0, %v1087
      %1089 = vst [vmem:[#allocation2 + $0x58] sm:$0x1] %v1088
      %v1090 = vld [vmem:[#allocation2 + $0x60] sm:$0x1]
      %v1091 = vsel %vm816, 0, %v1090
      %1092 = vst [vmem:[#allocation2 + $0x60] sm:$0x1] %v1091
      %v1093 = vld [vmem:[#allocation2 + $0x68] sm:$0x1]
      %v1094 = vsel %vm816, 0, %v1093
      %1095 = vst [vmem:[#allocation2 + $0x68] sm:$0x1] %v1094
      %v1096 = vld [vmem:[#allocation2 + $0x70] sm:$0x1]
      %v1097 = vsel %vm816, 0, %v1096
      %1098 = vst [vmem:[#allocation2 + $0x70] sm:$0x1] %v1097
      %v1099 = vld [vmem:[#allocation2 + $0x78] sm:$0x1]
      %v1100 = vsel %vm816, 0, %v1099
      %1101 = vst [vmem:[#allocation2 + $0x78] sm:$0x1] %v1100
      %v1102 = vld [vmem:[#allocation2 + $0x80] sm:$0x1]
      %v1103 = vsel %vm816, 0, %v1102
      %1104 = vst [vmem:[#allocation2 + $0x80] sm:$0x1] %v1103
      %v1105 = vld [vmem:[#allocation2 + $0x88] sm:$0x1]
      %v1106 = vsel %vm816, 0, %v1105
      %1107 = vst [vmem:[#allocation2 + $0x88] sm:$0x1] %v1106
      %v1108 = vld [vmem:[#allocation2 + $0x90] sm:$0x1]
      %v1109 = vsel %vm816, 0, %v1108
      %1110 = vst [vmem:[#allocation2 + $0x90] sm:$0x1] %v1109
      %v1111 = vld [vmem:[#allocation2 + $0x98] sm:$0x1]
      %v1112 = vsel %vm816, 0, %v1111
      %1113 = vst [vmem:[#allocation2 + $0x98] sm:$0x1] %v1112
      %v1114 = vld [vmem:[#allocation2 + $0xa0] sm:$0x1]
      %v1115 = vsel %vm816, 0, %v1114
      %1116 = vst [vmem:[#allocation2 + $0xa0] sm:$0x1] %v1115
      %v1117 = vld [vmem:[#allocation2 + $0xa8] sm:$0x1]
      %v1118 = vsel %vm816, 0, %v1117
      %1119 = vst [vmem:[#allocation2 + $0xa8] sm:$0x1] %v1118
      %v1120 = vld [vmem:[#allocation2 + $0xb0] sm:$0x1]
      %v1121 = vsel %vm816, 0, %v1120
      %1122 = vst [vmem:[#allocation2 + $0xb0] sm:$0x1] %v1121
      %v1123 = vld [vmem:[#allocation2 + $0xb8] sm:$0x1]
      %v1124 = vsel %vm816, 0, %v1123
      %1125 = vst [vmem:[#allocation2 + $0xb8] sm:$0x1] %v1124
      %v1126 = vld [vmem:[#allocation2 + $0xc0] sm:$0x1]
      %v1127 = vsel %vm816, 0, %v1126
      %1128 = vst [vmem:[#allocation2 + $0xc0] sm:$0x1] %v1127
      %v1129 = vld [vmem:[#allocation2 + $0xc8] sm:$0x1]
      %v1130 = vsel %vm816, 0, %v1129
      %1131 = vst [vmem:[#allocation2 + $0xc8] sm:$0x1] %v1130
      %v1132 = vld [vmem:[#allocation2 + $0xd0] sm:$0x1]
      %v1133 = vsel %vm816, 0, %v1132
      %1134 = vst [vmem:[#allocation2 + $0xd0] sm:$0x1] %v1133
      %v1135 = vld [vmem:[#allocation2 + $0xd8] sm:$0x1]
      %v1136 = vsel %vm816, 0, %v1135
      %1137 = vst [vmem:[#allocation2 + $0xd8] sm:$0x1] %v1136
      %v1138 = vld [vmem:[#allocation2 + $0xe0] sm:$0x1]
      %v1139 = vsel %vm816, 0, %v1138
      %1140 = vst [vmem:[#allocation2 + $0xe0] sm:$0x1] %v1139
      %v1141 = vld [vmem:[#allocation2 + $0xe8] sm:$0x1]
      %v1142 = vsel %vm816, 0, %v1141
      %1143 = vst [vmem:[#allocation2 + $0xe8] sm:$0x1] %v1142
      %v1144 = vld [vmem:[#allocation2 + $0xf0] sm:$0x1]
      %v1145 = vsel %vm816, 0, %v1144
      %1146 = vst [vmem:[#allocation2 + $0xf0] sm:$0x1] %v1145
      %v1147 = vld [vmem:[#allocation2 + $0xf8] sm:$0x1]
      %v1148 = vsel %vm816, 0, %v1147
      %1149 = vst [vmem:[#allocation2 + $0xf8] sm:$0x1] %v1148
      %v1150 = vld [vmem:[#allocation2 + $0x100] sm:$0x1]
      %v1151 = vsel %vm816, 0, %v1150
      %1152 = vst [vmem:[#allocation2 + $0x100] sm:$0x1] %v1151
      %v1153 = vld [vmem:[#allocation2 + $0x108] sm:$0x1]
      %v1154 = vsel %vm816, 0, %v1153
      %1155 = vst [vmem:[#allocation2 + $0x108] sm:$0x1] %v1154
      %v1156 = vld [vmem:[#allocation2 + $0x110] sm:$0x1]
      %v1157 = vsel %vm816, 0, %v1156
      %1158 = vst [vmem:[#allocation2 + $0x110] sm:$0x1] %v1157
      %v1159 = vld [vmem:[#allocation2 + $0x118] sm:$0x1]
      %v1160 = vsel %vm816, 0, %v1159
      %1161 = vst [vmem:[#allocation2 + $0x118] sm:$0x1] %v1160
      %v1162 = vld [vmem:[#allocation2 + $0x120] sm:$0x1]
      %v1163 = vsel %vm816, 0, %v1162
      %1164 = vst [vmem:[#allocation2 + $0x120] sm:$0x1] %v1163
      %v1165 = vld [vmem:[#allocation2 + $0x128] sm:$0x1]
      %v1166 = vsel %vm816, 0, %v1165
      %1167 = vst [vmem:[#allocation2 + $0x128] sm:$0x1] %v1166
      %v1168 = vld [vmem:[#allocation2 + $0x130] sm:$0x1]
      %v1169 = vsel %vm816, 0, %v1168
      %1170 = vst [vmem:[#allocation2 + $0x130] sm:$0x1] %v1169
      %v1171 = vld [vmem:[#allocation2 + $0x138] sm:$0x1]
      %v1172 = vsel %vm816, 0, %v1171
      %1173 = vst [vmem:[#allocation2 + $0x138] sm:$0x1] %v1172
      %vm1174 = vmand %vm814, %vm809
      %v1175 = vld [vmem:[#allocation2 + $0x4] sm:$0x1]
      %v1176 = vsel %vm1174, 0, %v1175
      %1177 = vst [vmem:[#allocation2 + $0x4] sm:$0x1] %v1176
      %v1178 = vld [vmem:[#allocation2 + $0xc] sm:$0x1]
      %v1179 = vsel %vm1174, 0, %v1178
      %1180 = vst [vmem:[#allocation2 + $0xc] sm:$0x1] %v1179
      %v1181 = vld [vmem:[#allocation2 + $0x14] sm:$0x1]
      %v1182 = vsel %vm1174, 0, %v1181
      %1183 = vst [vmem:[#allocation2 + $0x14] sm:$0x1] %v1182
      %v1184 = vld [vmem:[#allocation2 + $0x1c] sm:$0x1]
      %v1185 = vsel %vm1174, 0, %v1184
      %1186 = vst [vmem:[#allocation2 + $0x1c] sm:$0x1] %v1185
      %v1187 = vld [vmem:[#allocation2 + $0x24] sm:$0x1]
      %v1188 = vsel %vm1174, 0, %v1187
      %1189 = vst [vmem:[#allocation2 + $0x24] sm:$0x1] %v1188
      %v1190 = vld [vmem:[#allocation2 + $0x2c] sm:$0x1]
      %v1191 = vsel %vm1174, 0, %v1190
      %1192 = vst [vmem:[#allocation2 + $0x2c] sm:$0x1] %v1191
      %v1193 = vld [vmem:[#allocation2 + $0x34] sm:$0x1]
      %v1194 = vsel %vm1174, 0, %v1193
      %1195 = vst [vmem:[#allocation2 + $0x34] sm:$0x1] %v1194
      %v1196 = vld [vmem:[#allocation2 + $0x3c] sm:$0x1]
      %v1197 = vsel %vm1174, 0, %v1196
      %1198 = vst [vmem:[#allocation2 + $0x3c] sm:$0x1] %v1197
      %v1199 = vld [vmem:[#allocation2 + $0x44] sm:$0x1]
      %v1200 = vsel %vm1174, 0, %v1199
      %1201 = vst [vmem:[#allocation2 + $0x44] sm:$0x1] %v1200
      %v1202 = vld [vmem:[#allocation2 + $0x4c] sm:$0x1]
      %v1203 = vsel %vm1174, 0, %v1202
      %1204 = vst [vmem:[#allocation2 + $0x4c] sm:$0x1] %v1203
      %v1205 = vld [vmem:[#allocation2 + $0x54] sm:$0x1]
      %v1206 = vsel %vm1174, 0, %v1205
      %1207 = vst [vmem:[#allocation2 + $0x54] sm:$0x1] %v1206
      %v1208 = vld [vmem:[#allocation2 + $0x5c] sm:$0x1]
      %v1209 = vsel %vm1174, 0, %v1208
      %1210 = vst [vmem:[#allocation2 + $0x5c] sm:$0x1] %v1209
      %v1211 = vld [vmem:[#allocation2 + $0x64] sm:$0x1]
      %v1212 = vsel %vm1174, 0, %v1211
      %1213 = vst [vmem:[#allocation2 + $0x64] sm:$0x1] %v1212
      %v1214 = vld [vmem:[#allocation2 + $0x6c] sm:$0x1]
      %v1215 = vsel %vm1174, 0, %v1214
      %1216 = vst [vmem:[#allocation2 + $0x6c] sm:$0x1] %v1215
      %v1217 = vld [vmem:[#allocation2 + $0x74] sm:$0x1]
      %v1218 = vsel %vm1174, 0, %v1217
      %1219 = vst [vmem:[#allocation2 + $0x74] sm:$0x1] %v1218
      %v1220 = vld [vmem:[#allocation2 + $0x7c] sm:$0x1]
      %v1221 = vsel %vm1174, 0, %v1220
      %1222 = vst [vmem:[#allocation2 + $0x7c] sm:$0x1] %v1221
      %v1223 = vld [vmem:[#allocation2 + $0x84] sm:$0x1]
      %v1224 = vsel %vm1174, 0, %v1223
      %1225 = vst [vmem:[#allocation2 + $0x84] sm:$0x1] %v1224
      %v1226 = vld [vmem:[#allocation2 + $0x8c] sm:$0x1]
      %v1227 = vsel %vm1174, 0, %v1226
      %1228 = vst [vmem:[#allocation2 + $0x8c] sm:$0x1] %v1227
      %v1229 = vld [vmem:[#allocation2 + $0x94] sm:$0x1]
      %v1230 = vsel %vm1174, 0, %v1229
      %1231 = vst [vmem:[#allocation2 + $0x94] sm:$0x1] %v1230
      %v1232 = vld [vmem:[#allocation2 + $0x9c] sm:$0x1]
      %v1233 = vsel %vm1174, 0, %v1232
      %1234 = vst [vmem:[#allocation2 + $0x9c] sm:$0x1] %v1233
      %v1235 = vld [vmem:[#allocation2 + $0xa4] sm:$0x1]
      %v1236 = vsel %vm1174, 0, %v1235
      %1237 = vst [vmem:[#allocation2 + $0xa4] sm:$0x1] %v1236
      %v1238 = vld [vmem:[#allocation2 + $0xac] sm:$0x1]
      %v1239 = vsel %vm1174, 0, %v1238
      %1240 = vst [vmem:[#allocation2 + $0xac] sm:$0x1] %v1239
      %v1241 = vld [vmem:[#allocation2 + $0xb4] sm:$0x1]
      %v1242 = vsel %vm1174, 0, %v1241
      %1243 = vst [vmem:[#allocation2 + $0xb4] sm:$0x1] %v1242
      %v1244 = vld [vmem:[#allocation2 + $0xbc] sm:$0x1]
      %v1245 = vsel %vm1174, 0, %v1244
      %1246 = vst [vmem:[#allocation2 + $0xbc] sm:$0x1] %v1245
      %v1247 = vld [vmem:[#allocation2 + $0xc4] sm:$0x1]
      %v1248 = vsel %vm1174, 0, %v1247
      %1249 = vst [vmem:[#allocation2 + $0xc4] sm:$0x1] %v1248
      %v1250 = vld [vmem:[#allocation2 + $0xcc] sm:$0x1]
      %v1251 = vsel %vm1174, 0, %v1250
      %1252 = vst [vmem:[#allocation2 + $0xcc] sm:$0x1] %v1251
      %v1253 = vld [vmem:[#allocation2 + $0xd4] sm:$0x1]
      %v1254 = vsel %vm1174, 0, %v1253
      %1255 = vst [vmem:[#allocation2 + $0xd4] sm:$0x1] %v1254
      %v1256 = vld [vmem:[#allocation2 + $0xdc] sm:$0x1]
      %v1257 = vsel %vm1174, 0, %v1256
      %1258 = vst [vmem:[#allocation2 + $0xdc] sm:$0x1] %v1257
      %v1259 = vld [vmem:[#allocation2 + $0xe4] sm:$0x1]
      %v1260 = vsel %vm1174, 0, %v1259
      %1261 = vst [vmem:[#allocation2 + $0xe4] sm:$0x1] %v1260
      %v1262 = vld [vmem:[#allocation2 + $0xec] sm:$0x1]
      %v1263 = vsel %vm1174, 0, %v1262
      %1264 = vst [vmem:[#allocation2 + $0xec] sm:$0x1] %v1263
      %v1265 = vld [vmem:[#allocation2 + $0xf4] sm:$0x1]
      %v1266 = vsel %vm1174, 0, %v1265
      %1267 = vst [vmem:[#allocation2 + $0xf4] sm:$0x1] %v1266
      %v1268 = vld [vmem:[#allocation2 + $0xfc] sm:$0x1]
      %v1269 = vsel %vm1174, 0, %v1268
      %1270 = vst [vmem:[#allocation2 + $0xfc] sm:$0x1] %v1269
      %v1271 = vld [vmem:[#allocation2 + $0x104] sm:$0x1]
      %v1272 = vsel %vm1174, 0, %v1271
      %1273 = vst [vmem:[#allocation2 + $0x104] sm:$0x1] %v1272
      %v1274 = vld [vmem:[#allocation2 + $0x10c] sm:$0x1]
      %v1275 = vsel %vm1174, 0, %v1274
      %1276 = vst [vmem:[#allocation2 + $0x10c] sm:$0x1] %v1275
      %v1277 = vld [vmem:[#allocation2 + $0x114] sm:$0x1]
      %v1278 = vsel %vm1174, 0, %v1277
      %1279 = vst [vmem:[#allocation2 + $0x114] sm:$0x1] %v1278
      %v1280 = vld [vmem:[#allocation2 + $0x11c] sm:$0x1]
      %v1281 = vsel %vm1174, 0, %v1280
      %1282 = vst [vmem:[#allocation2 + $0x11c] sm:$0x1] %v1281
      %v1283 = vld [vmem:[#allocation2 + $0x124] sm:$0x1]
      %v1284 = vsel %vm1174, 0, %v1283
      %1285 = vst [vmem:[#allocation2 + $0x124] sm:$0x1] %v1284
      %v1286 = vld [vmem:[#allocation2 + $0x12c] sm:$0x1]
      %v1287 = vsel %vm1174, 0, %v1286
      %1288 = vst [vmem:[#allocation2 + $0x12c] sm:$0x1] %v1287
      %v1289 = vld [vmem:[#allocation2 + $0x134] sm:$0x1]
      %v1290 = vsel %vm1174, 0, %v1289
      %1291 = vst [vmem:[#allocation2 + $0x134] sm:$0x1] %v1290
      %v1292 = vld [vmem:[#allocation2 + $0x13c] sm:$0x1]
      %v1293 = vsel %vm1174, 0, %v1292
      %1294 = vst [vmem:[#allocation2 + $0x13c] sm:$0x1] %v1293
      %v1295 = vld [vmem:[#allocation2] sm:$0xf]
      %v1296 = vld [vmem:[#allocation2 + $0x4] sm:$0x1]
      %v1297 = vld [vmem:[#allocation2 + $0x8] sm:$0xf]
      %v1298 = vld [vmem:[#allocation2 + $0xc] sm:$0x1]
      %v1299 = vld [vmem:[#allocation2 + $0x10] sm:$0xf]
      %v1300 = vld [vmem:[#allocation2 + $0x14] sm:$0x1]
      %v1301 = vld [vmem:[#allocation2 + $0x18] sm:$0xf]
      %v1302 = vld [vmem:[#allocation2 + $0x1c] sm:$0x1]
      %v1303 = vld [vmem:[#allocation2 + $0x20] sm:$0xf]
      %v1304 = vld [vmem:[#allocation2 + $0x24] sm:$0x1]
      %v1305 = vld [vmem:[#allocation2 + $0x28] sm:$0xf]
      %v1306 = vld [vmem:[#allocation2 + $0x2c] sm:$0x1]
      %v1307 = vld [vmem:[#allocation2 + $0x30] sm:$0xf]
      %v1308 = vld [vmem:[#allocation2 + $0x34] sm:$0x1]
      %v1309 = vld [vmem:[#allocation2 + $0x38] sm:$0xf]
      %v1310 = vld [vmem:[#allocation2 + $0x3c] sm:$0x1]
      %v1311 = vld [vmem:[#allocation2 + $0x40] sm:$0xf]
      %v1312 = vld [vmem:[#allocation2 + $0x44] sm:$0x1]
      %v1313 = vld [vmem:[#allocation2 + $0x48] sm:$0xf]
      %v1314 = vld [vmem:[#allocation2 + $0x4c] sm:$0x1]
      %v1315 = vld [vmem:[#allocation2 + $0x50] sm:$0xf]
      %v1316 = vld [vmem:[#allocation2 + $0x54] sm:$0x1]
      %v1317 = vld [vmem:[#allocation2 + $0x58] sm:$0xf]
      %v1318 = vld [vmem:[#allocation2 + $0x5c] sm:$0x1]
      %v1319 = vld [vmem:[#allocation2 + $0x60] sm:$0xf]
      %v1320 = vld [vmem:[#allocation2 + $0x64] sm:$0x1]
      %v1321 = vld [vmem:[#allocation2 + $0x68] sm:$0xf]
      %v1322 = vld [vmem:[#allocation2 + $0x6c] sm:$0x1]
      %v1323 = vld [vmem:[#allocation2 + $0x70] sm:$0xf]
      %v1324 = vld [vmem:[#allocation2 + $0x74] sm:$0x1]
      %v1325 = vld [vmem:[#allocation2 + $0x78] sm:$0xf]
      %v1326 = vld [vmem:[#allocation2 + $0x7c] sm:$0x1]
      %v1327 = vld [vmem:[#allocation2 + $0x80] sm:$0xf]
      %v1328 = vld [vmem:[#allocation2 + $0x84] sm:$0x1]
      %v1329 = vld [vmem:[#allocation2 + $0x88] sm:$0xf]
      %v1330 = vld [vmem:[#allocation2 + $0x8c] sm:$0x1]
      %v1331 = vld [vmem:[#allocation2 + $0x90] sm:$0xf]
      %v1332 = vld [vmem:[#allocation2 + $0x94] sm:$0x1]
      %v1333 = vld [vmem:[#allocation2 + $0x98] sm:$0xf]
      %v1334 = vld [vmem:[#allocation2 + $0x9c] sm:$0x1]
      %v1335 = vld [vmem:[#allocation2 + $0xa0] sm:$0xf]
      %v1336 = vld [vmem:[#allocation2 + $0xa4] sm:$0x1]
      %v1337 = vld [vmem:[#allocation2 + $0xa8] sm:$0xf]
      %v1338 = vld [vmem:[#allocation2 + $0xac] sm:$0x1]
      %v1339 = vld [vmem:[#allocation2 + $0xb0] sm:$0xf]
      %v1340 = vld [vmem:[#allocation2 + $0xb4] sm:$0x1]
      %v1341 = vld [vmem:[#allocation2 + $0xb8] sm:$0xf]
      %v1342 = vld [vmem:[#allocation2 + $0xbc] sm:$0x1]
      %v1343 = vld [vmem:[#allocation2 + $0xc0] sm:$0xf]
      %v1344 = vld [vmem:[#allocation2 + $0xc4] sm:$0x1]
      %v1345 = vld [vmem:[#allocation2 + $0xc8] sm:$0xf]
      %v1346 = vld [vmem:[#allocation2 + $0xcc] sm:$0x1]
      %v1347 = vld [vmem:[#allocation2 + $0xd0] sm:$0xf]
      %v1348 = vld [vmem:[#allocation2 + $0xd4] sm:$0x1]
      %v1349 = vld [vmem:[#allocation2 + $0xd8] sm:$0xf]
      %v1350 = vld [vmem:[#allocation2 + $0xdc] sm:$0x1]
      %v1351 = vld [vmem:[#allocation2 + $0xe0] sm:$0xf]
      %v1352 = vld [vmem:[#allocation2 + $0xe4] sm:$0x1]
      %v1353 = vld [vmem:[#allocation2 + $0xe8] sm:$0xf]
      %v1354 = vld [vmem:[#allocation2 + $0xec] sm:$0x1]
      %v1355 = vld [vmem:[#allocation2 + $0xf0] sm:$0xf]
      %v1356 = vld [vmem:[#allocation2 + $0xf4] sm:$0x1]
      %v1357 = vld [vmem:[#allocation2 + $0xf8] sm:$0xf]
      %v1358 = vld [vmem:[#allocation2 + $0xfc] sm:$0x1]
      %v1359 = vld [vmem:[#allocation2 + $0x100] sm:$0xf]
      %v1360 = vld [vmem:[#allocation2 + $0x104] sm:$0x1]
      %v1361 = vld [vmem:[#allocation2 + $0x108] sm:$0xf]
      %v1362 = vld [vmem:[#allocation2 + $0x10c] sm:$0x1]
      %v1363 = vld [vmem:[#allocation2 + $0x110] sm:$0xf]
      %v1364 = vld [vmem:[#allocation2 + $0x114] sm:$0x1]
      %v1365 = vld [vmem:[#allocation2 + $0x118] sm:$0xf]
      %v1366 = vld [vmem:[#allocation2 + $0x11c] sm:$0x1]
      %v1367 = vld [vmem:[#allocation2 + $0x120] sm:$0xf]
      %v1368 = vld [vmem:[#allocation2 + $0x124] sm:$0x1]
      %v1369 = vld [vmem:[#allocation2 + $0x128] sm:$0xf]
      %v1370 = vld [vmem:[#allocation2 + $0x12c] sm:$0x1]
      %v1371 = vld [vmem:[#allocation2 + $0x130] sm:$0xf]
      %v1372 = vld [vmem:[#allocation2 + $0x134] sm:$0x1]
      %v1373 = vld [vmem:[#allocation2 + $0x138] sm:$0xf]
      %v1374 = vld [vmem:[#allocation2 + $0x13c] sm:$0x1]
      %v1439 = vunpack.c.l.b16 %v1295
      %v1440 = vunpack.c.l.b16 %v1296
      %v1441 = vunpack.c.l.b16 %v1297
      %v1442 = vunpack.c.l.b16 %v1298
      %v1443 = vunpack.c.l.b16 %v1299
      %v1444 = vunpack.c.l.b16 %v1300
      %v1445 = vunpack.c.l.b16 %v1301
      %v1446 = vunpack.c.l.b16 %v1302
      %v1447 = vunpack.c.l.b16 %v1303
      %v1448 = vunpack.c.l.b16 %v1304
      %v1449 = vunpack.c.l.b16 %v1305
      %v1450 = vunpack.c.l.b16 %v1306
      %v1451 = vunpack.c.l.b16 %v1307
      %v1452 = vunpack.c.l.b16 %v1308
      %v1453 = vunpack.c.l.b16 %v1309
      %v1454 = vunpack.c.l.b16 %v1310
      %v1455 = vunpack.c.l.b16 %v1315
      %v1456 = vunpack.c.l.b16 %v1316
      %v1457 = vunpack.c.l.b16 %v1317
      %v1458 = vunpack.c.l.b16 %v1318
      %v1459 = vunpack.c.l.b16 %v1319
      %v1460 = vunpack.c.l.b16 %v1320
      %v1461 = vunpack.c.l.b16 %v1321
      %v1462 = vunpack.c.l.b16 %v1322
      %v1463 = vunpack.c.l.b16 %v1323
      %v1464 = vunpack.c.l.b16 %v1324
      %v1465 = vunpack.c.l.b16 %v1325
      %v1466 = vunpack.c.l.b16 %v1326
      %v1467 = vunpack.c.l.b16 %v1327
      %v1468 = vunpack.c.l.b16 %v1328
      %v1469 = vunpack.c.l.b16 %v1329
      %v1470 = vunpack.c.l.b16 %v1330
      %v1471 = vunpack.c.l.b16 %v1335
      %v1472 = vunpack.c.l.b16 %v1336
      %v1473 = vunpack.c.l.b16 %v1337
      %v1474 = vunpack.c.l.b16 %v1338
      %v1475 = vunpack.c.l.b16 %v1339
      %v1476 = vunpack.c.l.b16 %v1340
      %v1477 = vunpack.c.l.b16 %v1341
      %v1478 = vunpack.c.l.b16 %v1342
      %v1479 = vunpack.c.l.b16 %v1343
      %v1480 = vunpack.c.l.b16 %v1344
      %v1481 = vunpack.c.l.b16 %v1345
      %v1482 = vunpack.c.l.b16 %v1346
      %v1483 = vunpack.c.l.b16 %v1347
      %v1484 = vunpack.c.l.b16 %v1348
      %v1485 = vunpack.c.l.b16 %v1349
      %v1486 = vunpack.c.l.b16 %v1350
      %v1487 = vunpack.c.l.b16 %v1355
      %v1488 = vunpack.c.l.b16 %v1356
      %v1489 = vunpack.c.l.b16 %v1357
      %v1490 = vunpack.c.l.b16 %v1358
      %v1491 = vunpack.c.l.b16 %v1359
      %v1492 = vunpack.c.l.b16 %v1360
      %v1493 = vunpack.c.l.b16 %v1361
      %v1494 = vunpack.c.l.b16 %v1362
      %v1495 = vunpack.c.l.b16 %v1363
      %v1496 = vunpack.c.l.b16 %v1364
      %v1497 = vunpack.c.l.b16 %v1365
      %v1498 = vunpack.c.l.b16 %v1366
      %v1499 = vunpack.c.l.b16 %v1367
      %v1500 = vunpack.c.l.b16 %v1368
      %v1501 = vunpack.c.l.b16 %v1369
      %v1502 = vunpack.c.l.b16 %v1370
      %v1503 = vpack.c.b16 %v1440, %v1439
      %v1504 = vpack.c.b16 %v1442, %v1441
      %v1505 = vpack.c.b16 %v1444, %v1443
      %v1506 = vpack.c.b16 %v1446, %v1445
      %v1507 = vpack.c.b16 %v1448, %v1447
      %v1508 = vpack.c.b16 %v1450, %v1449
      %v1509 = vpack.c.b16 %v1452, %v1451
      %v1510 = vpack.c.b16 %v1454, %v1453
      %v1511 = vpack.c.b16 %v1456, %v1455
      %v1512 = vpack.c.b16 %v1458, %v1457
      %v1513 = vpack.c.b16 %v1460, %v1459
      %v1514 = vpack.c.b16 %v1462, %v1461
      %v1515 = vpack.c.b16 %v1464, %v1463
      %v1516 = vpack.c.b16 %v1466, %v1465
      %v1517 = vpack.c.b16 %v1468, %v1467
      %v1518 = vpack.c.b16 %v1470, %v1469
      %v1519 = vpack.c.b16 %v1472, %v1471
      %v1520 = vpack.c.b16 %v1474, %v1473
      %v1521 = vpack.c.b16 %v1476, %v1475
      %v1522 = vpack.c.b16 %v1478, %v1477
      %v1523 = vpack.c.b16 %v1480, %v1479
      %v1524 = vpack.c.b16 %v1482, %v1481
      %v1525 = vpack.c.b16 %v1484, %v1483
      %v1526 = vpack.c.b16 %v1486, %v1485
      %v1527 = vpack.c.b16 %v1488, %v1487
      %v1528 = vpack.c.b16 %v1490, %v1489
      %v1529 = vpack.c.b16 %v1492, %v1491
      %v1530 = vpack.c.b16 %v1494, %v1493
      %v1531 = vpack.c.b16 %v1496, %v1495
      %v1532 = vpack.c.b16 %v1498, %v1497
      %v1533 = vpack.c.b16 %v1500, %v1499
      %v1534 = vpack.c.b16 %v1502, %v1501
      %v1536 = vshrl.u32 %v1503, 16
      %v1538 = vshll.u32 %v1503, 16
      %v1540 = vrot.slane %v1538, 1
      %v1541 = vor.u32 %v1536, %v1540
      %v1543 = vshrl.u32 %v1504, 16
      %v1545 = vshll.u32 %v1504, 16
      %v1547 = vrot.slane %v1545, 1
      %v1548 = vor.u32 %v1543, %v1547
      %v1550 = vshrl.u32 %v1505, 16
      %v1552 = vshll.u32 %v1505, 16
      %v1554 = vrot.slane %v1552, 1
      %v1555 = vor.u32 %v1550, %v1554
      %v1557 = vshrl.u32 %v1506, 16
      %v1559 = vshll.u32 %v1506, 16
      %v1561 = vrot.slane %v1559, 1
      %v1562 = vor.u32 %v1557, %v1561
      %v1564 = vshrl.u32 %v1507, 16
      %v1566 = vshll.u32 %v1507, 16
      %v1568 = vrot.slane %v1566, 1
      %v1569 = vor.u32 %v1564, %v1568
      %v1571 = vshrl.u32 %v1508, 16
      %v1573 = vshll.u32 %v1508, 16
      %v1575 = vrot.slane %v1573, 1
      %v1576 = vor.u32 %v1571, %v1575
      %v1578 = vshrl.u32 %v1509, 16
      %v1580 = vshll.u32 %v1509, 16
      %v1582 = vrot.slane %v1580, 1
      %v1583 = vor.u32 %v1578, %v1582
      %v1585 = vshrl.u32 %v1510, 16
      %v1587 = vshll.u32 %v1510, 16
      %v1589 = vrot.slane %v1587, 1
      %v1590 = vor.u32 %v1585, %v1589
      %v1592 = vshrl.u32 %v1511, 16
      %v1594 = vshll.u32 %v1511, 16
      %v1596 = vrot.slane %v1594, 1
      %v1597 = vor.u32 %v1592, %v1596
      %v1599 = vshrl.u32 %v1512, 16
      %v1601 = vshll.u32 %v1512, 16
      %v1603 = vrot.slane %v1601, 1
      %v1604 = vor.u32 %v1599, %v1603
      %v1606 = vshrl.u32 %v1513, 16
      %v1608 = vshll.u32 %v1513, 16
      %v1610 = vrot.slane %v1608, 1
      %v1611 = vor.u32 %v1606, %v1610
      %v1613 = vshrl.u32 %v1514, 16
      %v1615 = vshll.u32 %v1514, 16
      %v1617 = vrot.slane %v1615, 1
      %v1618 = vor.u32 %v1613, %v1617
      %v1620 = vshrl.u32 %v1515, 16
      %v1622 = vshll.u32 %v1515, 16
      %v1624 = vrot.slane %v1622, 1
      %v1625 = vor.u32 %v1620, %v1624
      %v1627 = vshrl.u32 %v1516, 16
      %v1629 = vshll.u32 %v1516, 16
      %v1631 = vrot.slane %v1629, 1
      %v1632 = vor.u32 %v1627, %v1631
      %v1634 = vshrl.u32 %v1517, 16
      %v1636 = vshll.u32 %v1517, 16
      %v1638 = vrot.slane %v1636, 1
      %v1639 = vor.u32 %v1634, %v1638
      %v1641 = vshrl.u32 %v1518, 16
      %v1643 = vshll.u32 %v1518, 16
      %v1645 = vrot.slane %v1643, 1
      %v1646 = vor.u32 %v1641, %v1645
      %v1648 = vshrl.u32 %v1519, 16
      %v1650 = vshll.u32 %v1519, 16
      %v1652 = vrot.slane %v1650, 1
      %v1653 = vor.u32 %v1648, %v1652
      %v1655 = vshrl.u32 %v1520, 16
      %v1657 = vshll.u32 %v1520, 16
      %v1659 = vrot.slane %v1657, 1
      %v1660 = vor.u32 %v1655, %v1659
      %v1662 = vshrl.u32 %v1521, 16
      %v1664 = vshll.u32 %v1521, 16
      %v1666 = vrot.slane %v1664, 1
      %v1667 = vor.u32 %v1662, %v1666
      %v1669 = vshrl.u32 %v1522, 16
      %v1671 = vshll.u32 %v1522, 16
      %v1673 = vrot.slane %v1671, 1
      %v1674 = vor.u32 %v1669, %v1673
      %v1676 = vshrl.u32 %v1523, 16
      %v1678 = vshll.u32 %v1523, 16
      %v1680 = vrot.slane %v1678, 1
      %v1681 = vor.u32 %v1676, %v1680
      %v1683 = vshrl.u32 %v1524, 16
      %v1685 = vshll.u32 %v1524, 16
      %v1687 = vrot.slane %v1685, 1
      %v1688 = vor.u32 %v1683, %v1687
      %v1690 = vshrl.u32 %v1525, 16
      %v1692 = vshll.u32 %v1525, 16
      %v1694 = vrot.slane %v1692, 1
      %v1695 = vor.u32 %v1690, %v1694
      %v1697 = vshrl.u32 %v1526, 16
      %v1699 = vshll.u32 %v1526, 16
      %v1701 = vrot.slane %v1699, 1
      %v1702 = vor.u32 %v1697, %v1701
      %v1704 = vshrl.u32 %v1527, 16
      %v1706 = vshll.u32 %v1527, 16
      %v1708 = vrot.slane %v1706, 1
      %v1709 = vor.u32 %v1704, %v1708
      %v1711 = vshrl.u32 %v1528, 16
      %v1713 = vshll.u32 %v1528, 16
      %v1715 = vrot.slane %v1713, 1
      %v1716 = vor.u32 %v1711, %v1715
      %v1718 = vshrl.u32 %v1529, 16
      %v1720 = vshll.u32 %v1529, 16
      %v1722 = vrot.slane %v1720, 1
      %v1723 = vor.u32 %v1718, %v1722
      %v1725 = vshrl.u32 %v1530, 16
      %v1727 = vshll.u32 %v1530, 16
      %v1729 = vrot.slane %v1727, 1
      %v1730 = vor.u32 %v1725, %v1729
      %v1732 = vshrl.u32 %v1531, 16
      %v1734 = vshll.u32 %v1531, 16
      %v1736 = vrot.slane %v1734, 1
      %v1737 = vor.u32 %v1732, %v1736
      %v1739 = vshrl.u32 %v1532, 16
      %v1741 = vshll.u32 %v1532, 16
      %v1743 = vrot.slane %v1741, 1
      %v1744 = vor.u32 %v1739, %v1743
      %v1746 = vshrl.u32 %v1533, 16
      %v1748 = vshll.u32 %v1533, 16
      %v1750 = vrot.slane %v1748, 1
      %v1751 = vor.u32 %v1746, %v1750
      %v1753 = vshrl.u32 %v1534, 16
      %v1755 = vshll.u32 %v1534, 16
      %v1757 = vrot.slane %v1755, 1
      %v1758 = vor.u32 %v1753, %v1757
      %v1759 = vrot.slane %v1503, 1
      %v1760 = vrot.slane %v1504, 1
      %v1761 = vrot.slane %v1505, 1
      %v1762 = vrot.slane %v1506, 1
      %v1763 = vrot.slane %v1507, 1
      %v1764 = vrot.slane %v1508, 1
      %v1765 = vrot.slane %v1509, 1
      %v1766 = vrot.slane %v1510, 1
      %v1767 = vrot.slane %v1511, 1
      %v1768 = vrot.slane %v1512, 1
      %v1769 = vrot.slane %v1513, 1
      %v1770 = vrot.slane %v1514, 1
      %v1771 = vrot.slane %v1515, 1
      %v1772 = vrot.slane %v1516, 1
      %v1773 = vrot.slane %v1517, 1
      %v1774 = vrot.slane %v1518, 1
      %v1775 = vrot.slane %v1519, 1
      %v1776 = vrot.slane %v1520, 1
      %v1777 = vrot.slane %v1521, 1
      %v1778 = vrot.slane %v1522, 1
      %v1779 = vrot.slane %v1523, 1
      %v1780 = vrot.slane %v1524, 1
      %v1781 = vrot.slane %v1525, 1
      %v1782 = vrot.slane %v1526, 1
      %v1783 = vrot.slane %v1527, 1
      %v1784 = vrot.slane %v1528, 1
      %v1785 = vrot.slane %v1529, 1
      %v1786 = vrot.slane %v1530, 1
      %v1787 = vrot.slane %v1531, 1
      %v1788 = vrot.slane %v1532, 1
      %v1789 = vrot.slane %v1533, 1
      %v1790 = vrot.slane %v1534, 1
      %v1799 = vunpack.c.l.b16 %v1311
      %v1800 = vunpack.c.l.b16 %v1312
      %v1801 = vunpack.c.l.b16 %v1331
      %v1802 = vunpack.c.l.b16 %v1332
      %v1803 = vunpack.c.l.b16 %v1351
      %v1804 = vunpack.c.l.b16 %v1352
      %v1805 = vunpack.c.l.b16 %v1371
      %v1806 = vunpack.c.l.b16 %v1372
      %v1807 = vpack.c.b16 %v1800, %v1799
      %v1808 = vpack.c.b16 %v1802, %v1801
      %v1809 = vpack.c.b16 %v1804, %v1803
      %v1810 = vpack.c.b16 %v1806, %v1805
      %v1812 = vshrl.u32 %v1807, 16
      %v1814 = vshll.u32 %v1807, 16
      %v1816 = vrot.slane %v1814, 1
      %v1817 = vor.u32 %v1812, %v1816
      %v1819 = vshrl.u32 %v1808, 16
      %v1821 = vshll.u32 %v1808, 16
      %v1823 = vrot.slane %v1821, 1
      %v1824 = vor.u32 %v1819, %v1823
      %v1826 = vshrl.u32 %v1809, 16
      %v1828 = vshll.u32 %v1809, 16
      %v1830 = vrot.slane %v1828, 1
      %v1831 = vor.u32 %v1826, %v1830
      %v1833 = vshrl.u32 %v1810, 16
      %v1835 = vshll.u32 %v1810, 16
      %v1837 = vrot.slane %v1835, 1
      %v1838 = vor.u32 %v1833, %v1837
      %v1839 = vrot.slane %v1807, 1
      %v1840 = vrot.slane %v1808, 1
      %v1841 = vrot.slane %v1809, 1
      %v1842 = vrot.slane %v1810, 1
      %v1851 = vunpack.c.l.b16 %v1313
      %v1852 = vunpack.c.l.b16 %v1314
      %v1853 = vunpack.c.l.b16 %v1333
      %v1854 = vunpack.c.l.b16 %v1334
      %v1855 = vunpack.c.l.b16 %v1353
      %v1856 = vunpack.c.l.b16 %v1354
      %v1857 = vunpack.c.l.b16 %v1373
      %v1858 = vunpack.c.l.b16 %v1374
      %v1859 = vpack.c.b16 %v1852, %v1851
      %v1860 = vpack.c.b16 %v1854, %v1853
      %v1861 = vpack.c.b16 %v1856, %v1855
      %v1862 = vpack.c.b16 %v1858, %v1857
      %v1864 = vshrl.u32 %v1859, 16
      %v1866 = vshll.u32 %v1859, 16
      %v1868 = vrot.slane %v1866, 1
      %v1869 = vor.u32 %v1864, %v1868
      %v1871 = vshrl.u32 %v1860, 16
      %v1873 = vshll.u32 %v1860, 16
      %v1875 = vrot.slane %v1873, 1
      %v1876 = vor.u32 %v1871, %v1875
      %v1878 = vshrl.u32 %v1861, 16
      %v1880 = vshll.u32 %v1861, 16
      %v1882 = vrot.slane %v1880, 1
      %v1883 = vor.u32 %v1878, %v1882
      %v1885 = vshrl.u32 %v1862, 16
      %v1887 = vshll.u32 %v1862, 16
      %v1889 = vrot.slane %v1887, 1
      %v1890 = vor.u32 %v1885, %v1889
      %v1891 = vrot.slane %v1859, 1
      %v1892 = vrot.slane %v1860, 1
      %v1893 = vrot.slane %v1861, 1
      %v1894 = vrot.slane %v1862, 1
      %v1895 = vunpack.c.l.b16 %v1541
      %v1896 = vunpack.c.l.b16 %v1759
      %v1897 = vunpack.c.l.b16 %v1548
      %v1898 = vunpack.c.l.b16 %v1760
      %v1899 = vunpack.c.l.b16 %v1555
      %v1900 = vunpack.c.l.b16 %v1761
      %v1901 = vunpack.c.l.b16 %v1562
      %v1902 = vunpack.c.l.b16 %v1762
      %v1903 = vunpack.c.l.b16 %v1569
      %v1904 = vunpack.c.l.b16 %v1763
      %v1905 = vunpack.c.l.b16 %v1576
      %v1906 = vunpack.c.l.b16 %v1764
      %v1907 = vunpack.c.l.b16 %v1583
      %v1908 = vunpack.c.l.b16 %v1765
      %v1909 = vunpack.c.l.b16 %v1590
      %v1910 = vunpack.c.l.b16 %v1766
      %v1911 = vunpack.c.l.b16 %v1817
      %v1912 = vunpack.c.l.b16 %v1839
      %v1913 = vunpack.c.l.b16 %v1869
      %v1914 = vunpack.c.l.b16 %v1891
      %v1915 = vunpack.c.l.b16 %v1597
      %v1916 = vunpack.c.l.b16 %v1767
      %v1917 = vunpack.c.l.b16 %v1604
      %v1918 = vunpack.c.l.b16 %v1768
      %v1919 = vunpack.c.l.b16 %v1611
      %v1920 = vunpack.c.l.b16 %v1769
      %v1921 = vunpack.c.l.b16 %v1618
      %v1922 = vunpack.c.l.b16 %v1770
      %v1923 = vunpack.c.l.b16 %v1625
      %v1924 = vunpack.c.l.b16 %v1771
      %v1925 = vunpack.c.l.b16 %v1632
      %v1926 = vunpack.c.l.b16 %v1772
      %v1927 = vunpack.c.l.b16 %v1639
      %v1928 = vunpack.c.l.b16 %v1773
      %v1929 = vunpack.c.l.b16 %v1646
      %v1930 = vunpack.c.l.b16 %v1774
      %v1931 = vunpack.c.l.b16 %v1824
      %v1932 = vunpack.c.l.b16 %v1840
      %v1933 = vunpack.c.l.b16 %v1876
      %v1934 = vunpack.c.l.b16 %v1892
      %v1935 = vunpack.c.l.b16 %v1653
      %v1936 = vunpack.c.l.b16 %v1775
      %v1937 = vunpack.c.l.b16 %v1660
      %v1938 = vunpack.c.l.b16 %v1776
      %v1939 = vunpack.c.l.b16 %v1667
      %v1940 = vunpack.c.l.b16 %v1777
      %v1941 = vunpack.c.l.b16 %v1674
      %v1942 = vunpack.c.l.b16 %v1778
      %v1943 = vunpack.c.l.b16 %v1681
      %v1944 = vunpack.c.l.b16 %v1779
      %v1945 = vunpack.c.l.b16 %v1688
      %v1946 = vunpack.c.l.b16 %v1780
      %v1947 = vunpack.c.l.b16 %v1695
      %v1948 = vunpack.c.l.b16 %v1781
      %v1949 = vunpack.c.l.b16 %v1702
      %v1950 = vunpack.c.l.b16 %v1782
      %v1951 = vunpack.c.l.b16 %v1831
      %v1952 = vunpack.c.l.b16 %v1841
      %v1953 = vunpack.c.l.b16 %v1883
      %v1954 = vunpack.c.l.b16 %v1893
      %v1955 = vunpack.c.l.b16 %v1709
      %v1956 = vunpack.c.l.b16 %v1783
      %v1957 = vunpack.c.l.b16 %v1716
      %v1958 = vunpack.c.l.b16 %v1784
      %v1959 = vunpack.c.l.b16 %v1723
      %v1960 = vunpack.c.l.b16 %v1785
      %v1961 = vunpack.c.l.b16 %v1730
      %v1962 = vunpack.c.l.b16 %v1786
      %v1963 = vunpack.c.l.b16 %v1737
      %v1964 = vunpack.c.l.b16 %v1787
      %v1965 = vunpack.c.l.b16 %v1744
      %v1966 = vunpack.c.l.b16 %v1788
      %v1967 = vunpack.c.l.b16 %v1751
      %v1968 = vunpack.c.l.b16 %v1789
      %v1969 = vunpack.c.l.b16 %v1758
      %v1970 = vunpack.c.l.b16 %v1790
      %v1971 = vunpack.c.l.b16 %v1838
      %v1972 = vunpack.c.l.b16 %v1842
      %v1973 = vunpack.c.l.b16 %v1890
      %v1974 = vunpack.c.l.b16 %v1894
      %v1975 = vld [vmem:[%s3] sm:$0xf]
      %v1976 = vld [vmem:[%s3 + $0x4] sm:$0xf]
      %v1977 = vld [vmem:[%s3 + $0x8] sm:$0xf]
      %v1978 = vld [vmem:[%s3 + $0xc] sm:$0xf]
      %v1979 = vld [vmem:[%s3 + $0x10] sm:$0xf]
      %v1980 = vld [vmem:[%s3 + $0x14] sm:$0xf]
      %v1981 = vld [vmem:[%s3 + $0x18] sm:$0xf]
      %v1982 = vld [vmem:[%s3 + $0x1c] sm:$0xf]
      %v1983 = vld [vmem:[%s3 + $0x20] sm:$0xf]
      %v1984 = vld [vmem:[%s3 + $0x24] sm:$0xf]
      %v1985 = vld [vmem:[%s3 + $0x28] sm:$0xf]
      %v1986 = vld [vmem:[%s3 + $0x2c] sm:$0xf]
      %v1987 = vld [vmem:[%s3 + $0x30] sm:$0xf]
      %v1988 = vld [vmem:[%s3 + $0x34] sm:$0xf]
      %v1989 = vld [vmem:[%s3 + $0x38] sm:$0xf]
      %v1990 = vld [vmem:[%s3 + $0x3c] sm:$0xf]
      %v1991 = vld [vmem:[%s3 + $0x40] sm:$0xf]
      %v1992 = vld [vmem:[%s3 + $0x44] sm:$0xf]
      %v1993 = vld [vmem:[%s3 + $0x48] sm:$0xf]
      %v1994 = vld [vmem:[%s3 + $0x4c] sm:$0xf]
      %v1995 = vld [vmem:[%s3 + $0x50] sm:$0xf]
      %v1996 = vld [vmem:[%s3 + $0x54] sm:$0xf]
      %v1997 = vld [vmem:[%s3 + $0x58] sm:$0xf]
      %v1998 = vld [vmem:[%s3 + $0x5c] sm:$0xf]
      %v1999 = vld [vmem:[%s3 + $0x60] sm:$0xf]
      %v2000 = vld [vmem:[%s3 + $0x64] sm:$0xf]
      %v2001 = vld [vmem:[%s3 + $0x68] sm:$0xf]
      %v2002 = vld [vmem:[%s3 + $0x6c] sm:$0xf]
      %v2003 = vld [vmem:[%s3 + $0x70] sm:$0xf]
      %v2004 = vld [vmem:[%s3 + $0x74] sm:$0xf]
      %v2005 = vld [vmem:[%s3 + $0x78] sm:$0xf]
      %v2006 = vld [vmem:[%s3 + $0x7c] sm:$0xf]
      %v2007 = vld [vmem:[%s3 + $0x80] sm:$0xf]
      %v2008 = vld [vmem:[%s3 + $0x84] sm:$0xf]
      %v2009 = vld [vmem:[%s3 + $0x88] sm:$0xf]
      %v2010 = vld [vmem:[%s3 + $0x8c] sm:$0xf]
      %v2011 = vld [vmem:[%s3 + $0x90] sm:$0xf]
      %v2012 = vld [vmem:[%s3 + $0x94] sm:$0xf]
      %v2013 = vld [vmem:[%s3 + $0x98] sm:$0xf]
      %v2014 = vld [vmem:[%s3 + $0x9c] sm:$0xf]
      %v2015 = vld [vmem:[%s3 + $0xa0] sm:$0xf]
      %v2016 = vld [vmem:[%s3 + $0xa4] sm:$0xf]
      %v2017 = vld [vmem:[%s3 + $0xa8] sm:$0xf]
      %v2018 = vld [vmem:[%s3 + $0xac] sm:$0xf]
      %v2019 = vld [vmem:[%s3 + $0xb0] sm:$0xf]
      %v2020 = vld [vmem:[%s3 + $0xb4] sm:$0xf]
      %v2021 = vld [vmem:[%s3 + $0xb8] sm:$0xf]
      %v2022 = vld [vmem:[%s3 + $0xbc] sm:$0xf]
      %v2023 = vld [vmem:[%s3 + $0xc0] sm:$0xf]
      %v2024 = vld [vmem:[%s3 + $0xc4] sm:$0xf]
      %v2025 = vld [vmem:[%s3 + $0xc8] sm:$0xf]
      %v2026 = vld [vmem:[%s3 + $0xcc] sm:$0xf]
      %v2027 = vld [vmem:[%s3 + $0xd0] sm:$0xf]
      %v2028 = vld [vmem:[%s3 + $0xd4] sm:$0xf]
      %v2029 = vld [vmem:[%s3 + $0xd8] sm:$0xf]
      %v2030 = vld [vmem:[%s3 + $0xdc] sm:$0xf]
      %v2031 = vld [vmem:[%s3 + $0xe0] sm:$0xf]
      %v2032 = vld [vmem:[%s3 + $0xe4] sm:$0xf]
      %v2033 = vld [vmem:[%s3 + $0xe8] sm:$0xf]
      %v2034 = vld [vmem:[%s3 + $0xec] sm:$0xf]
      %v2035 = vld [vmem:[%s3 + $0xf0] sm:$0xf]
      %v2036 = vld [vmem:[%s3 + $0xf4] sm:$0xf]
      %v2037 = vld [vmem:[%s3 + $0xf8] sm:$0xf]
      %v2038 = vld [vmem:[%s3 + $0xfc] sm:$0xf]
      %v2039 = vld [vmem:[%s3 + $0x100] sm:$0xf]
      %v2040 = vld [vmem:[%s3 + $0x104] sm:$0xf]
      %v2041 = vld [vmem:[%s3 + $0x108] sm:$0xf]
      %v2042 = vld [vmem:[%s3 + $0x10c] sm:$0xf]
      %v2043 = vld [vmem:[%s3 + $0x110] sm:$0xf]
      %v2044 = vld [vmem:[%s3 + $0x114] sm:$0xf]
      %v2045 = vld [vmem:[%s3 + $0x118] sm:$0xf]
      %v2046 = vld [vmem:[%s3 + $0x11c] sm:$0xf]
      %v2047 = vld [vmem:[%s3 + $0x120] sm:$0xf]
      %v2048 = vld [vmem:[%s3 + $0x124] sm:$0xf]
      %v2049 = vld [vmem:[%s3 + $0x128] sm:$0xf]
      %v2050 = vld [vmem:[%s3 + $0x12c] sm:$0xf]
      %v2051 = vld [vmem:[%s3 + $0x130] sm:$0xf]
      %v2052 = vld [vmem:[%s3 + $0x134] sm:$0xf]
      %v2053 = vld [vmem:[%s3 + $0x138] sm:$0xf]
      %v2054 = vld [vmem:[%s3 + $0x13c] sm:$0xf]
      %v2055 = vld [vmem:[%s3 + $0x140] sm:$0xf]
      %v2056 = vld [vmem:[%s3 + $0x144] sm:$0xf]
      %v2057 = vld [vmem:[%s3 + $0x148] sm:$0xf]
      %v2058 = vld [vmem:[%s3 + $0x14c] sm:$0xf]
      %v2059 = vld [vmem:[%s3 + $0x150] sm:$0xf]
      %v2060 = vld [vmem:[%s3 + $0x154] sm:$0xf]
      %v2061 = vld [vmem:[%s3 + $0x158] sm:$0xf]
      %v2062 = vld [vmem:[%s3 + $0x15c] sm:$0xf]
      %v2063 = vld [vmem:[%s3 + $0x160] sm:$0xf]
      %v2064 = vld [vmem:[%s3 + $0x164] sm:$0xf]
      %v2065 = vld [vmem:[%s3 + $0x168] sm:$0xf]
      %v2066 = vld [vmem:[%s3 + $0x16c] sm:$0xf]
      %v2067 = vld [vmem:[%s3 + $0x170] sm:$0xf]
      %v2068 = vld [vmem:[%s3 + $0x174] sm:$0xf]
      %v2069 = vld [vmem:[%s3 + $0x178] sm:$0xf]
      %v2070 = vld [vmem:[%s3 + $0x17c] sm:$0xf]
      %v2071 = vld [vmem:[%s3 + $0x180] sm:$0xf]
      %v2072 = vld [vmem:[%s3 + $0x184] sm:$0xf]
      %v2073 = vld [vmem:[%s3 + $0x188] sm:$0xf]
      %v2074 = vld [vmem:[%s3 + $0x18c] sm:$0xf]
      %v2075 = vld [vmem:[%s3 + $0x190] sm:$0xf]
      %v2076 = vld [vmem:[%s3 + $0x194] sm:$0xf]
      %v2077 = vld [vmem:[%s3 + $0x198] sm:$0xf]
      %v2078 = vld [vmem:[%s3 + $0x19c] sm:$0xf]
      %v2079 = vld [vmem:[%s3 + $0x1a0] sm:$0xf]
      %v2080 = vld [vmem:[%s3 + $0x1a4] sm:$0xf]
      %v2081 = vld [vmem:[%s3 + $0x1a8] sm:$0xf]
      %v2082 = vld [vmem:[%s3 + $0x1ac] sm:$0xf]
      %v2083 = vld [vmem:[%s3 + $0x1b0] sm:$0xf]
      %v2084 = vld [vmem:[%s3 + $0x1b4] sm:$0xf]
      %v2085 = vld [vmem:[%s3 + $0x1b8] sm:$0xf]
      %v2086 = vld [vmem:[%s3 + $0x1bc] sm:$0xf]
      %v2087 = vld [vmem:[%s3 + $0x1c0] sm:$0xf]
      %v2088 = vld [vmem:[%s3 + $0x1c4] sm:$0xf]
      %v2089 = vld [vmem:[%s3 + $0x1c8] sm:$0xf]
      %v2090 = vld [vmem:[%s3 + $0x1cc] sm:$0xf]
      %v2091 = vld [vmem:[%s3 + $0x1d0] sm:$0xf]
      %v2092 = vld [vmem:[%s3 + $0x1d4] sm:$0xf]
      %v2093 = vld [vmem:[%s3 + $0x1d8] sm:$0xf]
      %v2094 = vld [vmem:[%s3 + $0x1dc] sm:$0xf]
      %v2095 = vld [vmem:[%s3 + $0x1e0] sm:$0xf]
      %v2096 = vld [vmem:[%s3 + $0x1e4] sm:$0xf]
      %v2097 = vld [vmem:[%s3 + $0x1e8] sm:$0xf]
      %v2098 = vld [vmem:[%s3 + $0x1ec] sm:$0xf]
      %v2099 = vld [vmem:[%s3 + $0x1f0] sm:$0xf]
      %v2100 = vld [vmem:[%s3 + $0x1f4] sm:$0xf]
      %v2101 = vld [vmem:[%s3 + $0x1f8] sm:$0xf]
      %v2102 = vld [vmem:[%s3 + $0x1fc] sm:$0xf]
      %v2103 = vld [vmem:[%s3 + $0x200] sm:$0xf]
      %v2104 = vld [vmem:[%s3 + $0x204] sm:$0xf]
      %v2105 = vld [vmem:[%s3 + $0x208] sm:$0xf]
      %v2106 = vld [vmem:[%s3 + $0x20c] sm:$0xf]
      %v2107 = vld [vmem:[%s3 + $0x210] sm:$0xf]
      %v2108 = vld [vmem:[%s3 + $0x214] sm:$0xf]
      %v2109 = vld [vmem:[%s3 + $0x218] sm:$0xf]
      %v2110 = vld [vmem:[%s3 + $0x21c] sm:$0xf]
      %v2111 = vld [vmem:[%s3 + $0x220] sm:$0xf]
      %v2112 = vld [vmem:[%s3 + $0x224] sm:$0xf]
      %v2113 = vld [vmem:[%s3 + $0x228] sm:$0xf]
      %v2114 = vld [vmem:[%s3 + $0x22c] sm:$0xf]
      %v2115 = vld [vmem:[%s3 + $0x230] sm:$0xf]
      %v2116 = vld [vmem:[%s3 + $0x234] sm:$0xf]
      %v2117 = vld [vmem:[%s3 + $0x238] sm:$0xf]
      %v2118 = vld [vmem:[%s3 + $0x23c] sm:$0xf]
      %v2119 = vpack.c.b16 %v1441, %v1439
      %v2120 = vpack.c.b16 %v1897, %v1895
      %v2121 = vpack.c.b16 %v1898, %v1896
      %v2122 = vpack.c.b16 %v1443, %v1441
      %v2123 = vpack.c.b16 %v1899, %v1897
      %v2124 = vpack.c.b16 %v1900, %v1898
      %v2125 = vpack.c.b16 %v1445, %v1443
      %v2126 = vpack.c.b16 %v1901, %v1899
      %v2127 = vpack.c.b16 %v1902, %v1900
      %v2128 = vpack.c.b16 %v1447, %v1445
      %v2129 = vpack.c.b16 %v1903, %v1901
      %v2130 = vpack.c.b16 %v1904, %v1902
      %v2131 = vpack.c.b16 %v1449, %v1447
      %v2132 = vpack.c.b16 %v1905, %v1903
      %v2133 = vpack.c.b16 %v1906, %v1904
      %v2134 = vpack.c.b16 %v1451, %v1449
      %v2135 = vpack.c.b16 %v1907, %v1905
      %v2136 = vpack.c.b16 %v1908, %v1906
      %v2137 = vpack.c.b16 %v1453, %v1451
      %v2138 = vpack.c.b16 %v1909, %v1907
      %v2139 = vpack.c.b16 %v1910, %v1908
      %v2140 = vpack.c.b16 %v1799, %v1453
      %v2141 = vpack.c.b16 %v1911, %v1909
      %v2142 = vpack.c.b16 %v1912, %v1910
      %v2143 = vpack.c.b16 %v1851, %v1799
      %v2144 = vpack.c.b16 %v1913, %v1911
      %v2145 = vpack.c.b16 %v1914, %v1912
      %v2146 = vpack.c.b16 %v1457, %v1455
      %v2147 = vpack.c.b16 %v1917, %v1915
      %v2148 = vpack.c.b16 %v1918, %v1916
      %v2149 = vpack.c.b16 %v1459, %v1457
      %v2150 = vpack.c.b16 %v1919, %v1917
      %v2151 = vpack.c.b16 %v1920, %v1918
      %v2152 = vpack.c.b16 %v1461, %v1459
      %v2153 = vpack.c.b16 %v1921, %v1919
      %v2154 = vpack.c.b16 %v1922, %v1920
      %v2155 = vpack.c.b16 %v1463, %v1461
      %v2156 = vpack.c.b16 %v1923, %v1921
      %v2157 = vpack.c.b16 %v1924, %v1922
      %v2158 = vpack.c.b16 %v1465, %v1463
      %v2159 = vpack.c.b16 %v1925, %v1923
      %v2160 = vpack.c.b16 %v1926, %v1924
      %v2161 = vpack.c.b16 %v1467, %v1465
      %v2162 = vpack.c.b16 %v1927, %v1925
      %v2163 = vpack.c.b16 %v1928, %v1926
      %v2164 = vpack.c.b16 %v1469, %v1467
      %v2165 = vpack.c.b16 %v1929, %v1927
      %v2166 = vpack.c.b16 %v1930, %v1928
      %v2167 = vpack.c.b16 %v1801, %v1469
      %v2168 = vpack.c.b16 %v1931, %v1929
      %v2169 = vpack.c.b16 %v1932, %v1930
      %v2170 = vpack.c.b16 %v1853, %v1801
      %v2171 = vpack.c.b16 %v1933, %v1931
      %v2172 = vpack.c.b16 %v1934, %v1932
      %v2173 = vpack.c.b16 %v1473, %v1471
      %v2174 = vpack.c.b16 %v1937, %v1935
      %v2175 = vpack.c.b16 %v1938, %v1936
      %v2176 = vpack.c.b16 %v1475, %v1473
      %v2177 = vpack.c.b16 %v1939, %v1937
      %v2178 = vpack.c.b16 %v1940, %v1938
      %v2179 = vpack.c.b16 %v1477, %v1475
      %v2180 = vpack.c.b16 %v1941, %v1939
      %v2181 = vpack.c.b16 %v1942, %v1940
      %v2182 = vpack.c.b16 %v1479, %v1477
      %v2183 = vpack.c.b16 %v1943, %v1941
      %v2184 = vpack.c.b16 %v1944, %v1942
      %v2185 = vpack.c.b16 %v1481, %v1479
      %v2186 = vpack.c.b16 %v1945, %v1943
      %v2187 = vpack.c.b16 %v1946, %v1944
      %v2188 = vpack.c.b16 %v1483, %v1481
      %v2189 = vpack.c.b16 %v1947, %v1945
      %v2190 = vpack.c.b16 %v1948, %v1946
      %v2191 = vpack.c.b16 %v1485, %v1483
      %v2192 = vpack.c.b16 %v1949, %v1947
      %v2193 = vpack.c.b16 %v1950, %v1948
      %v2194 = vpack.c.b16 %v1803, %v1485
      %v2195 = vpack.c.b16 %v1951, %v1949
      %v2196 = vpack.c.b16 %v1952, %v1950
      %v2197 = vpack.c.b16 %v1855, %v1803
      %v2198 = vpack.c.b16 %v1953, %v1951
      %v2199 = vpack.c.b16 %v1954, %v1952
      %v2200 = vpack.c.b16 %v1489, %v1487
      %v2201 = vpack.c.b16 %v1957, %v1955
      %v2202 = vpack.c.b16 %v1958, %v1956
      %v2203 = vpack.c.b16 %v1491, %v1489
      %v2204 = vpack.c.b16 %v1959, %v1957
      %v2205 = vpack.c.b16 %v1960, %v1958
      %v2206 = vpack.c.b16 %v1493, %v1491
      %v2207 = vpack.c.b16 %v1961, %v1959
      %v2208 = vpack.c.b16 %v1962, %v1960
      %v2209 = vpack.c.b16 %v1495, %v1493
      %v2210 = vpack.c.b16 %v1963, %v1961
      %v2211 = vpack.c.b16 %v1964, %v1962
      %v2212 = vpack.c.b16 %v1497, %v1495
      %v2213 = vpack.c.b16 %v1965, %v1963
      %v2214 = vpack.c.b16 %v1966, %v1964
      %v2215 = vpack.c.b16 %v1499, %v1497
      %v2216 = vpack.c.b16 %v1967, %v1965
      %v2217 = vpack.c.b16 %v1968, %v1966
      %v2218 = vpack.c.b16 %v1501, %v1499
      %v2219 = vpack.c.b16 %v1969, %v1967
      %v2220 = vpack.c.b16 %v1970, %v1968
      %v2221 = vpack.c.b16 %v1805, %v1501
      %v2222 = vpack.c.b16 %v1971, %v1969
      %v2223 = vpack.c.b16 %v1972, %v1970
      %v2224 = vpack.c.b16 %v1857, %v1805
      %v2225 = vpack.c.b16 %v1973, %v1971
      %v2226 = vpack.c.b16 %v1974, %v1972
      %v2479 = vunpack.c.l.b16 %v1975
      %v2480 = vunpack.c.l.b16 %v1976
      %v2481 = vunpack.c.l.b16 %v1977
      %v2482 = vunpack.c.l.b16 %v1978
      %v2483 = vunpack.c.l.b16 %v1979
      %v2484 = vunpack.c.l.b16 %v1980
      %v2485 = vunpack.c.l.b16 %v1981
      %v2486 = vunpack.c.l.b16 %v1982
      %v2487 = vunpack.c.l.b16 %v1983
      %v2488 = vunpack.c.l.b16 %v1984
      %v2489 = vunpack.c.l.b16 %v1985
      %v2490 = vunpack.c.l.b16 %v1986
      %v2491 = vunpack.c.l.b16 %v1987
      %v2492 = vunpack.c.l.b16 %v1988
      %v2493 = vunpack.c.l.b16 %v1989
      %v2494 = vunpack.c.l.b16 %v1990
      %v2495 = vunpack.c.l.b16 %v1991
      %v2496 = vunpack.c.l.b16 %v1992
      %v2497 = vunpack.c.l.b16 %v1993
      %v2498 = vunpack.c.l.b16 %v1994
      %v2499 = vunpack.c.l.b16 %v1995
      %v2500 = vunpack.c.l.b16 %v1996
      %v2501 = vunpack.c.l.b16 %v1997
      %v2502 = vunpack.c.l.b16 %v1998
      %v2503 = vunpack.c.l.b16 %v1999
      %v2504 = vunpack.c.l.b16 %v2000
      %v2505 = vunpack.c.l.b16 %v2001
      %v2506 = vunpack.c.l.b16 %v2002
      %v2507 = vunpack.c.l.b16 %v2003
      %v2508 = vunpack.c.l.b16 %v2004
      %v2509 = vunpack.c.l.b16 %v2005
      %v2510 = vunpack.c.l.b16 %v2006
      %v2511 = vunpack.c.l.b16 %v2007
      %v2512 = vunpack.c.l.b16 %v2008
      %v2513 = vunpack.c.l.b16 %v2009
      %v2514 = vunpack.c.l.b16 %v2010
      %v2515 = vunpack.c.l.b16 %v2011
      %v2516 = vunpack.c.l.b16 %v2012
      %v2517 = vunpack.c.l.b16 %v2013
      %v2518 = vunpack.c.l.b16 %v2014
      %v2519 = vunpack.c.l.b16 %v2015
      %v2520 = vunpack.c.l.b16 %v2016
      %v2521 = vunpack.c.l.b16 %v2017
      %v2522 = vunpack.c.l.b16 %v2018
      %v2523 = vunpack.c.l.b16 %v2019
      %v2524 = vunpack.c.l.b16 %v2020
      %v2525 = vunpack.c.l.b16 %v2021
      %v2526 = vunpack.c.l.b16 %v2022
      %v2527 = vunpack.c.l.b16 %v2023
      %v2528 = vunpack.c.l.b16 %v2024
      %v2529 = vunpack.c.l.b16 %v2025
      %v2530 = vunpack.c.l.b16 %v2026
      %v2531 = vunpack.c.l.b16 %v2027
      %v2532 = vunpack.c.l.b16 %v2028
      %v2533 = vunpack.c.l.b16 %v2029
      %v2534 = vunpack.c.l.b16 %v2030
      %v2535 = vunpack.c.l.b16 %v2031
      %v2536 = vunpack.c.l.b16 %v2032
      %v2537 = vunpack.c.l.b16 %v2033
      %v2538 = vunpack.c.l.b16 %v2034
      %v2539 = vunpack.c.l.b16 %v2035
      %v2540 = vunpack.c.l.b16 %v2036
      %v2541 = vunpack.c.l.b16 %v2037
      %v2542 = vunpack.c.l.b16 %v2038
      %v2543 = vunpack.c.l.b16 %v2039
      %v2544 = vunpack.c.l.b16 %v2040
      %v2545 = vunpack.c.l.b16 %v2041
      %v2546 = vunpack.c.l.b16 %v2042
      %v2547 = vunpack.c.l.b16 %v2043
      %v2548 = vunpack.c.l.b16 %v2044
      %v2549 = vunpack.c.l.b16 %v2045
      %v2550 = vunpack.c.l.b16 %v2046
      %v2551 = vunpack.c.l.b16 %v2047
      %v2552 = vunpack.c.l.b16 %v2048
      %v2553 = vunpack.c.l.b16 %v2049
      %v2554 = vunpack.c.l.b16 %v2050
      %v2555 = vunpack.c.l.b16 %v2051
      %v2556 = vunpack.c.l.b16 %v2052
      %v2557 = vunpack.c.l.b16 %v2053
      %v2558 = vunpack.c.l.b16 %v2054
      %v2559 = vunpack.c.l.b16 %v2055
      %v2560 = vunpack.c.l.b16 %v2056
      %v2561 = vunpack.c.l.b16 %v2057
      %v2562 = vunpack.c.l.b16 %v2058
      %v2563 = vunpack.c.l.b16 %v2059
      %v2564 = vunpack.c.l.b16 %v2060
      %v2565 = vunpack.c.l.b16 %v2061
      %v2566 = vunpack.c.l.b16 %v2062
      %v2567 = vunpack.c.l.b16 %v2063
      %v2568 = vunpack.c.l.b16 %v2064
      %v2569 = vunpack.c.l.b16 %v2065
      %v2570 = vunpack.c.l.b16 %v2066
      %v2571 = vunpack.c.l.b16 %v2067
      %v2572 = vunpack.c.l.b16 %v2068
      %v2573 = vunpack.c.l.b16 %v2069
      %v2574 = vunpack.c.l.b16 %v2070
      %v2575 = vunpack.c.l.b16 %v2071
      %v2576 = vunpack.c.l.b16 %v2072
      %v2577 = vunpack.c.l.b16 %v2073
      %v2578 = vunpack.c.l.b16 %v2074
      %v2579 = vunpack.c.l.b16 %v2075
      %v2580 = vunpack.c.l.b16 %v2076
      %v2581 = vunpack.c.l.b16 %v2077
      %v2582 = vunpack.c.l.b16 %v2078
      %v2583 = vunpack.c.l.b16 %v2079
      %v2584 = vunpack.c.l.b16 %v2080
      %v2585 = vunpack.c.l.b16 %v2081
      %v2586 = vunpack.c.l.b16 %v2082
      %v2587 = vunpack.c.l.b16 %v2083
      %v2588 = vunpack.c.l.b16 %v2084
      %v2589 = vunpack.c.l.b16 %v2085
      %v2590 = vunpack.c.l.b16 %v2086
      %v2591 = vunpack.c.l.b16 %v2087
      %v2592 = vunpack.c.l.b16 %v2088
      %v2593 = vunpack.c.l.b16 %v2089
      %v2594 = vunpack.c.l.b16 %v2090
      %v2595 = vunpack.c.l.b16 %v2091
      %v2596 = vunpack.c.l.b16 %v2092
      %v2597 = vunpack.c.l.b16 %v2093
      %v2598 = vunpack.c.l.b16 %v2094
      %v2599 = vunpack.c.l.b16 %v2095
      %v2600 = vunpack.c.l.b16 %v2096
      %v2601 = vunpack.c.l.b16 %v2097
      %v2602 = vunpack.c.l.b16 %v2098
      %v2603 = vunpack.c.l.b16 %v2099
      %v2604 = vunpack.c.l.b16 %v2100
      %v2605 = vunpack.c.l.b16 %v2101
      %v2606 = vunpack.c.l.b16 %v2102
      %v2607 = vunpack.c.l.b16 %v2103
      %v2608 = vunpack.c.l.b16 %v2104
      %v2609 = vunpack.c.l.b16 %v2105
      %v2610 = vunpack.c.l.b16 %v2106
      %v2611 = vunpack.c.l.b16 %v2107
      %v2612 = vunpack.c.l.b16 %v2108
      %v2613 = vunpack.c.l.b16 %v2109
      %v2614 = vunpack.c.l.b16 %v2110
      %v2615 = vunpack.c.l.b16 %v2111
      %v2616 = vunpack.c.l.b16 %v2112
      %v2617 = vunpack.c.l.b16 %v2113
      %v2618 = vunpack.c.l.b16 %v2114
      %v2619 = vunpack.c.l.b16 %v2115
      %v2620 = vunpack.c.l.b16 %v2116
      %v2621 = vunpack.c.l.b16 %v2117
      %v2622 = vunpack.c.l.b16 %v2118
      %v2623 = vpack.c.b16 %v2480, %v2479
      %v2624 = vpack.c.b16 %v2482, %v2481
      %v2625 = vpack.c.b16 %v2484, %v2483
      %v2626 = vpack.c.b16 %v2486, %v2485
      %v2627 = vpack.c.b16 %v2488, %v2487
      %v2628 = vpack.c.b16 %v2490, %v2489
      %v2629 = vpack.c.b16 %v2492, %v2491
      %v2630 = vpack.c.b16 %v2494, %v2493
      %v2631 = vpack.c.b16 %v2496, %v2495
      %v2632 = vpack.c.b16 %v2498, %v2497
      %v2633 = vpack.c.b16 %v2500, %v2499
      %v2634 = vpack.c.b16 %v2502, %v2501
      %v2635 = vpack.c.b16 %v2504, %v2503
      %v2636 = vpack.c.b16 %v2506, %v2505
      %v2637 = vpack.c.b16 %v2508, %v2507
      %v2638 = vpack.c.b16 %v2510, %v2509
      %v2639 = vpack.c.b16 %v2512, %v2511
      %v2640 = vpack.c.b16 %v2514, %v2513
      %v2641 = vpack.c.b16 %v2516, %v2515
      %v2642 = vpack.c.b16 %v2518, %v2517
      %v2643 = vpack.c.b16 %v2520, %v2519
      %v2644 = vpack.c.b16 %v2522, %v2521
      %v2645 = vpack.c.b16 %v2524, %v2523
      %v2646 = vpack.c.b16 %v2526, %v2525
      %v2647 = vpack.c.b16 %v2528, %v2527
      %v2648 = vpack.c.b16 %v2530, %v2529
      %v2649 = vpack.c.b16 %v2532, %v2531
      %v2650 = vpack.c.b16 %v2534, %v2533
      %v2651 = vpack.c.b16 %v2536, %v2535
      %v2652 = vpack.c.b16 %v2538, %v2537
      %v2653 = vpack.c.b16 %v2540, %v2539
      %v2654 = vpack.c.b16 %v2542, %v2541
      %v2655 = vpack.c.b16 %v2544, %v2543
      %v2656 = vpack.c.b16 %v2546, %v2545
      %v2657 = vpack.c.b16 %v2548, %v2547
      %v2658 = vpack.c.b16 %v2550, %v2549
      %v2659 = vpack.c.b16 %v2552, %v2551
      %v2660 = vpack.c.b16 %v2554, %v2553
      %v2661 = vpack.c.b16 %v2556, %v2555
      %v2662 = vpack.c.b16 %v2558, %v2557
      %v2663 = vpack.c.b16 %v2560, %v2559
      %v2664 = vpack.c.b16 %v2562, %v2561
      %v2665 = vpack.c.b16 %v2564, %v2563
      %v2666 = vpack.c.b16 %v2566, %v2565
      %v2667 = vpack.c.b16 %v2568, %v2567
      %v2668 = vpack.c.b16 %v2570, %v2569
      %v2669 = vpack.c.b16 %v2572, %v2571
      %v2670 = vpack.c.b16 %v2574, %v2573
      %v2671 = vpack.c.b16 %v2576, %v2575
      %v2672 = vpack.c.b16 %v2578, %v2577
      %v2673 = vpack.c.b16 %v2580, %v2579
      %v2674 = vpack.c.b16 %v2582, %v2581
      %v2675 = vpack.c.b16 %v2584, %v2583
      %v2676 = vpack.c.b16 %v2586, %v2585
      %v2677 = vpack.c.b16 %v2588, %v2587
      %v2678 = vpack.c.b16 %v2590, %v2589
      %v2679 = vpack.c.b16 %v2592, %v2591
      %v2680 = vpack.c.b16 %v2594, %v2593
      %v2681 = vpack.c.b16 %v2596, %v2595
      %v2682 = vpack.c.b16 %v2598, %v2597
      %v2683 = vpack.c.b16 %v2600, %v2599
      %v2684 = vpack.c.b16 %v2602, %v2601
      %v2685 = vpack.c.b16 %v2604, %v2603
      %v2686 = vpack.c.b16 %v2606, %v2605
      %v2687 = vpack.c.b16 %v2608, %v2607
      %v2688 = vpack.c.b16 %v2610, %v2609
      %v2689 = vpack.c.b16 %v2612, %v2611
      %v2690 = vpack.c.b16 %v2614, %v2613
      %v2691 = vpack.c.b16 %v2616, %v2615
      %v2692 = vpack.c.b16 %v2618, %v2617
      %v2693 = vpack.c.b16 %v2620, %v2619
      %v2694 = vpack.c.b16 %v2622, %v2621
      %2767 = vmatprep.subr.bf16.mxu0 0
      %2768 = vmatpush1.bf16.msra.mxu0 %v2630
      %2769 = vmatprep.subr.bf16.mxu0 0
      %2770 = vmatpush1.bf16.msra.mxu0 %v2629
      %2771 = vmatprep.subr.bf16.mxu0 0
      %2772 = vmatpush1.bf16.msra.mxu0 %v2628
      %2773 = vmatprep.subr.bf16.mxu0 0
      %2774 = vmatpush1.bf16.msra.mxu0 %v2627
      %2775 = vmatprep.subr.bf16.mxu0 0
      %2776 = vmatpush1.bf16.msra.mxu0 %v2626
      %2777 = vmatprep.subr.bf16.mxu0 0
      %2778 = vmatpush1.bf16.msra.mxu0 %v2625
      %2779 = vmatprep.subr.bf16.mxu0 0
      %2780 = vmatpush1.bf16.msra.mxu0 %v2624
      %2781 = vmatprep.subr.bf16.mxu0 0
      %2782 = vmatpush1.bf16.msra.mxu0 %v2623
      %2783 = vmatprep.subr.bf16.mxu0 0
      %2784 = vmatpush2.bf16.msra.mxu0 %v2638
      %2785 = vmatprep.subr.bf16.mxu0 0
      %2786 = vmatpush2.bf16.msra.mxu0 %v2637
      %2787 = vmatprep.subr.bf16.mxu0 0
      %2788 = vmatpush2.bf16.msra.mxu0 %v2636
      %2789 = vmatprep.subr.bf16.mxu0 0
      %2790 = vmatpush2.bf16.msra.mxu0 %v2635
      %2791 = vmatprep.subr.bf16.mxu0 0
      %2792 = vmatpush2.bf16.msra.mxu0 %v2634
      %2793 = vmatprep.subr.bf16.mxu0 0
      %2794 = vmatpush2.bf16.msra.mxu0 %v2633
      %2795 = vmatprep.subr.bf16.mxu0 0
      %2796 = vmatpush2.bf16.msra.mxu0 %v2632
      %2797 = vmatprep.subr.bf16.mxu0 0
      %2798 = vmatpush2.bf16.msra.mxu0 %v2631
      %2799 = vmatprep.mubr.bf16.mxu0 %v2120
      %2800 = vmatmul.mubr.bf16.gmra.mxu0 %v2119
      %v2801 = vpop.f32.mrf.mxu0
      %v2802 = vadd.f32 0.0, %v2801
      %v2803 = vpop.f32.mrf.mxu0
      %v2804 = vpop.f32.mrf.mxu0
      %v2805 = vadd.f32 0.0, %v2804
      %v2806 = vpop.f32.mrf.mxu0
      %2807 = vmatprep.mubr.bf16.mxu0 %v2126
      %2808 = vmatmul.mubr.bf16.gmra.mxu0 %v2125
      %v2809 = vpop.f32.mrf.mxu0
      %v2810 = vadd.f32 0.0, %v2809
      %v2811 = vpop.f32.mrf.mxu0
      %v2812 = vpop.f32.mrf.mxu0
      %v2813 = vadd.f32 0.0, %v2812
      %v2814 = vpop.f32.mrf.mxu0
      %2815 = vmatprep.mubr.bf16.mxu0 %v2132
      %2816 = vmatmul.mubr.bf16.gmra.mxu0 %v2131
      %v2817 = vpop.f32.mrf.mxu0
      %v2818 = vadd.f32 0.0, %v2817
      %v2819 = vpop.f32.mrf.mxu0
      %v2820 = vpop.f32.mrf.mxu0
      %v2821 = vadd.f32 0.0, %v2820
      %v2822 = vpop.f32.mrf.mxu0
      %2823 = vmatprep.mubr.bf16.mxu0 %v2138
      %2824 = vmatmul.mubr.bf16.gmra.mxu0 %v2137
      %v2825 = vpop.f32.mrf.mxu0
      %v2826 = vadd.f32 0.0, %v2825
      %v2827 = vpop.f32.mrf.mxu0
      %v2828 = vpop.f32.mrf.mxu0
      %v2829 = vadd.f32 0.0, %v2828
      %v2830 = vpop.f32.mrf.mxu0
      %2831 = vmatprep.mubr.bf16.mxu0 %v2147
      %2832 = vmatmul.mubr.bf16.gmra.mxu0 %v2146
      %v2833 = vpop.f32.mrf.mxu0
      %v2834 = vadd.f32 0.0, %v2833
      %v2835 = vpop.f32.mrf.mxu0
      %v2836 = vpop.f32.mrf.mxu0
      %v2837 = vadd.f32 0.0, %v2836
      %v2838 = vpop.f32.mrf.mxu0
      %2839 = vmatprep.mubr.bf16.mxu0 %v2153
      %2840 = vmatmul.mubr.bf16.gmra.mxu0 %v2152
      %v2841 = vpop.f32.mrf.mxu0
      %v2842 = vadd.f32 0.0, %v2841
      %v2843 = vpop.f32.mrf.mxu0
      %v2844 = vpop.f32.mrf.mxu0
      %v2845 = vadd.f32 0.0, %v2844
      %v2846 = vpop.f32.mrf.mxu0
      %2847 = vmatprep.mubr.bf16.mxu0 %v2159
      %2848 = vmatmul.mubr.bf16.gmra.mxu0 %v2158
      %v2849 = vpop.f32.mrf.mxu0
      %v2850 = vadd.f32 0.0, %v2849
      %v2851 = vpop.f32.mrf.mxu0
      %v2852 = vpop.f32.mrf.mxu0
      %v2853 = vadd.f32 0.0, %v2852
      %v2854 = vpop.f32.mrf.mxu0
      %2855 = vmatprep.mubr.bf16.mxu0 %v2165
      %2856 = vmatmul.mubr.bf16.gmra.mxu0 %v2164
      %v2857 = vpop.f32.mrf.mxu0
      %v2858 = vadd.f32 0.0, %v2857
      %v2859 = vpop.f32.mrf.mxu0
      %v2860 = vpop.f32.mrf.mxu0
      %v2861 = vadd.f32 0.0, %v2860
      %v2862 = vpop.f32.mrf.mxu0
      %2863 = vmatprep.mubr.bf16.mxu0 %v2174
      %2864 = vmatmul.mubr.bf16.gmra.mxu0 %v2173
      %v2865 = vpop.f32.mrf.mxu0
      %v2866 = vadd.f32 0.0, %v2865
      %v2867 = vpop.f32.mrf.mxu0
      %v2868 = vpop.f32.mrf.mxu0
      %v2869 = vadd.f32 0.0, %v2868
      %v2870 = vpop.f32.mrf.mxu0
      %2871 = vmatprep.mubr.bf16.mxu0 %v2180
      %2872 = vmatmul.mubr.bf16.gmra.mxu0 %v2179
      %v2873 = vpop.f32.mrf.mxu0
      %v2874 = vadd.f32 0.0, %v2873
      %v2875 = vpop.f32.mrf.mxu0
      %v2876 = vpop.f32.mrf.mxu0
      %v2877 = vadd.f32 0.0, %v2876
      %v2878 = vpop.f32.mrf.mxu0
      %2879 = vmatprep.mubr.bf16.mxu0 %v2186
      %2880 = vmatmul.mubr.bf16.gmra.mxu0 %v2185
      %v2881 = vpop.f32.mrf.mxu0
      %v2882 = vadd.f32 0.0, %v2881
      %v2883 = vpop.f32.mrf.mxu0
      %v2884 = vpop.f32.mrf.mxu0
      %v2885 = vadd.f32 0.0, %v2884
      %v2886 = vpop.f32.mrf.mxu0
      %2887 = vmatprep.mubr.bf16.mxu0 %v2192
      %2888 = vmatmul.mubr.bf16.gmra.mxu0 %v2191
      %v2889 = vpop.f32.mrf.mxu0
      %v2890 = vadd.f32 0.0, %v2889
      %v2891 = vpop.f32.mrf.mxu0
      %v2892 = vpop.f32.mrf.mxu0
      %v2893 = vadd.f32 0.0, %v2892
      %v2894 = vpop.f32.mrf.mxu0
      %2895 = vmatprep.mubr.bf16.mxu0 %v2201
      %2896 = vmatmul.mubr.bf16.gmra.mxu0 %v2200
      %v2897 = vpop.f32.mrf.mxu0
      %v2898 = vadd.f32 0.0, %v2897
      %v2899 = vpop.f32.mrf.mxu0
      %v2900 = vpop.f32.mrf.mxu0
      %v2901 = vadd.f32 0.0, %v2900
      %v2902 = vpop.f32.mrf.mxu0
      %2903 = vmatprep.mubr.bf16.mxu0 %v2207
      %2904 = vmatmul.mubr.bf16.gmra.mxu0 %v2206
      %v2905 = vpop.f32.mrf.mxu0
      %v2906 = vadd.f32 0.0, %v2905
      %v2907 = vpop.f32.mrf.mxu0
      %v2908 = vpop.f32.mrf.mxu0
      %v2909 = vadd.f32 0.0, %v2908
      %v2910 = vpop.f32.mrf.mxu0
      %2911 = vmatprep.mubr.bf16.mxu0 %v2213
      %2912 = vmatmul.mubr.bf16.gmra.mxu0 %v2212
      %v2913 = vpop.f32.mrf.mxu0
      %v2914 = vadd.f32 0.0, %v2913
      %v2915 = vpop.f32.mrf.mxu0
      %v2916 = vpop.f32.mrf.mxu0
      %v2917 = vadd.f32 0.0, %v2916
      %v2918 = vpop.f32.mrf.mxu0
      %2919 = vmatprep.mubr.bf16.mxu0 %v2219
      %2920 = vmatmul.mubr.bf16.gmra.mxu0 %v2218
      %v2921 = vpop.f32.mrf.mxu0
      %v2922 = vadd.f32 0.0, %v2921
      %v2923 = vpop.f32.mrf.mxu0
      %v2924 = vpop.f32.mrf.mxu0
      %v2925 = vadd.f32 0.0, %v2924
      %v2926 = vpop.f32.mrf.mxu0
      %2927 = vdwg.mxu0
      %2928 = vmatprep.subr.bf16.mxu0 0
      %2929 = vmatpush1.bf16.msra.mxu0 %v2646
      %2930 = vmatprep.subr.bf16.mxu0 0
      %2931 = vmatpush1.bf16.msra.mxu0 %v2645
      %2932 = vmatprep.subr.bf16.mxu0 0
      %2933 = vmatpush1.bf16.msra.mxu0 %v2644
      %2934 = vmatprep.subr.bf16.mxu0 0
      %2935 = vmatpush1.bf16.msra.mxu0 %v2643
      %2936 = vmatprep.subr.bf16.mxu0 0
      %2937 = vmatpush1.bf16.msra.mxu0 %v2642
      %2938 = vmatprep.subr.bf16.mxu0 0
      %2939 = vmatpush1.bf16.msra.mxu0 %v2641
      %2940 = vmatprep.subr.bf16.mxu0 0
      %2941 = vmatpush1.bf16.msra.mxu0 %v2640
      %2942 = vmatprep.subr.bf16.mxu0 0
      %2943 = vmatpush1.bf16.msra.mxu0 %v2639
      %2944 = vmatprep.subr.bf16.mxu0 0
      %2945 = vmatpush2.bf16.msra.mxu0 %v2654
      %2946 = vmatprep.subr.bf16.mxu0 0
      %2947 = vmatpush2.bf16.msra.mxu0 %v2653
      %2948 = vmatprep.subr.bf16.mxu0 0
      %2949 = vmatpush2.bf16.msra.mxu0 %v2652
      %2950 = vmatprep.subr.bf16.mxu0 0
      %2951 = vmatpush2.bf16.msra.mxu0 %v2651
      %2952 = vmatprep.subr.bf16.mxu0 0
      %2953 = vmatpush2.bf16.msra.mxu0 %v2650
      %2954 = vmatprep.subr.bf16.mxu0 0
      %2955 = vmatpush2.bf16.msra.mxu0 %v2649
      %2956 = vmatprep.subr.bf16.mxu0 0
      %2957 = vmatpush2.bf16.msra.mxu0 %v2648
      %2958 = vmatprep.subr.bf16.mxu0 0
      %2959 = vmatpush2.bf16.msra.mxu0 %v2647
      %2960 = vmatprep.mubr.bf16.mxu0 %v2122
      %2961 = vmatmul.mubr.bf16.gmra.mxu0 %v2121
      %v2962 = vpop.f32.mrf.mxu0
      %v2963 = vadd.f32 %v2802, %v2962
      %v2964 = vpop.f32.mrf.mxu0
      %v2965 = vpop.f32.mrf.mxu0
      %v2966 = vadd.f32 %v2805, %v2965
      %v2967 = vpop.f32.mrf.mxu0
      %2968 = vmatprep.mubr.bf16.mxu0 %v2128
      %2969 = vmatmul.mubr.bf16.gmra.mxu0 %v2127
      %v2970 = vpop.f32.mrf.mxu0
      %v2971 = vadd.f32 %v2810, %v2970
      %v2972 = vpop.f32.mrf.mxu0
      %v2973 = vpop.f32.mrf.mxu0
      %v2974 = vadd.f32 %v2813, %v2973
      %v2975 = vpop.f32.mrf.mxu0
      %2976 = vmatprep.mubr.bf16.mxu0 %v2134
      %2977 = vmatmul.mubr.bf16.gmra.mxu0 %v2133
      %v2978 = vpop.f32.mrf.mxu0
      %v2979 = vadd.f32 %v2818, %v2978
      %v2980 = vpop.f32.mrf.mxu0
      %v2981 = vpop.f32.mrf.mxu0
      %v2982 = vadd.f32 %v2821, %v2981
      %v2983 = vpop.f32.mrf.mxu0
      %2984 = vmatprep.mubr.bf16.mxu0 %v2140
      %2985 = vmatmul.mubr.bf16.gmra.mxu0 %v2139
      %v2986 = vpop.f32.mrf.mxu0
      %v2987 = vadd.f32 %v2826, %v2986
      %v2988 = vpop.f32.mrf.mxu0
      %v2989 = vpop.f32.mrf.mxu0
      %v2990 = vadd.f32 %v2829, %v2989
      %v2991 = vpop.f32.mrf.mxu0
      %2992 = vmatprep.mubr.bf16.mxu0 %v2149
      %2993 = vmatmul.mubr.bf16.gmra.mxu0 %v2148
      %v2994 = vpop.f32.mrf.mxu0
      %v2995 = vadd.f32 %v2834, %v2994
      %v2996 = vpop.f32.mrf.mxu0
      %v2997 = vpop.f32.mrf.mxu0
      %v2998 = vadd.f32 %v2837, %v2997
      %v2999 = vpop.f32.mrf.mxu0
      %3000 = vmatprep.mubr.bf16.mxu0 %v2155
      %3001 = vmatmul.mubr.bf16.gmra.mxu0 %v2154
      %v3002 = vpop.f32.mrf.mxu0
      %v3003 = vadd.f32 %v2842, %v3002
      %v3004 = vpop.f32.mrf.mxu0
      %v3005 = vpop.f32.mrf.mxu0
      %v3006 = vadd.f32 %v2845, %v3005
      %v3007 = vpop.f32.mrf.mxu0
      %3008 = vmatprep.mubr.bf16.mxu0 %v2161
      %3009 = vmatmul.mubr.bf16.gmra.mxu0 %v2160
      %v3010 = vpop.f32.mrf.mxu0
      %v3011 = vadd.f32 %v2850, %v3010
      %v3012 = vpop.f32.mrf.mxu0
      %v3013 = vpop.f32.mrf.mxu0
      %v3014 = vadd.f32 %v2853, %v3013
      %v3015 = vpop.f32.mrf.mxu0
      %3016 = vmatprep.mubr.bf16.mxu0 %v2167
      %3017 = vmatmul.mubr.bf16.gmra.mxu0 %v2166
      %v3018 = vpop.f32.mrf.mxu0
      %v3019 = vadd.f32 %v2858, %v3018
      %v3020 = vpop.f32.mrf.mxu0
      %v3021 = vpop.f32.mrf.mxu0
      %v3022 = vadd.f32 %v2861, %v3021
      %v3023 = vpop.f32.mrf.mxu0
      %3024 = vmatprep.mubr.bf16.mxu0 %v2176
      %3025 = vmatmul.mubr.bf16.gmra.mxu0 %v2175
      %v3026 = vpop.f32.mrf.mxu0
      %v3027 = vadd.f32 %v2866, %v3026
      %v3028 = vpop.f32.mrf.mxu0
      %v3029 = vpop.f32.mrf.mxu0
      %v3030 = vadd.f32 %v2869, %v3029
      %v3031 = vpop.f32.mrf.mxu0
      %3032 = vmatprep.mubr.bf16.mxu0 %v2182
      %3033 = vmatmul.mubr.bf16.gmra.mxu0 %v2181
      %v3034 = vpop.f32.mrf.mxu0
      %v3035 = vadd.f32 %v2874, %v3034
      %v3036 = vpop.f32.mrf.mxu0
      %v3037 = vpop.f32.mrf.mxu0
      %v3038 = vadd.f32 %v2877, %v3037
      %v3039 = vpop.f32.mrf.mxu0
      %3040 = vmatprep.mubr.bf16.mxu0 %v2188
      %3041 = vmatmul.mubr.bf16.gmra.mxu0 %v2187
      %v3042 = vpop.f32.mrf.mxu0
      %v3043 = vadd.f32 %v2882, %v3042
      %v3044 = vpop.f32.mrf.mxu0
      %v3045 = vpop.f32.mrf.mxu0
      %v3046 = vadd.f32 %v2885, %v3045
      %v3047 = vpop.f32.mrf.mxu0
      %3048 = vmatprep.mubr.bf16.mxu0 %v2194
      %3049 = vmatmul.mubr.bf16.gmra.mxu0 %v2193
      %v3050 = vpop.f32.mrf.mxu0
      %v3051 = vadd.f32 %v2890, %v3050
      %v3052 = vpop.f32.mrf.mxu0
      %v3053 = vpop.f32.mrf.mxu0
      %v3054 = vadd.f32 %v2893, %v3053
      %v3055 = vpop.f32.mrf.mxu0
      %3056 = vmatprep.mubr.bf16.mxu0 %v2203
      %3057 = vmatmul.mubr.bf16.gmra.mxu0 %v2202
      %v3058 = vpop.f32.mrf.mxu0
      %v3059 = vadd.f32 %v2898, %v3058
      %v3060 = vpop.f32.mrf.mxu0
      %v3061 = vpop.f32.mrf.mxu0
      %v3062 = vadd.f32 %v2901, %v3061
      %v3063 = vpop.f32.mrf.mxu0
      %3064 = vmatprep.mubr.bf16.mxu0 %v2209
      %3065 = vmatmul.mubr.bf16.gmra.mxu0 %v2208
      %v3066 = vpop.f32.mrf.mxu0
      %v3067 = vadd.f32 %v2906, %v3066
      %v3068 = vpop.f32.mrf.mxu0
      %v3069 = vpop.f32.mrf.mxu0
      %v3070 = vadd.f32 %v2909, %v3069
      %v3071 = vpop.f32.mrf.mxu0
      %3072 = vmatprep.mubr.bf16.mxu0 %v2215
      %3073 = vmatmul.mubr.bf16.gmra.mxu0 %v2214
      %v3074 = vpop.f32.mrf.mxu0
      %v3075 = vadd.f32 %v2914, %v3074
      %v3076 = vpop.f32.mrf.mxu0
      %v3077 = vpop.f32.mrf.mxu0
      %v3078 = vadd.f32 %v2917, %v3077
      %v3079 = vpop.f32.mrf.mxu0
      %3080 = vmatprep.mubr.bf16.mxu0 %v2221
      %3081 = vmatmul.mubr.bf16.gmra.mxu0 %v2220
      %v3082 = vpop.f32.mrf.mxu0
      %v3083 = vadd.f32 %v2922, %v3082
      %v3084 = vpop.f32.mrf.mxu0
      %v3085 = vpop.f32.mrf.mxu0
      %v3086 = vadd.f32 %v2925, %v3085
      %v3087 = vpop.f32.mrf.mxu0
      %3088 = vdwg.mxu0
      %3089 = vmatprep.subr.bf16.mxu0 0
      %3090 = vmatpush1.bf16.msra.mxu0 %v2662
      %3091 = vmatprep.subr.bf16.mxu0 0
      %3092 = vmatpush1.bf16.msra.mxu0 %v2661
      %3093 = vmatprep.subr.bf16.mxu0 0
      %3094 = vmatpush1.bf16.msra.mxu0 %v2660
      %3095 = vmatprep.subr.bf16.mxu0 0
      %3096 = vmatpush1.bf16.msra.mxu0 %v2659
      %3097 = vmatprep.subr.bf16.mxu0 0
      %3098 = vmatpush1.bf16.msra.mxu0 %v2658
      %3099 = vmatprep.subr.bf16.mxu0 0
      %3100 = vmatpush1.bf16.msra.mxu0 %v2657
      %3101 = vmatprep.subr.bf16.mxu0 0
      %3102 = vmatpush1.bf16.msra.mxu0 %v2656
      %3103 = vmatprep.subr.bf16.mxu0 0
      %3104 = vmatpush1.bf16.msra.mxu0 %v2655
      %3105 = vmatprep.subr.bf16.mxu0 0
      %3106 = vmatpush2.bf16.msra.mxu0 %v2670
      %3107 = vmatprep.subr.bf16.mxu0 0
      %3108 = vmatpush2.bf16.msra.mxu0 %v2669
      %3109 = vmatprep.subr.bf16.mxu0 0
      %3110 = vmatpush2.bf16.msra.mxu0 %v2668
      %3111 = vmatprep.subr.bf16.mxu0 0
      %3112 = vmatpush2.bf16.msra.mxu0 %v2667
      %3113 = vmatprep.subr.bf16.mxu0 0
      %3114 = vmatpush2.bf16.msra.mxu0 %v2666
      %3115 = vmatprep.subr.bf16.mxu0 0
      %3116 = vmatpush2.bf16.msra.mxu0 %v2665
      %3117 = vmatprep.subr.bf16.mxu0 0
      %3118 = vmatpush2.bf16.msra.mxu0 %v2664
      %3119 = vmatprep.subr.bf16.mxu0 0
      %3120 = vmatpush2.bf16.msra.mxu0 %v2663
      %3121 = vmatprep.mubr.bf16.mxu0 %v2124
      %3122 = vmatmul.mubr.bf16.gmra.mxu0 %v2123
      %v3123 = vpop.f32.mrf.mxu0
      %v3124 = vadd.f32 %v2963, %v3123
      %v3125 = vpop.f32.mrf.mxu0
      %v3126 = vpop.f32.mrf.mxu0
      %v3127 = vadd.f32 %v2966, %v3126
      %v3128 = vpop.f32.mrf.mxu0
      %3129 = vmatprep.mubr.bf16.mxu0 %v2130
      %3130 = vmatmul.mubr.bf16.gmra.mxu0 %v2129
      %v3131 = vpop.f32.mrf.mxu0
      %v3132 = vadd.f32 %v2971, %v3131
      %v3133 = vpop.f32.mrf.mxu0
      %v3134 = vpop.f32.mrf.mxu0
      %v3135 = vadd.f32 %v2974, %v3134
      %v3136 = vpop.f32.mrf.mxu0
      %3137 = vmatprep.mubr.bf16.mxu0 %v2136
      %3138 = vmatmul.mubr.bf16.gmra.mxu0 %v2135
      %v3139 = vpop.f32.mrf.mxu0
      %v3140 = vadd.f32 %v2979, %v3139
      %v3141 = vpop.f32.mrf.mxu0
      %v3142 = vpop.f32.mrf.mxu0
      %v3143 = vadd.f32 %v2982, %v3142
      %v3144 = vpop.f32.mrf.mxu0
      %3145 = vmatprep.mubr.bf16.mxu0 %v2142
      %3146 = vmatmul.mubr.bf16.gmra.mxu0 %v2141
      %v3147 = vpop.f32.mrf.mxu0
      %v3148 = vadd.f32 %v2987, %v3147
      %v3149 = vpop.f32.mrf.mxu0
      %v3150 = vpop.f32.mrf.mxu0
      %v3151 = vadd.f32 %v2990, %v3150
      %v3152 = vpop.f32.mrf.mxu0
      %3153 = vmatprep.mubr.bf16.mxu0 %v2151
      %3154 = vmatmul.mubr.bf16.gmra.mxu0 %v2150
      %v3155 = vpop.f32.mrf.mxu0
      %v3156 = vadd.f32 %v2995, %v3155
      %v3157 = vpop.f32.mrf.mxu0
      %v3158 = vpop.f32.mrf.mxu0
      %v3159 = vadd.f32 %v2998, %v3158
      %v3160 = vpop.f32.mrf.mxu0
      %3161 = vmatprep.mubr.bf16.mxu0 %v2157
      %3162 = vmatmul.mubr.bf16.gmra.mxu0 %v2156
      %v3163 = vpop.f32.mrf.mxu0
      %v3164 = vadd.f32 %v3003, %v3163
      %v3165 = vpop.f32.mrf.mxu0
      %v3166 = vpop.f32.mrf.mxu0
      %v3167 = vadd.f32 %v3006, %v3166
      %v3168 = vpop.f32.mrf.mxu0
      %3169 = vmatprep.mubr.bf16.mxu0 %v2163
      %3170 = vmatmul.mubr.bf16.gmra.mxu0 %v2162
      %v3171 = vpop.f32.mrf.mxu0
      %v3172 = vadd.f32 %v3011, %v3171
      %v3173 = vpop.f32.mrf.mxu0
      %v3174 = vpop.f32.mrf.mxu0
      %v3175 = vadd.f32 %v3014, %v3174
      %v3176 = vpop.f32.mrf.mxu0
      %3177 = vmatprep.mubr.bf16.mxu0 %v2169
      %3178 = vmatmul.mubr.bf16.gmra.mxu0 %v2168
      %v3179 = vpop.f32.mrf.mxu0
      %v3180 = vadd.f32 %v3019, %v3179
      %v3181 = vpop.f32.mrf.mxu0
      %v3182 = vpop.f32.mrf.mxu0
      %v3183 = vadd.f32 %v3022, %v3182
      %v3184 = vpop.f32.mrf.mxu0
      %3185 = vmatprep.mubr.bf16.mxu0 %v2178
      %3186 = vmatmul.mubr.bf16.gmra.mxu0 %v2177
      %v3187 = vpop.f32.mrf.mxu0
      %v3188 = vadd.f32 %v3027, %v3187
      %v3189 = vpop.f32.mrf.mxu0
      %v3190 = vpop.f32.mrf.mxu0
      %v3191 = vadd.f32 %v3030, %v3190
      %v3192 = vpop.f32.mrf.mxu0
      %3193 = vmatprep.mubr.bf16.mxu0 %v2184
      %3194 = vmatmul.mubr.bf16.gmra.mxu0 %v2183
      %v3195 = vpop.f32.mrf.mxu0
      %v3196 = vadd.f32 %v3035, %v3195
      %v3197 = vpop.f32.mrf.mxu0
      %v3198 = vpop.f32.mrf.mxu0
      %v3199 = vadd.f32 %v3038, %v3198
      %v3200 = vpop.f32.mrf.mxu0
      %3201 = vmatprep.mubr.bf16.mxu0 %v2190
      %3202 = vmatmul.mubr.bf16.gmra.mxu0 %v2189
      %v3203 = vpop.f32.mrf.mxu0
      %v3204 = vadd.f32 %v3043, %v3203
      %v3205 = vpop.f32.mrf.mxu0
      %v3206 = vpop.f32.mrf.mxu0
      %v3207 = vadd.f32 %v3046, %v3206
      %v3208 = vpop.f32.mrf.mxu0
      %3209 = vmatprep.mubr.bf16.mxu0 %v2196
      %3210 = vmatmul.mubr.bf16.gmra.mxu0 %v2195
      %v3211 = vpop.f32.mrf.mxu0
      %v3212 = vadd.f32 %v3051, %v3211
      %v3213 = vpop.f32.mrf.mxu0
      %v3214 = vpop.f32.mrf.mxu0
      %v3215 = vadd.f32 %v3054, %v3214
      %v3216 = vpop.f32.mrf.mxu0
      %3217 = vmatprep.mubr.bf16.mxu0 %v2205
      %3218 = vmatmul.mubr.bf16.gmra.mxu0 %v2204
      %v3219 = vpop.f32.mrf.mxu0
      %v3220 = vadd.f32 %v3059, %v3219
      %v3221 = vpop.f32.mrf.mxu0
      %v3222 = vpop.f32.mrf.mxu0
      %v3223 = vadd.f32 %v3062, %v3222
      %v3224 = vpop.f32.mrf.mxu0
      %3225 = vmatprep.mubr.bf16.mxu0 %v2211
      %3226 = vmatmul.mubr.bf16.gmra.mxu0 %v2210
      %v3227 = vpop.f32.mrf.mxu0
      %v3228 = vadd.f32 %v3067, %v3227
      %v3229 = vpop.f32.mrf.mxu0
      %v3230 = vpop.f32.mrf.mxu0
      %v3231 = vadd.f32 %v3070, %v3230
      %v3232 = vpop.f32.mrf.mxu0
      %3233 = vmatprep.mubr.bf16.mxu0 %v2217
      %3234 = vmatmul.mubr.bf16.gmra.mxu0 %v2216
      %v3235 = vpop.f32.mrf.mxu0
      %v3236 = vadd.f32 %v3075, %v3235
      %v3237 = vpop.f32.mrf.mxu0
      %v3238 = vpop.f32.mrf.mxu0
      %v3239 = vadd.f32 %v3078, %v3238
      %v3240 = vpop.f32.mrf.mxu0
      %3241 = vmatprep.mubr.bf16.mxu0 %v2223
      %3242 = vmatmul.mubr.bf16.gmra.mxu0 %v2222
      %v3243 = vpop.f32.mrf.mxu0
      %v3244 = vadd.f32 %v3083, %v3243
      %v3245 = vpop.f32.mrf.mxu0
      %v3246 = vpop.f32.mrf.mxu0
      %v3247 = vadd.f32 %v3086, %v3246
      %v3248 = vpop.f32.mrf.mxu0
      %3249 = vdwg.mxu0
      %3250 = vmatprep.subr.bf16.mxu0 0
      %3251 = vmatpush1.bf16.msra.mxu0 %v2678
      %3252 = vmatprep.subr.bf16.mxu0 0
      %3253 = vmatpush1.bf16.msra.mxu0 %v2677
      %3254 = vmatprep.subr.bf16.mxu0 0
      %3255 = vmatpush1.bf16.msra.mxu0 %v2676
      %3256 = vmatprep.subr.bf16.mxu0 0
      %3257 = vmatpush1.bf16.msra.mxu0 %v2675
      %3258 = vmatprep.subr.bf16.mxu0 0
      %3259 = vmatpush1.bf16.msra.mxu0 %v2674
      %3260 = vmatprep.subr.bf16.mxu0 0
      %3261 = vmatpush1.bf16.msra.mxu0 %v2673
      %3262 = vmatprep.subr.bf16.mxu0 0
      %3263 = vmatpush1.bf16.msra.mxu0 %v2672
      %3264 = vmatprep.subr.bf16.mxu0 0
      %3265 = vmatpush1.bf16.msra.mxu0 %v2671
      %3266 = vmatprep.subr.bf16.mxu0 0
      %3267 = vmatpush2.bf16.msra.mxu0 %v2686
      %3268 = vmatprep.subr.bf16.mxu0 0
      %3269 = vmatpush2.bf16.msra.mxu0 %v2685
      %3270 = vmatprep.subr.bf16.mxu0 0
      %3271 = vmatpush2.bf16.msra.mxu0 %v2684
      %3272 = vmatprep.subr.bf16.mxu0 0
      %3273 = vmatpush2.bf16.msra.mxu0 %v2683
      %3274 = vmatprep.subr.bf16.mxu0 0
      %3275 = vmatpush2.bf16.msra.mxu0 %v2682
      %3276 = vmatprep.subr.bf16.mxu0 0
      %3277 = vmatpush2.bf16.msra.mxu0 %v2681
      %3278 = vmatprep.subr.bf16.mxu0 0
      %3279 = vmatpush2.bf16.msra.mxu0 %v2680
      %3280 = vmatprep.subr.bf16.mxu0 0
      %3281 = vmatpush2.bf16.msra.mxu0 %v2679
      %3282 = vmatprep.mubr.bf16.mxu0 %v2126
      %3283 = vmatmul.mubr.bf16.gmra.mxu0 %v2125
      %v3284 = vpop.f32.mrf.mxu0
      %v3285 = vadd.f32 %v3124, %v3284
      %v3286 = vpop.f32.mrf.mxu0
      %v3287 = vpop.f32.mrf.mxu0
      %v3288 = vadd.f32 %v3127, %v3287
      %v3289 = vpop.f32.mrf.mxu0
      %3290 = vmatprep.mubr.bf16.mxu0 %v2132
      %3291 = vmatmul.mubr.bf16.gmra.mxu0 %v2131
      %v3292 = vpop.f32.mrf.mxu0
      %v3293 = vadd.f32 %v3132, %v3292
      %v3294 = vpop.f32.mrf.mxu0
      %v3295 = vpop.f32.mrf.mxu0
      %v3296 = vadd.f32 %v3135, %v3295
      %v3297 = vpop.f32.mrf.mxu0
      %3298 = vmatprep.mubr.bf16.mxu0 %v2138
      %3299 = vmatmul.mubr.bf16.gmra.mxu0 %v2137
      %v3300 = vpop.f32.mrf.mxu0
      %v3301 = vadd.f32 %v3140, %v3300
      %v3302 = vpop.f32.mrf.mxu0
      %v3303 = vpop.f32.mrf.mxu0
      %v3304 = vadd.f32 %v3143, %v3303
      %v3305 = vpop.f32.mrf.mxu0
      %3306 = vmatprep.mubr.bf16.mxu0 %v2144
      %3307 = vmatmul.mubr.bf16.gmra.mxu0 %v2143
      %v3308 = vpop.f32.mrf.mxu0
      %v3309 = vadd.f32 %v3148, %v3308
      %v3310 = vpop.f32.mrf.mxu0
      %v3311 = vpop.f32.mrf.mxu0
      %v3312 = vadd.f32 %v3151, %v3311
      %v3313 = vpop.f32.mrf.mxu0
      %3314 = vmatprep.mubr.bf16.mxu0 %v2153
      %3315 = vmatmul.mubr.bf16.gmra.mxu0 %v2152
      %v3316 = vpop.f32.mrf.mxu0
      %v3317 = vadd.f32 %v3156, %v3316
      %v3318 = vpop.f32.mrf.mxu0
      %v3319 = vpop.f32.mrf.mxu0
      %v3320 = vadd.f32 %v3159, %v3319
      %v3321 = vpop.f32.mrf.mxu0
      %3322 = vmatprep.mubr.bf16.mxu0 %v2159
      %3323 = vmatmul.mubr.bf16.gmra.mxu0 %v2158
      %v3324 = vpop.f32.mrf.mxu0
      %v3325 = vadd.f32 %v3164, %v3324
      %v3326 = vpop.f32.mrf.mxu0
      %v3327 = vpop.f32.mrf.mxu0
      %v3328 = vadd.f32 %v3167, %v3327
      %v3329 = vpop.f32.mrf.mxu0
      %3330 = vmatprep.mubr.bf16.mxu0 %v2165
      %3331 = vmatmul.mubr.bf16.gmra.mxu0 %v2164
      %v3332 = vpop.f32.mrf.mxu0
      %v3333 = vadd.f32 %v3172, %v3332
      %v3334 = vpop.f32.mrf.mxu0
      %v3335 = vpop.f32.mrf.mxu0
      %v3336 = vadd.f32 %v3175, %v3335
      %v3337 = vpop.f32.mrf.mxu0
      %3338 = vmatprep.mubr.bf16.mxu0 %v2171
      %3339 = vmatmul.mubr.bf16.gmra.mxu0 %v2170
      %v3340 = vpop.f32.mrf.mxu0
      %v3341 = vadd.f32 %v3180, %v3340
      %v3342 = vpop.f32.mrf.mxu0
      %v3343 = vpop.f32.mrf.mxu0
      %v3344 = vadd.f32 %v3183, %v3343
      %v3345 = vpop.f32.mrf.mxu0
      %3346 = vmatprep.mubr.bf16.mxu0 %v2180
      %3347 = vmatmul.mubr.bf16.gmra.mxu0 %v2179
      %v3348 = vpop.f32.mrf.mxu0
      %v3349 = vadd.f32 %v3188, %v3348
      %v3350 = vpop.f32.mrf.mxu0
      %v3351 = vpop.f32.mrf.mxu0
      %v3352 = vadd.f32 %v3191, %v3351
      %v3353 = vpop.f32.mrf.mxu0
      %3354 = vmatprep.mubr.bf16.mxu0 %v2186
      %3355 = vmatmul.mubr.bf16.gmra.mxu0 %v2185
      %v3356 = vpop.f32.mrf.mxu0
      %v3357 = vadd.f32 %v3196, %v3356
      %v3358 = vpop.f32.mrf.mxu0
      %v3359 = vpop.f32.mrf.mxu0
      %v3360 = vadd.f32 %v3199, %v3359
      %v3361 = vpop.f32.mrf.mxu0
      %3362 = vmatprep.mubr.bf16.mxu0 %v2192
      %3363 = vmatmul.mubr.bf16.gmra.mxu0 %v2191
      %v3364 = vpop.f32.mrf.mxu0
      %v3365 = vadd.f32 %v3204, %v3364
      %v3366 = vpop.f32.mrf.mxu0
      %v3367 = vpop.f32.mrf.mxu0
      %v3368 = vadd.f32 %v3207, %v3367
      %v3369 = vpop.f32.mrf.mxu0
      %3370 = vmatprep.mubr.bf16.mxu0 %v2198
      %3371 = vmatmul.mubr.bf16.gmra.mxu0 %v2197
      %v3372 = vpop.f32.mrf.mxu0
      %v3373 = vadd.f32 %v3212, %v3372
      %v3374 = vpop.f32.mrf.mxu0
      %v3375 = vpop.f32.mrf.mxu0
      %v3376 = vadd.f32 %v3215, %v3375
      %v3377 = vpop.f32.mrf.mxu0
      %3378 = vmatprep.mubr.bf16.mxu0 %v2207
      %3379 = vmatmul.mubr.bf16.gmra.mxu0 %v2206
      %v3380 = vpop.f32.mrf.mxu0
      %v3381 = vadd.f32 %v3220, %v3380
      %v3382 = vpop.f32.mrf.mxu0
      %v3383 = vpop.f32.mrf.mxu0
      %v3384 = vadd.f32 %v3223, %v3383
      %v3385 = vpop.f32.mrf.mxu0
      %3386 = vmatprep.mubr.bf16.mxu0 %v2213
      %3387 = vmatmul.mubr.bf16.gmra.mxu0 %v2212
      %v3388 = vpop.f32.mrf.mxu0
      %v3389 = vadd.f32 %v3228, %v3388
      %v3390 = vpop.f32.mrf.mxu0
      %v3391 = vpop.f32.mrf.mxu0
      %v3392 = vadd.f32 %v3231, %v3391
      %v3393 = vpop.f32.mrf.mxu0
      %3394 = vmatprep.mubr.bf16.mxu0 %v2219
      %3395 = vmatmul.mubr.bf16.gmra.mxu0 %v2218
      %v3396 = vpop.f32.mrf.mxu0
      %v3397 = vadd.f32 %v3236, %v3396
      %v3398 = vpop.f32.mrf.mxu0
      %v3399 = vpop.f32.mrf.mxu0
      %v3400 = vadd.f32 %v3239, %v3399
      %v3401 = vpop.f32.mrf.mxu0
      %3402 = vmatprep.mubr.bf16.mxu0 %v2225
      %3403 = vmatmul.mubr.bf16.gmra.mxu0 %v2224
      %v3404 = vpop.f32.mrf.mxu0
      %v3405 = vadd.f32 %v3244, %v3404
      %v3406 = vpop.f32.mrf.mxu0
      %v3407 = vpop.f32.mrf.mxu0
      %v3408 = vadd.f32 %v3247, %v3407
      %v3409 = vpop.f32.mrf.mxu0
      %3410 = vdwg.mxu0
      %3411 = vmatprep.subr.bf16.mxu0 0
      %3412 = vmatpush1.bf16.msra.mxu0 %v2694
      %3413 = vmatprep.subr.bf16.mxu0 0
      %3414 = vmatpush1.bf16.msra.mxu0 %v2693
      %3415 = vmatprep.subr.bf16.mxu0 0
      %3416 = vmatpush1.bf16.msra.mxu0 %v2692
      %3417 = vmatprep.subr.bf16.mxu0 0
      %3418 = vmatpush1.bf16.msra.mxu0 %v2691
      %3419 = vmatprep.subr.bf16.mxu0 0
      %3420 = vmatpush1.bf16.msra.mxu0 %v2690
      %3421 = vmatprep.subr.bf16.mxu0 0
      %3422 = vmatpush1.bf16.msra.mxu0 %v2689
      %3423 = vmatprep.subr.bf16.mxu0 0
      %3424 = vmatpush1.bf16.msra.mxu0 %v2688
      %3425 = vmatprep.subr.bf16.mxu0 0
      %3426 = vmatpush1.bf16.msra.mxu0 %v2687
      %3427 = vmatprep.subr.bf16.mxu0 0
      %3428 = vmatpush2.bf16.msra.mxu0 0
      %3429 = vmatprep.subr.bf16.mxu0 0
      %3430 = vmatpush2.bf16.msra.mxu0 0
      %3431 = vmatprep.subr.bf16.mxu0 0
      %3432 = vmatpush2.bf16.msra.mxu0 0
      %3433 = vmatprep.subr.bf16.mxu0 0
      %3434 = vmatpush2.bf16.msra.mxu0 0
      %3435 = vmatprep.subr.bf16.mxu0 0
      %3436 = vmatpush2.bf16.msra.mxu0 0
      %3437 = vmatprep.subr.bf16.mxu0 0
      %3438 = vmatpush2.bf16.msra.mxu0 0
      %3439 = vmatprep.subr.bf16.mxu0 0
      %3440 = vmatpush2.bf16.msra.mxu0 0
      %3441 = vmatprep.subr.bf16.mxu0 0
      %3442 = vmatpush2.bf16.msra.mxu0 0
      %3443 = vmatprep.mubr.bf16.mxu0 0
      %3444 = vmatmul.mubr.bf16.gmra.mxu0 %v2127
      %v3445 = vpop.f32.mrf.mxu0
      %v3446 = vadd.f32 %v3285, %v3445
      %v3447 = vpop.f32.mrf.mxu0
      %v3448 = vpop.f32.mrf.mxu0
      %v3449 = vadd.f32 %v3288, %v3448
      %v3450 = vpop.f32.mrf.mxu0
      %3451 = vmatprep.mubr.bf16.mxu0 0
      %3452 = vmatmul.mubr.bf16.gmra.mxu0 %v2133
      %v3453 = vpop.f32.mrf.mxu0
      %v3454 = vadd.f32 %v3293, %v3453
      %v3455 = vpop.f32.mrf.mxu0
      %v3456 = vpop.f32.mrf.mxu0
      %v3457 = vadd.f32 %v3296, %v3456
      %v3458 = vpop.f32.mrf.mxu0
      %3459 = vmatprep.mubr.bf16.mxu0 0
      %3460 = vmatmul.mubr.bf16.gmra.mxu0 %v2139
      %v3461 = vpop.f32.mrf.mxu0
      %v3462 = vadd.f32 %v3301, %v3461
      %v3463 = vpop.f32.mrf.mxu0
      %v3464 = vpop.f32.mrf.mxu0
      %v3465 = vadd.f32 %v3304, %v3464
      %v3466 = vpop.f32.mrf.mxu0
      %3467 = vmatprep.mubr.bf16.mxu0 0
      %3468 = vmatmul.mubr.bf16.gmra.mxu0 %v2145
      %v3469 = vpop.f32.mrf.mxu0
      %v3470 = vadd.f32 %v3309, %v3469
      %v3471 = vpop.f32.mrf.mxu0
      %v3472 = vpop.f32.mrf.mxu0
      %v3473 = vadd.f32 %v3312, %v3472
      %v3474 = vpop.f32.mrf.mxu0
      %3475 = vmatprep.mubr.bf16.mxu0 0
      %3476 = vmatmul.mubr.bf16.gmra.mxu0 %v2154
      %v3477 = vpop.f32.mrf.mxu0
      %v3478 = vadd.f32 %v3317, %v3477
      %v3479 = vpop.f32.mrf.mxu0
      %v3480 = vpop.f32.mrf.mxu0
      %v3481 = vadd.f32 %v3320, %v3480
      %v3482 = vpop.f32.mrf.mxu0
      %3483 = vmatprep.mubr.bf16.mxu0 0
      %3484 = vmatmul.mubr.bf16.gmra.mxu0 %v2160
      %v3485 = vpop.f32.mrf.mxu0
      %v3486 = vadd.f32 %v3325, %v3485
      %v3487 = vpop.f32.mrf.mxu0
      %v3488 = vpop.f32.mrf.mxu0
      %v3489 = vadd.f32 %v3328, %v3488
      %v3490 = vpop.f32.mrf.mxu0
      %3491 = vmatprep.mubr.bf16.mxu0 0
      %3492 = vmatmul.mubr.bf16.gmra.mxu0 %v2166
      %v3493 = vpop.f32.mrf.mxu0
      %v3494 = vadd.f32 %v3333, %v3493
      %v3495 = vpop.f32.mrf.mxu0
      %v3496 = vpop.f32.mrf.mxu0
      %v3497 = vadd.f32 %v3336, %v3496
      %v3498 = vpop.f32.mrf.mxu0
      %3499 = vmatprep.mubr.bf16.mxu0 0
      %3500 = vmatmul.mubr.bf16.gmra.mxu0 %v2172
      %v3501 = vpop.f32.mrf.mxu0
      %v3502 = vadd.f32 %v3341, %v3501
      %v3503 = vpop.f32.mrf.mxu0
      %v3504 = vpop.f32.mrf.mxu0
      %v3505 = vadd.f32 %v3344, %v3504
      %v3506 = vpop.f32.mrf.mxu0
      %3507 = vmatprep.mubr.bf16.mxu0 0
      %3508 = vmatmul.mubr.bf16.gmra.mxu0 %v2181
      %v3509 = vpop.f32.mrf.mxu0
      %v3510 = vadd.f32 %v3349, %v3509
      %v3511 = vpop.f32.mrf.mxu0
      %v3512 = vpop.f32.mrf.mxu0
      %v3513 = vadd.f32 %v3352, %v3512
      %v3514 = vpop.f32.mrf.mxu0
      %3515 = vmatprep.mubr.bf16.mxu0 0
      %3516 = vmatmul.mubr.bf16.gmra.mxu0 %v2187
      %v3517 = vpop.f32.mrf.mxu0
      %v3518 = vadd.f32 %v3357, %v3517
      %v3519 = vpop.f32.mrf.mxu0
      %v3520 = vpop.f32.mrf.mxu0
      %v3521 = vadd.f32 %v3360, %v3520
      %v3522 = vpop.f32.mrf.mxu0
      %3523 = vmatprep.mubr.bf16.mxu0 0
      %3524 = vmatmul.mubr.bf16.gmra.mxu0 %v2193
      %v3525 = vpop.f32.mrf.mxu0
      %v3526 = vadd.f32 %v3365, %v3525
      %v3527 = vpop.f32.mrf.mxu0
      %v3528 = vpop.f32.mrf.mxu0
      %v3529 = vadd.f32 %v3368, %v3528
      %v3530 = vpop.f32.mrf.mxu0
      %3531 = vmatprep.mubr.bf16.mxu0 0
      %3532 = vmatmul.mubr.bf16.gmra.mxu0 %v2199
      %v3533 = vpop.f32.mrf.mxu0
      %v3534 = vadd.f32 %v3373, %v3533
      %v3535 = vpop.f32.mrf.mxu0
      %v3536 = vpop.f32.mrf.mxu0
      %v3537 = vadd.f32 %v3376, %v3536
      %v3538 = vpop.f32.mrf.mxu0
      %3539 = vmatprep.mubr.bf16.mxu0 0
      %3540 = vmatmul.mubr.bf16.gmra.mxu0 %v2208
      %v3541 = vpop.f32.mrf.mxu0
      %v3542 = vadd.f32 %v3381, %v3541
      %v3543 = vpop.f32.mrf.mxu0
      %v3544 = vpop.f32.mrf.mxu0
      %v3545 = vadd.f32 %v3384, %v3544
      %v3546 = vpop.f32.mrf.mxu0
      %3547 = vmatprep.mubr.bf16.mxu0 0
      %3548 = vmatmul.mubr.bf16.gmra.mxu0 %v2214
      %v3549 = vpop.f32.mrf.mxu0
      %v3550 = vadd.f32 %v3389, %v3549
      %v3551 = vpop.f32.mrf.mxu0
      %v3552 = vpop.f32.mrf.mxu0
      %v3553 = vadd.f32 %v3392, %v3552
      %v3554 = vpop.f32.mrf.mxu0
      %3555 = vmatprep.mubr.bf16.mxu0 0
      %3556 = vmatmul.mubr.bf16.gmra.mxu0 %v2220
      %v3557 = vpop.f32.mrf.mxu0
      %v3558 = vadd.f32 %v3397, %v3557
      %v3559 = vpop.f32.mrf.mxu0
      %v3560 = vpop.f32.mrf.mxu0
      %v3561 = vadd.f32 %v3400, %v3560
      %v3562 = vpop.f32.mrf.mxu0
      %3563 = vmatprep.mubr.bf16.mxu0 0
      %3564 = vmatmul.mubr.bf16.gmra.mxu0 %v2226
      %v3565 = vpop.f32.mrf.mxu0
      %v3566 = vadd.f32 %v3405, %v3565
      %v3567 = vpop.f32.mrf.mxu0
      %v3568 = vpop.f32.mrf.mxu0
      %v3569 = vadd.f32 %v3408, %v3568
      %v3570 = vpop.f32.mrf.mxu0
      %3571 = vdwg.mxu0
      %3572 = vst [vmem:[%s231] sm:$0xff] %v3446
      %3573 = vst [vmem:[%s231 + $0x8] sm:$0xff] %v3449
      %3574 = vst [vmem:[%s231 + $0x10] sm:$0xff] %v3454
      %3575 = vst [vmem:[%s231 + $0x18] sm:$0xff] %v3457
      %3576 = vst [vmem:[%s231 + $0x20] sm:$0xff] %v3462
      %3577 = vst [vmem:[%s231 + $0x28] sm:$0xff] %v3465
      %3578 = vst [vmem:[%s231 + $0x30] sm:$0xff] %v3470
      %3579 = vst [vmem:[%s231 + $0x38] sm:$0xff] %v3473
      %3580 = vst [vmem:[%s231 + $0x40] sm:$0xff] %v3478
      %3581 = vst [vmem:[%s231 + $0x48] sm:$0xff] %v3481
      %3582 = vst [vmem:[%s231 + $0x50] sm:$0xff] %v3486
      %3583 = vst [vmem:[%s231 + $0x58] sm:$0xff] %v3489
      %3584 = vst [vmem:[%s231 + $0x60] sm:$0xff] %v3494
      %3585 = vst [vmem:[%s231 + $0x68] sm:$0xff] %v3497
      %3586 = vst [vmem:[%s231 + $0x70] sm:$0xff] %v3502
      %3587 = vst [vmem:[%s231 + $0x78] sm:$0xff] %v3505
      %3588 = vst [vmem:[%s231 + $0x80] sm:$0xff] %v3510
      %3589 = vst [vmem:[%s231 + $0x88] sm:$0xff] %v3513
      %3590 = vst [vmem:[%s231 + $0x90] sm:$0xff] %v3518
      %3591 = vst [vmem:[%s231 + $0x98] sm:$0xff] %v3521
      %3592 = vst [vmem:[%s231 + $0xa0] sm:$0xff] %v3526
      %3593 = vst [vmem:[%s231 + $0xa8] sm:$0xff] %v3529
      %3594 = vst [vmem:[%s231 + $0xb0] sm:$0xff] %v3534
      %3595 = vst [vmem:[%s231 + $0xb8] sm:$0xff] %v3537
      %3596 = vst [vmem:[%s231 + $0xc0] sm:$0xff] %v3542
      %3597 = vst [vmem:[%s231 + $0xc8] sm:$0xff] %v3545
      %3598 = vst [vmem:[%s231 + $0xd0] sm:$0xff] %v3550
      %3599 = vst [vmem:[%s231 + $0xd8] sm:$0xff] %v3553
      %3600 = vst [vmem:[%s231 + $0xe0] sm:$0xff] %v3558
      %3601 = vst [vmem:[%s231 + $0xe8] sm:$0xff] %v3561
      %3602 = vst [vmem:[%s231 + $0xf0] sm:$0xff] %v3566
      %3603 = vst [vmem:[%s231 + $0xf8] sm:$0xff] %v3569
      %v3604 = vadd.f32 %v3446, %v3449
      %v3605 = vadd.f32 %v3604, %v3454
      %v3606 = vadd.f32 %v3605, %v3457
      %v3607 = vadd.f32 %v3606, %v3462
      %v3608 = vadd.f32 %v3607, %v3465
      %v3609 = vadd.f32 %v3608, %v3470
      %v3610 = vadd.f32 %v3609, %v3473
      %v3611 = vadd.f32 %v3610, %v3478
      %v3612 = vadd.f32 %v3611, %v3481
      %v3613 = vadd.f32 %v3612, %v3486
      %v3614 = vadd.f32 %v3613, %v3489
      %v3615 = vadd.f32 %v3614, %v3494
      %v3616 = vadd.f32 %v3615, %v3497
      %v3617 = vadd.f32 %v3616, %v3502
      %v3618 = vadd.f32 %v3617, %v3505
      %v3619 = vadd.f32 %v3618, %v3510
      %v3620 = vadd.f32 %v3619, %v3513
      %v3621 = vadd.f32 %v3620, %v3518
      %v3622 = vadd.f32 %v3621, %v3521
      %v3623 = vadd.f32 %v3622, %v3526
      %v3624 = vadd.f32 %v3623, %v3529
      %v3625 = vadd.f32 %v3624, %v3534
      %v3626 = vadd.f32 %v3625, %v3537
      %v3627 = vadd.f32 %v3626, %v3542
      %v3628 = vadd.f32 %v3627, %v3545
      %v3629 = vadd.f32 %v3628, %v3550
      %v3630 = vadd.f32 %v3629, %v3553
      %v3631 = vadd.f32 %v3630, %v3558
      %v3632 = vadd.f32 %v3631, %v3561
      %v3633 = vadd.f32 %v3632, %v3566
      %v3634 = vadd.f32 %v3633, %v3569
      %v3635 = vrot.slane %v3634, 4
      %v3636 = vadd.f32 %v3634, %v3635
      %v3637 = vrot.slane %v3636, 2
      %v3638 = vadd.f32 %v3636, %v3637
      %v3639 = vrot.slane %v3638, 1
      %v3640 = vadd.f32 %v3638, %v3639
      %3641 = vst [vmem:[%s235] sm:$0x1] %v3640
      %v3642 = vmul.f32 %v3446, %v3446
      %v3643 = vmul.f32 %v3449, %v3449
      %v3644 = vmul.f32 %v3454, %v3454
      %v3645 = vmul.f32 %v3457, %v3457
      %v3646 = vmul.f32 %v3462, %v3462
      %v3647 = vmul.f32 %v3465, %v3465
      %v3648 = vmul.f32 %v3470, %v3470
      %v3649 = vmul.f32 %v3473, %v3473
      %v3650 = vmul.f32 %v3478, %v3478
      %v3651 = vmul.f32 %v3481, %v3481
      %v3652 = vmul.f32 %v3486, %v3486
      %v3653 = vmul.f32 %v3489, %v3489
      %v3654 = vmul.f32 %v3494, %v3494
      %v3655 = vmul.f32 %v3497, %v3497
      %v3656 = vmul.f32 %v3502, %v3502
      %v3657 = vmul.f32 %v3505, %v3505
      %v3658 = vmul.f32 %v3510, %v3510
      %v3659 = vmul.f32 %v3513, %v3513
      %v3660 = vmul.f32 %v3518, %v3518
      %v3661 = vmul.f32 %v3521, %v3521
      %v3662 = vmul.f32 %v3526, %v3526
      %v3663 = vmul.f32 %v3529, %v3529
      %v3664 = vmul.f32 %v3534, %v3534
      %v3665 = vmul.f32 %v3537, %v3537
      %v3666 = vmul.f32 %v3542, %v3542
      %v3667 = vmul.f32 %v3545, %v3545
      %v3668 = vmul.f32 %v3550, %v3550
      %v3669 = vmul.f32 %v3553, %v3553
      %v3670 = vmul.f32 %v3558, %v3558
      %v3671 = vmul.f32 %v3561, %v3561
      %v3672 = vmul.f32 %v3566, %v3566
      %v3673 = vmul.f32 %v3569, %v3569
      %v3674 = vadd.f32 %v3642, %v3643
      %v3675 = vadd.f32 %v3674, %v3644
      %v3676 = vadd.f32 %v3675, %v3645
      %v3677 = vadd.f32 %v3676, %v3646
      %v3678 = vadd.f32 %v3677, %v3647
      %v3679 = vadd.f32 %v3678, %v3648
      %v3680 = vadd.f32 %v3679, %v3649
      %v3681 = vadd.f32 %v3680, %v3650
      %v3682 = vadd.f32 %v3681, %v3651
      %v3683 = vadd.f32 %v3682, %v3652
      %v3684 = vadd.f32 %v3683, %v3653
      %v3685 = vadd.f32 %v3684, %v3654
      %v3686 = vadd.f32 %v3685, %v3655
      %v3687 = vadd.f32 %v3686, %v3656
      %v3688 = vadd.f32 %v3687, %v3657
      %v3689 = vadd.f32 %v3688, %v3658
      %v3690 = vadd.f32 %v3689, %v3659
      %v3691 = vadd.f32 %v3690, %v3660
      %v3692 = vadd.f32 %v3691, %v3661
      %v3693 = vadd.f32 %v3692, %v3662
      %v3694 = vadd.f32 %v3693, %v3663
      %v3695 = vadd.f32 %v3694, %v3664
      %v3696 = vadd.f32 %v3695, %v3665
      %v3697 = vadd.f32 %v3696, %v3666
      %v3698 = vadd.f32 %v3697, %v3667
      %v3699 = vadd.f32 %v3698, %v3668
      %v3700 = vadd.f32 %v3699, %v3669
      %v3701 = vadd.f32 %v3700, %v3670
      %v3702 = vadd.f32 %v3701, %v3671
      %v3703 = vadd.f32 %v3702, %v3672
      %v3704 = vadd.f32 %v3703, %v3673
      %v3705 = vrot.slane %v3704, 4
      %v3706 = vadd.f32 %v3704, %v3705
      %v3707 = vrot.slane %v3706, 2
      %v3708 = vadd.f32 %v3706, %v3707
      %v3709 = vrot.slane %v3708, 1
      %v3710 = vadd.f32 %v3708, %v3709
      %3711 = vst [vmem:[%s235 + $0x1] sm:$0x1] %v3710
      %p3712 = scmp.lt.s32.totalorder %s17, 1
      %s3713 = scalar_select %p3712, %s17, 1
      %s3714 = smul.addr %s3713, 32
      %s3715 = smul.addr %s3714, 8
      %s3716 = scalar_lea.vmem %s4, %s3715
      %p3717 = scmp.lt.s32.totalorder %s17, 1
      %s3718 = scalar_select %p3717, %s17, 1
      %s3719 = smul.addr %s3718, 2
      %s3720 = scalar_lea.vmem %s5, %s3719
      // Predicated region
      $region37: #{basic_transform_pallas.4} parent=35 // pred_check
        %p3721 = pneg %p124
      $region38: #{basic_transform_pallas.4} parent=35 // pred_check_branch
        %3723 = sbr.rel (%p3721) target = $region40
      $region39: #{basic_transform_pallas.4} parent=35 // pred_region
        _
      $region40: #{basic_transform_pallas.4} parent=35 // pred_fallthru
        _
      // Predicated region
      $region41: #{basic_transform_pallas.4} parent=35 // pred_check
        %p3724 = pneg %p150
      $region42: #{basic_transform_pallas.4} parent=35 // pred_check_branch
        %3726 = sbr.rel (%p3724) target = $region44
      $region43: #{basic_transform_pallas.4} parent=35 // pred_region
        _
      $region44: #{basic_transform_pallas.4} parent=35 // pred_fallthru
        _
    $region36: #{basic_transform_pallas.4} parent=5 // pred_fallthru
      _
    %p3727 = scmp.le.s32.totalorder 2, %s12
    // Predicated region
    $region45: #{basic_transform_pallas.4} parent=5 // pred_check
      %p3728 = pneg %p3727
    $region46: #{basic_transform_pallas.4} parent=5 // pred_check_branch
      %3730 = sbr.rel (%p3728) target = $region48
    $region47: #{basic_transform_pallas.4} parent=5 // pred_region
      %s3731 = ssub.s32 %s12, 2
      // Predicated region
      $region49: #{basic_transform_pallas.4} parent=47 // pred_check
        %p3732 = pneg %p130
      $region50: #{basic_transform_pallas.4} parent=47 // pred_check_branch
        %3734 = sbr.rel (%p3732) target = $region52
      $region51: #{basic_transform_pallas.4} parent=47 // pred_region
        %p3735 = scmp.lt.s32.totalorder %s18, 1
        %s3736 = scalar_select %p3735, %s18, 1
        %s3737 = smul.addr %s3736, 32
        %s3738 = smul.addr %s3737, 8
        %s3739 = scalar_lea.vmem %s4, %s3738
      $region52: #{basic_transform_pallas.4} parent=47 // pred_fallthru
        _
      // Predicated region
      $region53: #{basic_transform_pallas.4} parent=47 // pred_check
        %p3740 = pneg %p156
      $region54: #{basic_transform_pallas.4} parent=47 // pred_check_branch
        %3742 = sbr.rel (%p3740) target = $region56
      $region55: #{basic_transform_pallas.4} parent=47 // pred_region
        %p3743 = scmp.lt.s32.totalorder %s18, 1
        %s3744 = scalar_select %p3743, %s18, 1
        %s3745 = smul.addr %s3744, 2
        %s3746 = scalar_lea.vmem %s5, %s3745
      $region56: #{basic_transform_pallas.4} parent=47 // pred_fallthru
        _
    $region48: #{basic_transform_pallas.4} parent=5 // pred_fallthru
      _
  $region6: #{basic_transform_pallas.4} parent=0 // loop_footer
    %s16 = sadd.s32 1, %s12
  $region7: #{basic_transform_pallas.4} parent=0 // loop_footer_branch
    %11 = sbr.rel target = $region3
  $region8: #{basic_transform_pallas.4} parent=0 // loop_exit
    _

// kernel: basic_transform_pallas.3
$region0: #{basic_transform_pallas.3}
  #allocation0 [shape = 'u32[]', space=smem, size = 0x4, offset = 0x4, fixed_abs, tag = 'smem constant byte address 0x4 - core index']
  #allocation1 [shape = 'u32[144,128]{1,0:T(1,128)}', space=vmem, size = 0x12000, scoped, tag = 'internal scratch']
  %s0 = inlined_call_operand.vmem [shape: bf16[2,6,10,10,128], index: 0, kind: input, shape index: {}]
  %s1 = inlined_call_operand.vmem [shape: bf16[3456,128], index: 1, kind: input, shape index: {}]
  %s2 = inlined_call_operand.vmem [shape: f32[2,256,128], index: 2, kind: output, shape index: {0}]
  %s3 = inlined_call_operand.vmem [shape: f32[2,2,128], index: 3, kind: output, shape index: {1}]
  %4 = xla_tuple %s2, %s3
  %s5 = sld [smem:[#allocation0]]
  $region49: #{basic_transform_pallas.3} parent=0
    _
  %s7 = ssub.s32 1, %s5
  %s8 = scalar_select 0, %s7, %s5
  loop: start=0, step=1, limit=4
  $region2: #{basic_transform_pallas.3} parent=0 // loop_pre_header
    _
  $region3: #{basic_transform_pallas.3} parent=0 // loop_header
    %s10 = sphi 0, %s14
    %p11 = scmp.ge.s32.totalorder %s10, 4
    %s20 = sphi 0, %s22
    %s23 = sphi 0, %s20
    %s24 = sphi 0, %s23
    %s40 = sphi 0, %s24
    %s44 = sphi 0, %s44
    %s46 = sphi 0, %s44
    %s47 = sphi 0, %s46
    %s61 = sphi 0, %s47
    %s67 = sphi 0, %s69
    %s70 = sphi 0, %s67
    %s71 = sphi 0, %s70
    %s87 = sphi 0, %s71
    %s93 = sphi 0, %s95
    %s96 = sphi 0, %s93
    %s97 = sphi 0, %s96
    %s113 = sphi 0, %s97
  $region4: #{basic_transform_pallas.3} parent=0 // loop_header_branch
    %13 = sbr.rel (%p11) target = $region8
  $region5: #{basic_transform_pallas.3} parent=0 // loop_body
    %s15 = ssub.s32 %s10, 1
    %s16 = ssub.s32 %s10, 2
    %s17 = sadd.s32 %s10, 1
    %s18 = ssub.s32 %s10, %s17
    %p19 = scmp.eq.s32.totalorder %s18, 0
    %s21 = sadd.s32 %s20, 1
    %s22 = scalar_select %p19, %s20, %s21
    %p25 = pneg %p19
    %p26 = scmp.eq.s32.totalorder %s10, 1
    %p27 = por %p25, %p26
    %p28 = scmp.ne.s32.totalorder %s20, %s23
    %p29 = scmp.eq.s32.totalorder %s10, 0
    %p30 = por %p28, %p29
    %p31 = scmp.ne.s32.totalorder %s20, %s23
    %p32 = scmp.eq.s32.totalorder %s15, 1
    %p33 = por %p31, %p32
    %p34 = scmp.ne.s32.totalorder %s23, %s24
    %p35 = scmp.eq.s32.totalorder %s15, 0
    %p36 = por %p34, %p35
    %p37 = scmp.ne.s32.totalorder %s23, %s24
    %p38 = scmp.eq.s32.totalorder %s16, 1
    %p39 = por %p37, %p38
    %p41 = scmp.ne.s32.totalorder %s24, %s40
    %p42 = scmp.eq.s32.totalorder %s16, 0
    %p43 = por %p41, %p42
    %s45 = sadd.s32 %s44, 1
    %p48 = scmp.eq.s32.totalorder %s10, 1
    %p49 = scmp.ne.s32.totalorder %s44, %s46
    %p50 = scmp.eq.s32.totalorder %s10, 0
    %p51 = por %p49, %p50
    %p52 = scmp.ne.s32.totalorder %s44, %s46
    %p53 = scmp.eq.s32.totalorder %s15, 1
    %p54 = por %p52, %p53
    %p55 = scmp.ne.s32.totalorder %s46, %s47
    %p56 = scmp.eq.s32.totalorder %s15, 0
    %p57 = por %p55, %p56
    %p58 = scmp.ne.s32.totalorder %s46, %s47
    %p59 = scmp.eq.s32.totalorder %s16, 1
    %p60 = por %p58, %p59
    %p62 = scmp.ne.s32.totalorder %s47, %s61
    %p63 = scmp.eq.s32.totalorder %s16, 0
    %p64 = por %p62, %p63
    %s65 = ssub.s32 %s10, %s17
    %p66 = scmp.eq.s32.totalorder %s65, 0
    %s68 = sadd.s32 %s67, 1
    %s69 = scalar_select %p66, %s67, %s68
    %p72 = pneg %p66
    %p73 = scmp.eq.s32.totalorder %s10, 1
    %p74 = por %p72, %p73
    %p75 = scmp.ne.s32.totalorder %s67, %s70
    %p76 = scmp.eq.s32.totalorder %s10, 0
    %p77 = por %p75, %p76
    %p78 = scmp.ne.s32.totalorder %s67, %s70
    %p79 = scmp.eq.s32.totalorder %s15, 1
    %p80 = por %p78, %p79
    %p81 = scmp.ne.s32.totalorder %s70, %s71
    %p82 = scmp.eq.s32.totalorder %s15, 0
    %p83 = por %p81, %p82
    %p84 = scmp.ne.s32.totalorder %s70, %s71
    %p85 = scmp.eq.s32.totalorder %s16, 1
    %p86 = por %p84, %p85
    %p88 = scmp.ne.s32.totalorder %s71, %s87
    %p89 = scmp.eq.s32.totalorder %s16, 0
    %p90 = por %p88, %p89
    %s91 = ssub.s32 %s10, %s17
    %p92 = scmp.eq.s32.totalorder %s91, 0
    %s94 = sadd.s32 %s93, 1
    %s95 = scalar_select %p92, %s93, %s94
    %p98 = pneg %p92
    %p99 = scmp.eq.s32.totalorder %s10, 1
    %p100 = por %p98, %p99
    %p101 = scmp.ne.s32.totalorder %s93, %s96
    %p102 = scmp.eq.s32.totalorder %s10, 0
    %p103 = por %p101, %p102
    %p104 = scmp.ne.s32.totalorder %s93, %s96
    %p105 = scmp.eq.s32.totalorder %s15, 1
    %p106 = por %p104, %p105
    %p107 = scmp.ne.s32.totalorder %s96, %s97
    %p108 = scmp.eq.s32.totalorder %s15, 0
    %p109 = por %p107, %p108
    %p110 = scmp.ne.s32.totalorder %s96, %s97
    %p111 = scmp.eq.s32.totalorder %s16, 1
    %p112 = por %p110, %p111
    %p114 = scmp.ne.s32.totalorder %s97, %s113
    %p115 = scmp.eq.s32.totalorder %s16, 0
    %p116 = por %p114, %p115
    %p117 = scmp.le.s32.totalorder 1, %s10
    %p118 = scmp.lt.s32.totalorder %s10, 3
    %p119 = pnand %p117, %p118
    %p120 = pneg %p119
    // Predicated region
    $region9: #{basic_transform_pallas.3} parent=5 // pred_check
      _
    $region10: #{basic_transform_pallas.3} parent=5 // pred_check_branch
      %122 = sbr.rel (%p119) target = $region12
    $region11: #{basic_transform_pallas.3} parent=5 // pred_region
      %s123 = ssub.s32 %s10, 1
      // Predicated region
      $region13: #{basic_transform_pallas.3} parent=11 // pred_check
        %p124 = pneg %p57
      $region14: #{basic_transform_pallas.3} parent=11 // pred_check_branch
        %126 = sbr.rel (%p124) target = $region16
      $region15: #{basic_transform_pallas.3} parent=11 // pred_region
        _
      $region16: #{basic_transform_pallas.3} parent=11 // pred_fallthru
        _
    $region12: #{basic_transform_pallas.3} parent=5 // pred_fallthru
      _
    %p127 = scmp.lt.s32.totalorder %s10, 2
    // Predicated region
    $region17: #{basic_transform_pallas.3} parent=5 // pred_check
      %p128 = pneg %p127
    $region18: #{basic_transform_pallas.3} parent=5 // pred_check_branch
      %130 = sbr.rel (%p128) target = $region20
    $region19: #{basic_transform_pallas.3} parent=5 // pred_region
      // Predicated region
      $region21: #{basic_transform_pallas.3} parent=19 // pred_check
        %p131 = pneg %p30
      $region22: #{basic_transform_pallas.3} parent=19 // pred_check_branch
        %133 = sbr.rel (%p131) target = $region24
      $region23: #{basic_transform_pallas.3} parent=19 // pred_region
        %p134 = scmp.lt.s32.totalorder %s10, 1
        %s135 = scalar_select %p134, %s10, 1
        %s136 = smul.addr %s135, 120
        %s137 = smul.addr %s136, 4
        %s138 = scalar_lea.vmem %s0, %s137
      $region24: #{basic_transform_pallas.3} parent=19 // pred_fallthru
        _
    $region20: #{basic_transform_pallas.3} parent=5 // pred_fallthru
      _
    %p139 = scmp.le.s32.totalorder 1, %s10
    %p140 = scmp.lt.s32.totalorder %s10, 3
    %p141 = pnand %p139, %p140
    %p142 = pneg %p141
    // Predicated region
    $region25: #{basic_transform_pallas.3} parent=5 // pred_check
      _
    $region26: #{basic_transform_pallas.3} parent=5 // pred_check_branch
      %144 = sbr.rel (%p141) target = $region28
    $region27: #{basic_transform_pallas.3} parent=5 // pred_region
      %s145 = ssub.s32 %s10, 1
      %p146 = scmp.lt.s32.totalorder %s15, 1
      %s147 = scalar_select %p146, %s15, 1
      %s148 = smul.addr %s147, 120
      %s149 = smul.addr %s148, 4
      %s150 = scalar_lea.vmem %s0, %s149
      %p151 = pneg %p36
      %p152 = pneg %p33
      %p153 = pneg %p57
      %p154 = pneg %p54
      %p155 = pneg %p83
      %p156 = pneg %p80
      %p157 = scmp.lt.s32.totalorder %s15, 1
      %s158 = scalar_select %p157, %s15, 1
      %s159 = smul.addr %s158, 32
      %s160 = smul.addr %s159, 8
      %s161 = scalar_lea.vmem %s2, %s160
      %p162 = pneg %p109
      %p163 = pneg %p106
      %p164 = scmp.lt.s32.totalorder %s15, 1
      %s165 = scalar_select %p164, %s15, 1
      %s166 = smul.addr %s165, 2
      %s167 = scalar_lea.vmem %s3, %s166
      %p168 = scmp.lt.s32.totalorder %s15, 1
      %s169 = scalar_select %p168, %s15, 1
      %s170 = smul.addr %s169, 120
      %s171 = smul.addr %s170, 4
      %s172 = scalar_lea.vmem %s0, %s171
      %p173 = scmp.lt.s32.totalorder %s15, 1
      %s174 = scalar_select %p173, %s15, 1
      %s175 = smul.addr %s174, 32
      %s176 = smul.addr %s175, 8
      %s177 = scalar_lea.vmem %s2, %s176
      %p178 = scmp.lt.s32.totalorder %s15, 1
      %s179 = scalar_select %p178, %s15, 1
      %s180 = smul.addr %s179, 2
      %s181 = scalar_lea.vmem %s3, %s180
      %v183 = vld [vmem:[%s172] sm:$0xf]
      %v184 = vld [vmem:[%s172 + $0x4] sm:$0x1]
      %v185 = vld [vmem:[%s172 + $0x8] sm:$0xf]
      %v186 = vld [vmem:[%s172 + $0xc] sm:$0x1]
      %v187 = vld [vmem:[%s172 + $0x10] sm:$0xf]
      %v188 = vld [vmem:[%s172 + $0x14] sm:$0x1]
      %v189 = vld [vmem:[%s172 + $0x18] sm:$0xf]
      %v190 = vld [vmem:[%s172 + $0x1c] sm:$0x1]
      %v191 = vld [vmem:[%s172 + $0x20] sm:$0xf]
      %v192 = vld [vmem:[%s172 + $0x24] sm:$0x1]
      %v193 = vld [vmem:[%s172 + $0x28] sm:$0xf]
      %v194 = vld [vmem:[%s172 + $0x2c] sm:$0x1]
      %v195 = vld [vmem:[%s172 + $0x30] sm:$0xf]
      %v196 = vld [vmem:[%s172 + $0x34] sm:$0x1]
      %v197 = vld [vmem:[%s172 + $0x38] sm:$0xf]
      %v198 = vld [vmem:[%s172 + $0x3c] sm:$0x1]
      %v199 = vld [vmem:[%s172 + $0x40] sm:$0xf]
      %v200 = vld [vmem:[%s172 + $0x44] sm:$0x1]
      %v201 = vld [vmem:[%s172 + $0x48] sm:$0xf]
      %v202 = vld [vmem:[%s172 + $0x4c] sm:$0x1]
      %v203 = vld [vmem:[%s172 + $0x50] sm:$0xf]
      %v204 = vld [vmem:[%s172 + $0x54] sm:$0x1]
      %v205 = vld [vmem:[%s172 + $0x58] sm:$0xf]
      %v206 = vld [vmem:[%s172 + $0x5c] sm:$0x1]
      %v207 = vld [vmem:[%s172 + $0x60] sm:$0xf]
      %v208 = vld [vmem:[%s172 + $0x64] sm:$0x1]
      %v209 = vld [vmem:[%s172 + $0x68] sm:$0xf]
      %v210 = vld [vmem:[%s172 + $0x6c] sm:$0x1]
      %v211 = vld [vmem:[%s172 + $0x70] sm:$0xf]
      %v212 = vld [vmem:[%s172 + $0x74] sm:$0x1]
      %v213 = vld [vmem:[%s172 + $0x78] sm:$0xf]
      %v214 = vld [vmem:[%s172 + $0x7c] sm:$0x1]
      %v215 = vld [vmem:[%s172 + $0x80] sm:$0xf]
      %v216 = vld [vmem:[%s172 + $0x84] sm:$0x1]
      %v217 = vld [vmem:[%s172 + $0x88] sm:$0xf]
      %v218 = vld [vmem:[%s172 + $0x8c] sm:$0x1]
      %v219 = vld [vmem:[%s172 + $0x90] sm:$0xf]
      %v220 = vld [vmem:[%s172 + $0x94] sm:$0x1]
      %v221 = vld [vmem:[%s172 + $0x98] sm:$0xf]
      %v222 = vld [vmem:[%s172 + $0x9c] sm:$0x1]
      %v223 = vld [vmem:[%s172 + $0xa0] sm:$0xf]
      %v224 = vld [vmem:[%s172 + $0xa4] sm:$0x1]
      %v225 = vld [vmem:[%s172 + $0xa8] sm:$0xf]
      %v226 = vld [vmem:[%s172 + $0xac] sm:$0x1]
      %v227 = vld [vmem:[%s172 + $0xb0] sm:$0xf]
      %v228 = vld [vmem:[%s172 + $0xb4] sm:$0x1]
      %v229 = vld [vmem:[%s172 + $0xb8] sm:$0xf]
      %v230 = vld [vmem:[%s172 + $0xbc] sm:$0x1]
      %v231 = vld [vmem:[%s172 + $0xc0] sm:$0xf]
      %v232 = vld [vmem:[%s172 + $0xc4] sm:$0x1]
      %v233 = vld [vmem:[%s172 + $0xc8] sm:$0xf]
      %v234 = vld [vmem:[%s172 + $0xcc] sm:$0x1]
      %v235 = vld [vmem:[%s172 + $0xd0] sm:$0xf]
      %v236 = vld [vmem:[%s172 + $0xd4] sm:$0x1]
      %v237 = vld [vmem:[%s172 + $0xd8] sm:$0xf]
      %v238 = vld [vmem:[%s172 + $0xdc] sm:$0x1]
      %v239 = vld [vmem:[%s172 + $0xe0] sm:$0xf]
      %v240 = vld [vmem:[%s172 + $0xe4] sm:$0x1]
      %v241 = vld [vmem:[%s172 + $0xe8] sm:$0xf]
      %v242 = vld [vmem:[%s172 + $0xec] sm:$0x1]
      %v243 = vld [vmem:[%s172 + $0xf0] sm:$0xf]
      %v244 = vld [vmem:[%s172 + $0xf4] sm:$0x1]
      %v245 = vld [vmem:[%s172 + $0xf8] sm:$0xf]
      %v246 = vld [vmem:[%s172 + $0xfc] sm:$0x1]
      %v247 = vld [vmem:[%s172 + $0x100] sm:$0xf]
      %v248 = vld [vmem:[%s172 + $0x104] sm:$0x1]
      %v249 = vld [vmem:[%s172 + $0x108] sm:$0xf]
      %v250 = vld [vmem:[%s172 + $0x10c] sm:$0x1]
      %v251 = vld [vmem:[%s172 + $0x110] sm:$0xf]
      %v252 = vld [vmem:[%s172 + $0x114] sm:$0x1]
      %v253 = vld [vmem:[%s172 + $0x118] sm:$0xf]
      %v254 = vld [vmem:[%s172 + $0x11c] sm:$0x1]
      %v255 = vld [vmem:[%s172 + $0x120] sm:$0xf]
      %v256 = vld [vmem:[%s172 + $0x124] sm:$0x1]
      %v257 = vld [vmem:[%s172 + $0x128] sm:$0xf]
      %v258 = vld [vmem:[%s172 + $0x12c] sm:$0x1]
      %v259 = vld [vmem:[%s172 + $0x130] sm:$0xf]
      %v260 = vld [vmem:[%s172 + $0x134] sm:$0x1]
      %v261 = vld [vmem:[%s172 + $0x138] sm:$0xf]
      %v262 = vld [vmem:[%s172 + $0x13c] sm:$0x1]
      %v263 = vld [vmem:[%s172 + $0x140] sm:$0xf]
      %v264 = vld [vmem:[%s172 + $0x144] sm:$0x1]
      %v265 = vld [vmem:[%s172 + $0x148] sm:$0xf]
      %v266 = vld [vmem:[%s172 + $0x14c] sm:$0x1]
      %v267 = vld [vmem:[%s172 + $0x150] sm:$0xf]
      %v268 = vld [vmem:[%s172 + $0x154] sm:$0x1]
      %v269 = vld [vmem:[%s172 + $0x158] sm:$0xf]
      %v270 = vld [vmem:[%s172 + $0x15c] sm:$0x1]
      %v271 = vld [vmem:[%s172 + $0x160] sm:$0xf]
      %v272 = vld [vmem:[%s172 + $0x164] sm:$0x1]
      %v273 = vld [vmem:[%s172 + $0x168] sm:$0xf]
      %v274 = vld [vmem:[%s172 + $0x16c] sm:$0x1]
      %v275 = vld [vmem:[%s172 + $0x170] sm:$0xf]
      %v276 = vld [vmem:[%s172 + $0x174] sm:$0x1]
      %v277 = vld [vmem:[%s172 + $0x178] sm:$0xf]
      %v278 = vld [vmem:[%s172 + $0x17c] sm:$0x1]
      %v279 = vld [vmem:[%s172 + $0x180] sm:$0xf]
      %v280 = vld [vmem:[%s172 + $0x184] sm:$0x1]
      %v281 = vld [vmem:[%s172 + $0x188] sm:$0xf]
      %v282 = vld [vmem:[%s172 + $0x18c] sm:$0x1]
      %v283 = vld [vmem:[%s172 + $0x190] sm:$0xf]
      %v284 = vld [vmem:[%s172 + $0x194] sm:$0x1]
      %v285 = vld [vmem:[%s172 + $0x198] sm:$0xf]
      %v286 = vld [vmem:[%s172 + $0x19c] sm:$0x1]
      %v287 = vld [vmem:[%s172 + $0x1a0] sm:$0xf]
      %v288 = vld [vmem:[%s172 + $0x1a4] sm:$0x1]
      %v289 = vld [vmem:[%s172 + $0x1a8] sm:$0xf]
      %v290 = vld [vmem:[%s172 + $0x1ac] sm:$0x1]
      %v291 = vld [vmem:[%s172 + $0x1b0] sm:$0xf]
      %v292 = vld [vmem:[%s172 + $0x1b4] sm:$0x1]
      %v293 = vld [vmem:[%s172 + $0x1b8] sm:$0xf]
      %v294 = vld [vmem:[%s172 + $0x1bc] sm:$0x1]
      %v295 = vld [vmem:[%s172 + $0x1c0] sm:$0xf]
      %v296 = vld [vmem:[%s172 + $0x1c4] sm:$0x1]
      %v297 = vld [vmem:[%s172 + $0x1c8] sm:$0xf]
      %v298 = vld [vmem:[%s172 + $0x1cc] sm:$0x1]
      %v299 = vld [vmem:[%s172 + $0x1d0] sm:$0xf]
      %v300 = vld [vmem:[%s172 + $0x1d4] sm:$0x1]
      %v301 = vld [vmem:[%s172 + $0x1d8] sm:$0xf]
      %v302 = vld [vmem:[%s172 + $0x1dc] sm:$0x1]
      %v367 = vunpack.c.l.b16 %v183
      %v368 = vunpack.c.l.b16 %v184
      %v369 = vunpack.c.l.b16 %v185
      %v370 = vunpack.c.l.b16 %v186
      %v371 = vunpack.c.l.b16 %v187
      %v372 = vunpack.c.l.b16 %v188
      %v373 = vunpack.c.l.b16 %v189
      %v374 = vunpack.c.l.b16 %v190
      %v375 = vunpack.c.l.b16 %v191
      %v376 = vunpack.c.l.b16 %v192
      %v377 = vunpack.c.l.b16 %v193
      %v378 = vunpack.c.l.b16 %v194
      %v379 = vunpack.c.l.b16 %v195
      %v380 = vunpack.c.l.b16 %v196
      %v381 = vunpack.c.l.b16 %v197
      %v382 = vunpack.c.l.b16 %v198
      %v383 = vunpack.c.l.b16 %v203
      %v384 = vunpack.c.l.b16 %v204
      %v385 = vunpack.c.l.b16 %v205
      %v386 = vunpack.c.l.b16 %v206
      %v387 = vunpack.c.l.b16 %v207
      %v388 = vunpack.c.l.b16 %v208
      %v389 = vunpack.c.l.b16 %v209
      %v390 = vunpack.c.l.b16 %v210
      %v391 = vunpack.c.l.b16 %v211
      %v392 = vunpack.c.l.b16 %v212
      %v393 = vunpack.c.l.b16 %v213
      %v394 = vunpack.c.l.b16 %v214
      %v395 = vunpack.c.l.b16 %v215
      %v396 = vunpack.c.l.b16 %v216
      %v397 = vunpack.c.l.b16 %v217
      %v398 = vunpack.c.l.b16 %v218
      %v399 = vunpack.c.l.b16 %v223
      %v400 = vunpack.c.l.b16 %v224
      %v401 = vunpack.c.l.b16 %v225
      %v402 = vunpack.c.l.b16 %v226
      %v403 = vunpack.c.l.b16 %v227
      %v404 = vunpack.c.l.b16 %v228
      %v405 = vunpack.c.l.b16 %v229
      %v406 = vunpack.c.l.b16 %v230
      %v407 = vunpack.c.l.b16 %v231
      %v408 = vunpack.c.l.b16 %v232
      %v409 = vunpack.c.l.b16 %v233
      %v410 = vunpack.c.l.b16 %v234
      %v411 = vunpack.c.l.b16 %v235
      %v412 = vunpack.c.l.b16 %v236
      %v413 = vunpack.c.l.b16 %v237
      %v414 = vunpack.c.l.b16 %v238
      %v415 = vunpack.c.l.b16 %v243
      %v416 = vunpack.c.l.b16 %v244
      %v417 = vunpack.c.l.b16 %v245
      %v418 = vunpack.c.l.b16 %v246
      %v419 = vunpack.c.l.b16 %v247
      %v420 = vunpack.c.l.b16 %v248
      %v421 = vunpack.c.l.b16 %v249
      %v422 = vunpack.c.l.b16 %v250
      %v423 = vunpack.c.l.b16 %v251
      %v424 = vunpack.c.l.b16 %v252
      %v425 = vunpack.c.l.b16 %v253
      %v426 = vunpack.c.l.b16 %v254
      %v427 = vunpack.c.l.b16 %v255
      %v428 = vunpack.c.l.b16 %v256
      %v429 = vunpack.c.l.b16 %v257
      %v430 = vunpack.c.l.b16 %v258
      %v431 = vpack.c.b16 %v368, %v367
      %v432 = vpack.c.b16 %v370, %v369
      %v433 = vpack.c.b16 %v372, %v371
      %v434 = vpack.c.b16 %v374, %v373
      %v435 = vpack.c.b16 %v376, %v375
      %v436 = vpack.c.b16 %v378, %v377
      %v437 = vpack.c.b16 %v380, %v379
      %v438 = vpack.c.b16 %v382, %v381
      %v439 = vpack.c.b16 %v384, %v383
      %v440 = vpack.c.b16 %v386, %v385
      %v441 = vpack.c.b16 %v388, %v387
      %v442 = vpack.c.b16 %v390, %v389
      %v443 = vpack.c.b16 %v392, %v391
      %v444 = vpack.c.b16 %v394, %v393
      %v445 = vpack.c.b16 %v396, %v395
      %v446 = vpack.c.b16 %v398, %v397
      %v447 = vpack.c.b16 %v400, %v399
      %v448 = vpack.c.b16 %v402, %v401
      %v449 = vpack.c.b16 %v404, %v403
      %v450 = vpack.c.b16 %v406, %v405
      %v451 = vpack.c.b16 %v408, %v407
      %v452 = vpack.c.b16 %v410, %v409
      %v453 = vpack.c.b16 %v412, %v411
      %v454 = vpack.c.b16 %v414, %v413
      %v455 = vpack.c.b16 %v416, %v415
      %v456 = vpack.c.b16 %v418, %v417
      %v457 = vpack.c.b16 %v420, %v419
      %v458 = vpack.c.b16 %v422, %v421
      %v459 = vpack.c.b16 %v424, %v423
      %v460 = vpack.c.b16 %v426, %v425
      %v461 = vpack.c.b16 %v428, %v427
      %v462 = vpack.c.b16 %v430, %v429
      %v464 = vshrl.u32 %v431, 16
      %v466 = vshll.u32 %v431, 16
      %v468 = vrot.slane %v466, 1
      %v469 = vor.u32 %v464, %v468
      %v471 = vshrl.u32 %v432, 16
      %v473 = vshll.u32 %v432, 16
      %v475 = vrot.slane %v473, 1
      %v476 = vor.u32 %v471, %v475
      %v478 = vshrl.u32 %v433, 16
      %v480 = vshll.u32 %v433, 16
      %v482 = vrot.slane %v480, 1
      %v483 = vor.u32 %v478, %v482
      %v485 = vshrl.u32 %v434, 16
      %v487 = vshll.u32 %v434, 16
      %v489 = vrot.slane %v487, 1
      %v490 = vor.u32 %v485, %v489
      %v492 = vshrl.u32 %v435, 16
      %v494 = vshll.u32 %v435, 16
      %v496 = vrot.slane %v494, 1
      %v497 = vor.u32 %v492, %v496
      %v499 = vshrl.u32 %v436, 16
      %v501 = vshll.u32 %v436, 16
      %v503 = vrot.slane %v501, 1
      %v504 = vor.u32 %v499, %v503
      %v506 = vshrl.u32 %v437, 16
      %v508 = vshll.u32 %v437, 16
      %v510 = vrot.slane %v508, 1
      %v511 = vor.u32 %v506, %v510
      %v513 = vshrl.u32 %v438, 16
      %v515 = vshll.u32 %v438, 16
      %v517 = vrot.slane %v515, 1
      %v518 = vor.u32 %v513, %v517
      %v520 = vshrl.u32 %v439, 16
      %v522 = vshll.u32 %v439, 16
      %v524 = vrot.slane %v522, 1
      %v525 = vor.u32 %v520, %v524
      %v527 = vshrl.u32 %v440, 16
      %v529 = vshll.u32 %v440, 16
      %v531 = vrot.slane %v529, 1
      %v532 = vor.u32 %v527, %v531
      %v534 = vshrl.u32 %v441, 16
      %v536 = vshll.u32 %v441, 16
      %v538 = vrot.slane %v536, 1
      %v539 = vor.u32 %v534, %v538
      %v541 = vshrl.u32 %v442, 16
      %v543 = vshll.u32 %v442, 16
      %v545 = vrot.slane %v543, 1
      %v546 = vor.u32 %v541, %v545
      %v548 = vshrl.u32 %v443, 16
      %v550 = vshll.u32 %v443, 16
      %v552 = vrot.slane %v550, 1
      %v553 = vor.u32 %v548, %v552
      %v555 = vshrl.u32 %v444, 16
      %v557 = vshll.u32 %v444, 16
      %v559 = vrot.slane %v557, 1
      %v560 = vor.u32 %v555, %v559
      %v562 = vshrl.u32 %v445, 16
      %v564 = vshll.u32 %v445, 16
      %v566 = vrot.slane %v564, 1
      %v567 = vor.u32 %v562, %v566
      %v569 = vshrl.u32 %v446, 16
      %v571 = vshll.u32 %v446, 16
      %v573 = vrot.slane %v571, 1
      %v574 = vor.u32 %v569, %v573
      %v576 = vshrl.u32 %v447, 16
      %v578 = vshll.u32 %v447, 16
      %v580 = vrot.slane %v578, 1
      %v581 = vor.u32 %v576, %v580
      %v583 = vshrl.u32 %v448, 16
      %v585 = vshll.u32 %v448, 16
      %v587 = vrot.slane %v585, 1
      %v588 = vor.u32 %v583, %v587
      %v590 = vshrl.u32 %v449, 16
      %v592 = vshll.u32 %v449, 16
      %v594 = vrot.slane %v592, 1
      %v595 = vor.u32 %v590, %v594
      %v597 = vshrl.u32 %v450, 16
      %v599 = vshll.u32 %v450, 16
      %v601 = vrot.slane %v599, 1
      %v602 = vor.u32 %v597, %v601
      %v604 = vshrl.u32 %v451, 16
      %v606 = vshll.u32 %v451, 16
      %v608 = vrot.slane %v606, 1
      %v609 = vor.u32 %v604, %v608
      %v611 = vshrl.u32 %v452, 16
      %v613 = vshll.u32 %v452, 16
      %v615 = vrot.slane %v613, 1
      %v616 = vor.u32 %v611, %v615
      %v618 = vshrl.u32 %v453, 16
      %v620 = vshll.u32 %v453, 16
      %v622 = vrot.slane %v620, 1
      %v623 = vor.u32 %v618, %v622
      %v625 = vshrl.u32 %v454, 16
      %v627 = vshll.u32 %v454, 16
      %v629 = vrot.slane %v627, 1
      %v630 = vor.u32 %v625, %v629
      %v632 = vshrl.u32 %v455, 16
      %v634 = vshll.u32 %v455, 16
      %v636 = vrot.slane %v634, 1
      %v637 = vor.u32 %v632, %v636
      %v639 = vshrl.u32 %v456, 16
      %v641 = vshll.u32 %v456, 16
      %v643 = vrot.slane %v641, 1
      %v644 = vor.u32 %v639, %v643
      %v646 = vshrl.u32 %v457, 16
      %v648 = vshll.u32 %v457, 16
      %v650 = vrot.slane %v648, 1
      %v651 = vor.u32 %v646, %v650
      %v653 = vshrl.u32 %v458, 16
      %v655 = vshll.u32 %v458, 16
      %v657 = vrot.slane %v655, 1
      %v658 = vor.u32 %v653, %v657
      %v660 = vshrl.u32 %v459, 16
      %v662 = vshll.u32 %v459, 16
      %v664 = vrot.slane %v662, 1
      %v665 = vor.u32 %v660, %v664
      %v667 = vshrl.u32 %v460, 16
      %v669 = vshll.u32 %v460, 16
      %v671 = vrot.slane %v669, 1
      %v672 = vor.u32 %v667, %v671
      %v674 = vshrl.u32 %v461, 16
      %v676 = vshll.u32 %v461, 16
      %v678 = vrot.slane %v676, 1
      %v679 = vor.u32 %v674, %v678
      %v681 = vshrl.u32 %v462, 16
      %v683 = vshll.u32 %v462, 16
      %v685 = vrot.slane %v683, 1
      %v686 = vor.u32 %v681, %v685
      %v687 = vrot.slane %v431, 1
      %v688 = vrot.slane %v432, 1
      %v689 = vrot.slane %v433, 1
      %v690 = vrot.slane %v434, 1
      %v691 = vrot.slane %v435, 1
      %v692 = vrot.slane %v436, 1
      %v693 = vrot.slane %v437, 1
      %v694 = vrot.slane %v438, 1
      %v695 = vrot.slane %v439, 1
      %v696 = vrot.slane %v440, 1
      %v697 = vrot.slane %v441, 1
      %v698 = vrot.slane %v442, 1
      %v699 = vrot.slane %v443, 1
      %v700 = vrot.slane %v444, 1
      %v701 = vrot.slane %v445, 1
      %v702 = vrot.slane %v446, 1
      %v703 = vrot.slane %v447, 1
      %v704 = vrot.slane %v448, 1
      %v705 = vrot.slane %v449, 1
      %v706 = vrot.slane %v450, 1
      %v707 = vrot.slane %v451, 1
      %v708 = vrot.slane %v452, 1
      %v709 = vrot.slane %v453, 1
      %v710 = vrot.slane %v454, 1
      %v711 = vrot.slane %v455, 1
      %v712 = vrot.slane %v456, 1
      %v713 = vrot.slane %v457, 1
      %v714 = vrot.slane %v458, 1
      %v715 = vrot.slane %v459, 1
      %v716 = vrot.slane %v460, 1
      %v717 = vrot.slane %v461, 1
      %v718 = vrot.slane %v462, 1
      %v727 = vunpack.c.l.b16 %v199
      %v728 = vunpack.c.l.b16 %v200
      %v729 = vunpack.c.l.b16 %v219
      %v730 = vunpack.c.l.b16 %v220
      %v731 = vunpack.c.l.b16 %v239
      %v732 = vunpack.c.l.b16 %v240
      %v733 = vunpack.c.l.b16 %v259
      %v734 = vunpack.c.l.b16 %v260
      %v735 = vpack.c.b16 %v728, %v727
      %v736 = vpack.c.b16 %v730, %v729
      %v737 = vpack.c.b16 %v732, %v731
      %v738 = vpack.c.b16 %v734, %v733
      %v740 = vshrl.u32 %v735, 16
      %v742 = vshll.u32 %v735, 16
      %v744 = vrot.slane %v742, 1
      %v745 = vor.u32 %v740, %v744
      %v747 = vshrl.u32 %v736, 16
      %v749 = vshll.u32 %v736, 16
      %v751 = vrot.slane %v749, 1
      %v752 = vor.u32 %v747, %v751
      %v754 = vshrl.u32 %v737, 16
      %v756 = vshll.u32 %v737, 16
      %v758 = vrot.slane %v756, 1
      %v759 = vor.u32 %v754, %v758
      %v761 = vshrl.u32 %v738, 16
      %v763 = vshll.u32 %v738, 16
      %v765 = vrot.slane %v763, 1
      %v766 = vor.u32 %v761, %v765
      %v767 = vrot.slane %v735, 1
      %v768 = vrot.slane %v736, 1
      %v769 = vrot.slane %v737, 1
      %v770 = vrot.slane %v738, 1
      %v779 = vunpack.c.l.b16 %v201
      %v780 = vunpack.c.l.b16 %v202
      %v781 = vunpack.c.l.b16 %v221
      %v782 = vunpack.c.l.b16 %v222
      %v783 = vunpack.c.l.b16 %v241
      %v784 = vunpack.c.l.b16 %v242
      %v785 = vunpack.c.l.b16 %v261
      %v786 = vunpack.c.l.b16 %v262
      %v787 = vpack.c.b16 %v780, %v779
      %v788 = vpack.c.b16 %v782, %v781
      %v789 = vpack.c.b16 %v784, %v783
      %v790 = vpack.c.b16 %v786, %v785
      %v792 = vshrl.u32 %v787, 16
      %v794 = vshll.u32 %v787, 16
      %v796 = vrot.slane %v794, 1
      %v797 = vor.u32 %v792, %v796
      %v799 = vshrl.u32 %v788, 16
      %v801 = vshll.u32 %v788, 16
      %v803 = vrot.slane %v801, 1
      %v804 = vor.u32 %v799, %v803
      %v806 = vshrl.u32 %v789, 16
      %v808 = vshll.u32 %v789, 16
      %v810 = vrot.slane %v808, 1
      %v811 = vor.u32 %v806, %v810
      %v813 = vshrl.u32 %v790, 16
      %v815 = vshll.u32 %v790, 16
      %v817 = vrot.slane %v815, 1
      %v818 = vor.u32 %v813, %v817
      %v819 = vrot.slane %v787, 1
      %v820 = vrot.slane %v788, 1
      %v821 = vrot.slane %v789, 1
      %v822 = vrot.slane %v790, 1
      %v839 = vunpack.c.l.b16 %v263
      %v840 = vunpack.c.l.b16 %v264
      %v841 = vunpack.c.l.b16 %v265
      %v842 = vunpack.c.l.b16 %v266
      %v843 = vunpack.c.l.b16 %v267
      %v844 = vunpack.c.l.b16 %v268
      %v845 = vunpack.c.l.b16 %v269
      %v846 = vunpack.c.l.b16 %v270
      %v847 = vunpack.c.l.b16 %v271
      %v848 = vunpack.c.l.b16 %v272
      %v849 = vunpack.c.l.b16 %v273
      %v850 = vunpack.c.l.b16 %v274
      %v851 = vunpack.c.l.b16 %v275
      %v852 = vunpack.c.l.b16 %v276
      %v853 = vunpack.c.l.b16 %v277
      %v854 = vunpack.c.l.b16 %v278
      %v855 = vpack.c.b16 %v840, %v839
      %v856 = vpack.c.b16 %v842, %v841
      %v857 = vpack.c.b16 %v844, %v843
      %v858 = vpack.c.b16 %v846, %v845
      %v859 = vpack.c.b16 %v848, %v847
      %v860 = vpack.c.b16 %v850, %v849
      %v861 = vpack.c.b16 %v852, %v851
      %v862 = vpack.c.b16 %v854, %v853
      %v864 = vshrl.u32 %v855, 16
      %v866 = vshll.u32 %v855, 16
      %v868 = vrot.slane %v866, 1
      %v869 = vor.u32 %v864, %v868
      %v871 = vshrl.u32 %v856, 16
      %v873 = vshll.u32 %v856, 16
      %v875 = vrot.slane %v873, 1
      %v876 = vor.u32 %v871, %v875
      %v878 = vshrl.u32 %v857, 16
      %v880 = vshll.u32 %v857, 16
      %v882 = vrot.slane %v880, 1
      %v883 = vor.u32 %v878, %v882
      %v885 = vshrl.u32 %v858, 16
      %v887 = vshll.u32 %v858, 16
      %v889 = vrot.slane %v887, 1
      %v890 = vor.u32 %v885, %v889
      %v892 = vshrl.u32 %v859, 16
      %v894 = vshll.u32 %v859, 16
      %v896 = vrot.slane %v894, 1
      %v897 = vor.u32 %v892, %v896
      %v899 = vshrl.u32 %v860, 16
      %v901 = vshll.u32 %v860, 16
      %v903 = vrot.slane %v901, 1
      %v904 = vor.u32 %v899, %v903
      %v906 = vshrl.u32 %v861, 16
      %v908 = vshll.u32 %v861, 16
      %v910 = vrot.slane %v908, 1
      %v911 = vor.u32 %v906, %v910
      %v913 = vshrl.u32 %v862, 16
      %v915 = vshll.u32 %v862, 16
      %v917 = vrot.slane %v915, 1
      %v918 = vor.u32 %v913, %v917
      %v919 = vrot.slane %v855, 1
      %v920 = vrot.slane %v856, 1
      %v921 = vrot.slane %v857, 1
      %v922 = vrot.slane %v858, 1
      %v923 = vrot.slane %v859, 1
      %v924 = vrot.slane %v860, 1
      %v925 = vrot.slane %v861, 1
      %v926 = vrot.slane %v862, 1
      %v929 = vunpack.c.l.b16 %v279
      %v930 = vunpack.c.l.b16 %v280
      %v931 = vpack.c.b16 %v930, %v929
      %v933 = vshrl.u32 %v931, 16
      %v935 = vshll.u32 %v931, 16
      %v937 = vrot.slane %v935, 1
      %v938 = vor.u32 %v933, %v937
      %v939 = vrot.slane %v931, 1
      %v942 = vunpack.c.l.b16 %v281
      %v943 = vunpack.c.l.b16 %v282
      %v944 = vpack.c.b16 %v943, %v942
      %v946 = vshrl.u32 %v944, 16
      %v948 = vshll.u32 %v944, 16
      %v950 = vrot.slane %v948, 1
      %v951 = vor.u32 %v946, %v950
      %v960 = vunpack.c.l.b16 %v283
      %v961 = vunpack.c.l.b16 %v285
      %v962 = vunpack.c.l.b16 %v287
      %v963 = vunpack.c.l.b16 %v289
      %v964 = vunpack.c.l.b16 %v291
      %v965 = vunpack.c.l.b16 %v293
      %v966 = vunpack.c.l.b16 %v295
      %v967 = vunpack.c.l.b16 %v297
      %v968 = vpack.c.b16 %v399, %v399
      %v969 = vpack.c.b16 %v401, %v401
      %v970 = vpack.c.b16 %v403, %v403
      %v971 = vpack.c.b16 %v405, %v405
      %v972 = vpack.c.b16 %v407, %v407
      %v973 = vpack.c.b16 %v409, %v409
      %v974 = vpack.c.b16 %v411, %v411
      %v975 = vpack.c.b16 %v413, %v413
      %v976 = vpack.c.b16 %v415, %v415
      %v977 = vpack.c.b16 %v417, %v417
      %v978 = vpack.c.b16 %v419, %v419
      %v979 = vpack.c.b16 %v421, %v421
      %v980 = vpack.c.b16 %v423, %v423
      %v981 = vpack.c.b16 %v425, %v425
      %v982 = vpack.c.b16 %v427, %v427
      %v983 = vpack.c.b16 %v429, %v429
      %v984 = vpack.c.b16 %v839, %v839
      %v985 = vpack.c.b16 %v841, %v841
      %v986 = vpack.c.b16 %v843, %v843
      %v987 = vpack.c.b16 %v845, %v845
      %v988 = vpack.c.b16 %v847, %v847
      %v989 = vpack.c.b16 %v849, %v849
      %v990 = vpack.c.b16 %v851, %v851
      %v991 = vpack.c.b16 %v853, %v853
      %v992 = vpack.c.b16 %v960, %v960
      %v993 = vpack.c.b16 %v961, %v961
      %v994 = vpack.c.b16 %v962, %v962
      %v995 = vpack.c.b16 %v963, %v963
      %v996 = vpack.c.b16 %v964, %v964
      %v997 = vpack.c.b16 %v965, %v965
      %v998 = vpack.c.b16 %v966, %v966
      %v999 = vpack.c.b16 %v967, %v967
      %v1001 = vshrl.u32 %v968, 16
      %v1003 = vrot.slane %v1001, 7
      %v1004 = vshll.u32 %v968, 16
      %v1006 = vor.u32 %v1003, %v1004
      %v1008 = vshrl.u32 %v969, 16
      %v1010 = vrot.slane %v1008, 7
      %v1011 = vshll.u32 %v969, 16
      %v1013 = vor.u32 %v1010, %v1011
      %v1015 = vshrl.u32 %v970, 16
      %v1017 = vrot.slane %v1015, 7
      %v1018 = vshll.u32 %v970, 16
      %v1020 = vor.u32 %v1017, %v1018
      %v1022 = vshrl.u32 %v971, 16
      %v1024 = vrot.slane %v1022, 7
      %v1025 = vshll.u32 %v971, 16
      %v1027 = vor.u32 %v1024, %v1025
      %v1029 = vshrl.u32 %v972, 16
      %v1031 = vrot.slane %v1029, 7
      %v1032 = vshll.u32 %v972, 16
      %v1034 = vor.u32 %v1031, %v1032
      %v1036 = vshrl.u32 %v973, 16
      %v1038 = vrot.slane %v1036, 7
      %v1039 = vshll.u32 %v973, 16
      %v1041 = vor.u32 %v1038, %v1039
      %v1043 = vshrl.u32 %v974, 16
      %v1045 = vrot.slane %v1043, 7
      %v1046 = vshll.u32 %v974, 16
      %v1048 = vor.u32 %v1045, %v1046
      %v1050 = vshrl.u32 %v975, 16
      %v1052 = vrot.slane %v1050, 7
      %v1053 = vshll.u32 %v975, 16
      %v1055 = vor.u32 %v1052, %v1053
      %v1057 = vshrl.u32 %v976, 16
      %v1059 = vrot.slane %v1057, 7
      %v1060 = vshll.u32 %v976, 16
      %v1062 = vor.u32 %v1059, %v1060
      %v1064 = vshrl.u32 %v977, 16
      %v1066 = vrot.slane %v1064, 7
      %v1067 = vshll.u32 %v977, 16
      %v1069 = vor.u32 %v1066, %v1067
      %v1071 = vshrl.u32 %v978, 16
      %v1073 = vrot.slane %v1071, 7
      %v1074 = vshll.u32 %v978, 16
      %v1076 = vor.u32 %v1073, %v1074
      %v1078 = vshrl.u32 %v979, 16
      %v1080 = vrot.slane %v1078, 7
      %v1081 = vshll.u32 %v979, 16
      %v1083 = vor.u32 %v1080, %v1081
      %v1085 = vshrl.u32 %v980, 16
      %v1087 = vrot.slane %v1085, 7
      %v1088 = vshll.u32 %v980, 16
      %v1090 = vor.u32 %v1087, %v1088
      %v1092 = vshrl.u32 %v981, 16
      %v1094 = vrot.slane %v1092, 7
      %v1095 = vshll.u32 %v981, 16
      %v1097 = vor.u32 %v1094, %v1095
      %v1099 = vshrl.u32 %v982, 16
      %v1101 = vrot.slane %v1099, 7
      %v1102 = vshll.u32 %v982, 16
      %v1104 = vor.u32 %v1101, %v1102
      %v1106 = vshrl.u32 %v983, 16
      %v1108 = vrot.slane %v1106, 7
      %v1109 = vshll.u32 %v983, 16
      %v1111 = vor.u32 %v1108, %v1109
      %v1113 = vshrl.u32 %v984, 16
      %v1115 = vrot.slane %v1113, 7
      %v1116 = vshll.u32 %v984, 16
      %v1118 = vor.u32 %v1115, %v1116
      %v1120 = vshrl.u32 %v985, 16
      %v1122 = vrot.slane %v1120, 7
      %v1123 = vshll.u32 %v985, 16
      %v1125 = vor.u32 %v1122, %v1123
      %v1127 = vshrl.u32 %v986, 16
      %v1129 = vrot.slane %v1127, 7
      %v1130 = vshll.u32 %v986, 16
      %v1132 = vor.u32 %v1129, %v1130
      %v1134 = vshrl.u32 %v987, 16
      %v1136 = vrot.slane %v1134, 7
      %v1137 = vshll.u32 %v987, 16
      %v1139 = vor.u32 %v1136, %v1137
      %v1141 = vshrl.u32 %v988, 16
      %v1143 = vrot.slane %v1141, 7
      %v1144 = vshll.u32 %v988, 16
      %v1146 = vor.u32 %v1143, %v1144
      %v1148 = vshrl.u32 %v989, 16
      %v1150 = vrot.slane %v1148, 7
      %v1151 = vshll.u32 %v989, 16
      %v1153 = vor.u32 %v1150, %v1151
      %v1155 = vshrl.u32 %v990, 16
      %v1157 = vrot.slane %v1155, 7
      %v1158 = vshll.u32 %v990, 16
      %v1160 = vor.u32 %v1157, %v1158
      %v1162 = vshrl.u32 %v991, 16
      %v1164 = vrot.slane %v1162, 7
      %v1165 = vshll.u32 %v991, 16
      %v1167 = vor.u32 %v1164, %v1165
      %v1169 = vshrl.u32 %v992, 16
      %v1171 = vrot.slane %v1169, 7
      %v1172 = vshll.u32 %v992, 16
      %v1174 = vor.u32 %v1171, %v1172
      %v1176 = vshrl.u32 %v993, 16
      %v1178 = vrot.slane %v1176, 7
      %v1179 = vshll.u32 %v993, 16
      %v1181 = vor.u32 %v1178, %v1179
      %v1183 = vshrl.u32 %v994, 16
      %v1185 = vrot.slane %v1183, 7
      %v1186 = vshll.u32 %v994, 16
      %v1188 = vor.u32 %v1185, %v1186
      %v1190 = vshrl.u32 %v995, 16
      %v1192 = vrot.slane %v1190, 7
      %v1193 = vshll.u32 %v995, 16
      %v1195 = vor.u32 %v1192, %v1193
      %v1197 = vshrl.u32 %v996, 16
      %v1199 = vrot.slane %v1197, 7
      %v1200 = vshll.u32 %v996, 16
      %v1202 = vor.u32 %v1199, %v1200
      %v1204 = vshrl.u32 %v997, 16
      %v1206 = vrot.slane %v1204, 7
      %v1207 = vshll.u32 %v997, 16
      %v1209 = vor.u32 %v1206, %v1207
      %v1211 = vshrl.u32 %v998, 16
      %v1213 = vrot.slane %v1211, 7
      %v1214 = vshll.u32 %v998, 16
      %v1216 = vor.u32 %v1213, %v1214
      %v1218 = vshrl.u32 %v999, 16
      %v1220 = vrot.slane %v1218, 7
      %v1221 = vshll.u32 %v999, 16
      %v1223 = vor.u32 %v1220, %v1221
      %v1232 = vunpack.c.l.b16 %v284
      %v1233 = vunpack.c.l.b16 %v286
      %v1234 = vunpack.c.l.b16 %v288
      %v1235 = vunpack.c.l.b16 %v290
      %v1236 = vunpack.c.l.b16 %v292
      %v1237 = vunpack.c.l.b16 %v294
      %v1238 = vunpack.c.l.b16 %v296
      %v1239 = vunpack.c.l.b16 %v298
      %v1240 = vpack.c.b16 %v1232, %v960
      %v1241 = vpack.c.b16 %v1233, %v961
      %v1242 = vpack.c.b16 %v1234, %v962
      %v1243 = vpack.c.b16 %v1235, %v963
      %v1244 = vpack.c.b16 %v1236, %v964
      %v1245 = vpack.c.b16 %v1237, %v965
      %v1246 = vpack.c.b16 %v1238, %v966
      %v1247 = vpack.c.b16 %v1239, %v967
      %v1249 = vshrl.u32 %v1240, 16
      %v1251 = vshll.u32 %v1240, 16
      %v1253 = vrot.slane %v1251, 1
      %v1254 = vor.u32 %v1249, %v1253
      %v1256 = vshrl.u32 %v1241, 16
      %v1258 = vshll.u32 %v1241, 16
      %v1260 = vrot.slane %v1258, 1
      %v1261 = vor.u32 %v1256, %v1260
      %v1263 = vshrl.u32 %v1242, 16
      %v1265 = vshll.u32 %v1242, 16
      %v1267 = vrot.slane %v1265, 1
      %v1268 = vor.u32 %v1263, %v1267
      %v1270 = vshrl.u32 %v1243, 16
      %v1272 = vshll.u32 %v1243, 16
      %v1274 = vrot.slane %v1272, 1
      %v1275 = vor.u32 %v1270, %v1274
      %v1277 = vshrl.u32 %v1244, 16
      %v1279 = vshll.u32 %v1244, 16
      %v1281 = vrot.slane %v1279, 1
      %v1282 = vor.u32 %v1277, %v1281
      %v1284 = vshrl.u32 %v1245, 16
      %v1286 = vshll.u32 %v1245, 16
      %v1288 = vrot.slane %v1286, 1
      %v1289 = vor.u32 %v1284, %v1288
      %v1291 = vshrl.u32 %v1246, 16
      %v1293 = vshll.u32 %v1246, 16
      %v1295 = vrot.slane %v1293, 1
      %v1296 = vor.u32 %v1291, %v1295
      %v1298 = vshrl.u32 %v1247, 16
      %v1300 = vshll.u32 %v1247, 16
      %v1302 = vrot.slane %v1300, 1
      %v1303 = vor.u32 %v1298, %v1302
      %v1305 = vunpack.c.l.b16 %v299
      %v1306 = vpack.c.b16 %v731, %v731
      %v1307 = vpack.c.b16 %v733, %v733
      %v1308 = vpack.c.b16 %v929, %v929
      %v1309 = vpack.c.b16 %v1305, %v1305
      %v1311 = vshrl.u32 %v1306, 16
      %v1313 = vrot.slane %v1311, 7
      %v1314 = vshll.u32 %v1306, 16
      %v1316 = vor.u32 %v1313, %v1314
      %v1318 = vshrl.u32 %v1307, 16
      %v1320 = vrot.slane %v1318, 7
      %v1321 = vshll.u32 %v1307, 16
      %v1323 = vor.u32 %v1320, %v1321
      %v1325 = vshrl.u32 %v1308, 16
      %v1327 = vrot.slane %v1325, 7
      %v1328 = vshll.u32 %v1308, 16
      %v1330 = vor.u32 %v1327, %v1328
      %v1332 = vshrl.u32 %v1309, 16
      %v1334 = vrot.slane %v1332, 7
      %v1335 = vshll.u32 %v1309, 16
      %v1337 = vor.u32 %v1334, %v1335
      %v1339 = vunpack.c.l.b16 %v300
      %v1340 = vpack.c.b16 %v1339, %v1305
      %v1342 = vshrl.u32 %v1340, 16
      %v1344 = vshll.u32 %v1340, 16
      %v1346 = vrot.slane %v1344, 1
      %v1347 = vor.u32 %v1342, %v1346
      %v1349 = vunpack.c.l.b16 %v301
      %v1350 = vpack.c.b16 %v783, %v783
      %v1351 = vpack.c.b16 %v785, %v785
      %v1352 = vpack.c.b16 %v942, %v942
      %v1353 = vpack.c.b16 %v1349, %v1349
      %v1355 = vshrl.u32 %v1350, 16
      %v1357 = vrot.slane %v1355, 7
      %v1358 = vshll.u32 %v1350, 16
      %v1360 = vor.u32 %v1357, %v1358
      %v1362 = vshrl.u32 %v1351, 16
      %v1364 = vrot.slane %v1362, 7
      %v1365 = vshll.u32 %v1351, 16
      %v1367 = vor.u32 %v1364, %v1365
      %v1369 = vshrl.u32 %v1352, 16
      %v1371 = vrot.slane %v1369, 7
      %v1372 = vshll.u32 %v1352, 16
      %v1374 = vor.u32 %v1371, %v1372
      %v1376 = vshrl.u32 %v1353, 16
      %v1378 = vrot.slane %v1376, 7
      %v1379 = vshll.u32 %v1353, 16
      %v1381 = vor.u32 %v1378, %v1379
      %v1383 = vunpack.c.l.b16 %v302
      %v1384 = vpack.c.b16 %v1383, %v1349
      %v1386 = vshrl.u32 %v1384, 16
      %v1388 = vshll.u32 %v1384, 16
      %v1390 = vrot.slane %v1388, 1
      %v1391 = vor.u32 %v1386, %v1390
      %v1393 = vshrl.u32 %v539, 16
      %v1395 = vshll.u32 %v539, 16
      %v1397 = vrot.slane %v1395, 1
      %v1398 = vor.u32 %v1393, %v1397
      %v1400 = vshrl.u32 %v1006, 16
      %v1402 = vshll.u32 %v1006, 16
      %v1404 = vrot.slane %v1402, 1
      %v1405 = vor.u32 %v1400, %v1404
      %v1407 = vshrl.u32 %v581, 16
      %v1409 = vshll.u32 %v581, 16
      %v1411 = vrot.slane %v1409, 1
      %v1412 = vor.u32 %v1407, %v1411
      %v1414 = vshrl.u32 %v1013, 16
      %v1416 = vshll.u32 %v1013, 16
      %v1418 = vrot.slane %v1416, 1
      %v1419 = vor.u32 %v1414, %v1418
      %v1421 = vshrl.u32 %v588, 16
      %v1423 = vshll.u32 %v588, 16
      %v1425 = vrot.slane %v1423, 1
      %v1426 = vor.u32 %v1421, %v1425
      %v1428 = vshrl.u32 %v1020, 16
      %v1430 = vshll.u32 %v1020, 16
      %v1432 = vrot.slane %v1430, 1
      %v1433 = vor.u32 %v1428, %v1432
      %v1435 = vshrl.u32 %v595, 16
      %v1437 = vshll.u32 %v595, 16
      %v1439 = vrot.slane %v1437, 1
      %v1440 = vor.u32 %v1435, %v1439
      %v1442 = vshrl.u32 %v546, 16
      %v1444 = vshll.u32 %v546, 16
      %v1446 = vrot.slane %v1444, 1
      %v1447 = vor.u32 %v1442, %v1446
      %v1449 = vshrl.u32 %v1027, 16
      %v1451 = vshll.u32 %v1027, 16
      %v1453 = vrot.slane %v1451, 1
      %v1454 = vor.u32 %v1449, %v1453
      %v1456 = vshrl.u32 %v602, 16
      %v1458 = vshll.u32 %v602, 16
      %v1460 = vrot.slane %v1458, 1
      %v1461 = vor.u32 %v1456, %v1460
      %v1463 = vshrl.u32 %v553, 16
      %v1465 = vshll.u32 %v553, 16
      %v1467 = vrot.slane %v1465, 1
      %v1468 = vor.u32 %v1463, %v1467
      %v1470 = vshrl.u32 %v1034, 16
      %v1472 = vshll.u32 %v1034, 16
      %v1474 = vrot.slane %v1472, 1
      %v1475 = vor.u32 %v1470, %v1474
      %v1477 = vshrl.u32 %v609, 16
      %v1479 = vshll.u32 %v609, 16
      %v1481 = vrot.slane %v1479, 1
      %v1482 = vor.u32 %v1477, %v1481
      %v1484 = vshrl.u32 %v560, 16
      %v1486 = vshll.u32 %v560, 16
      %v1488 = vrot.slane %v1486, 1
      %v1489 = vor.u32 %v1484, %v1488
      %v1491 = vshrl.u32 %v1041, 16
      %v1493 = vshll.u32 %v1041, 16
      %v1495 = vrot.slane %v1493, 1
      %v1496 = vor.u32 %v1491, %v1495
      %v1498 = vshrl.u32 %v616, 16
      %v1500 = vshll.u32 %v616, 16
      %v1502 = vrot.slane %v1500, 1
      %v1503 = vor.u32 %v1498, %v1502
      %v1505 = vshrl.u32 %v567, 16
      %v1507 = vshll.u32 %v567, 16
      %v1509 = vrot.slane %v1507, 1
      %v1510 = vor.u32 %v1505, %v1509
      %v1512 = vshrl.u32 %v1048, 16
      %v1514 = vshll.u32 %v1048, 16
      %v1516 = vrot.slane %v1514, 1
      %v1517 = vor.u32 %v1512, %v1516
      %v1519 = vshrl.u32 %v623, 16
      %v1521 = vshll.u32 %v623, 16
      %v1523 = vrot.slane %v1521, 1
      %v1524 = vor.u32 %v1519, %v1523
      %v1526 = vshrl.u32 %v574, 16
      %v1528 = vshll.u32 %v574, 16
      %v1530 = vrot.slane %v1528, 1
      %v1531 = vor.u32 %v1526, %v1530
      %v1533 = vshrl.u32 %v1055, 16
      %v1535 = vshll.u32 %v1055, 16
      %v1537 = vrot.slane %v1535, 1
      %v1538 = vor.u32 %v1533, %v1537
      %v1540 = vshrl.u32 %v630, 16
      %v1542 = vshll.u32 %v630, 16
      %v1544 = vrot.slane %v1542, 1
      %v1545 = vor.u32 %v1540, %v1544
      %v1547 = vshrl.u32 %v752, 16
      %v1549 = vshll.u32 %v752, 16
      %v1551 = vrot.slane %v1549, 1
      %v1552 = vor.u32 %v1547, %v1551
      %v1554 = vshrl.u32 %v1316, 16
      %v1556 = vshll.u32 %v1316, 16
      %v1558 = vrot.slane %v1556, 1
      %v1559 = vor.u32 %v1554, %v1558
      %v1561 = vshrl.u32 %v759, 16
      %v1563 = vshll.u32 %v759, 16
      %v1565 = vrot.slane %v1563, 1
      %v1566 = vor.u32 %v1561, %v1565
      %v1568 = vshrl.u32 %v804, 16
      %v1570 = vshll.u32 %v804, 16
      %v1572 = vrot.slane %v1570, 1
      %v1573 = vor.u32 %v1568, %v1572
      %v1575 = vshrl.u32 %v1360, 16
      %v1577 = vshll.u32 %v1360, 16
      %v1579 = vrot.slane %v1577, 1
      %v1580 = vor.u32 %v1575, %v1579
      %v1582 = vshrl.u32 %v811, 16
      %v1584 = vshll.u32 %v811, 16
      %v1586 = vrot.slane %v1584, 1
      %v1587 = vor.u32 %v1582, %v1586
      %v1589 = vshrl.u32 %v1062, 16
      %v1591 = vshll.u32 %v1062, 16
      %v1593 = vrot.slane %v1591, 1
      %v1594 = vor.u32 %v1589, %v1593
      %v1596 = vshrl.u32 %v637, 16
      %v1598 = vshll.u32 %v637, 16
      %v1600 = vrot.slane %v1598, 1
      %v1601 = vor.u32 %v1596, %v1600
      %v1603 = vshrl.u32 %v1069, 16
      %v1605 = vshll.u32 %v1069, 16
      %v1607 = vrot.slane %v1605, 1
      %v1608 = vor.u32 %v1603, %v1607
      %v1610 = vshrl.u32 %v644, 16
      %v1612 = vshll.u32 %v644, 16
      %v1614 = vrot.slane %v1612, 1
      %v1615 = vor.u32 %v1610, %v1614
      %v1617 = vshrl.u32 %v1076, 16
      %v1619 = vshll.u32 %v1076, 16
      %v1621 = vrot.slane %v1619, 1
      %v1622 = vor.u32 %v1617, %v1621
      %v1624 = vshrl.u32 %v651, 16
      %v1626 = vshll.u32 %v651, 16
      %v1628 = vrot.slane %v1626, 1
      %v1629 = vor.u32 %v1624, %v1628
      %v1631 = vshrl.u32 %v1083, 16
      %v1633 = vshll.u32 %v1083, 16
      %v1635 = vrot.slane %v1633, 1
      %v1636 = vor.u32 %v1631, %v1635
      %v1638 = vshrl.u32 %v658, 16
      %v1640 = vshll.u32 %v658, 16
      %v1642 = vrot.slane %v1640, 1
      %v1643 = vor.u32 %v1638, %v1642
      %v1645 = vshrl.u32 %v1090, 16
      %v1647 = vshll.u32 %v1090, 16
      %v1649 = vrot.slane %v1647, 1
      %v1650 = vor.u32 %v1645, %v1649
      %v1652 = vshrl.u32 %v665, 16
      %v1654 = vshll.u32 %v665, 16
      %v1656 = vrot.slane %v1654, 1
      %v1657 = vor.u32 %v1652, %v1656
      %v1659 = vshrl.u32 %v1097, 16
      %v1661 = vshll.u32 %v1097, 16
      %v1663 = vrot.slane %v1661, 1
      %v1664 = vor.u32 %v1659, %v1663
      %v1666 = vshrl.u32 %v672, 16
      %v1668 = vshll.u32 %v672, 16
      %v1670 = vrot.slane %v1668, 1
      %v1671 = vor.u32 %v1666, %v1670
      %v1673 = vshrl.u32 %v1104, 16
      %v1675 = vshll.u32 %v1104, 16
      %v1677 = vrot.slane %v1675, 1
      %v1678 = vor.u32 %v1673, %v1677
      %v1680 = vshrl.u32 %v679, 16
      %v1682 = vshll.u32 %v679, 16
      %v1684 = vrot.slane %v1682, 1
      %v1685 = vor.u32 %v1680, %v1684
      %v1687 = vshrl.u32 %v1111, 16
      %v1689 = vshll.u32 %v1111, 16
      %v1691 = vrot.slane %v1689, 1
      %v1692 = vor.u32 %v1687, %v1691
      %v1694 = vshrl.u32 %v686, 16
      %v1696 = vshll.u32 %v686, 16
      %v1698 = vrot.slane %v1696, 1
      %v1699 = vor.u32 %v1694, %v1698
      %v1701 = vshrl.u32 %v1323, 16
      %v1703 = vshll.u32 %v1323, 16
      %v1705 = vrot.slane %v1703, 1
      %v1706 = vor.u32 %v1701, %v1705
      %v1708 = vshrl.u32 %v766, 16
      %v1710 = vshll.u32 %v766, 16
      %v1712 = vrot.slane %v1710, 1
      %v1713 = vor.u32 %v1708, %v1712
      %v1715 = vshrl.u32 %v1367, 16
      %v1717 = vshll.u32 %v1367, 16
      %v1719 = vrot.slane %v1717, 1
      %v1720 = vor.u32 %v1715, %v1719
      %v1722 = vshrl.u32 %v818, 16
      %v1724 = vshll.u32 %v818, 16
      %v1726 = vrot.slane %v1724, 1
      %v1727 = vor.u32 %v1722, %v1726
      %v1729 = vshrl.u32 %v1118, 16
      %v1731 = vshll.u32 %v1118, 16
      %v1733 = vrot.slane %v1731, 1
      %v1734 = vor.u32 %v1729, %v1733
      %v1736 = vshrl.u32 %v869, 16
      %v1738 = vshll.u32 %v869, 16
      %v1740 = vrot.slane %v1738, 1
      %v1741 = vor.u32 %v1736, %v1740
      %v1743 = vshrl.u32 %v1125, 16
      %v1745 = vshll.u32 %v1125, 16
      %v1747 = vrot.slane %v1745, 1
      %v1748 = vor.u32 %v1743, %v1747
      %v1750 = vshrl.u32 %v876, 16
      %v1752 = vshll.u32 %v876, 16
      %v1754 = vrot.slane %v1752, 1
      %v1755 = vor.u32 %v1750, %v1754
      %v1757 = vshrl.u32 %v1132, 16
      %v1759 = vshll.u32 %v1132, 16
      %v1761 = vrot.slane %v1759, 1
      %v1762 = vor.u32 %v1757, %v1761
      %v1764 = vshrl.u32 %v883, 16
      %v1766 = vshll.u32 %v883, 16
      %v1768 = vrot.slane %v1766, 1
      %v1769 = vor.u32 %v1764, %v1768
      %v1771 = vshrl.u32 %v1139, 16
      %v1773 = vshll.u32 %v1139, 16
      %v1775 = vrot.slane %v1773, 1
      %v1776 = vor.u32 %v1771, %v1775
      %v1778 = vshrl.u32 %v890, 16
      %v1780 = vshll.u32 %v890, 16
      %v1782 = vrot.slane %v1780, 1
      %v1783 = vor.u32 %v1778, %v1782
      %v1785 = vshrl.u32 %v1146, 16
      %v1787 = vshll.u32 %v1146, 16
      %v1789 = vrot.slane %v1787, 1
      %v1790 = vor.u32 %v1785, %v1789
      %v1792 = vshrl.u32 %v897, 16
      %v1794 = vshll.u32 %v897, 16
      %v1796 = vrot.slane %v1794, 1
      %v1797 = vor.u32 %v1792, %v1796
      %v1799 = vshrl.u32 %v1153, 16
      %v1801 = vshll.u32 %v1153, 16
      %v1803 = vrot.slane %v1801, 1
      %v1804 = vor.u32 %v1799, %v1803
      %v1806 = vshrl.u32 %v904, 16
      %v1808 = vshll.u32 %v904, 16
      %v1810 = vrot.slane %v1808, 1
      %v1811 = vor.u32 %v1806, %v1810
      %v1813 = vshrl.u32 %v1160, 16
      %v1815 = vshll.u32 %v1160, 16
      %v1817 = vrot.slane %v1815, 1
      %v1818 = vor.u32 %v1813, %v1817
      %v1820 = vshrl.u32 %v911, 16
      %v1822 = vshll.u32 %v911, 16
      %v1824 = vrot.slane %v1822, 1
      %v1825 = vor.u32 %v1820, %v1824
      %v1827 = vshrl.u32 %v1167, 16
      %v1829 = vshll.u32 %v1167, 16
      %v1831 = vrot.slane %v1829, 1
      %v1832 = vor.u32 %v1827, %v1831
      %v1834 = vshrl.u32 %v918, 16
      %v1836 = vshll.u32 %v918, 16
      %v1838 = vrot.slane %v1836, 1
      %v1839 = vor.u32 %v1834, %v1838
      %v1841 = vshrl.u32 %v1330, 16
      %v1843 = vshll.u32 %v1330, 16
      %v1845 = vrot.slane %v1843, 1
      %v1846 = vor.u32 %v1841, %v1845
      %v1848 = vshrl.u32 %v938, 16
      %v1850 = vshll.u32 %v938, 16
      %v1852 = vrot.slane %v1850, 1
      %v1853 = vor.u32 %v1848, %v1852
      %v1855 = vshrl.u32 %v1374, 16
      %v1857 = vshll.u32 %v1374, 16
      %v1859 = vrot.slane %v1857, 1
      %v1860 = vor.u32 %v1855, %v1859
      %v1862 = vshrl.u32 %v951, 16
      %v1864 = vshll.u32 %v951, 16
      %v1866 = vrot.slane %v1864, 1
      %v1867 = vor.u32 %v1862, %v1866
      %v1869 = vshrl.u32 %v1174, 16
      %v1871 = vshll.u32 %v1174, 16
      %v1873 = vrot.slane %v1871, 1
      %v1874 = vor.u32 %v1869, %v1873
      %v1876 = vshrl.u32 %v1254, 16
      %v1878 = vshll.u32 %v1254, 16
      %v1880 = vrot.slane %v1878, 1
      %v1881 = vor.u32 %v1876, %v1880
      %v1883 = vshrl.u32 %v1181, 16
      %v1885 = vshll.u32 %v1181, 16
      %v1887 = vrot.slane %v1885, 1
      %v1888 = vor.u32 %v1883, %v1887
      %v1890 = vshrl.u32 %v1261, 16
      %v1892 = vshll.u32 %v1261, 16
      %v1894 = vrot.slane %v1892, 1
      %v1895 = vor.u32 %v1890, %v1894
      %v1897 = vshrl.u32 %v1188, 16
      %v1899 = vshll.u32 %v1188, 16
      %v1901 = vrot.slane %v1899, 1
      %v1902 = vor.u32 %v1897, %v1901
      %v1904 = vshrl.u32 %v1268, 16
      %v1906 = vshll.u32 %v1268, 16
      %v1908 = vrot.slane %v1906, 1
      %v1909 = vor.u32 %v1904, %v1908
      %v1911 = vshrl.u32 %v1195, 16
      %v1913 = vshll.u32 %v1195, 16
      %v1915 = vrot.slane %v1913, 1
      %v1916 = vor.u32 %v1911, %v1915
      %v1918 = vshrl.u32 %v1275, 16
      %v1920 = vshll.u32 %v1275, 16
      %v1922 = vrot.slane %v1920, 1
      %v1923 = vor.u32 %v1918, %v1922
      %v1925 = vshrl.u32 %v1202, 16
      %v1927 = vshll.u32 %v1202, 16
      %v1929 = vrot.slane %v1927, 1
      %v1930 = vor.u32 %v1925, %v1929
      %v1932 = vshrl.u32 %v1282, 16
      %v1934 = vshll.u32 %v1282, 16
      %v1936 = vrot.slane %v1934, 1
      %v1937 = vor.u32 %v1932, %v1936
      %v1939 = vshrl.u32 %v1209, 16
      %v1941 = vshll.u32 %v1209, 16
      %v1943 = vrot.slane %v1941, 1
      %v1944 = vor.u32 %v1939, %v1943
      %v1946 = vshrl.u32 %v1289, 16
      %v1948 = vshll.u32 %v1289, 16
      %v1950 = vrot.slane %v1948, 1
      %v1951 = vor.u32 %v1946, %v1950
      %v1953 = vshrl.u32 %v1216, 16
      %v1955 = vshll.u32 %v1216, 16
      %v1957 = vrot.slane %v1955, 1
      %v1958 = vor.u32 %v1953, %v1957
      %v1960 = vshrl.u32 %v1296, 16
      %v1962 = vshll.u32 %v1296, 16
      %v1964 = vrot.slane %v1962, 1
      %v1965 = vor.u32 %v1960, %v1964
      %v1967 = vshrl.u32 %v1223, 16
      %v1969 = vshll.u32 %v1223, 16
      %v1971 = vrot.slane %v1969, 1
      %v1972 = vor.u32 %v1967, %v1971
      %v1974 = vshrl.u32 %v1303, 16
      %v1976 = vshll.u32 %v1303, 16
      %v1978 = vrot.slane %v1976, 1
      %v1979 = vor.u32 %v1974, %v1978
      %v1981 = vshrl.u32 %v1337, 16
      %v1983 = vshll.u32 %v1337, 16
      %v1985 = vrot.slane %v1983, 1
      %v1986 = vor.u32 %v1981, %v1985
      %v1988 = vshrl.u32 %v1347, 16
      %v1990 = vshll.u32 %v1347, 16
      %v1992 = vrot.slane %v1990, 1
      %v1993 = vor.u32 %v1988, %v1992
      %v1995 = vshrl.u32 %v1381, 16
      %v1997 = vshll.u32 %v1381, 16
      %v1999 = vrot.slane %v1997, 1
      %v2000 = vor.u32 %v1995, %v1999
      %v2002 = vshrl.u32 %v1391, 16
      %v2004 = vshll.u32 %v1391, 16
      %v2006 = vrot.slane %v2004, 1
      %v2007 = vor.u32 %v2002, %v2006
      %v2008 = vunpack.c.l.b16 %v469
      %v2009 = vunpack.c.l.b16 %v687
      %v2010 = vunpack.c.l.b16 %v476
      %v2011 = vunpack.c.l.b16 %v688
      %v2012 = vunpack.c.l.b16 %v483
      %v2013 = vunpack.c.l.b16 %v689
      %v2014 = vunpack.c.l.b16 %v525
      %v2015 = vunpack.c.l.b16 %v695
      %v2016 = vunpack.c.l.b16 %v532
      %v2017 = vunpack.c.l.b16 %v696
      %v2018 = vunpack.c.l.b16 %v539
      %v2019 = vunpack.c.l.b16 %v1398
      %v2020 = vunpack.c.l.b16 %v1405
      %v2021 = vunpack.c.l.b16 %v581
      %v2022 = vunpack.c.l.b16 %v1412
      %v2023 = vunpack.c.l.b16 %v1419
      %v2024 = vunpack.c.l.b16 %v588
      %v2025 = vunpack.c.l.b16 %v1426
      %v2026 = vunpack.c.l.b16 %v1433
      %v2027 = vunpack.c.l.b16 %v595
      %v2028 = vunpack.c.l.b16 %v1440
      %v2029 = vunpack.c.l.b16 %v490
      %v2030 = vunpack.c.l.b16 %v690
      %v2031 = vunpack.c.l.b16 %v697
      %v2032 = vunpack.c.l.b16 %v546
      %v2033 = vunpack.c.l.b16 %v1447
      %v2034 = vunpack.c.l.b16 %v1454
      %v2035 = vunpack.c.l.b16 %v602
      %v2036 = vunpack.c.l.b16 %v1461
      %v2037 = vunpack.c.l.b16 %v497
      %v2038 = vunpack.c.l.b16 %v691
      %v2039 = vunpack.c.l.b16 %v698
      %v2040 = vunpack.c.l.b16 %v553
      %v2041 = vunpack.c.l.b16 %v1468
      %v2042 = vunpack.c.l.b16 %v1475
      %v2043 = vunpack.c.l.b16 %v609
      %v2044 = vunpack.c.l.b16 %v1482
      %v2045 = vunpack.c.l.b16 %v504
      %v2046 = vunpack.c.l.b16 %v692
      %v2047 = vunpack.c.l.b16 %v699
      %v2048 = vunpack.c.l.b16 %v560
      %v2049 = vunpack.c.l.b16 %v1489
      %v2050 = vunpack.c.l.b16 %v1496
      %v2051 = vunpack.c.l.b16 %v616
      %v2052 = vunpack.c.l.b16 %v1503
      %v2053 = vunpack.c.l.b16 %v511
      %v2054 = vunpack.c.l.b16 %v693
      %v2055 = vunpack.c.l.b16 %v700
      %v2056 = vunpack.c.l.b16 %v567
      %v2057 = vunpack.c.l.b16 %v1510
      %v2058 = vunpack.c.l.b16 %v1517
      %v2059 = vunpack.c.l.b16 %v623
      %v2060 = vunpack.c.l.b16 %v1524
      %v2061 = vunpack.c.l.b16 %v518
      %v2062 = vunpack.c.l.b16 %v694
      %v2063 = vunpack.c.l.b16 %v701
      %v2064 = vunpack.c.l.b16 %v574
      %v2065 = vunpack.c.l.b16 %v1531
      %v2066 = vunpack.c.l.b16 %v1538
      %v2067 = vunpack.c.l.b16 %v630
      %v2068 = vunpack.c.l.b16 %v1545
      %v2069 = vunpack.c.l.b16 %v745
      %v2070 = vunpack.c.l.b16 %v767
      %v2071 = vunpack.c.l.b16 %v702
      %v2072 = vunpack.c.l.b16 %v752
      %v2073 = vunpack.c.l.b16 %v1552
      %v2074 = vunpack.c.l.b16 %v1559
      %v2075 = vunpack.c.l.b16 %v759
      %v2076 = vunpack.c.l.b16 %v1566
      %v2077 = vunpack.c.l.b16 %v797
      %v2078 = vunpack.c.l.b16 %v819
      %v2079 = vunpack.c.l.b16 %v768
      %v2080 = vunpack.c.l.b16 %v804
      %v2081 = vunpack.c.l.b16 %v1573
      %v2082 = vunpack.c.l.b16 %v1580
      %v2083 = vunpack.c.l.b16 %v811
      %v2084 = vunpack.c.l.b16 %v1587
      %v2085 = vunpack.c.l.b16 %v703
      %v2086 = vunpack.c.l.b16 %v704
      %v2087 = vunpack.c.l.b16 %v1594
      %v2088 = vunpack.c.l.b16 %v637
      %v2089 = vunpack.c.l.b16 %v1601
      %v2090 = vunpack.c.l.b16 %v1608
      %v2091 = vunpack.c.l.b16 %v644
      %v2092 = vunpack.c.l.b16 %v1615
      %v2093 = vunpack.c.l.b16 %v1622
      %v2094 = vunpack.c.l.b16 %v651
      %v2095 = vunpack.c.l.b16 %v1629
      %v2096 = vunpack.c.l.b16 %v705
      %v2097 = vunpack.c.l.b16 %v1636
      %v2098 = vunpack.c.l.b16 %v658
      %v2099 = vunpack.c.l.b16 %v1643
      %v2100 = vunpack.c.l.b16 %v706
      %v2101 = vunpack.c.l.b16 %v1650
      %v2102 = vunpack.c.l.b16 %v665
      %v2103 = vunpack.c.l.b16 %v1657
      %v2104 = vunpack.c.l.b16 %v707
      %v2105 = vunpack.c.l.b16 %v1664
      %v2106 = vunpack.c.l.b16 %v672
      %v2107 = vunpack.c.l.b16 %v1671
      %v2108 = vunpack.c.l.b16 %v708
      %v2109 = vunpack.c.l.b16 %v1678
      %v2110 = vunpack.c.l.b16 %v679
      %v2111 = vunpack.c.l.b16 %v1685
      %v2112 = vunpack.c.l.b16 %v709
      %v2113 = vunpack.c.l.b16 %v1692
      %v2114 = vunpack.c.l.b16 %v686
      %v2115 = vunpack.c.l.b16 %v1699
      %v2116 = vunpack.c.l.b16 %v710
      %v2117 = vunpack.c.l.b16 %v1706
      %v2118 = vunpack.c.l.b16 %v766
      %v2119 = vunpack.c.l.b16 %v1713
      %v2120 = vunpack.c.l.b16 %v820
      %v2121 = vunpack.c.l.b16 %v769
      %v2122 = vunpack.c.l.b16 %v1720
      %v2123 = vunpack.c.l.b16 %v818
      %v2124 = vunpack.c.l.b16 %v1727
      %v2125 = vunpack.c.l.b16 %v711
      %v2126 = vunpack.c.l.b16 %v712
      %v2127 = vunpack.c.l.b16 %v1734
      %v2128 = vunpack.c.l.b16 %v869
      %v2129 = vunpack.c.l.b16 %v1741
      %v2130 = vunpack.c.l.b16 %v1748
      %v2131 = vunpack.c.l.b16 %v876
      %v2132 = vunpack.c.l.b16 %v1755
      %v2133 = vunpack.c.l.b16 %v1762
      %v2134 = vunpack.c.l.b16 %v883
      %v2135 = vunpack.c.l.b16 %v1769
      %v2136 = vunpack.c.l.b16 %v713
      %v2137 = vunpack.c.l.b16 %v1776
      %v2138 = vunpack.c.l.b16 %v890
      %v2139 = vunpack.c.l.b16 %v1783
      %v2140 = vunpack.c.l.b16 %v714
      %v2141 = vunpack.c.l.b16 %v1790
      %v2142 = vunpack.c.l.b16 %v897
      %v2143 = vunpack.c.l.b16 %v1797
      %v2144 = vunpack.c.l.b16 %v715
      %v2145 = vunpack.c.l.b16 %v1804
      %v2146 = vunpack.c.l.b16 %v904
      %v2147 = vunpack.c.l.b16 %v1811
      %v2148 = vunpack.c.l.b16 %v716
      %v2149 = vunpack.c.l.b16 %v1818
      %v2150 = vunpack.c.l.b16 %v911
      %v2151 = vunpack.c.l.b16 %v1825
      %v2152 = vunpack.c.l.b16 %v717
      %v2153 = vunpack.c.l.b16 %v1832
      %v2154 = vunpack.c.l.b16 %v918
      %v2155 = vunpack.c.l.b16 %v1839
      %v2156 = vunpack.c.l.b16 %v718
      %v2157 = vunpack.c.l.b16 %v1846
      %v2158 = vunpack.c.l.b16 %v938
      %v2159 = vunpack.c.l.b16 %v1853
      %v2160 = vunpack.c.l.b16 %v821
      %v2161 = vunpack.c.l.b16 %v770
      %v2162 = vunpack.c.l.b16 %v1860
      %v2163 = vunpack.c.l.b16 %v951
      %v2164 = vunpack.c.l.b16 %v1867
      %v2165 = vunpack.c.l.b16 %v919
      %v2166 = vunpack.c.l.b16 %v920
      %v2167 = vunpack.c.l.b16 %v1874
      %v2168 = vunpack.c.l.b16 %v1254
      %v2169 = vunpack.c.l.b16 %v1881
      %v2170 = vunpack.c.l.b16 %v1888
      %v2171 = vunpack.c.l.b16 %v1261
      %v2172 = vunpack.c.l.b16 %v1895
      %v2173 = vunpack.c.l.b16 %v1902
      %v2174 = vunpack.c.l.b16 %v1268
      %v2175 = vunpack.c.l.b16 %v1909
      %v2176 = vunpack.c.l.b16 %v921
      %v2177 = vunpack.c.l.b16 %v1916
      %v2178 = vunpack.c.l.b16 %v1275
      %v2179 = vunpack.c.l.b16 %v1923
      %v2180 = vunpack.c.l.b16 %v922
      %v2181 = vunpack.c.l.b16 %v1930
      %v2182 = vunpack.c.l.b16 %v1282
      %v2183 = vunpack.c.l.b16 %v1937
      %v2184 = vunpack.c.l.b16 %v923
      %v2185 = vunpack.c.l.b16 %v1944
      %v2186 = vunpack.c.l.b16 %v1289
      %v2187 = vunpack.c.l.b16 %v1951
      %v2188 = vunpack.c.l.b16 %v924
      %v2189 = vunpack.c.l.b16 %v1958
      %v2190 = vunpack.c.l.b16 %v1296
      %v2191 = vunpack.c.l.b16 %v1965
      %v2192 = vunpack.c.l.b16 %v925
      %v2193 = vunpack.c.l.b16 %v1972
      %v2194 = vunpack.c.l.b16 %v1303
      %v2195 = vunpack.c.l.b16 %v1979
      %v2196 = vunpack.c.l.b16 %v926
      %v2197 = vunpack.c.l.b16 %v1986
      %v2198 = vunpack.c.l.b16 %v1347
      %v2199 = vunpack.c.l.b16 %v1993
      %v2200 = vunpack.c.l.b16 %v822
      %v2201 = vunpack.c.l.b16 %v939
      %v2202 = vunpack.c.l.b16 %v2000
      %v2203 = vunpack.c.l.b16 %v1391
      %v2204 = vunpack.c.l.b16 %v2007
      %v2205 = vld [vmem:[%s1] sm:$0xf]
      %v2206 = vld [vmem:[%s1 + $0x4] sm:$0xf]
      %v2207 = vld [vmem:[%s1 + $0x8] sm:$0xf]
      %v2208 = vld [vmem:[%s1 + $0xc] sm:$0xf]
      %v2209 = vld [vmem:[%s1 + $0x10] sm:$0xf]
      %v2210 = vld [vmem:[%s1 + $0x14] sm:$0xf]
      %v2211 = vld [vmem:[%s1 + $0x18] sm:$0xf]
      %v2212 = vld [vmem:[%s1 + $0x1c] sm:$0xf]
      %v2213 = vld [vmem:[%s1 + $0x20] sm:$0xf]
      %v2214 = vld [vmem:[%s1 + $0x24] sm:$0xf]
      %v2215 = vld [vmem:[%s1 + $0x28] sm:$0xf]
      %v2216 = vld [vmem:[%s1 + $0x2c] sm:$0xf]
      %v2217 = vld [vmem:[%s1 + $0x30] sm:$0xf]
      %v2218 = vld [vmem:[%s1 + $0x34] sm:$0xf]
      %v2219 = vld [vmem:[%s1 + $0x38] sm:$0xf]
      %v2220 = vld [vmem:[%s1 + $0x3c] sm:$0xf]
      %v2221 = vld [vmem:[%s1 + $0x40] sm:$0xf]
      %v2222 = vld [vmem:[%s1 + $0x44] sm:$0xf]
      %v2223 = vld [vmem:[%s1 + $0x48] sm:$0xf]
      %v2224 = vld [vmem:[%s1 + $0x4c] sm:$0xf]
      %v2225 = vld [vmem:[%s1 + $0x50] sm:$0xf]
      %v2226 = vld [vmem:[%s1 + $0x54] sm:$0xf]
      %v2227 = vld [vmem:[%s1 + $0x58] sm:$0xf]
      %v2228 = vld [vmem:[%s1 + $0x5c] sm:$0xf]
      %v2229 = vld [vmem:[%s1 + $0x60] sm:$0xf]
      %v2230 = vld [vmem:[%s1 + $0x64] sm:$0xf]
      %v2231 = vld [vmem:[%s1 + $0x68] sm:$0xf]
      %v2232 = vld [vmem:[%s1 + $0x6c] sm:$0xf]
      %v2233 = vld [vmem:[%s1 + $0x70] sm:$0xf]
      %v2234 = vld [vmem:[%s1 + $0x74] sm:$0xf]
      %v2235 = vld [vmem:[%s1 + $0x78] sm:$0xf]
      %v2236 = vld [vmem:[%s1 + $0x7c] sm:$0xf]
      %v2237 = vld [vmem:[%s1 + $0x80] sm:$0xf]
      %v2238 = vld [vmem:[%s1 + $0x84] sm:$0xf]
      %v2239 = vld [vmem:[%s1 + $0x88] sm:$0xf]
      %v2240 = vld [vmem:[%s1 + $0x8c] sm:$0xf]
      %v2241 = vld [vmem:[%s1 + $0x90] sm:$0xf]
      %v2242 = vld [vmem:[%s1 + $0x94] sm:$0xf]
      %v2243 = vld [vmem:[%s1 + $0x98] sm:$0xf]
      %v2244 = vld [vmem:[%s1 + $0x9c] sm:$0xf]
      %v2245 = vld [vmem:[%s1 + $0xa0] sm:$0xf]
      %v2246 = vld [vmem:[%s1 + $0xa4] sm:$0xf]
      %v2247 = vld [vmem:[%s1 + $0xa8] sm:$0xf]
      %v2248 = vld [vmem:[%s1 + $0xac] sm:$0xf]
      %v2249 = vld [vmem:[%s1 + $0xb0] sm:$0xf]
      %v2250 = vld [vmem:[%s1 + $0xb4] sm:$0xf]
      %v2251 = vld [vmem:[%s1 + $0xb8] sm:$0xf]
      %v2252 = vld [vmem:[%s1 + $0xbc] sm:$0xf]
      %v2253 = vld [vmem:[%s1 + $0xc0] sm:$0xf]
      %v2254 = vld [vmem:[%s1 + $0xc4] sm:$0xf]
      %v2255 = vld [vmem:[%s1 + $0xc8] sm:$0xf]
      %v2256 = vld [vmem:[%s1 + $0xcc] sm:$0xf]
      %v2257 = vld [vmem:[%s1 + $0xd0] sm:$0xf]
      %v2258 = vld [vmem:[%s1 + $0xd4] sm:$0xf]
      %v2259 = vld [vmem:[%s1 + $0xd8] sm:$0xf]
      %v2260 = vld [vmem:[%s1 + $0xdc] sm:$0xf]
      %v2261 = vld [vmem:[%s1 + $0xe0] sm:$0xf]
      %v2262 = vld [vmem:[%s1 + $0xe4] sm:$0xf]
      %v2263 = vld [vmem:[%s1 + $0xe8] sm:$0xf]
      %v2264 = vld [vmem:[%s1 + $0xec] sm:$0xf]
      %v2265 = vld [vmem:[%s1 + $0xf0] sm:$0xf]
      %v2266 = vld [vmem:[%s1 + $0xf4] sm:$0xf]
      %v2267 = vld [vmem:[%s1 + $0xf8] sm:$0xf]
      %v2268 = vld [vmem:[%s1 + $0xfc] sm:$0xf]
      %v2269 = vld [vmem:[%s1 + $0x100] sm:$0xf]
      %v2270 = vld [vmem:[%s1 + $0x104] sm:$0xf]
      %v2271 = vld [vmem:[%s1 + $0x108] sm:$0xf]
      %v2272 = vld [vmem:[%s1 + $0x10c] sm:$0xf]
      %v2273 = vld [vmem:[%s1 + $0x110] sm:$0xf]
      %v2274 = vld [vmem:[%s1 + $0x114] sm:$0xf]
      %v2275 = vld [vmem:[%s1 + $0x118] sm:$0xf]
      %v2276 = vld [vmem:[%s1 + $0x11c] sm:$0xf]
      %v2277 = vld [vmem:[%s1 + $0x120] sm:$0xf]
      %v2278 = vld [vmem:[%s1 + $0x124] sm:$0xf]
      %v2279 = vld [vmem:[%s1 + $0x128] sm:$0xf]
      %v2280 = vld [vmem:[%s1 + $0x12c] sm:$0xf]
      %v2281 = vld [vmem:[%s1 + $0x130] sm:$0xf]
      %v2282 = vld [vmem:[%s1 + $0x134] sm:$0xf]
      %v2283 = vld [vmem:[%s1 + $0x138] sm:$0xf]
      %v2284 = vld [vmem:[%s1 + $0x13c] sm:$0xf]
      %v2285 = vld [vmem:[%s1 + $0x140] sm:$0xf]
      %v2286 = vld [vmem:[%s1 + $0x144] sm:$0xf]
      %v2287 = vld [vmem:[%s1 + $0x148] sm:$0xf]
      %v2288 = vld [vmem:[%s1 + $0x14c] sm:$0xf]
      %v2289 = vld [vmem:[%s1 + $0x150] sm:$0xf]
      %v2290 = vld [vmem:[%s1 + $0x154] sm:$0xf]
      %v2291 = vld [vmem:[%s1 + $0x158] sm:$0xf]
      %v2292 = vld [vmem:[%s1 + $0x15c] sm:$0xf]
      %v2293 = vld [vmem:[%s1 + $0x160] sm:$0xf]
      %v2294 = vld [vmem:[%s1 + $0x164] sm:$0xf]
      %v2295 = vld [vmem:[%s1 + $0x168] sm:$0xf]
      %v2296 = vld [vmem:[%s1 + $0x16c] sm:$0xf]
      %v2297 = vld [vmem:[%s1 + $0x170] sm:$0xf]
      %v2298 = vld [vmem:[%s1 + $0x174] sm:$0xf]
      %v2299 = vld [vmem:[%s1 + $0x178] sm:$0xf]
      %v2300 = vld [vmem:[%s1 + $0x17c] sm:$0xf]
      %v2301 = vld [vmem:[%s1 + $0x180] sm:$0xf]
      %v2302 = vld [vmem:[%s1 + $0x184] sm:$0xf]
      %v2303 = vld [vmem:[%s1 + $0x188] sm:$0xf]
      %v2304 = vld [vmem:[%s1 + $0x18c] sm:$0xf]
      %v2305 = vld [vmem:[%s1 + $0x190] sm:$0xf]
      %v2306 = vld [vmem:[%s1 + $0x194] sm:$0xf]
      %v2307 = vld [vmem:[%s1 + $0x198] sm:$0xf]
      %v2308 = vld [vmem:[%s1 + $0x19c] sm:$0xf]
      %v2309 = vld [vmem:[%s1 + $0x1a0] sm:$0xf]
      %v2310 = vld [vmem:[%s1 + $0x1a4] sm:$0xf]
      %v2311 = vld [vmem:[%s1 + $0x1a8] sm:$0xf]
      %v2312 = vld [vmem:[%s1 + $0x1ac] sm:$0xf]
      %v2313 = vld [vmem:[%s1 + $0x1b0] sm:$0xf]
      %v2314 = vld [vmem:[%s1 + $0x1b4] sm:$0xf]
      %v2315 = vld [vmem:[%s1 + $0x1b8] sm:$0xf]
      %v2316 = vld [vmem:[%s1 + $0x1bc] sm:$0xf]
      %v2317 = vld [vmem:[%s1 + $0x1c0] sm:$0xf]
      %v2318 = vld [vmem:[%s1 + $0x1c4] sm:$0xf]
      %v2319 = vld [vmem:[%s1 + $0x1c8] sm:$0xf]
      %v2320 = vld [vmem:[%s1 + $0x1cc] sm:$0xf]
      %v2321 = vld [vmem:[%s1 + $0x1d0] sm:$0xf]
      %v2322 = vld [vmem:[%s1 + $0x1d4] sm:$0xf]
      %v2323 = vld [vmem:[%s1 + $0x1d8] sm:$0xf]
      %v2324 = vld [vmem:[%s1 + $0x1dc] sm:$0xf]
      %v2325 = vld [vmem:[%s1 + $0x1e0] sm:$0xf]
      %v2326 = vld [vmem:[%s1 + $0x1e4] sm:$0xf]
      %v2327 = vld [vmem:[%s1 + $0x1e8] sm:$0xf]
      %v2328 = vld [vmem:[%s1 + $0x1ec] sm:$0xf]
      %v2329 = vld [vmem:[%s1 + $0x1f0] sm:$0xf]
      %v2330 = vld [vmem:[%s1 + $0x1f4] sm:$0xf]
      %v2331 = vld [vmem:[%s1 + $0x1f8] sm:$0xf]
      %v2332 = vld [vmem:[%s1 + $0x1fc] sm:$0xf]
      %v2333 = vld [vmem:[%s1 + $0x200] sm:$0xf]
      %v2334 = vld [vmem:[%s1 + $0x204] sm:$0xf]
      %v2335 = vld [vmem:[%s1 + $0x208] sm:$0xf]
      %v2336 = vld [vmem:[%s1 + $0x20c] sm:$0xf]
      %v2337 = vld [vmem:[%s1 + $0x210] sm:$0xf]
      %v2338 = vld [vmem:[%s1 + $0x214] sm:$0xf]
      %v2339 = vld [vmem:[%s1 + $0x218] sm:$0xf]
      %v2340 = vld [vmem:[%s1 + $0x21c] sm:$0xf]
      %v2341 = vld [vmem:[%s1 + $0x220] sm:$0xf]
      %v2342 = vld [vmem:[%s1 + $0x224] sm:$0xf]
      %v2343 = vld [vmem:[%s1 + $0x228] sm:$0xf]
      %v2344 = vld [vmem:[%s1 + $0x22c] sm:$0xf]
      %v2345 = vld [vmem:[%s1 + $0x230] sm:$0xf]
      %v2346 = vld [vmem:[%s1 + $0x234] sm:$0xf]
      %v2347 = vld [vmem:[%s1 + $0x238] sm:$0xf]
      %v2348 = vld [vmem:[%s1 + $0x23c] sm:$0xf]
      %v2349 = vld [vmem:[%s1 + $0x240] sm:$0xf]
      %v2350 = vld [vmem:[%s1 + $0x244] sm:$0xf]
      %v2351 = vld [vmem:[%s1 + $0x248] sm:$0xf]
      %v2352 = vld [vmem:[%s1 + $0x24c] sm:$0xf]
      %v2353 = vld [vmem:[%s1 + $0x250] sm:$0xf]
      %v2354 = vld [vmem:[%s1 + $0x254] sm:$0xf]
      %v2355 = vld [vmem:[%s1 + $0x258] sm:$0xf]
      %v2356 = vld [vmem:[%s1 + $0x25c] sm:$0xf]
      %v2357 = vld [vmem:[%s1 + $0x260] sm:$0xf]
      %v2358 = vld [vmem:[%s1 + $0x264] sm:$0xf]
      %v2359 = vld [vmem:[%s1 + $0x268] sm:$0xf]
      %v2360 = vld [vmem:[%s1 + $0x26c] sm:$0xf]
      %v2361 = vld [vmem:[%s1 + $0x270] sm:$0xf]
      %v2362 = vld [vmem:[%s1 + $0x274] sm:$0xf]
      %v2363 = vld [vmem:[%s1 + $0x278] sm:$0xf]
      %v2364 = vld [vmem:[%s1 + $0x27c] sm:$0xf]
      %v2365 = vld [vmem:[%s1 + $0x280] sm:$0xf]
      %v2366 = vld [vmem:[%s1 + $0x284] sm:$0xf]
      %v2367 = vld [vmem:[%s1 + $0x288] sm:$0xf]
      %v2368 = vld [vmem:[%s1 + $0x28c] sm:$0xf]
      %v2369 = vld [vmem:[%s1 + $0x290] sm:$0xf]
      %v2370 = vld [vmem:[%s1 + $0x294] sm:$0xf]
      %v2371 = vld [vmem:[%s1 + $0x298] sm:$0xf]
      %v2372 = vld [vmem:[%s1 + $0x29c] sm:$0xf]
      %v2373 = vld [vmem:[%s1 + $0x2a0] sm:$0xf]
      %v2374 = vld [vmem:[%s1 + $0x2a4] sm:$0xf]
      %v2375 = vld [vmem:[%s1 + $0x2a8] sm:$0xf]
      %v2376 = vld [vmem:[%s1 + $0x2ac] sm:$0xf]
      %v2377 = vld [vmem:[%s1 + $0x2b0] sm:$0xf]
      %v2378 = vld [vmem:[%s1 + $0x2b4] sm:$0xf]
      %v2379 = vld [vmem:[%s1 + $0x2b8] sm:$0xf]
      %v2380 = vld [vmem:[%s1 + $0x2bc] sm:$0xf]
      %v2381 = vld [vmem:[%s1 + $0x2c0] sm:$0xf]
      %v2382 = vld [vmem:[%s1 + $0x2c4] sm:$0xf]
      %v2383 = vld [vmem:[%s1 + $0x2c8] sm:$0xf]
      %v2384 = vld [vmem:[%s1 + $0x2cc] sm:$0xf]
      %v2385 = vld [vmem:[%s1 + $0x2d0] sm:$0xf]
      %v2386 = vld [vmem:[%s1 + $0x2d4] sm:$0xf]
      %v2387 = vld [vmem:[%s1 + $0x2d8] sm:$0xf]
      %v2388 = vld [vmem:[%s1 + $0x2dc] sm:$0xf]
      %v2389 = vld [vmem:[%s1 + $0x2e0] sm:$0xf]
      %v2390 = vld [vmem:[%s1 + $0x2e4] sm:$0xf]
      %v2391 = vld [vmem:[%s1 + $0x2e8] sm:$0xf]
      %v2392 = vld [vmem:[%s1 + $0x2ec] sm:$0xf]
      %v2393 = vld [vmem:[%s1 + $0x2f0] sm:$0xf]
      %v2394 = vld [vmem:[%s1 + $0x2f4] sm:$0xf]
      %v2395 = vld [vmem:[%s1 + $0x2f8] sm:$0xf]
      %v2396 = vld [vmem:[%s1 + $0x2fc] sm:$0xf]
      %v2397 = vld [vmem:[%s1 + $0x300] sm:$0xf]
      %v2398 = vld [vmem:[%s1 + $0x304] sm:$0xf]
      %v2399 = vld [vmem:[%s1 + $0x308] sm:$0xf]
      %v2400 = vld [vmem:[%s1 + $0x30c] sm:$0xf]
      %v2401 = vld [vmem:[%s1 + $0x310] sm:$0xf]
      %v2402 = vld [vmem:[%s1 + $0x314] sm:$0xf]
      %v2403 = vld [vmem:[%s1 + $0x318] sm:$0xf]
      %v2404 = vld [vmem:[%s1 + $0x31c] sm:$0xf]
      %v2405 = vld [vmem:[%s1 + $0x320] sm:$0xf]
      %v2406 = vld [vmem:[%s1 + $0x324] sm:$0xf]
      %v2407 = vld [vmem:[%s1 + $0x328] sm:$0xf]
      %v2408 = vld [vmem:[%s1 + $0x32c] sm:$0xf]
      %v2409 = vld [vmem:[%s1 + $0x330] sm:$0xf]
      %v2410 = vld [vmem:[%s1 + $0x334] sm:$0xf]
      %v2411 = vld [vmem:[%s1 + $0x338] sm:$0xf]
      %v2412 = vld [vmem:[%s1 + $0x33c] sm:$0xf]
      %v2413 = vld [vmem:[%s1 + $0x340] sm:$0xf]
      %v2414 = vld [vmem:[%s1 + $0x344] sm:$0xf]
      %v2415 = vld [vmem:[%s1 + $0x348] sm:$0xf]
      %v2416 = vld [vmem:[%s1 + $0x34c] sm:$0xf]
      %v2417 = vld [vmem:[%s1 + $0x350] sm:$0xf]
      %v2418 = vld [vmem:[%s1 + $0x354] sm:$0xf]
      %v2419 = vld [vmem:[%s1 + $0x358] sm:$0xf]
      %v2420 = vld [vmem:[%s1 + $0x35c] sm:$0xf]
      %v2421 = vld [vmem:[%s1 + $0x360] sm:$0xf]
      %v2422 = vld [vmem:[%s1 + $0x364] sm:$0xf]
      %v2423 = vld [vmem:[%s1 + $0x368] sm:$0xf]
      %v2424 = vld [vmem:[%s1 + $0x36c] sm:$0xf]
      %v2425 = vld [vmem:[%s1 + $0x370] sm:$0xf]
      %v2426 = vld [vmem:[%s1 + $0x374] sm:$0xf]
      %v2427 = vld [vmem:[%s1 + $0x378] sm:$0xf]
      %v2428 = vld [vmem:[%s1 + $0x37c] sm:$0xf]
      %v2429 = vld [vmem:[%s1 + $0x380] sm:$0xf]
      %v2430 = vld [vmem:[%s1 + $0x384] sm:$0xf]
      %v2431 = vld [vmem:[%s1 + $0x388] sm:$0xf]
      %v2432 = vld [vmem:[%s1 + $0x38c] sm:$0xf]
      %v2433 = vld [vmem:[%s1 + $0x390] sm:$0xf]
      %v2434 = vld [vmem:[%s1 + $0x394] sm:$0xf]
      %v2435 = vld [vmem:[%s1 + $0x398] sm:$0xf]
      %v2436 = vld [vmem:[%s1 + $0x39c] sm:$0xf]
      %v2437 = vld [vmem:[%s1 + $0x3a0] sm:$0xf]
      %v2438 = vld [vmem:[%s1 + $0x3a4] sm:$0xf]
      %v2439 = vld [vmem:[%s1 + $0x3a8] sm:$0xf]
      %v2440 = vld [vmem:[%s1 + $0x3ac] sm:$0xf]
      %v2441 = vld [vmem:[%s1 + $0x3b0] sm:$0xf]
      %v2442 = vld [vmem:[%s1 + $0x3b4] sm:$0xf]
      %v2443 = vld [vmem:[%s1 + $0x3b8] sm:$0xf]
      %v2444 = vld [vmem:[%s1 + $0x3bc] sm:$0xf]
      %v2445 = vld [vmem:[%s1 + $0x3c0] sm:$0xf]
      %v2446 = vld [vmem:[%s1 + $0x3c4] sm:$0xf]
      %v2447 = vld [vmem:[%s1 + $0x3c8] sm:$0xf]
      %v2448 = vld [vmem:[%s1 + $0x3cc] sm:$0xf]
      %v2449 = vld [vmem:[%s1 + $0x3d0] sm:$0xf]
      %v2450 = vld [vmem:[%s1 + $0x3d4] sm:$0xf]
      %v2451 = vld [vmem:[%s1 + $0x3d8] sm:$0xf]
      %v2452 = vld [vmem:[%s1 + $0x3dc] sm:$0xf]
      %v2453 = vld [vmem:[%s1 + $0x3e0] sm:$0xf]
      %v2454 = vld [vmem:[%s1 + $0x3e4] sm:$0xf]
      %v2455 = vld [vmem:[%s1 + $0x3e8] sm:$0xf]
      %v2456 = vld [vmem:[%s1 + $0x3ec] sm:$0xf]
      %v2457 = vld [vmem:[%s1 + $0x3f0] sm:$0xf]
      %v2458 = vld [vmem:[%s1 + $0x3f4] sm:$0xf]
      %v2459 = vld [vmem:[%s1 + $0x3f8] sm:$0xf]
      %v2460 = vld [vmem:[%s1 + $0x3fc] sm:$0xf]
      %v2461 = vld [vmem:[%s1 + $0x400] sm:$0xf]
      %v2462 = vld [vmem:[%s1 + $0x404] sm:$0xf]
      %v2463 = vld [vmem:[%s1 + $0x408] sm:$0xf]
      %v2464 = vld [vmem:[%s1 + $0x40c] sm:$0xf]
      %v2465 = vld [vmem:[%s1 + $0x410] sm:$0xf]
      %v2466 = vld [vmem:[%s1 + $0x414] sm:$0xf]
      %v2467 = vld [vmem:[%s1 + $0x418] sm:$0xf]
      %v2468 = vld [vmem:[%s1 + $0x41c] sm:$0xf]
      %v2469 = vld [vmem:[%s1 + $0x420] sm:$0xf]
      %v2470 = vld [vmem:[%s1 + $0x424] sm:$0xf]
      %v2471 = vld [vmem:[%s1 + $0x428] sm:$0xf]
      %v2472 = vld [vmem:[%s1 + $0x42c] sm:$0xf]
      %v2473 = vld [vmem:[%s1 + $0x430] sm:$0xf]
      %v2474 = vld [vmem:[%s1 + $0x434] sm:$0xf]
      %v2475 = vld [vmem:[%s1 + $0x438] sm:$0xf]
      %v2476 = vld [vmem:[%s1 + $0x43c] sm:$0xf]
      %v2477 = vld [vmem:[%s1 + $0x440] sm:$0xf]
      %v2478 = vld [vmem:[%s1 + $0x444] sm:$0xf]
      %v2479 = vld [vmem:[%s1 + $0x448] sm:$0xf]
      %v2480 = vld [vmem:[%s1 + $0x44c] sm:$0xf]
      %v2481 = vld [vmem:[%s1 + $0x450] sm:$0xf]
      %v2482 = vld [vmem:[%s1 + $0x454] sm:$0xf]
      %v2483 = vld [vmem:[%s1 + $0x458] sm:$0xf]
      %v2484 = vld [vmem:[%s1 + $0x45c] sm:$0xf]
      %v2485 = vld [vmem:[%s1 + $0x460] sm:$0xf]
      %v2486 = vld [vmem:[%s1 + $0x464] sm:$0xf]
      %v2487 = vld [vmem:[%s1 + $0x468] sm:$0xf]
      %v2488 = vld [vmem:[%s1 + $0x46c] sm:$0xf]
      %v2489 = vld [vmem:[%s1 + $0x470] sm:$0xf]
      %v2490 = vld [vmem:[%s1 + $0x474] sm:$0xf]
      %v2491 = vld [vmem:[%s1 + $0x478] sm:$0xf]
      %v2492 = vld [vmem:[%s1 + $0x47c] sm:$0xf]
      %v2493 = vld [vmem:[%s1 + $0x480] sm:$0xf]
      %v2494 = vld [vmem:[%s1 + $0x484] sm:$0xf]
      %v2495 = vld [vmem:[%s1 + $0x488] sm:$0xf]
      %v2496 = vld [vmem:[%s1 + $0x48c] sm:$0xf]
      %v2497 = vld [vmem:[%s1 + $0x490] sm:$0xf]
      %v2498 = vld [vmem:[%s1 + $0x494] sm:$0xf]
      %v2499 = vld [vmem:[%s1 + $0x498] sm:$0xf]
      %v2500 = vld [vmem:[%s1 + $0x49c] sm:$0xf]
      %v2501 = vld [vmem:[%s1 + $0x4a0] sm:$0xf]
      %v2502 = vld [vmem:[%s1 + $0x4a4] sm:$0xf]
      %v2503 = vld [vmem:[%s1 + $0x4a8] sm:$0xf]
      %v2504 = vld [vmem:[%s1 + $0x4ac] sm:$0xf]
      %v2505 = vld [vmem:[%s1 + $0x4b0] sm:$0xf]
      %v2506 = vld [vmem:[%s1 + $0x4b4] sm:$0xf]
      %v2507 = vld [vmem:[%s1 + $0x4b8] sm:$0xf]
      %v2508 = vld [vmem:[%s1 + $0x4bc] sm:$0xf]
      %v2509 = vld [vmem:[%s1 + $0x4c0] sm:$0xf]
      %v2510 = vld [vmem:[%s1 + $0x4c4] sm:$0xf]
      %v2511 = vld [vmem:[%s1 + $0x4c8] sm:$0xf]
      %v2512 = vld [vmem:[%s1 + $0x4cc] sm:$0xf]
      %v2513 = vld [vmem:[%s1 + $0x4d0] sm:$0xf]
      %v2514 = vld [vmem:[%s1 + $0x4d4] sm:$0xf]
      %v2515 = vld [vmem:[%s1 + $0x4d8] sm:$0xf]
      %v2516 = vld [vmem:[%s1 + $0x4dc] sm:$0xf]
      %v2517 = vld [vmem:[%s1 + $0x4e0] sm:$0xf]
      %v2518 = vld [vmem:[%s1 + $0x4e4] sm:$0xf]
      %v2519 = vld [vmem:[%s1 + $0x4e8] sm:$0xf]
      %v2520 = vld [vmem:[%s1 + $0x4ec] sm:$0xf]
      %v2521 = vld [vmem:[%s1 + $0x4f0] sm:$0xf]
      %v2522 = vld [vmem:[%s1 + $0x4f4] sm:$0xf]
      %v2523 = vld [vmem:[%s1 + $0x4f8] sm:$0xf]
      %v2524 = vld [vmem:[%s1 + $0x4fc] sm:$0xf]
      %v2525 = vld [vmem:[%s1 + $0x500] sm:$0xf]
      %v2526 = vld [vmem:[%s1 + $0x504] sm:$0xf]
      %v2527 = vld [vmem:[%s1 + $0x508] sm:$0xf]
      %v2528 = vld [vmem:[%s1 + $0x50c] sm:$0xf]
      %v2529 = vld [vmem:[%s1 + $0x510] sm:$0xf]
      %v2530 = vld [vmem:[%s1 + $0x514] sm:$0xf]
      %v2531 = vld [vmem:[%s1 + $0x518] sm:$0xf]
      %v2532 = vld [vmem:[%s1 + $0x51c] sm:$0xf]
      %v2533 = vld [vmem:[%s1 + $0x520] sm:$0xf]
      %v2534 = vld [vmem:[%s1 + $0x524] sm:$0xf]
      %v2535 = vld [vmem:[%s1 + $0x528] sm:$0xf]
      %v2536 = vld [vmem:[%s1 + $0x52c] sm:$0xf]
      %v2537 = vld [vmem:[%s1 + $0x530] sm:$0xf]
      %v2538 = vld [vmem:[%s1 + $0x534] sm:$0xf]
      %v2539 = vld [vmem:[%s1 + $0x538] sm:$0xf]
      %v2540 = vld [vmem:[%s1 + $0x53c] sm:$0xf]
      %v2541 = vld [vmem:[%s1 + $0x540] sm:$0xf]
      %v2542 = vld [vmem:[%s1 + $0x544] sm:$0xf]
      %v2543 = vld [vmem:[%s1 + $0x548] sm:$0xf]
      %v2544 = vld [vmem:[%s1 + $0x54c] sm:$0xf]
      %v2545 = vld [vmem:[%s1 + $0x550] sm:$0xf]
      %v2546 = vld [vmem:[%s1 + $0x554] sm:$0xf]
      %v2547 = vld [vmem:[%s1 + $0x558] sm:$0xf]
      %v2548 = vld [vmem:[%s1 + $0x55c] sm:$0xf]
      %v2549 = vld [vmem:[%s1 + $0x560] sm:$0xf]
      %v2550 = vld [vmem:[%s1 + $0x564] sm:$0xf]
      %v2551 = vld [vmem:[%s1 + $0x568] sm:$0xf]
      %v2552 = vld [vmem:[%s1 + $0x56c] sm:$0xf]
      %v2553 = vld [vmem:[%s1 + $0x570] sm:$0xf]
      %v2554 = vld [vmem:[%s1 + $0x574] sm:$0xf]
      %v2555 = vld [vmem:[%s1 + $0x578] sm:$0xf]
      %v2556 = vld [vmem:[%s1 + $0x57c] sm:$0xf]
      %v2557 = vld [vmem:[%s1 + $0x580] sm:$0xf]
      %v2558 = vld [vmem:[%s1 + $0x584] sm:$0xf]
      %v2559 = vld [vmem:[%s1 + $0x588] sm:$0xf]
      %v2560 = vld [vmem:[%s1 + $0x58c] sm:$0xf]
      %v2561 = vld [vmem:[%s1 + $0x590] sm:$0xf]
      %v2562 = vld [vmem:[%s1 + $0x594] sm:$0xf]
      %v2563 = vld [vmem:[%s1 + $0x598] sm:$0xf]
      %v2564 = vld [vmem:[%s1 + $0x59c] sm:$0xf]
      %v2565 = vld [vmem:[%s1 + $0x5a0] sm:$0xf]
      %v2566 = vld [vmem:[%s1 + $0x5a4] sm:$0xf]
      %v2567 = vld [vmem:[%s1 + $0x5a8] sm:$0xf]
      %v2568 = vld [vmem:[%s1 + $0x5ac] sm:$0xf]
      %v2569 = vld [vmem:[%s1 + $0x5b0] sm:$0xf]
      %v2570 = vld [vmem:[%s1 + $0x5b4] sm:$0xf]
      %v2571 = vld [vmem:[%s1 + $0x5b8] sm:$0xf]
      %v2572 = vld [vmem:[%s1 + $0x5bc] sm:$0xf]
      %v2573 = vld [vmem:[%s1 + $0x5c0] sm:$0xf]
      %v2574 = vld [vmem:[%s1 + $0x5c4] sm:$0xf]
      %v2575 = vld [vmem:[%s1 + $0x5c8] sm:$0xf]
      %v2576 = vld [vmem:[%s1 + $0x5cc] sm:$0xf]
      %v2577 = vld [vmem:[%s1 + $0x5d0] sm:$0xf]
      %v2578 = vld [vmem:[%s1 + $0x5d4] sm:$0xf]
      %v2579 = vld [vmem:[%s1 + $0x5d8] sm:$0xf]
      %v2580 = vld [vmem:[%s1 + $0x5dc] sm:$0xf]
      %v2581 = vld [vmem:[%s1 + $0x5e0] sm:$0xf]
      %v2582 = vld [vmem:[%s1 + $0x5e4] sm:$0xf]
      %v2583 = vld [vmem:[%s1 + $0x5e8] sm:$0xf]
      %v2584 = vld [vmem:[%s1 + $0x5ec] sm:$0xf]
      %v2585 = vld [vmem:[%s1 + $0x5f0] sm:$0xf]
      %v2586 = vld [vmem:[%s1 + $0x5f4] sm:$0xf]
      %v2587 = vld [vmem:[%s1 + $0x5f8] sm:$0xf]
      %v2588 = vld [vmem:[%s1 + $0x5fc] sm:$0xf]
      %v2589 = vld [vmem:[%s1 + $0x600] sm:$0xf]
      %v2590 = vld [vmem:[%s1 + $0x604] sm:$0xf]
      %v2591 = vld [vmem:[%s1 + $0x608] sm:$0xf]
      %v2592 = vld [vmem:[%s1 + $0x60c] sm:$0xf]
      %v2593 = vld [vmem:[%s1 + $0x610] sm:$0xf]
      %v2594 = vld [vmem:[%s1 + $0x614] sm:$0xf]
      %v2595 = vld [vmem:[%s1 + $0x618] sm:$0xf]
      %v2596 = vld [vmem:[%s1 + $0x61c] sm:$0xf]
      %v2597 = vld [vmem:[%s1 + $0x620] sm:$0xf]
      %v2598 = vld [vmem:[%s1 + $0x624] sm:$0xf]
      %v2599 = vld [vmem:[%s1 + $0x628] sm:$0xf]
      %v2600 = vld [vmem:[%s1 + $0x62c] sm:$0xf]
      %v2601 = vld [vmem:[%s1 + $0x630] sm:$0xf]
      %v2602 = vld [vmem:[%s1 + $0x634] sm:$0xf]
      %v2603 = vld [vmem:[%s1 + $0x638] sm:$0xf]
      %v2604 = vld [vmem:[%s1 + $0x63c] sm:$0xf]
      %v2605 = vld [vmem:[%s1 + $0x640] sm:$0xf]
      %v2606 = vld [vmem:[%s1 + $0x644] sm:$0xf]
      %v2607 = vld [vmem:[%s1 + $0x648] sm:$0xf]
      %v2608 = vld [vmem:[%s1 + $0x64c] sm:$0xf]
      %v2609 = vld [vmem:[%s1 + $0x650] sm:$0xf]
      %v2610 = vld [vmem:[%s1 + $0x654] sm:$0xf]
      %v2611 = vld [vmem:[%s1 + $0x658] sm:$0xf]
      %v2612 = vld [vmem:[%s1 + $0x65c] sm:$0xf]
      %v2613 = vld [vmem:[%s1 + $0x660] sm:$0xf]
      %v2614 = vld [vmem:[%s1 + $0x664] sm:$0xf]
      %v2615 = vld [vmem:[%s1 + $0x668] sm:$0xf]
      %v2616 = vld [vmem:[%s1 + $0x66c] sm:$0xf]
      %v2617 = vld [vmem:[%s1 + $0x670] sm:$0xf]
      %v2618 = vld [vmem:[%s1 + $0x674] sm:$0xf]
      %v2619 = vld [vmem:[%s1 + $0x678] sm:$0xf]
      %v2620 = vld [vmem:[%s1 + $0x67c] sm:$0xf]
      %v2621 = vld [vmem:[%s1 + $0x680] sm:$0xf]
      %v2622 = vld [vmem:[%s1 + $0x684] sm:$0xf]
      %v2623 = vld [vmem:[%s1 + $0x688] sm:$0xf]
      %v2624 = vld [vmem:[%s1 + $0x68c] sm:$0xf]
      %v2625 = vld [vmem:[%s1 + $0x690] sm:$0xf]
      %v2626 = vld [vmem:[%s1 + $0x694] sm:$0xf]
      %v2627 = vld [vmem:[%s1 + $0x698] sm:$0xf]
      %v2628 = vld [vmem:[%s1 + $0x69c] sm:$0xf]
      %v2629 = vld [vmem:[%s1 + $0x6a0] sm:$0xf]
      %v2630 = vld [vmem:[%s1 + $0x6a4] sm:$0xf]
      %v2631 = vld [vmem:[%s1 + $0x6a8] sm:$0xf]
      %v2632 = vld [vmem:[%s1 + $0x6ac] sm:$0xf]
      %v2633 = vld [vmem:[%s1 + $0x6b0] sm:$0xf]
      %v2634 = vld [vmem:[%s1 + $0x6b4] sm:$0xf]
      %v2635 = vld [vmem:[%s1 + $0x6b8] sm:$0xf]
      %v2636 = vld [vmem:[%s1 + $0x6bc] sm:$0xf]
      %v2637 = vpack.c.b16 %v369, %v367
      %v2638 = vpack.c.b16 %v2010, %v2008
      %v2639 = vpack.c.b16 %v2011, %v2009
      %v2640 = vpack.c.b16 %v371, %v369
      %v2641 = vpack.c.b16 %v2012, %v2010
      %v2642 = vpack.c.b16 %v2013, %v2011
      %v2643 = vpack.c.b16 %v373, %v371
      %v2644 = vpack.c.b16 %v2029, %v2012
      %v2645 = vpack.c.b16 %v2030, %v2013
      %v2646 = vpack.c.b16 %v385, %v383
      %v2647 = vpack.c.b16 %v2016, %v2014
      %v2648 = vpack.c.b16 %v2017, %v2015
      %v2649 = vpack.c.b16 %v387, %v385
      %v2650 = vpack.c.b16 %v2018, %v2016
      %v2651 = vpack.c.b16 %v2031, %v2017
      %v2652 = vpack.c.b16 %v389, %v387
      %v2653 = vpack.c.b16 %v2032, %v2018
      %v2654 = vpack.c.b16 %v2033, %v2019
      %v2655 = vpack.c.b16 %v2023, %v2020
      %v2656 = vpack.c.b16 %v2024, %v2021
      %v2657 = vpack.c.b16 %v2025, %v2022
      %v2658 = vpack.c.b16 %v2026, %v2023
      %v2659 = vpack.c.b16 %v2027, %v2024
      %v2660 = vpack.c.b16 %v2028, %v2025
      %v2661 = vpack.c.b16 %v2034, %v2026
      %v2662 = vpack.c.b16 %v2035, %v2027
      %v2663 = vpack.c.b16 %v2036, %v2028
      %v2664 = vpack.c.b16 %v375, %v373
      %v2665 = vpack.c.b16 %v2037, %v2029
      %v2666 = vpack.c.b16 %v2038, %v2030
      %v2667 = vpack.c.b16 %v377, %v375
      %v2668 = vpack.c.b16 %v2045, %v2037
      %v2669 = vpack.c.b16 %v2046, %v2038
      %v2670 = vpack.c.b16 %v2039, %v2031
      %v2671 = vpack.c.b16 %v391, %v389
      %v2672 = vpack.c.b16 %v2040, %v2032
      %v2673 = vpack.c.b16 %v2047, %v2039
      %v2674 = vpack.c.b16 %v393, %v391
      %v2675 = vpack.c.b16 %v2048, %v2040
      %v2676 = vpack.c.b16 %v2049, %v2041
      %v2677 = vpack.c.b16 %v2042, %v2034
      %v2678 = vpack.c.b16 %v2043, %v2035
      %v2679 = vpack.c.b16 %v2044, %v2036
      %v2680 = vpack.c.b16 %v2050, %v2042
      %v2681 = vpack.c.b16 %v2051, %v2043
      %v2682 = vpack.c.b16 %v2052, %v2044
      %v2683 = vpack.c.b16 %v379, %v377
      %v2684 = vpack.c.b16 %v2053, %v2045
      %v2685 = vpack.c.b16 %v2054, %v2046
      %v2686 = vpack.c.b16 %v381, %v379
      %v2687 = vpack.c.b16 %v2061, %v2053
      %v2688 = vpack.c.b16 %v2062, %v2054
      %v2689 = vpack.c.b16 %v2055, %v2047
      %v2690 = vpack.c.b16 %v395, %v393
      %v2691 = vpack.c.b16 %v2056, %v2048
      %v2692 = vpack.c.b16 %v2063, %v2055
      %v2693 = vpack.c.b16 %v397, %v395
      %v2694 = vpack.c.b16 %v2064, %v2056
      %v2695 = vpack.c.b16 %v2065, %v2057
      %v2696 = vpack.c.b16 %v2058, %v2050
      %v2697 = vpack.c.b16 %v2059, %v2051
      %v2698 = vpack.c.b16 %v2060, %v2052
      %v2699 = vpack.c.b16 %v2066, %v2058
      %v2700 = vpack.c.b16 %v2067, %v2059
      %v2701 = vpack.c.b16 %v2068, %v2060
      %v2702 = vpack.c.b16 %v727, %v381
      %v2703 = vpack.c.b16 %v2069, %v2061
      %v2704 = vpack.c.b16 %v2070, %v2062
      %v2705 = vpack.c.b16 %v779, %v727
      %v2706 = vpack.c.b16 %v2077, %v2069
      %v2707 = vpack.c.b16 %v2078, %v2070
      %v2708 = vpack.c.b16 %v2071, %v2063
      %v2709 = vpack.c.b16 %v729, %v397
      %v2710 = vpack.c.b16 %v2072, %v2064
      %v2711 = vpack.c.b16 %v2079, %v2071
      %v2712 = vpack.c.b16 %v781, %v729
      %v2713 = vpack.c.b16 %v2080, %v2072
      %v2714 = vpack.c.b16 %v2081, %v2073
      %v2715 = vpack.c.b16 %v2074, %v2066
      %v2716 = vpack.c.b16 %v2075, %v2067
      %v2717 = vpack.c.b16 %v2076, %v2068
      %v2718 = vpack.c.b16 %v2082, %v2074
      %v2719 = vpack.c.b16 %v2083, %v2075
      %v2720 = vpack.c.b16 %v2084, %v2076
      %v2721 = vpack.c.b16 %v401, %v399
      %v2722 = vpack.c.b16 %v2086, %v2085
      %v2723 = vpack.c.b16 %v403, %v401
      %v2724 = vpack.c.b16 %v2096, %v2086
      %v2725 = vpack.c.b16 %v405, %v403
      %v2726 = vpack.c.b16 %v2090, %v2087
      %v2727 = vpack.c.b16 %v2091, %v2088
      %v2728 = vpack.c.b16 %v2092, %v2089
      %v2729 = vpack.c.b16 %v2093, %v2090
      %v2730 = vpack.c.b16 %v2094, %v2091
      %v2731 = vpack.c.b16 %v2095, %v2092
      %v2732 = vpack.c.b16 %v2097, %v2093
      %v2733 = vpack.c.b16 %v2098, %v2094
      %v2734 = vpack.c.b16 %v2099, %v2095
      %v2735 = vpack.c.b16 %v2100, %v2096
      %v2736 = vpack.c.b16 %v407, %v405
      %v2737 = vpack.c.b16 %v2104, %v2100
      %v2738 = vpack.c.b16 %v409, %v407
      %v2739 = vpack.c.b16 %v2101, %v2097
      %v2740 = vpack.c.b16 %v2102, %v2098
      %v2741 = vpack.c.b16 %v2103, %v2099
      %v2742 = vpack.c.b16 %v2105, %v2101
      %v2743 = vpack.c.b16 %v2106, %v2102
      %v2744 = vpack.c.b16 %v2107, %v2103
      %v2745 = vpack.c.b16 %v2108, %v2104
      %v2746 = vpack.c.b16 %v411, %v409
      %v2747 = vpack.c.b16 %v2112, %v2108
      %v2748 = vpack.c.b16 %v413, %v411
      %v2749 = vpack.c.b16 %v2109, %v2105
      %v2750 = vpack.c.b16 %v2110, %v2106
      %v2751 = vpack.c.b16 %v2111, %v2107
      %v2752 = vpack.c.b16 %v2113, %v2109
      %v2753 = vpack.c.b16 %v2114, %v2110
      %v2754 = vpack.c.b16 %v2115, %v2111
      %v2755 = vpack.c.b16 %v2120, %v2079
      %v2756 = vpack.c.b16 %v2116, %v2112
      %v2757 = vpack.c.b16 %v731, %v413
      %v2758 = vpack.c.b16 %v2121, %v2116
      %v2759 = vpack.c.b16 %v783, %v731
      %v2760 = vpack.c.b16 %v2117, %v2113
      %v2761 = vpack.c.b16 %v2118, %v2114
      %v2762 = vpack.c.b16 %v2119, %v2115
      %v2763 = vpack.c.b16 %v2122, %v2117
      %v2764 = vpack.c.b16 %v2123, %v2118
      %v2765 = vpack.c.b16 %v2124, %v2119
      %v2766 = vpack.c.b16 %v417, %v415
      %v2767 = vpack.c.b16 %v2126, %v2125
      %v2768 = vpack.c.b16 %v419, %v417
      %v2769 = vpack.c.b16 %v2136, %v2126
      %v2770 = vpack.c.b16 %v421, %v419
      %v2771 = vpack.c.b16 %v2130, %v2127
      %v2772 = vpack.c.b16 %v2131, %v2128
      %v2773 = vpack.c.b16 %v2132, %v2129
      %v2774 = vpack.c.b16 %v2133, %v2130
      %v2775 = vpack.c.b16 %v2134, %v2131
      %v2776 = vpack.c.b16 %v2135, %v2132
      %v2777 = vpack.c.b16 %v2137, %v2133
      %v2778 = vpack.c.b16 %v2138, %v2134
      %v2779 = vpack.c.b16 %v2139, %v2135
      %v2780 = vpack.c.b16 %v2140, %v2136
      %v2781 = vpack.c.b16 %v423, %v421
      %v2782 = vpack.c.b16 %v2144, %v2140
      %v2783 = vpack.c.b16 %v425, %v423
      %v2784 = vpack.c.b16 %v2141, %v2137
      %v2785 = vpack.c.b16 %v2142, %v2138
      %v2786 = vpack.c.b16 %v2143, %v2139
      %v2787 = vpack.c.b16 %v2145, %v2141
      %v2788 = vpack.c.b16 %v2146, %v2142
      %v2789 = vpack.c.b16 %v2147, %v2143
      %v2790 = vpack.c.b16 %v2148, %v2144
      %v2791 = vpack.c.b16 %v427, %v425
      %v2792 = vpack.c.b16 %v2152, %v2148
      %v2793 = vpack.c.b16 %v429, %v427
      %v2794 = vpack.c.b16 %v2149, %v2145
      %v2795 = vpack.c.b16 %v2150, %v2146
      %v2796 = vpack.c.b16 %v2151, %v2147
      %v2797 = vpack.c.b16 %v2153, %v2149
      %v2798 = vpack.c.b16 %v2154, %v2150
      %v2799 = vpack.c.b16 %v2155, %v2151
      %v2800 = vpack.c.b16 %v2160, %v2121
      %v2801 = vpack.c.b16 %v2156, %v2152
      %v2802 = vpack.c.b16 %v733, %v429
      %v2803 = vpack.c.b16 %v2161, %v2156
      %v2804 = vpack.c.b16 %v785, %v733
      %v2805 = vpack.c.b16 %v2157, %v2153
      %v2806 = vpack.c.b16 %v2158, %v2154
      %v2807 = vpack.c.b16 %v2159, %v2155
      %v2808 = vpack.c.b16 %v2162, %v2157
      %v2809 = vpack.c.b16 %v2163, %v2158
      %v2810 = vpack.c.b16 %v2164, %v2159
      %v2811 = vpack.c.b16 %v841, %v839
      %v2812 = vpack.c.b16 %v2166, %v2165
      %v2813 = vpack.c.b16 %v843, %v841
      %v2814 = vpack.c.b16 %v2176, %v2166
      %v2815 = vpack.c.b16 %v845, %v843
      %v2816 = vpack.c.b16 %v2170, %v2167
      %v2817 = vpack.c.b16 %v2171, %v2168
      %v2818 = vpack.c.b16 %v2172, %v2169
      %v2819 = vpack.c.b16 %v2173, %v2170
      %v2820 = vpack.c.b16 %v2174, %v2171
      %v2821 = vpack.c.b16 %v2175, %v2172
      %v2822 = vpack.c.b16 %v2177, %v2173
      %v2823 = vpack.c.b16 %v2178, %v2174
      %v2824 = vpack.c.b16 %v2179, %v2175
      %v2825 = vpack.c.b16 %v2180, %v2176
      %v2826 = vpack.c.b16 %v847, %v845
      %v2827 = vpack.c.b16 %v2184, %v2180
      %v2828 = vpack.c.b16 %v849, %v847
      %v2829 = vpack.c.b16 %v2181, %v2177
      %v2830 = vpack.c.b16 %v2182, %v2178
      %v2831 = vpack.c.b16 %v2183, %v2179
      %v2832 = vpack.c.b16 %v2185, %v2181
      %v2833 = vpack.c.b16 %v2186, %v2182
      %v2834 = vpack.c.b16 %v2187, %v2183
      %v2835 = vpack.c.b16 %v2188, %v2184
      %v2836 = vpack.c.b16 %v851, %v849
      %v2837 = vpack.c.b16 %v2192, %v2188
      %v2838 = vpack.c.b16 %v853, %v851
      %v2839 = vpack.c.b16 %v2189, %v2185
      %v2840 = vpack.c.b16 %v2190, %v2186
      %v2841 = vpack.c.b16 %v2191, %v2187
      %v2842 = vpack.c.b16 %v2193, %v2189
      %v2843 = vpack.c.b16 %v2194, %v2190
      %v2844 = vpack.c.b16 %v2195, %v2191
      %v2845 = vpack.c.b16 %v2200, %v2161
      %v2846 = vpack.c.b16 %v2196, %v2192
      %v2847 = vpack.c.b16 %v929, %v853
      %v2848 = vpack.c.b16 %v2201, %v2196
      %v2849 = vpack.c.b16 %v942, %v929
      %v2850 = vpack.c.b16 %v2197, %v2193
      %v2851 = vpack.c.b16 %v2198, %v2194
      %v2852 = vpack.c.b16 %v2199, %v2195
      %v2853 = vpack.c.b16 %v2202, %v2197
      %v2854 = vpack.c.b16 %v2203, %v2198
      %v2855 = vpack.c.b16 %v2204, %v2199
      %v3507 = vunpack.c.l.b16 %v2205
      %v3508 = vunpack.c.l.b16 %v2206
      %v3509 = vunpack.c.l.b16 %v2207
      %v3510 = vunpack.c.l.b16 %v2208
      %v3511 = vunpack.c.l.b16 %v2209
      %v3512 = vunpack.c.l.b16 %v2210
      %v3513 = vunpack.c.l.b16 %v2211
      %v3514 = vunpack.c.l.b16 %v2212
      %v3515 = vunpack.c.l.b16 %v2213
      %v3516 = vunpack.c.l.b16 %v2214
      %v3517 = vunpack.c.l.b16 %v2215
      %v3518 = vunpack.c.l.b16 %v2216
      %v3519 = vunpack.c.l.b16 %v2217
      %v3520 = vunpack.c.l.b16 %v2218
      %v3521 = vunpack.c.l.b16 %v2219
      %v3522 = vunpack.c.l.b16 %v2220
      %v3523 = vunpack.c.l.b16 %v2221
      %v3524 = vunpack.c.l.b16 %v2222
      %v3525 = vunpack.c.l.b16 %v2223
      %v3526 = vunpack.c.l.b16 %v2224
      %v3527 = vunpack.c.l.b16 %v2225
      %v3528 = vunpack.c.l.b16 %v2226
      %v3529 = vunpack.c.l.b16 %v2227
      %v3530 = vunpack.c.l.b16 %v2228
      %v3531 = vunpack.c.l.b16 %v2229
      %v3532 = vunpack.c.l.b16 %v2230
      %v3533 = vunpack.c.l.b16 %v2231
      %v3534 = vunpack.c.l.b16 %v2232
      %v3535 = vunpack.c.l.b16 %v2233
      %v3536 = vunpack.c.l.b16 %v2234
      %v3537 = vunpack.c.l.b16 %v2235
      %v3538 = vunpack.c.l.b16 %v2236
      %v3539 = vunpack.c.l.b16 %v2237
      %v3540 = vunpack.c.l.b16 %v2238
      %v3541 = vunpack.c.l.b16 %v2239
      %v3542 = vunpack.c.l.b16 %v2240
      %v3543 = vunpack.c.l.b16 %v2241
      %v3544 = vunpack.c.l.b16 %v2242
      %v3545 = vunpack.c.l.b16 %v2243
      %v3546 = vunpack.c.l.b16 %v2244
      %v3547 = vunpack.c.l.b16 %v2245
      %v3548 = vunpack.c.l.b16 %v2246
      %v3549 = vunpack.c.l.b16 %v2247
      %v3550 = vunpack.c.l.b16 %v2248
      %v3551 = vunpack.c.l.b16 %v2249
      %v3552 = vunpack.c.l.b16 %v2250
      %v3553 = vunpack.c.l.b16 %v2251
      %v3554 = vunpack.c.l.b16 %v2252
      %v3555 = vunpack.c.l.b16 %v2253
      %v3556 = vunpack.c.l.b16 %v2254
      %v3557 = vunpack.c.l.b16 %v2255
      %v3558 = vunpack.c.l.b16 %v2256
      %v3559 = vunpack.c.l.b16 %v2257
      %v3560 = vunpack.c.l.b16 %v2258
      %v3561 = vunpack.c.l.b16 %v2259
      %v3562 = vunpack.c.l.b16 %v2260
      %v3563 = vunpack.c.l.b16 %v2261
      %v3564 = vunpack.c.l.b16 %v2262
      %v3565 = vunpack.c.l.b16 %v2263
      %v3566 = vunpack.c.l.b16 %v2264
      %v3567 = vunpack.c.l.b16 %v2265
      %v3568 = vunpack.c.l.b16 %v2266
      %v3569 = vunpack.c.l.b16 %v2267
      %v3570 = vunpack.c.l.b16 %v2268
      %v3571 = vunpack.c.l.b16 %v2269
      %v3572 = vunpack.c.l.b16 %v2270
      %v3573 = vunpack.c.l.b16 %v2271
      %v3574 = vunpack.c.l.b16 %v2272
      %v3575 = vunpack.c.l.b16 %v2273
      %v3576 = vunpack.c.l.b16 %v2274
      %v3577 = vunpack.c.l.b16 %v2275
      %v3578 = vunpack.c.l.b16 %v2276
      %v3579 = vunpack.c.l.b16 %v2277
      %v3580 = vunpack.c.l.b16 %v2278
      %v3581 = vunpack.c.l.b16 %v2279
      %v3582 = vunpack.c.l.b16 %v2280
      %v3583 = vunpack.c.l.b16 %v2281
      %v3584 = vunpack.c.l.b16 %v2282
      %v3585 = vunpack.c.l.b16 %v2283
      %v3586 = vunpack.c.l.b16 %v2284
      %v3587 = vunpack.c.l.b16 %v2285
      %v3588 = vunpack.c.l.b16 %v2286
      %v3589 = vunpack.c.l.b16 %v2287
      %v3590 = vunpack.c.l.b16 %v2288
      %v3591 = vunpack.c.l.b16 %v2289
      %v3592 = vunpack.c.l.b16 %v2290
      %v3593 = vunpack.c.l.b16 %v2291
      %v3594 = vunpack.c.l.b16 %v2292
      %v3595 = vunpack.c.l.b16 %v2293
      %v3596 = vunpack.c.l.b16 %v2294
      %v3597 = vunpack.c.l.b16 %v2295
      %v3598 = vunpack.c.l.b16 %v2296
      %v3599 = vunpack.c.l.b16 %v2297
      %v3600 = vunpack.c.l.b16 %v2298
      %v3601 = vunpack.c.l.b16 %v2299
      %v3602 = vunpack.c.l.b16 %v2300
      %v3603 = vunpack.c.l.b16 %v2301
      %v3604 = vunpack.c.l.b16 %v2302
      %v3605 = vunpack.c.l.b16 %v2303
      %v3606 = vunpack.c.l.b16 %v2304
      %v3607 = vunpack.c.l.b16 %v2305
      %v3608 = vunpack.c.l.b16 %v2306
      %v3609 = vunpack.c.l.b16 %v2307
      %v3610 = vunpack.c.l.b16 %v2308
      %v3611 = vunpack.c.l.b16 %v2309
      %v3612 = vunpack.c.l.b16 %v2310
      %v3613 = vunpack.c.l.b16 %v2311
      %v3614 = vunpack.c.l.b16 %v2312
      %v3615 = vunpack.c.l.b16 %v2313
      %v3616 = vunpack.c.l.b16 %v2314
      %v3617 = vunpack.c.l.b16 %v2315
      %v3618 = vunpack.c.l.b16 %v2316
      %v3619 = vunpack.c.l.b16 %v2317
      %v3620 = vunpack.c.l.b16 %v2318
      %v3621 = vunpack.c.l.b16 %v2319
      %v3622 = vunpack.c.l.b16 %v2320
      %v3623 = vunpack.c.l.b16 %v2321
      %v3624 = vunpack.c.l.b16 %v2322
      %v3625 = vunpack.c.l.b16 %v2323
      %v3626 = vunpack.c.l.b16 %v2324
      %v3627 = vunpack.c.l.b16 %v2325
      %v3628 = vunpack.c.l.b16 %v2326
      %v3629 = vunpack.c.l.b16 %v2327
      %v3630 = vunpack.c.l.b16 %v2328
      %v3631 = vunpack.c.l.b16 %v2329
      %v3632 = vunpack.c.l.b16 %v2330
      %v3633 = vunpack.c.l.b16 %v2331
      %v3634 = vunpack.c.l.b16 %v2332
      %v3635 = vunpack.c.l.b16 %v2333
      %v3636 = vunpack.c.l.b16 %v2334
      %v3637 = vunpack.c.l.b16 %v2335
      %v3638 = vunpack.c.l.b16 %v2336
      %v3639 = vunpack.c.l.b16 %v2337
      %v3640 = vunpack.c.l.b16 %v2338
      %v3641 = vunpack.c.l.b16 %v2339
      %v3642 = vunpack.c.l.b16 %v2340
      %v3643 = vunpack.c.l.b16 %v2341
      %v3644 = vunpack.c.l.b16 %v2342
      %v3645 = vunpack.c.l.b16 %v2343
      %v3646 = vunpack.c.l.b16 %v2344
      %v3647 = vunpack.c.l.b16 %v2345
      %v3648 = vunpack.c.l.b16 %v2346
      %v3649 = vunpack.c.l.b16 %v2347
      %v3650 = vunpack.c.l.b16 %v2348
      %v3651 = vunpack.c.l.b16 %v2349
      %v3652 = vunpack.c.l.b16 %v2350
      %v3653 = vunpack.c.l.b16 %v2351
      %v3654 = vunpack.c.l.b16 %v2352
      %v3655 = vunpack.c.l.b16 %v2353
      %v3656 = vunpack.c.l.b16 %v2354
      %v3657 = vunpack.c.l.b16 %v2355
      %v3658 = vunpack.c.l.b16 %v2356
      %v3659 = vunpack.c.l.b16 %v2357
      %v3660 = vunpack.c.l.b16 %v2358
      %v3661 = vunpack.c.l.b16 %v2359
      %v3662 = vunpack.c.l.b16 %v2360
      %v3663 = vunpack.c.l.b16 %v2361
      %v3664 = vunpack.c.l.b16 %v2362
      %v3665 = vunpack.c.l.b16 %v2363
      %v3666 = vunpack.c.l.b16 %v2364
      %v3667 = vunpack.c.l.b16 %v2365
      %v3668 = vunpack.c.l.b16 %v2366
      %v3669 = vunpack.c.l.b16 %v2367
      %v3670 = vunpack.c.l.b16 %v2368
      %v3671 = vunpack.c.l.b16 %v2369
      %v3672 = vunpack.c.l.b16 %v2370
      %v3673 = vunpack.c.l.b16 %v2371
      %v3674 = vunpack.c.l.b16 %v2372
      %v3675 = vunpack.c.l.b16 %v2373
      %v3676 = vunpack.c.l.b16 %v2374
      %v3677 = vunpack.c.l.b16 %v2375
      %v3678 = vunpack.c.l.b16 %v2376
      %v3679 = vunpack.c.l.b16 %v2377
      %v3680 = vunpack.c.l.b16 %v2378
      %v3681 = vunpack.c.l.b16 %v2379
      %v3682 = vunpack.c.l.b16 %v2380
      %v3683 = vunpack.c.l.b16 %v2381
      %v3684 = vunpack.c.l.b16 %v2382
      %v3685 = vunpack.c.l.b16 %v2383
      %v3686 = vunpack.c.l.b16 %v2384
      %v3687 = vunpack.c.l.b16 %v2385
      %v3688 = vunpack.c.l.b16 %v2386
      %v3689 = vunpack.c.l.b16 %v2387
      %v3690 = vunpack.c.l.b16 %v2388
      %v3691 = vunpack.c.l.b16 %v2389
      %v3692 = vunpack.c.l.b16 %v2390
      %v3693 = vunpack.c.l.b16 %v2391
      %v3694 = vunpack.c.l.b16 %v2392
      %v3695 = vunpack.c.l.b16 %v2393
      %v3696 = vunpack.c.l.b16 %v2394
      %v3697 = vunpack.c.l.b16 %v2395
      %v3698 = vunpack.c.l.b16 %v2396
      %v3699 = vunpack.c.l.b16 %v2397
      %v3700 = vunpack.c.l.b16 %v2398
      %v3701 = vunpack.c.l.b16 %v2399
      %v3702 = vunpack.c.l.b16 %v2400
      %v3703 = vunpack.c.l.b16 %v2401
      %v3704 = vunpack.c.l.b16 %v2402
      %v3705 = vunpack.c.l.b16 %v2403
      %v3706 = vunpack.c.l.b16 %v2404
      %v3707 = vunpack.c.l.b16 %v2405
      %v3708 = vunpack.c.l.b16 %v2406
      %v3709 = vunpack.c.l.b16 %v2407
      %v3710 = vunpack.c.l.b16 %v2408
      %v3711 = vunpack.c.l.b16 %v2409
      %v3712 = vunpack.c.l.b16 %v2410
      %v3713 = vunpack.c.l.b16 %v2411
      %v3714 = vunpack.c.l.b16 %v2412
      %v3715 = vunpack.c.l.b16 %v2413
      %v3716 = vunpack.c.l.b16 %v2414
      %v3717 = vunpack.c.l.b16 %v2415
      %v3718 = vunpack.c.l.b16 %v2416
      %v3719 = vunpack.c.l.b16 %v2417
      %v3720 = vunpack.c.l.b16 %v2418
      %v3721 = vunpack.c.l.b16 %v2419
      %v3722 = vunpack.c.l.b16 %v2420
      %v3723 = vunpack.c.l.b16 %v2421
      %v3724 = vunpack.c.l.b16 %v2422
      %v3725 = vunpack.c.l.b16 %v2423
      %v3726 = vunpack.c.l.b16 %v2424
      %v3727 = vunpack.c.l.b16 %v2425
      %v3728 = vunpack.c.l.b16 %v2426
      %v3729 = vunpack.c.l.b16 %v2427
      %v3730 = vunpack.c.l.b16 %v2428
      %v3731 = vunpack.c.l.b16 %v2429
      %v3732 = vunpack.c.l.b16 %v2430
      %v3733 = vunpack.c.l.b16 %v2431
      %v3734 = vunpack.c.l.b16 %v2432
      %v3735 = vunpack.c.l.b16 %v2433
      %v3736 = vunpack.c.l.b16 %v2434
      %v3737 = vunpack.c.l.b16 %v2435
      %v3738 = vunpack.c.l.b16 %v2436
      %v3739 = vunpack.c.l.b16 %v2437
      %v3740 = vunpack.c.l.b16 %v2438
      %v3741 = vunpack.c.l.b16 %v2439
      %v3742 = vunpack.c.l.b16 %v2440
      %v3743 = vunpack.c.l.b16 %v2441
      %v3744 = vunpack.c.l.b16 %v2442
      %v3745 = vunpack.c.l.b16 %v2443
      %v3746 = vunpack.c.l.b16 %v2444
      %v3747 = vunpack.c.l.b16 %v2445
      %v3748 = vunpack.c.l.b16 %v2446
      %v3749 = vunpack.c.l.b16 %v2447
      %v3750 = vunpack.c.l.b16 %v2448
      %v3751 = vunpack.c.l.b16 %v2449
      %v3752 = vunpack.c.l.b16 %v2450
      %v3753 = vunpack.c.l.b16 %v2451
      %v3754 = vunpack.c.l.b16 %v2452
      %v3755 = vunpack.c.l.b16 %v2453
      %v3756 = vunpack.c.l.b16 %v2454
      %v3757 = vunpack.c.l.b16 %v2455
      %v3758 = vunpack.c.l.b16 %v2456
      %v3759 = vunpack.c.l.b16 %v2457
      %v3760 = vunpack.c.l.b16 %v2458
      %v3761 = vunpack.c.l.b16 %v2459
      %v3762 = vunpack.c.l.b16 %v2460
      %v3763 = vunpack.c.l.b16 %v2461
      %v3764 = vunpack.c.l.b16 %v2462
      %v3765 = vunpack.c.l.b16 %v2463
      %v3766 = vunpack.c.l.b16 %v2464
      %v3767 = vunpack.c.l.b16 %v2465
      %v3768 = vunpack.c.l.b16 %v2466
      %v3769 = vunpack.c.l.b16 %v2467
      %v3770 = vunpack.c.l.b16 %v2468
      %v3771 = vunpack.c.l.b16 %v2469
      %v3772 = vunpack.c.l.b16 %v2470
      %v3773 = vunpack.c.l.b16 %v2471
      %v3774 = vunpack.c.l.b16 %v2472
      %v3775 = vunpack.c.l.b16 %v2473
      %v3776 = vunpack.c.l.b16 %v2474
      %v3777 = vunpack.c.l.b16 %v2475
      %v3778 = vunpack.c.l.b16 %v2476
      %v3779 = vunpack.c.l.b16 %v2477
      %v3780 = vunpack.c.l.b16 %v2478
      %v3781 = vunpack.c.l.b16 %v2479
      %v3782 = vunpack.c.l.b16 %v2480
      %v3783 = vunpack.c.l.b16 %v2481
      %v3784 = vunpack.c.l.b16 %v2482
      %v3785 = vunpack.c.l.b16 %v2483
      %v3786 = vunpack.c.l.b16 %v2484
      %v3787 = vunpack.c.l.b16 %v2485
      %v3788 = vunpack.c.l.b16 %v2486
      %v3789 = vunpack.c.l.b16 %v2487
      %v3790 = vunpack.c.l.b16 %v2488
      %v3791 = vunpack.c.l.b16 %v2489
      %v3792 = vunpack.c.l.b16 %v2490
      %v3793 = vunpack.c.l.b16 %v2491
      %v3794 = vunpack.c.l.b16 %v2492
      %v3795 = vunpack.c.l.b16 %v2493
      %v3796 = vunpack.c.l.b16 %v2494
      %v3797 = vunpack.c.l.b16 %v2495
      %v3798 = vunpack.c.l.b16 %v2496
      %v3799 = vunpack.c.l.b16 %v2497
      %v3800 = vunpack.c.l.b16 %v2498
      %v3801 = vunpack.c.l.b16 %v2499
      %v3802 = vunpack.c.l.b16 %v2500
      %v3803 = vunpack.c.l.b16 %v2501
      %v3804 = vunpack.c.l.b16 %v2502
      %v3805 = vunpack.c.l.b16 %v2503
      %v3806 = vunpack.c.l.b16 %v2504
      %v3807 = vunpack.c.l.b16 %v2505
      %v3808 = vunpack.c.l.b16 %v2506
      %v3809 = vunpack.c.l.b16 %v2507
      %v3810 = vunpack.c.l.b16 %v2508
      %v3811 = vunpack.c.l.b16 %v2509
      %v3812 = vunpack.c.l.b16 %v2510
      %v3813 = vunpack.c.l.b16 %v2511
      %v3814 = vunpack.c.l.b16 %v2512
      %v3815 = vunpack.c.l.b16 %v2513
      %v3816 = vunpack.c.l.b16 %v2514
      %v3817 = vunpack.c.l.b16 %v2515
      %v3818 = vunpack.c.l.b16 %v2516
      %v3819 = vunpack.c.l.b16 %v2517
      %v3820 = vunpack.c.l.b16 %v2518
      %v3821 = vunpack.c.l.b16 %v2519
      %v3822 = vunpack.c.l.b16 %v2520
      %v3823 = vunpack.c.l.b16 %v2521
      %v3824 = vunpack.c.l.b16 %v2522
      %v3825 = vunpack.c.l.b16 %v2523
      %v3826 = vunpack.c.l.b16 %v2524
      %v3827 = vunpack.c.l.b16 %v2525
      %v3828 = vunpack.c.l.b16 %v2526
      %v3829 = vunpack.c.l.b16 %v2527
      %v3830 = vunpack.c.l.b16 %v2528
      %v3831 = vunpack.c.l.b16 %v2529
      %v3832 = vunpack.c.l.b16 %v2530
      %v3833 = vunpack.c.l.b16 %v2531
      %v3834 = vunpack.c.l.b16 %v2532
      %v3835 = vunpack.c.l.b16 %v2533
      %v3836 = vunpack.c.l.b16 %v2534
      %v3837 = vunpack.c.l.b16 %v2535
      %v3838 = vunpack.c.l.b16 %v2536
      %v3839 = vunpack.c.l.b16 %v2537
      %v3840 = vunpack.c.l.b16 %v2538
      %v3841 = vunpack.c.l.b16 %v2539
      %v3842 = vunpack.c.l.b16 %v2540
      %v3843 = vunpack.c.l.b16 %v2541
      %v3844 = vunpack.c.l.b16 %v2542
      %v3845 = vunpack.c.l.b16 %v2543
      %v3846 = vunpack.c.l.b16 %v2544
      %v3847 = vunpack.c.l.b16 %v2545
      %v3848 = vunpack.c.l.b16 %v2546
      %v3849 = vunpack.c.l.b16 %v2547
      %v3850 = vunpack.c.l.b16 %v2548
      %v3851 = vunpack.c.l.b16 %v2549
      %v3852 = vunpack.c.l.b16 %v2550
      %v3853 = vunpack.c.l.b16 %v2551
      %v3854 = vunpack.c.l.b16 %v2552
      %v3855 = vunpack.c.l.b16 %v2553
      %v3856 = vunpack.c.l.b16 %v2554
      %v3857 = vunpack.c.l.b16 %v2555
      %v3858 = vunpack.c.l.b16 %v2556
      %v3859 = vunpack.c.l.b16 %v2557
      %v3860 = vunpack.c.l.b16 %v2558
      %v3861 = vunpack.c.l.b16 %v2559
      %v3862 = vunpack.c.l.b16 %v2560
      %v3863 = vunpack.c.l.b16 %v2561
      %v3864 = vunpack.c.l.b16 %v2562
      %v3865 = vunpack.c.l.b16 %v2563
      %v3866 = vunpack.c.l.b16 %v2564
      %v3867 = vunpack.c.l.b16 %v2565
      %v3868 = vunpack.c.l.b16 %v2566
      %v3869 = vunpack.c.l.b16 %v2567
      %v3870 = vunpack.c.l.b16 %v2568
      %v3871 = vunpack.c.l.b16 %v2569
      %v3872 = vunpack.c.l.b16 %v2570
      %v3873 = vunpack.c.l.b16 %v2571
      %v3874 = vunpack.c.l.b16 %v2572
      %v3875 = vunpack.c.l.b16 %v2573
      %v3876 = vunpack.c.l.b16 %v2574
      %v3877 = vunpack.c.l.b16 %v2575
      %v3878 = vunpack.c.l.b16 %v2576
      %v3879 = vunpack.c.l.b16 %v2577
      %v3880 = vunpack.c.l.b16 %v2578
      %v3881 = vunpack.c.l.b16 %v2579
      %v3882 = vunpack.c.l.b16 %v2580
      %v3883 = vunpack.c.l.b16 %v2581
      %v3884 = vunpack.c.l.b16 %v2582
      %v3885 = vunpack.c.l.b16 %v2583
      %v3886 = vunpack.c.l.b16 %v2584
      %v3887 = vunpack.c.l.b16 %v2585
      %v3888 = vunpack.c.l.b16 %v2586
      %v3889 = vunpack.c.l.b16 %v2587
      %v3890 = vunpack.c.l.b16 %v2588
      %v3891 = vunpack.c.l.b16 %v2589
      %v3892 = vunpack.c.l.b16 %v2590
      %v3893 = vunpack.c.l.b16 %v2591
      %v3894 = vunpack.c.l.b16 %v2592
      %v3895 = vunpack.c.l.b16 %v2593
      %v3896 = vunpack.c.l.b16 %v2594
      %v3897 = vunpack.c.l.b16 %v2595
      %v3898 = vunpack.c.l.b16 %v2596
      %v3899 = vunpack.c.l.b16 %v2597
      %v3900 = vunpack.c.l.b16 %v2598
      %v3901 = vunpack.c.l.b16 %v2599
      %v3902 = vunpack.c.l.b16 %v2600
      %v3903 = vunpack.c.l.b16 %v2601
      %v3904 = vunpack.c.l.b16 %v2602
      %v3905 = vunpack.c.l.b16 %v2603
      %v3906 = vunpack.c.l.b16 %v2604
      %v3907 = vunpack.c.l.b16 %v2605
      %v3908 = vunpack.c.l.b16 %v2606
      %v3909 = vunpack.c.l.b16 %v2607
      %v3910 = vunpack.c.l.b16 %v2608
      %v3911 = vunpack.c.l.b16 %v2609
      %v3912 = vunpack.c.l.b16 %v2610
      %v3913 = vunpack.c.l.b16 %v2611
      %v3914 = vunpack.c.l.b16 %v2612
      %v3915 = vunpack.c.l.b16 %v2613
      %v3916 = vunpack.c.l.b16 %v2614
      %v3917 = vunpack.c.l.b16 %v2615
      %v3918 = vunpack.c.l.b16 %v2616
      %v3919 = vunpack.c.l.b16 %v2617
      %v3920 = vunpack.c.l.b16 %v2618
      %v3921 = vunpack.c.l.b16 %v2619
      %v3922 = vunpack.c.l.b16 %v2620
      %v3923 = vunpack.c.l.b16 %v2621
      %v3924 = vunpack.c.l.b16 %v2622
      %v3925 = vunpack.c.l.b16 %v2623
      %v3926 = vunpack.c.l.b16 %v2624
      %v3927 = vunpack.c.l.b16 %v2625
      %v3928 = vunpack.c.l.b16 %v2626
      %v3929 = vunpack.c.l.b16 %v2627
      %v3930 = vunpack.c.l.b16 %v2628
      %v3931 = vunpack.c.l.b16 %v2629
      %v3932 = vunpack.c.l.b16 %v2630
      %v3933 = vunpack.c.l.b16 %v2631
      %v3934 = vunpack.c.l.b16 %v2632
      %v3935 = vunpack.c.l.b16 %v2633
      %v3936 = vunpack.c.l.b16 %v2634
      %v3937 = vunpack.c.l.b16 %v2635
      %v3938 = vunpack.c.l.b16 %v2636
      %v3939 = vpack.c.b16 %v3508, %v3507
      %v3940 = vpack.c.b16 %v3510, %v3509
      %v3941 = vpack.c.b16 %v3512, %v3511
      %v3942 = vpack.c.b16 %v3514, %v3513
      %v3943 = vpack.c.b16 %v3516, %v3515
      %v3944 = vpack.c.b16 %v3518, %v3517
      %v3945 = vpack.c.b16 %v3520, %v3519
      %v3946 = vpack.c.b16 %v3522, %v3521
      %v3947 = vpack.c.b16 %v3524, %v3523
      %v3948 = vpack.c.b16 %v3526, %v3525
      %v3949 = vpack.c.b16 %v3528, %v3527
      %v3950 = vpack.c.b16 %v3530, %v3529
      %v3951 = vpack.c.b16 %v3532, %v3531
      %v3952 = vpack.c.b16 %v3534, %v3533
      %v3953 = vpack.c.b16 %v3536, %v3535
      %v3954 = vpack.c.b16 %v3538, %v3537
      %v3955 = vpack.c.b16 %v3540, %v3539
      %v3956 = vpack.c.b16 %v3542, %v3541
      %v3957 = vpack.c.b16 %v3544, %v3543
      %v3958 = vpack.c.b16 %v3546, %v3545
      %v3959 = vpack.c.b16 %v3548, %v3547
      %v3960 = vpack.c.b16 %v3550, %v3549
      %v3961 = vpack.c.b16 %v3552, %v3551
      %v3962 = vpack.c.b16 %v3554, %v3553
      %v3963 = vpack.c.b16 %v3556, %v3555
      %v3964 = vpack.c.b16 %v3558, %v3557
      %v3965 = vpack.c.b16 %v3560, %v3559
      %v3966 = vpack.c.b16 %v3562, %v3561
      %v3967 = vpack.c.b16 %v3564, %v3563
      %v3968 = vpack.c.b16 %v3566, %v3565
      %v3969 = vpack.c.b16 %v3568, %v3567
      %v3970 = vpack.c.b16 %v3570, %v3569
      %v3971 = vpack.c.b16 %v3572, %v3571
      %v3972 = vpack.c.b16 %v3574, %v3573
      %v3973 = vpack.c.b16 %v3576, %v3575
      %v3974 = vpack.c.b16 %v3578, %v3577
      %v3975 = vpack.c.b16 %v3580, %v3579
      %v3976 = vpack.c.b16 %v3582, %v3581
      %v3977 = vpack.c.b16 %v3584, %v3583
      %v3978 = vpack.c.b16 %v3586, %v3585
      %v3979 = vpack.c.b16 %v3588, %v3587
      %v3980 = vpack.c.b16 %v3590, %v3589
      %v3981 = vpack.c.b16 %v3592, %v3591
      %v3982 = vpack.c.b16 %v3594, %v3593
      %v3983 = vpack.c.b16 %v3596, %v3595
      %v3984 = vpack.c.b16 %v3598, %v3597
      %v3985 = vpack.c.b16 %v3600, %v3599
      %v3986 = vpack.c.b16 %v3602, %v3601
      %v3987 = vpack.c.b16 %v3604, %v3603
      %v3988 = vpack.c.b16 %v3606, %v3605
      %v3989 = vpack.c.b16 %v3608, %v3607
      %v3990 = vpack.c.b16 %v3610, %v3609
      %v3991 = vpack.c.b16 %v3612, %v3611
      %v3992 = vpack.c.b16 %v3614, %v3613
      %v3993 = vpack.c.b16 %v3616, %v3615
      %v3994 = vpack.c.b16 %v3618, %v3617
      %v3995 = vpack.c.b16 %v3620, %v3619
      %v3996 = vpack.c.b16 %v3622, %v3621
      %v3997 = vpack.c.b16 %v3624, %v3623
      %v3998 = vpack.c.b16 %v3626, %v3625
      %v3999 = vpack.c.b16 %v3628, %v3627
      %v4000 = vpack.c.b16 %v3630, %v3629
      %v4001 = vpack.c.b16 %v3632, %v3631
      %v4002 = vpack.c.b16 %v3634, %v3633
      %v4003 = vpack.c.b16 %v3636, %v3635
      %v4004 = vpack.c.b16 %v3638, %v3637
      %v4005 = vpack.c.b16 %v3640, %v3639
      %v4006 = vpack.c.b16 %v3642, %v3641
      %v4007 = vpack.c.b16 %v3644, %v3643
      %v4008 = vpack.c.b16 %v3646, %v3645
      %v4009 = vpack.c.b16 %v3648, %v3647
      %v4010 = vpack.c.b16 %v3650, %v3649
      %v4011 = vpack.c.b16 %v3652, %v3651
      %v4012 = vpack.c.b16 %v3654, %v3653
      %v4013 = vpack.c.b16 %v3656, %v3655
      %v4014 = vpack.c.b16 %v3658, %v3657
      %v4015 = vpack.c.b16 %v3660, %v3659
      %v4016 = vpack.c.b16 %v3662, %v3661
      %v4017 = vpack.c.b16 %v3664, %v3663
      %v4018 = vpack.c.b16 %v3666, %v3665
      %v4019 = vpack.c.b16 %v3668, %v3667
      %v4020 = vpack.c.b16 %v3670, %v3669
      %v4021 = vpack.c.b16 %v3672, %v3671
      %v4022 = vpack.c.b16 %v3674, %v3673
      %v4023 = vpack.c.b16 %v3676, %v3675
      %v4024 = vpack.c.b16 %v3678, %v3677
      %v4025 = vpack.c.b16 %v3680, %v3679
      %v4026 = vpack.c.b16 %v3682, %v3681
      %v4027 = vpack.c.b16 %v3684, %v3683
      %v4028 = vpack.c.b16 %v3686, %v3685
      %v4029 = vpack.c.b16 %v3688, %v3687
      %v4030 = vpack.c.b16 %v3690, %v3689
      %v4031 = vpack.c.b16 %v3692, %v3691
      %v4032 = vpack.c.b16 %v3694, %v3693
      %v4033 = vpack.c.b16 %v3696, %v3695
      %v4034 = vpack.c.b16 %v3698, %v3697
      %v4035 = vpack.c.b16 %v3700, %v3699
      %v4036 = vpack.c.b16 %v3702, %v3701
      %v4037 = vpack.c.b16 %v3704, %v3703
      %v4038 = vpack.c.b16 %v3706, %v3705
      %v4039 = vpack.c.b16 %v3708, %v3707
      %v4040 = vpack.c.b16 %v3710, %v3709
      %v4041 = vpack.c.b16 %v3712, %v3711
      %v4042 = vpack.c.b16 %v3714, %v3713
      %v4043 = vpack.c.b16 %v3716, %v3715
      %v4044 = vpack.c.b16 %v3718, %v3717
      %v4045 = vpack.c.b16 %v3720, %v3719
      %v4046 = vpack.c.b16 %v3722, %v3721
      %v4047 = vpack.c.b16 %v3724, %v3723
      %v4048 = vpack.c.b16 %v3726, %v3725
      %v4049 = vpack.c.b16 %v3728, %v3727
      %v4050 = vpack.c.b16 %v3730, %v3729
      %v4051 = vpack.c.b16 %v3732, %v3731
      %v4052 = vpack.c.b16 %v3734, %v3733
      %v4053 = vpack.c.b16 %v3736, %v3735
      %v4054 = vpack.c.b16 %v3738, %v3737
      %v4055 = vpack.c.b16 %v3740, %v3739
      %v4056 = vpack.c.b16 %v3742, %v3741
      %v4057 = vpack.c.b16 %v3744, %v3743
      %v4058 = vpack.c.b16 %v3746, %v3745
      %v4059 = vpack.c.b16 %v3748, %v3747
      %v4060 = vpack.c.b16 %v3750, %v3749
      %v4061 = vpack.c.b16 %v3752, %v3751
      %v4062 = vpack.c.b16 %v3754, %v3753
      %v4063 = vpack.c.b16 %v3756, %v3755
      %v4064 = vpack.c.b16 %v3758, %v3757
      %v4065 = vpack.c.b16 %v3760, %v3759
      %v4066 = vpack.c.b16 %v3762, %v3761
      %v4067 = vpack.c.b16 %v3764, %v3763
      %v4068 = vpack.c.b16 %v3766, %v3765
      %v4069 = vpack.c.b16 %v3768, %v3767
      %v4070 = vpack.c.b16 %v3770, %v3769
      %v4071 = vpack.c.b16 %v3772, %v3771
      %v4072 = vpack.c.b16 %v3774, %v3773
      %v4073 = vpack.c.b16 %v3776, %v3775
      %v4074 = vpack.c.b16 %v3778, %v3777
      %v4075 = vpack.c.b16 %v3780, %v3779
      %v4076 = vpack.c.b16 %v3782, %v3781
      %v4077 = vpack.c.b16 %v3784, %v3783
      %v4078 = vpack.c.b16 %v3786, %v3785
      %v4079 = vpack.c.b16 %v3788, %v3787
      %v4080 = vpack.c.b16 %v3790, %v3789
      %v4081 = vpack.c.b16 %v3792, %v3791
      %v4082 = vpack.c.b16 %v3794, %v3793
      %v4083 = vpack.c.b16 %v3796, %v3795
      %v4084 = vpack.c.b16 %v3798, %v3797
      %v4085 = vpack.c.b16 %v3800, %v3799
      %v4086 = vpack.c.b16 %v3802, %v3801
      %v4087 = vpack.c.b16 %v3804, %v3803
      %v4088 = vpack.c.b16 %v3806, %v3805
      %v4089 = vpack.c.b16 %v3808, %v3807
      %v4090 = vpack.c.b16 %v3810, %v3809
      %v4091 = vpack.c.b16 %v3812, %v3811
      %v4092 = vpack.c.b16 %v3814, %v3813
      %v4093 = vpack.c.b16 %v3816, %v3815
      %v4094 = vpack.c.b16 %v3818, %v3817
      %v4095 = vpack.c.b16 %v3820, %v3819
      %v4096 = vpack.c.b16 %v3822, %v3821
      %v4097 = vpack.c.b16 %v3824, %v3823
      %v4098 = vpack.c.b16 %v3826, %v3825
      %v4099 = vpack.c.b16 %v3828, %v3827
      %v4100 = vpack.c.b16 %v3830, %v3829
      %v4101 = vpack.c.b16 %v3832, %v3831
      %v4102 = vpack.c.b16 %v3834, %v3833
      %v4103 = vpack.c.b16 %v3836, %v3835
      %v4104 = vpack.c.b16 %v3838, %v3837
      %v4105 = vpack.c.b16 %v3840, %v3839
      %v4106 = vpack.c.b16 %v3842, %v3841
      %v4107 = vpack.c.b16 %v3844, %v3843
      %v4108 = vpack.c.b16 %v3846, %v3845
      %v4109 = vpack.c.b16 %v3848, %v3847
      %v4110 = vpack.c.b16 %v3850, %v3849
      %v4111 = vpack.c.b16 %v3852, %v3851
      %v4112 = vpack.c.b16 %v3854, %v3853
      %v4113 = vpack.c.b16 %v3856, %v3855
      %v4114 = vpack.c.b16 %v3858, %v3857
      %v4115 = vpack.c.b16 %v3860, %v3859
      %v4116 = vpack.c.b16 %v3862, %v3861
      %v4117 = vpack.c.b16 %v3864, %v3863
      %v4118 = vpack.c.b16 %v3866, %v3865
      %v4119 = vpack.c.b16 %v3868, %v3867
      %v4120 = vpack.c.b16 %v3870, %v3869
      %v4121 = vpack.c.b16 %v3872, %v3871
      %v4122 = vpack.c.b16 %v3874, %v3873
      %v4123 = vpack.c.b16 %v3876, %v3875
      %v4124 = vpack.c.b16 %v3878, %v3877
      %v4125 = vpack.c.b16 %v3880, %v3879
      %v4126 = vpack.c.b16 %v3882, %v3881
      %v4127 = vpack.c.b16 %v3884, %v3883
      %v4128 = vpack.c.b16 %v3886, %v3885
      %v4129 = vpack.c.b16 %v3888, %v3887
      %v4130 = vpack.c.b16 %v3890, %v3889
      %v4131 = vpack.c.b16 %v3892, %v3891
      %v4132 = vpack.c.b16 %v3894, %v3893
      %v4133 = vpack.c.b16 %v3896, %v3895
      %v4134 = vpack.c.b16 %v3898, %v3897
      %v4135 = vpack.c.b16 %v3900, %v3899
      %v4136 = vpack.c.b16 %v3902, %v3901
      %v4137 = vpack.c.b16 %v3904, %v3903
      %v4138 = vpack.c.b16 %v3906, %v3905
      %v4139 = vpack.c.b16 %v3908, %v3907
      %v4140 = vpack.c.b16 %v3910, %v3909
      %v4141 = vpack.c.b16 %v3912, %v3911
      %v4142 = vpack.c.b16 %v3914, %v3913
      %v4143 = vpack.c.b16 %v3916, %v3915
      %v4144 = vpack.c.b16 %v3918, %v3917
      %v4145 = vpack.c.b16 %v3920, %v3919
      %v4146 = vpack.c.b16 %v3922, %v3921
      %v4147 = vpack.c.b16 %v3924, %v3923
      %v4148 = vpack.c.b16 %v3926, %v3925
      %v4149 = vpack.c.b16 %v3928, %v3927
      %v4150 = vpack.c.b16 %v3930, %v3929
      %v4151 = vpack.c.b16 %v3932, %v3931
      %v4152 = vpack.c.b16 %v3934, %v3933
      %v4153 = vpack.c.b16 %v3936, %v3935
      %v4154 = vpack.c.b16 %v3938, %v3937
      %4371 = vmatprep.subr.bf16.mxu0 0
      %4372 = vmatpush1.bf16.msra.mxu0 %v3946
      %4373 = vmatprep.subr.bf16.mxu0 0
      %4374 = vmatpush1.bf16.msra.mxu0 %v3945
      %4375 = vmatprep.subr.bf16.mxu0 0
      %4376 = vmatpush1.bf16.msra.mxu0 %v3944
      %4377 = vmatprep.subr.bf16.mxu0 0
      %4378 = vmatpush1.bf16.msra.mxu0 %v3943
      %4379 = vmatprep.subr.bf16.mxu0 0
      %4380 = vmatpush1.bf16.msra.mxu0 %v3942
      %4381 = vmatprep.subr.bf16.mxu0 0
      %4382 = vmatpush1.bf16.msra.mxu0 %v3941
      %4383 = vmatprep.subr.bf16.mxu0 0
      %4384 = vmatpush1.bf16.msra.mxu0 %v3940
      %4385 = vmatprep.subr.bf16.mxu0 0
      %4386 = vmatpush1.bf16.msra.mxu0 %v3939
      %4387 = vmatprep.subr.bf16.mxu0 0
      %4388 = vmatpush2.bf16.msra.mxu0 %v3954
      %4389 = vmatprep.subr.bf16.mxu0 0
      %4390 = vmatpush2.bf16.msra.mxu0 %v3953
      %4391 = vmatprep.subr.bf16.mxu0 0
      %4392 = vmatpush2.bf16.msra.mxu0 %v3952
      %4393 = vmatprep.subr.bf16.mxu0 0
      %4394 = vmatpush2.bf16.msra.mxu0 %v3951
      %4395 = vmatprep.subr.bf16.mxu0 0
      %4396 = vmatpush2.bf16.msra.mxu0 %v3950
      %4397 = vmatprep.subr.bf16.mxu0 0
      %4398 = vmatpush2.bf16.msra.mxu0 %v3949
      %4399 = vmatprep.subr.bf16.mxu0 0
      %4400 = vmatpush2.bf16.msra.mxu0 %v3948
      %4401 = vmatprep.subr.bf16.mxu0 0
      %4402 = vmatpush2.bf16.msra.mxu0 %v3947
      %4403 = vmatprep.mubr.bf16.mxu0 %v2638
      %4404 = vmatmul.mubr.bf16.gmra.mxu0 %v2637
      %v4405 = vpop.f32.mrf.mxu0
      %v4406 = vadd.f32 0.0, %v4405
      %v4407 = vpop.f32.mrf.mxu0
      %v4408 = vpop.f32.mrf.mxu0
      %v4409 = vadd.f32 0.0, %v4408
      %v4410 = vpop.f32.mrf.mxu0
      %4411 = vmatprep.mubr.bf16.mxu0 %v2644
      %4412 = vmatmul.mubr.bf16.gmra.mxu0 %v2643
      %v4413 = vpop.f32.mrf.mxu0
      %v4414 = vadd.f32 0.0, %v4413
      %v4415 = vpop.f32.mrf.mxu0
      %v4416 = vpop.f32.mrf.mxu0
      %v4417 = vadd.f32 0.0, %v4416
      %v4418 = vpop.f32.mrf.mxu0
      %4419 = vmatprep.mubr.bf16.mxu0 %v2668
      %4420 = vmatmul.mubr.bf16.gmra.mxu0 %v2667
      %v4421 = vpop.f32.mrf.mxu0
      %v4422 = vadd.f32 0.0, %v4421
      %v4423 = vpop.f32.mrf.mxu0
      %v4424 = vpop.f32.mrf.mxu0
      %v4425 = vadd.f32 0.0, %v4424
      %v4426 = vpop.f32.mrf.mxu0
      %4427 = vmatprep.mubr.bf16.mxu0 %v2687
      %4428 = vmatmul.mubr.bf16.gmra.mxu0 %v2686
      %v4429 = vpop.f32.mrf.mxu0
      %v4430 = vadd.f32 0.0, %v4429
      %v4431 = vpop.f32.mrf.mxu0
      %v4432 = vpop.f32.mrf.mxu0
      %v4433 = vadd.f32 0.0, %v4432
      %v4434 = vpop.f32.mrf.mxu0
      %4435 = vmatprep.mubr.bf16.mxu0 %v2647
      %4436 = vmatmul.mubr.bf16.gmra.mxu0 %v2646
      %v4437 = vpop.f32.mrf.mxu0
      %v4438 = vadd.f32 0.0, %v4437
      %v4439 = vpop.f32.mrf.mxu0
      %v4440 = vpop.f32.mrf.mxu0
      %v4441 = vadd.f32 0.0, %v4440
      %v4442 = vpop.f32.mrf.mxu0
      %4443 = vmatprep.mubr.bf16.mxu0 %v2653
      %4444 = vmatmul.mubr.bf16.gmra.mxu0 %v2652
      %v4445 = vpop.f32.mrf.mxu0
      %v4446 = vadd.f32 0.0, %v4445
      %v4447 = vpop.f32.mrf.mxu0
      %v4448 = vpop.f32.mrf.mxu0
      %v4449 = vadd.f32 0.0, %v4448
      %v4450 = vpop.f32.mrf.mxu0
      %4451 = vmatprep.mubr.bf16.mxu0 %v2675
      %4452 = vmatmul.mubr.bf16.gmra.mxu0 %v2674
      %v4453 = vpop.f32.mrf.mxu0
      %v4454 = vadd.f32 0.0, %v4453
      %v4455 = vpop.f32.mrf.mxu0
      %v4456 = vpop.f32.mrf.mxu0
      %v4457 = vadd.f32 0.0, %v4456
      %v4458 = vpop.f32.mrf.mxu0
      %4459 = vmatprep.mubr.bf16.mxu0 %v2694
      %4460 = vmatmul.mubr.bf16.gmra.mxu0 %v2693
      %v4461 = vpop.f32.mrf.mxu0
      %v4462 = vadd.f32 0.0, %v4461
      %v4463 = vpop.f32.mrf.mxu0
      %v4464 = vpop.f32.mrf.mxu0
      %v4465 = vadd.f32 0.0, %v4464
      %v4466 = vpop.f32.mrf.mxu0
      %4467 = vmatprep.mubr.bf16.mxu0 %v2656
      %4468 = vmatmul.mubr.bf16.gmra.mxu0 %v2721
      %v4469 = vpop.f32.mrf.mxu0
      %v4470 = vadd.f32 0.0, %v4469
      %v4471 = vpop.f32.mrf.mxu0
      %v4472 = vpop.f32.mrf.mxu0
      %v4473 = vadd.f32 0.0, %v4472
      %v4474 = vpop.f32.mrf.mxu0
      %4475 = vmatprep.mubr.bf16.mxu0 %v2662
      %4476 = vmatmul.mubr.bf16.gmra.mxu0 %v2725
      %v4477 = vpop.f32.mrf.mxu0
      %v4478 = vadd.f32 0.0, %v4477
      %v4479 = vpop.f32.mrf.mxu0
      %v4480 = vpop.f32.mrf.mxu0
      %v4481 = vadd.f32 0.0, %v4480
      %v4482 = vpop.f32.mrf.mxu0
      %4483 = vmatprep.mubr.bf16.mxu0 %v2681
      %4484 = vmatmul.mubr.bf16.gmra.mxu0 %v2738
      %v4485 = vpop.f32.mrf.mxu0
      %v4486 = vadd.f32 0.0, %v4485
      %v4487 = vpop.f32.mrf.mxu0
      %v4488 = vpop.f32.mrf.mxu0
      %v4489 = vadd.f32 0.0, %v4488
      %v4490 = vpop.f32.mrf.mxu0
      %4491 = vmatprep.mubr.bf16.mxu0 %v2700
      %4492 = vmatmul.mubr.bf16.gmra.mxu0 %v2748
      %v4493 = vpop.f32.mrf.mxu0
      %v4494 = vadd.f32 0.0, %v4493
      %v4495 = vpop.f32.mrf.mxu0
      %v4496 = vpop.f32.mrf.mxu0
      %v4497 = vadd.f32 0.0, %v4496
      %v4498 = vpop.f32.mrf.mxu0
      %4499 = vmatprep.mubr.bf16.mxu0 %v2727
      %4500 = vmatmul.mubr.bf16.gmra.mxu0 %v2766
      %v4501 = vpop.f32.mrf.mxu0
      %v4502 = vadd.f32 0.0, %v4501
      %v4503 = vpop.f32.mrf.mxu0
      %v4504 = vpop.f32.mrf.mxu0
      %v4505 = vadd.f32 0.0, %v4504
      %v4506 = vpop.f32.mrf.mxu0
      %4507 = vmatprep.mubr.bf16.mxu0 %v2733
      %4508 = vmatmul.mubr.bf16.gmra.mxu0 %v2770
      %v4509 = vpop.f32.mrf.mxu0
      %v4510 = vadd.f32 0.0, %v4509
      %v4511 = vpop.f32.mrf.mxu0
      %v4512 = vpop.f32.mrf.mxu0
      %v4513 = vadd.f32 0.0, %v4512
      %v4514 = vpop.f32.mrf.mxu0
      %4515 = vmatprep.mubr.bf16.mxu0 %v2743
      %4516 = vmatmul.mubr.bf16.gmra.mxu0 %v2783
      %v4517 = vpop.f32.mrf.mxu0
      %v4518 = vadd.f32 0.0, %v4517
      %v4519 = vpop.f32.mrf.mxu0
      %v4520 = vpop.f32.mrf.mxu0
      %v4521 = vadd.f32 0.0, %v4520
      %v4522 = vpop.f32.mrf.mxu0
      %4523 = vmatprep.mubr.bf16.mxu0 %v2753
      %4524 = vmatmul.mubr.bf16.gmra.mxu0 %v2793
      %v4525 = vpop.f32.mrf.mxu0
      %v4526 = vadd.f32 0.0, %v4525
      %v4527 = vpop.f32.mrf.mxu0
      %v4528 = vpop.f32.mrf.mxu0
      %v4529 = vadd.f32 0.0, %v4528
      %v4530 = vpop.f32.mrf.mxu0
      %4531 = vdwg.mxu0
      %4532 = vmatprep.subr.bf16.mxu0 0
      %4533 = vmatpush1.bf16.msra.mxu0 %v3962
      %4534 = vmatprep.subr.bf16.mxu0 0
      %4535 = vmatpush1.bf16.msra.mxu0 %v3961
      %4536 = vmatprep.subr.bf16.mxu0 0
      %4537 = vmatpush1.bf16.msra.mxu0 %v3960
      %4538 = vmatprep.subr.bf16.mxu0 0
      %4539 = vmatpush1.bf16.msra.mxu0 %v3959
      %4540 = vmatprep.subr.bf16.mxu0 0
      %4541 = vmatpush1.bf16.msra.mxu0 %v3958
      %4542 = vmatprep.subr.bf16.mxu0 0
      %4543 = vmatpush1.bf16.msra.mxu0 %v3957
      %4544 = vmatprep.subr.bf16.mxu0 0
      %4545 = vmatpush1.bf16.msra.mxu0 %v3956
      %4546 = vmatprep.subr.bf16.mxu0 0
      %4547 = vmatpush1.bf16.msra.mxu0 %v3955
      %4548 = vmatprep.subr.bf16.mxu0 0
      %4549 = vmatpush2.bf16.msra.mxu0 %v3970
      %4550 = vmatprep.subr.bf16.mxu0 0
      %4551 = vmatpush2.bf16.msra.mxu0 %v3969
      %4552 = vmatprep.subr.bf16.mxu0 0
      %4553 = vmatpush2.bf16.msra.mxu0 %v3968
      %4554 = vmatprep.subr.bf16.mxu0 0
      %4555 = vmatpush2.bf16.msra.mxu0 %v3967
      %4556 = vmatprep.subr.bf16.mxu0 0
      %4557 = vmatpush2.bf16.msra.mxu0 %v3966
      %4558 = vmatprep.subr.bf16.mxu0 0
      %4559 = vmatpush2.bf16.msra.mxu0 %v3965
      %4560 = vmatprep.subr.bf16.mxu0 0
      %4561 = vmatpush2.bf16.msra.mxu0 %v3964
      %4562 = vmatprep.subr.bf16.mxu0 0
      %4563 = vmatpush2.bf16.msra.mxu0 %v3963
      %4564 = vmatprep.mubr.bf16.mxu0 %v2640
      %4565 = vmatmul.mubr.bf16.gmra.mxu0 %v2639
      %v4566 = vpop.f32.mrf.mxu0
      %v4567 = vadd.f32 %v4406, %v4566
      %v4568 = vpop.f32.mrf.mxu0
      %v4569 = vpop.f32.mrf.mxu0
      %v4570 = vadd.f32 %v4409, %v4569
      %v4571 = vpop.f32.mrf.mxu0
      %4572 = vmatprep.mubr.bf16.mxu0 %v2664
      %4573 = vmatmul.mubr.bf16.gmra.mxu0 %v2645
      %v4574 = vpop.f32.mrf.mxu0
      %v4575 = vadd.f32 %v4414, %v4574
      %v4576 = vpop.f32.mrf.mxu0
      %v4577 = vpop.f32.mrf.mxu0
      %v4578 = vadd.f32 %v4417, %v4577
      %v4579 = vpop.f32.mrf.mxu0
      %4580 = vmatprep.mubr.bf16.mxu0 %v2683
      %4581 = vmatmul.mubr.bf16.gmra.mxu0 %v2669
      %v4582 = vpop.f32.mrf.mxu0
      %v4583 = vadd.f32 %v4422, %v4582
      %v4584 = vpop.f32.mrf.mxu0
      %v4585 = vpop.f32.mrf.mxu0
      %v4586 = vadd.f32 %v4425, %v4585
      %v4587 = vpop.f32.mrf.mxu0
      %4588 = vmatprep.mubr.bf16.mxu0 %v2702
      %4589 = vmatmul.mubr.bf16.gmra.mxu0 %v2688
      %v4590 = vpop.f32.mrf.mxu0
      %v4591 = vadd.f32 %v4430, %v4590
      %v4592 = vpop.f32.mrf.mxu0
      %v4593 = vpop.f32.mrf.mxu0
      %v4594 = vadd.f32 %v4433, %v4593
      %v4595 = vpop.f32.mrf.mxu0
      %4596 = vmatprep.mubr.bf16.mxu0 %v2649
      %4597 = vmatmul.mubr.bf16.gmra.mxu0 %v2648
      %v4598 = vpop.f32.mrf.mxu0
      %v4599 = vadd.f32 %v4438, %v4598
      %v4600 = vpop.f32.mrf.mxu0
      %v4601 = vpop.f32.mrf.mxu0
      %v4602 = vadd.f32 %v4441, %v4601
      %v4603 = vpop.f32.mrf.mxu0
      %4604 = vmatprep.mubr.bf16.mxu0 %v2671
      %4605 = vmatmul.mubr.bf16.gmra.mxu0 %v2670
      %v4606 = vpop.f32.mrf.mxu0
      %v4607 = vadd.f32 %v4446, %v4606
      %v4608 = vpop.f32.mrf.mxu0
      %v4609 = vpop.f32.mrf.mxu0
      %v4610 = vadd.f32 %v4449, %v4609
      %v4611 = vpop.f32.mrf.mxu0
      %4612 = vmatprep.mubr.bf16.mxu0 %v2690
      %4613 = vmatmul.mubr.bf16.gmra.mxu0 %v2689
      %v4614 = vpop.f32.mrf.mxu0
      %v4615 = vadd.f32 %v4454, %v4614
      %v4616 = vpop.f32.mrf.mxu0
      %v4617 = vpop.f32.mrf.mxu0
      %v4618 = vadd.f32 %v4457, %v4617
      %v4619 = vpop.f32.mrf.mxu0
      %4620 = vmatprep.mubr.bf16.mxu0 %v2709
      %4621 = vmatmul.mubr.bf16.gmra.mxu0 %v2708
      %v4622 = vpop.f32.mrf.mxu0
      %v4623 = vadd.f32 %v4462, %v4622
      %v4624 = vpop.f32.mrf.mxu0
      %v4625 = vpop.f32.mrf.mxu0
      %v4626 = vadd.f32 %v4465, %v4625
      %v4627 = vpop.f32.mrf.mxu0
      %4628 = vmatprep.mubr.bf16.mxu0 %v2723
      %4629 = vmatmul.mubr.bf16.gmra.mxu0 %v2722
      %v4630 = vpop.f32.mrf.mxu0
      %v4631 = vadd.f32 %v4470, %v4630
      %v4632 = vpop.f32.mrf.mxu0
      %v4633 = vpop.f32.mrf.mxu0
      %v4634 = vadd.f32 %v4473, %v4633
      %v4635 = vpop.f32.mrf.mxu0
      %4636 = vmatprep.mubr.bf16.mxu0 %v2736
      %4637 = vmatmul.mubr.bf16.gmra.mxu0 %v2735
      %v4638 = vpop.f32.mrf.mxu0
      %v4639 = vadd.f32 %v4478, %v4638
      %v4640 = vpop.f32.mrf.mxu0
      %v4641 = vpop.f32.mrf.mxu0
      %v4642 = vadd.f32 %v4481, %v4641
      %v4643 = vpop.f32.mrf.mxu0
      %4644 = vmatprep.mubr.bf16.mxu0 %v2746
      %4645 = vmatmul.mubr.bf16.gmra.mxu0 %v2745
      %v4646 = vpop.f32.mrf.mxu0
      %v4647 = vadd.f32 %v4486, %v4646
      %v4648 = vpop.f32.mrf.mxu0
      %v4649 = vpop.f32.mrf.mxu0
      %v4650 = vadd.f32 %v4489, %v4649
      %v4651 = vpop.f32.mrf.mxu0
      %4652 = vmatprep.mubr.bf16.mxu0 %v2757
      %4653 = vmatmul.mubr.bf16.gmra.mxu0 %v2756
      %v4654 = vpop.f32.mrf.mxu0
      %v4655 = vadd.f32 %v4494, %v4654
      %v4656 = vpop.f32.mrf.mxu0
      %v4657 = vpop.f32.mrf.mxu0
      %v4658 = vadd.f32 %v4497, %v4657
      %v4659 = vpop.f32.mrf.mxu0
      %4660 = vmatprep.mubr.bf16.mxu0 %v2768
      %4661 = vmatmul.mubr.bf16.gmra.mxu0 %v2767
      %v4662 = vpop.f32.mrf.mxu0
      %v4663 = vadd.f32 %v4502, %v4662
      %v4664 = vpop.f32.mrf.mxu0
      %v4665 = vpop.f32.mrf.mxu0
      %v4666 = vadd.f32 %v4505, %v4665
      %v4667 = vpop.f32.mrf.mxu0
      %4668 = vmatprep.mubr.bf16.mxu0 %v2781
      %4669 = vmatmul.mubr.bf16.gmra.mxu0 %v2780
      %v4670 = vpop.f32.mrf.mxu0
      %v4671 = vadd.f32 %v4510, %v4670
      %v4672 = vpop.f32.mrf.mxu0
      %v4673 = vpop.f32.mrf.mxu0
      %v4674 = vadd.f32 %v4513, %v4673
      %v4675 = vpop.f32.mrf.mxu0
      %4676 = vmatprep.mubr.bf16.mxu0 %v2791
      %4677 = vmatmul.mubr.bf16.gmra.mxu0 %v2790
      %v4678 = vpop.f32.mrf.mxu0
      %v4679 = vadd.f32 %v4518, %v4678
      %v4680 = vpop.f32.mrf.mxu0
      %v4681 = vpop.f32.mrf.mxu0
      %v4682 = vadd.f32 %v4521, %v4681
      %v4683 = vpop.f32.mrf.mxu0
      %4684 = vmatprep.mubr.bf16.mxu0 %v2802
      %4685 = vmatmul.mubr.bf16.gmra.mxu0 %v2801
      %v4686 = vpop.f32.mrf.mxu0
      %v4687 = vadd.f32 %v4526, %v4686
      %v4688 = vpop.f32.mrf.mxu0
      %v4689 = vpop.f32.mrf.mxu0
      %v4690 = vadd.f32 %v4529, %v4689
      %v4691 = vpop.f32.mrf.mxu0
      %4692 = vdwg.mxu0
      %4693 = vmatprep.subr.bf16.mxu0 0
      %4694 = vmatpush1.bf16.msra.mxu0 %v3978
      %4695 = vmatprep.subr.bf16.mxu0 0
      %4696 = vmatpush1.bf16.msra.mxu0 %v3977
      %4697 = vmatprep.subr.bf16.mxu0 0
      %4698 = vmatpush1.bf16.msra.mxu0 %v3976
      %4699 = vmatprep.subr.bf16.mxu0 0
      %4700 = vmatpush1.bf16.msra.mxu0 %v3975
      %4701 = vmatprep.subr.bf16.mxu0 0
      %4702 = vmatpush1.bf16.msra.mxu0 %v3974
      %4703 = vmatprep.subr.bf16.mxu0 0
      %4704 = vmatpush1.bf16.msra.mxu0 %v3973
      %4705 = vmatprep.subr.bf16.mxu0 0
      %4706 = vmatpush1.bf16.msra.mxu0 %v3972
      %4707 = vmatprep.subr.bf16.mxu0 0
      %4708 = vmatpush1.bf16.msra.mxu0 %v3971
      %4709 = vmatprep.subr.bf16.mxu0 0
      %4710 = vmatpush2.bf16.msra.mxu0 %v3986
      %4711 = vmatprep.subr.bf16.mxu0 0
      %4712 = vmatpush2.bf16.msra.mxu0 %v3985
      %4713 = vmatprep.subr.bf16.mxu0 0
      %4714 = vmatpush2.bf16.msra.mxu0 %v3984
      %4715 = vmatprep.subr.bf16.mxu0 0
      %4716 = vmatpush2.bf16.msra.mxu0 %v3983
      %4717 = vmatprep.subr.bf16.mxu0 0
      %4718 = vmatpush2.bf16.msra.mxu0 %v3982
      %4719 = vmatprep.subr.bf16.mxu0 0
      %4720 = vmatpush2.bf16.msra.mxu0 %v3981
      %4721 = vmatprep.subr.bf16.mxu0 0
      %4722 = vmatpush2.bf16.msra.mxu0 %v3980
      %4723 = vmatprep.subr.bf16.mxu0 0
      %4724 = vmatpush2.bf16.msra.mxu0 %v3979
      %4725 = vmatprep.mubr.bf16.mxu0 %v2642
      %4726 = vmatmul.mubr.bf16.gmra.mxu0 %v2641
      %v4727 = vpop.f32.mrf.mxu0
      %v4728 = vadd.f32 %v4567, %v4727
      %v4729 = vpop.f32.mrf.mxu0
      %v4730 = vpop.f32.mrf.mxu0
      %v4731 = vadd.f32 %v4570, %v4730
      %v4732 = vpop.f32.mrf.mxu0
      %4733 = vmatprep.mubr.bf16.mxu0 %v2666
      %4734 = vmatmul.mubr.bf16.gmra.mxu0 %v2665
      %v4735 = vpop.f32.mrf.mxu0
      %v4736 = vadd.f32 %v4575, %v4735
      %v4737 = vpop.f32.mrf.mxu0
      %v4738 = vpop.f32.mrf.mxu0
      %v4739 = vadd.f32 %v4578, %v4738
      %v4740 = vpop.f32.mrf.mxu0
      %4741 = vmatprep.mubr.bf16.mxu0 %v2685
      %4742 = vmatmul.mubr.bf16.gmra.mxu0 %v2684
      %v4743 = vpop.f32.mrf.mxu0
      %v4744 = vadd.f32 %v4583, %v4743
      %v4745 = vpop.f32.mrf.mxu0
      %v4746 = vpop.f32.mrf.mxu0
      %v4747 = vadd.f32 %v4586, %v4746
      %v4748 = vpop.f32.mrf.mxu0
      %4749 = vmatprep.mubr.bf16.mxu0 %v2704
      %4750 = vmatmul.mubr.bf16.gmra.mxu0 %v2703
      %v4751 = vpop.f32.mrf.mxu0
      %v4752 = vadd.f32 %v4591, %v4751
      %v4753 = vpop.f32.mrf.mxu0
      %v4754 = vpop.f32.mrf.mxu0
      %v4755 = vadd.f32 %v4594, %v4754
      %v4756 = vpop.f32.mrf.mxu0
      %4757 = vmatprep.mubr.bf16.mxu0 %v2651
      %4758 = vmatmul.mubr.bf16.gmra.mxu0 %v2650
      %v4759 = vpop.f32.mrf.mxu0
      %v4760 = vadd.f32 %v4599, %v4759
      %v4761 = vpop.f32.mrf.mxu0
      %v4762 = vpop.f32.mrf.mxu0
      %v4763 = vadd.f32 %v4602, %v4762
      %v4764 = vpop.f32.mrf.mxu0
      %4765 = vmatprep.mubr.bf16.mxu0 %v2673
      %4766 = vmatmul.mubr.bf16.gmra.mxu0 %v2672
      %v4767 = vpop.f32.mrf.mxu0
      %v4768 = vadd.f32 %v4607, %v4767
      %v4769 = vpop.f32.mrf.mxu0
      %v4770 = vpop.f32.mrf.mxu0
      %v4771 = vadd.f32 %v4610, %v4770
      %v4772 = vpop.f32.mrf.mxu0
      %4773 = vmatprep.mubr.bf16.mxu0 %v2692
      %4774 = vmatmul.mubr.bf16.gmra.mxu0 %v2691
      %v4775 = vpop.f32.mrf.mxu0
      %v4776 = vadd.f32 %v4615, %v4775
      %v4777 = vpop.f32.mrf.mxu0
      %v4778 = vpop.f32.mrf.mxu0
      %v4779 = vadd.f32 %v4618, %v4778
      %v4780 = vpop.f32.mrf.mxu0
      %4781 = vmatprep.mubr.bf16.mxu0 %v2711
      %4782 = vmatmul.mubr.bf16.gmra.mxu0 %v2710
      %v4783 = vpop.f32.mrf.mxu0
      %v4784 = vadd.f32 %v4623, %v4783
      %v4785 = vpop.f32.mrf.mxu0
      %v4786 = vpop.f32.mrf.mxu0
      %v4787 = vadd.f32 %v4626, %v4786
      %v4788 = vpop.f32.mrf.mxu0
      %4789 = vmatprep.mubr.bf16.mxu0 %v2724
      %4790 = vmatmul.mubr.bf16.gmra.mxu0 %v2659
      %v4791 = vpop.f32.mrf.mxu0
      %v4792 = vadd.f32 %v4631, %v4791
      %v4793 = vpop.f32.mrf.mxu0
      %v4794 = vpop.f32.mrf.mxu0
      %v4795 = vadd.f32 %v4634, %v4794
      %v4796 = vpop.f32.mrf.mxu0
      %4797 = vmatprep.mubr.bf16.mxu0 %v2737
      %4798 = vmatmul.mubr.bf16.gmra.mxu0 %v2678
      %v4799 = vpop.f32.mrf.mxu0
      %v4800 = vadd.f32 %v4639, %v4799
      %v4801 = vpop.f32.mrf.mxu0
      %v4802 = vpop.f32.mrf.mxu0
      %v4803 = vadd.f32 %v4642, %v4802
      %v4804 = vpop.f32.mrf.mxu0
      %4805 = vmatprep.mubr.bf16.mxu0 %v2747
      %4806 = vmatmul.mubr.bf16.gmra.mxu0 %v2697
      %v4807 = vpop.f32.mrf.mxu0
      %v4808 = vadd.f32 %v4647, %v4807
      %v4809 = vpop.f32.mrf.mxu0
      %v4810 = vpop.f32.mrf.mxu0
      %v4811 = vadd.f32 %v4650, %v4810
      %v4812 = vpop.f32.mrf.mxu0
      %4813 = vmatprep.mubr.bf16.mxu0 %v2758
      %4814 = vmatmul.mubr.bf16.gmra.mxu0 %v2716
      %v4815 = vpop.f32.mrf.mxu0
      %v4816 = vadd.f32 %v4655, %v4815
      %v4817 = vpop.f32.mrf.mxu0
      %v4818 = vpop.f32.mrf.mxu0
      %v4819 = vadd.f32 %v4658, %v4818
      %v4820 = vpop.f32.mrf.mxu0
      %4821 = vmatprep.mubr.bf16.mxu0 %v2769
      %4822 = vmatmul.mubr.bf16.gmra.mxu0 %v2730
      %v4823 = vpop.f32.mrf.mxu0
      %v4824 = vadd.f32 %v4663, %v4823
      %v4825 = vpop.f32.mrf.mxu0
      %v4826 = vpop.f32.mrf.mxu0
      %v4827 = vadd.f32 %v4666, %v4826
      %v4828 = vpop.f32.mrf.mxu0
      %4829 = vmatprep.mubr.bf16.mxu0 %v2782
      %4830 = vmatmul.mubr.bf16.gmra.mxu0 %v2740
      %v4831 = vpop.f32.mrf.mxu0
      %v4832 = vadd.f32 %v4671, %v4831
      %v4833 = vpop.f32.mrf.mxu0
      %v4834 = vpop.f32.mrf.mxu0
      %v4835 = vadd.f32 %v4674, %v4834
      %v4836 = vpop.f32.mrf.mxu0
      %4837 = vmatprep.mubr.bf16.mxu0 %v2792
      %4838 = vmatmul.mubr.bf16.gmra.mxu0 %v2750
      %v4839 = vpop.f32.mrf.mxu0
      %v4840 = vadd.f32 %v4679, %v4839
      %v4841 = vpop.f32.mrf.mxu0
      %v4842 = vpop.f32.mrf.mxu0
      %v4843 = vadd.f32 %v4682, %v4842
      %v4844 = vpop.f32.mrf.mxu0
      %4845 = vmatprep.mubr.bf16.mxu0 %v2803
      %4846 = vmatmul.mubr.bf16.gmra.mxu0 %v2761
      %v4847 = vpop.f32.mrf.mxu0
      %v4848 = vadd.f32 %v4687, %v4847
      %v4849 = vpop.f32.mrf.mxu0
      %v4850 = vpop.f32.mrf.mxu0
      %v4851 = vadd.f32 %v4690, %v4850
      %v4852 = vpop.f32.mrf.mxu0
      %4853 = vdwg.mxu0
      %4854 = vmatprep.subr.bf16.mxu0 0
      %4855 = vmatpush1.bf16.msra.mxu0 %v3994
      %4856 = vmatprep.subr.bf16.mxu0 0
      %4857 = vmatpush1.bf16.msra.mxu0 %v3993
      %4858 = vmatprep.subr.bf16.mxu0 0
      %4859 = vmatpush1.bf16.msra.mxu0 %v3992
      %4860 = vmatprep.subr.bf16.mxu0 0
      %4861 = vmatpush1.bf16.msra.mxu0 %v3991
      %4862 = vmatprep.subr.bf16.mxu0 0
      %4863 = vmatpush1.bf16.msra.mxu0 %v3990
      %4864 = vmatprep.subr.bf16.mxu0 0
      %4865 = vmatpush1.bf16.msra.mxu0 %v3989
      %4866 = vmatprep.subr.bf16.mxu0 0
      %4867 = vmatpush1.bf16.msra.mxu0 %v3988
      %4868 = vmatprep.subr.bf16.mxu0 0
      %4869 = vmatpush1.bf16.msra.mxu0 %v3987
      %4870 = vmatprep.subr.bf16.mxu0 0
      %4871 = vmatpush2.bf16.msra.mxu0 %v4002
      %4872 = vmatprep.subr.bf16.mxu0 0
      %4873 = vmatpush2.bf16.msra.mxu0 %v4001
      %4874 = vmatprep.subr.bf16.mxu0 0
      %4875 = vmatpush2.bf16.msra.mxu0 %v4000
      %4876 = vmatprep.subr.bf16.mxu0 0
      %4877 = vmatpush2.bf16.msra.mxu0 %v3999
      %4878 = vmatprep.subr.bf16.mxu0 0
      %4879 = vmatpush2.bf16.msra.mxu0 %v3998
      %4880 = vmatprep.subr.bf16.mxu0 0
      %4881 = vmatpush2.bf16.msra.mxu0 %v3997
      %4882 = vmatprep.subr.bf16.mxu0 0
      %4883 = vmatpush2.bf16.msra.mxu0 %v3996
      %4884 = vmatprep.subr.bf16.mxu0 0
      %4885 = vmatpush2.bf16.msra.mxu0 %v3995
      %4886 = vmatprep.mubr.bf16.mxu0 %v2644
      %4887 = vmatmul.mubr.bf16.gmra.mxu0 %v2643
      %v4888 = vpop.f32.mrf.mxu0
      %v4889 = vadd.f32 %v4728, %v4888
      %v4890 = vpop.f32.mrf.mxu0
      %v4891 = vpop.f32.mrf.mxu0
      %v4892 = vadd.f32 %v4731, %v4891
      %v4893 = vpop.f32.mrf.mxu0
      %4894 = vmatprep.mubr.bf16.mxu0 %v2668
      %4895 = vmatmul.mubr.bf16.gmra.mxu0 %v2667
      %v4896 = vpop.f32.mrf.mxu0
      %v4897 = vadd.f32 %v4736, %v4896
      %v4898 = vpop.f32.mrf.mxu0
      %v4899 = vpop.f32.mrf.mxu0
      %v4900 = vadd.f32 %v4739, %v4899
      %v4901 = vpop.f32.mrf.mxu0
      %4902 = vmatprep.mubr.bf16.mxu0 %v2687
      %4903 = vmatmul.mubr.bf16.gmra.mxu0 %v2686
      %v4904 = vpop.f32.mrf.mxu0
      %v4905 = vadd.f32 %v4744, %v4904
      %v4906 = vpop.f32.mrf.mxu0
      %v4907 = vpop.f32.mrf.mxu0
      %v4908 = vadd.f32 %v4747, %v4907
      %v4909 = vpop.f32.mrf.mxu0
      %4910 = vmatprep.mubr.bf16.mxu0 %v2706
      %4911 = vmatmul.mubr.bf16.gmra.mxu0 %v2705
      %v4912 = vpop.f32.mrf.mxu0
      %v4913 = vadd.f32 %v4752, %v4912
      %v4914 = vpop.f32.mrf.mxu0
      %v4915 = vpop.f32.mrf.mxu0
      %v4916 = vadd.f32 %v4755, %v4915
      %v4917 = vpop.f32.mrf.mxu0
      %4918 = vmatprep.mubr.bf16.mxu0 %v2653
      %4919 = vmatmul.mubr.bf16.gmra.mxu0 %v2652
      %v4920 = vpop.f32.mrf.mxu0
      %v4921 = vadd.f32 %v4760, %v4920
      %v4922 = vpop.f32.mrf.mxu0
      %v4923 = vpop.f32.mrf.mxu0
      %v4924 = vadd.f32 %v4763, %v4923
      %v4925 = vpop.f32.mrf.mxu0
      %4926 = vmatprep.mubr.bf16.mxu0 %v2675
      %4927 = vmatmul.mubr.bf16.gmra.mxu0 %v2674
      %v4928 = vpop.f32.mrf.mxu0
      %v4929 = vadd.f32 %v4768, %v4928
      %v4930 = vpop.f32.mrf.mxu0
      %v4931 = vpop.f32.mrf.mxu0
      %v4932 = vadd.f32 %v4771, %v4931
      %v4933 = vpop.f32.mrf.mxu0
      %4934 = vmatprep.mubr.bf16.mxu0 %v2694
      %4935 = vmatmul.mubr.bf16.gmra.mxu0 %v2693
      %v4936 = vpop.f32.mrf.mxu0
      %v4937 = vadd.f32 %v4776, %v4936
      %v4938 = vpop.f32.mrf.mxu0
      %v4939 = vpop.f32.mrf.mxu0
      %v4940 = vadd.f32 %v4779, %v4939
      %v4941 = vpop.f32.mrf.mxu0
      %4942 = vmatprep.mubr.bf16.mxu0 %v2713
      %4943 = vmatmul.mubr.bf16.gmra.mxu0 %v2712
      %v4944 = vpop.f32.mrf.mxu0
      %v4945 = vadd.f32 %v4784, %v4944
      %v4946 = vpop.f32.mrf.mxu0
      %v4947 = vpop.f32.mrf.mxu0
      %v4948 = vadd.f32 %v4787, %v4947
      %v4949 = vpop.f32.mrf.mxu0
      %4950 = vmatprep.mubr.bf16.mxu0 %v2662
      %4951 = vmatmul.mubr.bf16.gmra.mxu0 %v2725
      %v4952 = vpop.f32.mrf.mxu0
      %v4953 = vadd.f32 %v4792, %v4952
      %v4954 = vpop.f32.mrf.mxu0
      %v4955 = vpop.f32.mrf.mxu0
      %v4956 = vadd.f32 %v4795, %v4955
      %v4957 = vpop.f32.mrf.mxu0
      %4958 = vmatprep.mubr.bf16.mxu0 %v2681
      %4959 = vmatmul.mubr.bf16.gmra.mxu0 %v2738
      %v4960 = vpop.f32.mrf.mxu0
      %v4961 = vadd.f32 %v4800, %v4960
      %v4962 = vpop.f32.mrf.mxu0
      %v4963 = vpop.f32.mrf.mxu0
      %v4964 = vadd.f32 %v4803, %v4963
      %v4965 = vpop.f32.mrf.mxu0
      %4966 = vmatprep.mubr.bf16.mxu0 %v2700
      %4967 = vmatmul.mubr.bf16.gmra.mxu0 %v2748
      %v4968 = vpop.f32.mrf.mxu0
      %v4969 = vadd.f32 %v4808, %v4968
      %v4970 = vpop.f32.mrf.mxu0
      %v4971 = vpop.f32.mrf.mxu0
      %v4972 = vadd.f32 %v4811, %v4971
      %v4973 = vpop.f32.mrf.mxu0
      %4974 = vmatprep.mubr.bf16.mxu0 %v2719
      %4975 = vmatmul.mubr.bf16.gmra.mxu0 %v2759
      %v4976 = vpop.f32.mrf.mxu0
      %v4977 = vadd.f32 %v4816, %v4976
      %v4978 = vpop.f32.mrf.mxu0
      %v4979 = vpop.f32.mrf.mxu0
      %v4980 = vadd.f32 %v4819, %v4979
      %v4981 = vpop.f32.mrf.mxu0
      %4982 = vmatprep.mubr.bf16.mxu0 %v2733
      %4983 = vmatmul.mubr.bf16.gmra.mxu0 %v2770
      %v4984 = vpop.f32.mrf.mxu0
      %v4985 = vadd.f32 %v4824, %v4984
      %v4986 = vpop.f32.mrf.mxu0
      %v4987 = vpop.f32.mrf.mxu0
      %v4988 = vadd.f32 %v4827, %v4987
      %v4989 = vpop.f32.mrf.mxu0
      %4990 = vmatprep.mubr.bf16.mxu0 %v2743
      %4991 = vmatmul.mubr.bf16.gmra.mxu0 %v2783
      %v4992 = vpop.f32.mrf.mxu0
      %v4993 = vadd.f32 %v4832, %v4992
      %v4994 = vpop.f32.mrf.mxu0
      %v4995 = vpop.f32.mrf.mxu0
      %v4996 = vadd.f32 %v4835, %v4995
      %v4997 = vpop.f32.mrf.mxu0
      %4998 = vmatprep.mubr.bf16.mxu0 %v2753
      %4999 = vmatmul.mubr.bf16.gmra.mxu0 %v2793
      %v5000 = vpop.f32.mrf.mxu0
      %v5001 = vadd.f32 %v4840, %v5000
      %v5002 = vpop.f32.mrf.mxu0
      %v5003 = vpop.f32.mrf.mxu0
      %v5004 = vadd.f32 %v4843, %v5003
      %v5005 = vpop.f32.mrf.mxu0
      %5006 = vmatprep.mubr.bf16.mxu0 %v2764
      %5007 = vmatmul.mubr.bf16.gmra.mxu0 %v2804
      %v5008 = vpop.f32.mrf.mxu0
      %v5009 = vadd.f32 %v4848, %v5008
      %v5010 = vpop.f32.mrf.mxu0
      %v5011 = vpop.f32.mrf.mxu0
      %v5012 = vadd.f32 %v4851, %v5011
      %v5013 = vpop.f32.mrf.mxu0
      %5014 = vdwg.mxu0
      %5015 = vmatprep.subr.bf16.mxu0 0
      %5016 = vmatpush1.bf16.msra.mxu0 %v4010
      %5017 = vmatprep.subr.bf16.mxu0 0
      %5018 = vmatpush1.bf16.msra.mxu0 %v4009
      %5019 = vmatprep.subr.bf16.mxu0 0
      %5020 = vmatpush1.bf16.msra.mxu0 %v4008
      %5021 = vmatprep.subr.bf16.mxu0 0
      %5022 = vmatpush1.bf16.msra.mxu0 %v4007
      %5023 = vmatprep.subr.bf16.mxu0 0
      %5024 = vmatpush1.bf16.msra.mxu0 %v4006
      %5025 = vmatprep.subr.bf16.mxu0 0
      %5026 = vmatpush1.bf16.msra.mxu0 %v4005
      %5027 = vmatprep.subr.bf16.mxu0 0
      %5028 = vmatpush1.bf16.msra.mxu0 %v4004
      %5029 = vmatprep.subr.bf16.mxu0 0
      %5030 = vmatpush1.bf16.msra.mxu0 %v4003
      %5031 = vmatprep.subr.bf16.mxu0 0
      %5032 = vmatpush2.bf16.msra.mxu0 %v4018
      %5033 = vmatprep.subr.bf16.mxu0 0
      %5034 = vmatpush2.bf16.msra.mxu0 %v4017
      %5035 = vmatprep.subr.bf16.mxu0 0
      %5036 = vmatpush2.bf16.msra.mxu0 %v4016
      %5037 = vmatprep.subr.bf16.mxu0 0
      %5038 = vmatpush2.bf16.msra.mxu0 %v4015
      %5039 = vmatprep.subr.bf16.mxu0 0
      %5040 = vmatpush2.bf16.msra.mxu0 %v4014
      %5041 = vmatprep.subr.bf16.mxu0 0
      %5042 = vmatpush2.bf16.msra.mxu0 %v4013
      %5043 = vmatprep.subr.bf16.mxu0 0
      %5044 = vmatpush2.bf16.msra.mxu0 %v4012
      %5045 = vmatprep.subr.bf16.mxu0 0
      %5046 = vmatpush2.bf16.msra.mxu0 %v4011
      %5047 = vmatprep.mubr.bf16.mxu0 %v2646
      %5048 = vmatmul.mubr.bf16.gmra.mxu0 %v2645
      %v5049 = vpop.f32.mrf.mxu0
      %v5050 = vadd.f32 %v4889, %v5049
      %v5051 = vpop.f32.mrf.mxu0
      %v5052 = vpop.f32.mrf.mxu0
      %v5053 = vadd.f32 %v4892, %v5052
      %v5054 = vpop.f32.mrf.mxu0
      %5055 = vmatprep.mubr.bf16.mxu0 %v2652
      %5056 = vmatmul.mubr.bf16.gmra.mxu0 %v2669
      %v5057 = vpop.f32.mrf.mxu0
      %v5058 = vadd.f32 %v4897, %v5057
      %v5059 = vpop.f32.mrf.mxu0
      %v5060 = vpop.f32.mrf.mxu0
      %v5061 = vadd.f32 %v4900, %v5060
      %v5062 = vpop.f32.mrf.mxu0
      %5063 = vmatprep.mubr.bf16.mxu0 %v2674
      %5064 = vmatmul.mubr.bf16.gmra.mxu0 %v2688
      %v5065 = vpop.f32.mrf.mxu0
      %v5066 = vadd.f32 %v4905, %v5065
      %v5067 = vpop.f32.mrf.mxu0
      %v5068 = vpop.f32.mrf.mxu0
      %v5069 = vadd.f32 %v4908, %v5068
      %v5070 = vpop.f32.mrf.mxu0
      %5071 = vmatprep.mubr.bf16.mxu0 %v2693
      %5072 = vmatmul.mubr.bf16.gmra.mxu0 %v2707
      %v5073 = vpop.f32.mrf.mxu0
      %v5074 = vadd.f32 %v4913, %v5073
      %v5075 = vpop.f32.mrf.mxu0
      %v5076 = vpop.f32.mrf.mxu0
      %v5077 = vadd.f32 %v4916, %v5076
      %v5078 = vpop.f32.mrf.mxu0
      %5079 = vmatprep.mubr.bf16.mxu0 %v2721
      %5080 = vmatmul.mubr.bf16.gmra.mxu0 %v2670
      %v5081 = vpop.f32.mrf.mxu0
      %v5082 = vadd.f32 %v4921, %v5081
      %v5083 = vpop.f32.mrf.mxu0
      %v5084 = vpop.f32.mrf.mxu0
      %v5085 = vadd.f32 %v4924, %v5084
      %v5086 = vpop.f32.mrf.mxu0
      %5087 = vmatprep.mubr.bf16.mxu0 %v2725
      %5088 = vmatmul.mubr.bf16.gmra.mxu0 %v2689
      %v5089 = vpop.f32.mrf.mxu0
      %v5090 = vadd.f32 %v4929, %v5089
      %v5091 = vpop.f32.mrf.mxu0
      %v5092 = vpop.f32.mrf.mxu0
      %v5093 = vadd.f32 %v4932, %v5092
      %v5094 = vpop.f32.mrf.mxu0
      %5095 = vmatprep.mubr.bf16.mxu0 %v2738
      %5096 = vmatmul.mubr.bf16.gmra.mxu0 %v2708
      %v5097 = vpop.f32.mrf.mxu0
      %v5098 = vadd.f32 %v4937, %v5097
      %v5099 = vpop.f32.mrf.mxu0
      %v5100 = vpop.f32.mrf.mxu0
      %v5101 = vadd.f32 %v4940, %v5100
      %v5102 = vpop.f32.mrf.mxu0
      %5103 = vmatprep.mubr.bf16.mxu0 %v2748
      %5104 = vmatmul.mubr.bf16.gmra.mxu0 %v2755
      %v5105 = vpop.f32.mrf.mxu0
      %v5106 = vadd.f32 %v4945, %v5105
      %v5107 = vpop.f32.mrf.mxu0
      %v5108 = vpop.f32.mrf.mxu0
      %v5109 = vadd.f32 %v4948, %v5108
      %v5110 = vpop.f32.mrf.mxu0
      %5111 = vmatprep.mubr.bf16.mxu0 %v2766
      %5112 = vmatmul.mubr.bf16.gmra.mxu0 %v2735
      %v5113 = vpop.f32.mrf.mxu0
      %v5114 = vadd.f32 %v4953, %v5113
      %v5115 = vpop.f32.mrf.mxu0
      %v5116 = vpop.f32.mrf.mxu0
      %v5117 = vadd.f32 %v4956, %v5116
      %v5118 = vpop.f32.mrf.mxu0
      %5119 = vmatprep.mubr.bf16.mxu0 %v2770
      %5120 = vmatmul.mubr.bf16.gmra.mxu0 %v2745
      %v5121 = vpop.f32.mrf.mxu0
      %v5122 = vadd.f32 %v4961, %v5121
      %v5123 = vpop.f32.mrf.mxu0
      %v5124 = vpop.f32.mrf.mxu0
      %v5125 = vadd.f32 %v4964, %v5124
      %v5126 = vpop.f32.mrf.mxu0
      %5127 = vmatprep.mubr.bf16.mxu0 %v2783
      %5128 = vmatmul.mubr.bf16.gmra.mxu0 %v2756
      %v5129 = vpop.f32.mrf.mxu0
      %v5130 = vadd.f32 %v4969, %v5129
      %v5131 = vpop.f32.mrf.mxu0
      %v5132 = vpop.f32.mrf.mxu0
      %v5133 = vadd.f32 %v4972, %v5132
      %v5134 = vpop.f32.mrf.mxu0
      %5135 = vmatprep.mubr.bf16.mxu0 %v2793
      %5136 = vmatmul.mubr.bf16.gmra.mxu0 %v2800
      %v5137 = vpop.f32.mrf.mxu0
      %v5138 = vadd.f32 %v4977, %v5137
      %v5139 = vpop.f32.mrf.mxu0
      %v5140 = vpop.f32.mrf.mxu0
      %v5141 = vadd.f32 %v4980, %v5140
      %v5142 = vpop.f32.mrf.mxu0
      %5143 = vmatprep.mubr.bf16.mxu0 %v2811
      %5144 = vmatmul.mubr.bf16.gmra.mxu0 %v2780
      %v5145 = vpop.f32.mrf.mxu0
      %v5146 = vadd.f32 %v4985, %v5145
      %v5147 = vpop.f32.mrf.mxu0
      %v5148 = vpop.f32.mrf.mxu0
      %v5149 = vadd.f32 %v4988, %v5148
      %v5150 = vpop.f32.mrf.mxu0
      %5151 = vmatprep.mubr.bf16.mxu0 %v2815
      %5152 = vmatmul.mubr.bf16.gmra.mxu0 %v2790
      %v5153 = vpop.f32.mrf.mxu0
      %v5154 = vadd.f32 %v4993, %v5153
      %v5155 = vpop.f32.mrf.mxu0
      %v5156 = vpop.f32.mrf.mxu0
      %v5157 = vadd.f32 %v4996, %v5156
      %v5158 = vpop.f32.mrf.mxu0
      %5159 = vmatprep.mubr.bf16.mxu0 %v2828
      %5160 = vmatmul.mubr.bf16.gmra.mxu0 %v2801
      %v5161 = vpop.f32.mrf.mxu0
      %v5162 = vadd.f32 %v5001, %v5161
      %v5163 = vpop.f32.mrf.mxu0
      %v5164 = vpop.f32.mrf.mxu0
      %v5165 = vadd.f32 %v5004, %v5164
      %v5166 = vpop.f32.mrf.mxu0
      %5167 = vmatprep.mubr.bf16.mxu0 %v2838
      %5168 = vmatmul.mubr.bf16.gmra.mxu0 %v2845
      %v5169 = vpop.f32.mrf.mxu0
      %v5170 = vadd.f32 %v5009, %v5169
      %v5171 = vpop.f32.mrf.mxu0
      %v5172 = vpop.f32.mrf.mxu0
      %v5173 = vadd.f32 %v5012, %v5172
      %v5174 = vpop.f32.mrf.mxu0
      %5175 = vdwg.mxu0
      %5176 = vmatprep.subr.bf16.mxu0 0
      %5177 = vmatpush1.bf16.msra.mxu0 %v4026
      %5178 = vmatprep.subr.bf16.mxu0 0
      %5179 = vmatpush1.bf16.msra.mxu0 %v4025
      %5180 = vmatprep.subr.bf16.mxu0 0
      %5181 = vmatpush1.bf16.msra.mxu0 %v4024
      %5182 = vmatprep.subr.bf16.mxu0 0
      %5183 = vmatpush1.bf16.msra.mxu0 %v4023
      %5184 = vmatprep.subr.bf16.mxu0 0
      %5185 = vmatpush1.bf16.msra.mxu0 %v4022
      %5186 = vmatprep.subr.bf16.mxu0 0
      %5187 = vmatpush1.bf16.msra.mxu0 %v4021
      %5188 = vmatprep.subr.bf16.mxu0 0
      %5189 = vmatpush1.bf16.msra.mxu0 %v4020
      %5190 = vmatprep.subr.bf16.mxu0 0
      %5191 = vmatpush1.bf16.msra.mxu0 %v4019
      %5192 = vmatprep.subr.bf16.mxu0 0
      %5193 = vmatpush2.bf16.msra.mxu0 %v4034
      %5194 = vmatprep.subr.bf16.mxu0 0
      %5195 = vmatpush2.bf16.msra.mxu0 %v4033
      %5196 = vmatprep.subr.bf16.mxu0 0
      %5197 = vmatpush2.bf16.msra.mxu0 %v4032
      %5198 = vmatprep.subr.bf16.mxu0 0
      %5199 = vmatpush2.bf16.msra.mxu0 %v4031
      %5200 = vmatprep.subr.bf16.mxu0 0
      %5201 = vmatpush2.bf16.msra.mxu0 %v4030
      %5202 = vmatprep.subr.bf16.mxu0 0
      %5203 = vmatpush2.bf16.msra.mxu0 %v4029
      %5204 = vmatprep.subr.bf16.mxu0 0
      %5205 = vmatpush2.bf16.msra.mxu0 %v4028
      %5206 = vmatprep.subr.bf16.mxu0 0
      %5207 = vmatpush2.bf16.msra.mxu0 %v4027
      %5208 = vmatprep.mubr.bf16.mxu0 %v2648
      %5209 = vmatmul.mubr.bf16.gmra.mxu0 %v2647
      %v5210 = vpop.f32.mrf.mxu0
      %v5211 = vadd.f32 %v5050, %v5210
      %v5212 = vpop.f32.mrf.mxu0
      %v5213 = vpop.f32.mrf.mxu0
      %v5214 = vadd.f32 %v5053, %v5213
      %v5215 = vpop.f32.mrf.mxu0
      %5216 = vmatprep.mubr.bf16.mxu0 %v2670
      %5217 = vmatmul.mubr.bf16.gmra.mxu0 %v2653
      %v5218 = vpop.f32.mrf.mxu0
      %v5219 = vadd.f32 %v5058, %v5218
      %v5220 = vpop.f32.mrf.mxu0
      %v5221 = vpop.f32.mrf.mxu0
      %v5222 = vadd.f32 %v5061, %v5221
      %v5223 = vpop.f32.mrf.mxu0
      %5224 = vmatprep.mubr.bf16.mxu0 %v2689
      %5225 = vmatmul.mubr.bf16.gmra.mxu0 %v2675
      %v5226 = vpop.f32.mrf.mxu0
      %v5227 = vadd.f32 %v5066, %v5226
      %v5228 = vpop.f32.mrf.mxu0
      %v5229 = vpop.f32.mrf.mxu0
      %v5230 = vadd.f32 %v5069, %v5229
      %v5231 = vpop.f32.mrf.mxu0
      %5232 = vmatprep.mubr.bf16.mxu0 %v2708
      %5233 = vmatmul.mubr.bf16.gmra.mxu0 %v2694
      %v5234 = vpop.f32.mrf.mxu0
      %v5235 = vadd.f32 %v5074, %v5234
      %v5236 = vpop.f32.mrf.mxu0
      %v5237 = vpop.f32.mrf.mxu0
      %v5238 = vadd.f32 %v5077, %v5237
      %v5239 = vpop.f32.mrf.mxu0
      %5240 = vmatprep.mubr.bf16.mxu0 %v2722
      %5241 = vmatmul.mubr.bf16.gmra.mxu0 %v2656
      %v5242 = vpop.f32.mrf.mxu0
      %v5243 = vadd.f32 %v5082, %v5242
      %v5244 = vpop.f32.mrf.mxu0
      %v5245 = vpop.f32.mrf.mxu0
      %v5246 = vadd.f32 %v5085, %v5245
      %v5247 = vpop.f32.mrf.mxu0
      %5248 = vmatprep.mubr.bf16.mxu0 %v2735
      %5249 = vmatmul.mubr.bf16.gmra.mxu0 %v2662
      %v5250 = vpop.f32.mrf.mxu0
      %v5251 = vadd.f32 %v5090, %v5250
      %v5252 = vpop.f32.mrf.mxu0
      %v5253 = vpop.f32.mrf.mxu0
      %v5254 = vadd.f32 %v5093, %v5253
      %v5255 = vpop.f32.mrf.mxu0
      %5256 = vmatprep.mubr.bf16.mxu0 %v2745
      %5257 = vmatmul.mubr.bf16.gmra.mxu0 %v2681
      %v5258 = vpop.f32.mrf.mxu0
      %v5259 = vadd.f32 %v5098, %v5258
      %v5260 = vpop.f32.mrf.mxu0
      %v5261 = vpop.f32.mrf.mxu0
      %v5262 = vadd.f32 %v5101, %v5261
      %v5263 = vpop.f32.mrf.mxu0
      %5264 = vmatprep.mubr.bf16.mxu0 %v2756
      %5265 = vmatmul.mubr.bf16.gmra.mxu0 %v2700
      %v5266 = vpop.f32.mrf.mxu0
      %v5267 = vadd.f32 %v5106, %v5266
      %v5268 = vpop.f32.mrf.mxu0
      %v5269 = vpop.f32.mrf.mxu0
      %v5270 = vadd.f32 %v5109, %v5269
      %v5271 = vpop.f32.mrf.mxu0
      %5272 = vmatprep.mubr.bf16.mxu0 %v2767
      %5273 = vmatmul.mubr.bf16.gmra.mxu0 %v2727
      %v5274 = vpop.f32.mrf.mxu0
      %v5275 = vadd.f32 %v5114, %v5274
      %v5276 = vpop.f32.mrf.mxu0
      %v5277 = vpop.f32.mrf.mxu0
      %v5278 = vadd.f32 %v5117, %v5277
      %v5279 = vpop.f32.mrf.mxu0
      %5280 = vmatprep.mubr.bf16.mxu0 %v2780
      %5281 = vmatmul.mubr.bf16.gmra.mxu0 %v2733
      %v5282 = vpop.f32.mrf.mxu0
      %v5283 = vadd.f32 %v5122, %v5282
      %v5284 = vpop.f32.mrf.mxu0
      %v5285 = vpop.f32.mrf.mxu0
      %v5286 = vadd.f32 %v5125, %v5285
      %v5287 = vpop.f32.mrf.mxu0
      %5288 = vmatprep.mubr.bf16.mxu0 %v2790
      %5289 = vmatmul.mubr.bf16.gmra.mxu0 %v2743
      %v5290 = vpop.f32.mrf.mxu0
      %v5291 = vadd.f32 %v5130, %v5290
      %v5292 = vpop.f32.mrf.mxu0
      %v5293 = vpop.f32.mrf.mxu0
      %v5294 = vadd.f32 %v5133, %v5293
      %v5295 = vpop.f32.mrf.mxu0
      %5296 = vmatprep.mubr.bf16.mxu0 %v2801
      %5297 = vmatmul.mubr.bf16.gmra.mxu0 %v2753
      %v5298 = vpop.f32.mrf.mxu0
      %v5299 = vadd.f32 %v5138, %v5298
      %v5300 = vpop.f32.mrf.mxu0
      %v5301 = vpop.f32.mrf.mxu0
      %v5302 = vadd.f32 %v5141, %v5301
      %v5303 = vpop.f32.mrf.mxu0
      %5304 = vmatprep.mubr.bf16.mxu0 %v2812
      %5305 = vmatmul.mubr.bf16.gmra.mxu0 %v2772
      %v5306 = vpop.f32.mrf.mxu0
      %v5307 = vadd.f32 %v5146, %v5306
      %v5308 = vpop.f32.mrf.mxu0
      %v5309 = vpop.f32.mrf.mxu0
      %v5310 = vadd.f32 %v5149, %v5309
      %v5311 = vpop.f32.mrf.mxu0
      %5312 = vmatprep.mubr.bf16.mxu0 %v2825
      %5313 = vmatmul.mubr.bf16.gmra.mxu0 %v2778
      %v5314 = vpop.f32.mrf.mxu0
      %v5315 = vadd.f32 %v5154, %v5314
      %v5316 = vpop.f32.mrf.mxu0
      %v5317 = vpop.f32.mrf.mxu0
      %v5318 = vadd.f32 %v5157, %v5317
      %v5319 = vpop.f32.mrf.mxu0
      %5320 = vmatprep.mubr.bf16.mxu0 %v2835
      %5321 = vmatmul.mubr.bf16.gmra.mxu0 %v2788
      %v5322 = vpop.f32.mrf.mxu0
      %v5323 = vadd.f32 %v5162, %v5322
      %v5324 = vpop.f32.mrf.mxu0
      %v5325 = vpop.f32.mrf.mxu0
      %v5326 = vadd.f32 %v5165, %v5325
      %v5327 = vpop.f32.mrf.mxu0
      %5328 = vmatprep.mubr.bf16.mxu0 %v2846
      %5329 = vmatmul.mubr.bf16.gmra.mxu0 %v2798
      %v5330 = vpop.f32.mrf.mxu0
      %v5331 = vadd.f32 %v5170, %v5330
      %v5332 = vpop.f32.mrf.mxu0
      %v5333 = vpop.f32.mrf.mxu0
      %v5334 = vadd.f32 %v5173, %v5333
      %v5335 = vpop.f32.mrf.mxu0
      %5336 = vdwg.mxu0
      %5337 = vmatprep.subr.bf16.mxu0 0
      %5338 = vmatpush1.bf16.msra.mxu0 %v4042
      %5339 = vmatprep.subr.bf16.mxu0 0
      %5340 = vmatpush1.bf16.msra.mxu0 %v4041
      %5341 = vmatprep.subr.bf16.mxu0 0
      %5342 = vmatpush1.bf16.msra.mxu0 %v4040
      %5343 = vmatprep.subr.bf16.mxu0 0
      %5344 = vmatpush1.bf16.msra.mxu0 %v4039
      %5345 = vmatprep.subr.bf16.mxu0 0
      %5346 = vmatpush1.bf16.msra.mxu0 %v4038
      %5347 = vmatprep.subr.bf16.mxu0 0
      %5348 = vmatpush1.bf16.msra.mxu0 %v4037
      %5349 = vmatprep.subr.bf16.mxu0 0
      %5350 = vmatpush1.bf16.msra.mxu0 %v4036
      %5351 = vmatprep.subr.bf16.mxu0 0
      %5352 = vmatpush1.bf16.msra.mxu0 %v4035
      %5353 = vmatprep.subr.bf16.mxu0 0
      %5354 = vmatpush2.bf16.msra.mxu0 %v4050
      %5355 = vmatprep.subr.bf16.mxu0 0
      %5356 = vmatpush2.bf16.msra.mxu0 %v4049
      %5357 = vmatprep.subr.bf16.mxu0 0
      %5358 = vmatpush2.bf16.msra.mxu0 %v4048
      %5359 = vmatprep.subr.bf16.mxu0 0
      %5360 = vmatpush2.bf16.msra.mxu0 %v4047
      %5361 = vmatprep.subr.bf16.mxu0 0
      %5362 = vmatpush2.bf16.msra.mxu0 %v4046
      %5363 = vmatprep.subr.bf16.mxu0 0
      %5364 = vmatpush2.bf16.msra.mxu0 %v4045
      %5365 = vmatprep.subr.bf16.mxu0 0
      %5366 = vmatpush2.bf16.msra.mxu0 %v4044
      %5367 = vmatprep.subr.bf16.mxu0 0
      %5368 = vmatpush2.bf16.msra.mxu0 %v4043
      %5369 = vmatprep.mubr.bf16.mxu0 %v2650
      %5370 = vmatmul.mubr.bf16.gmra.mxu0 %v2649
      %v5371 = vpop.f32.mrf.mxu0
      %v5372 = vadd.f32 %v5211, %v5371
      %v5373 = vpop.f32.mrf.mxu0
      %v5374 = vpop.f32.mrf.mxu0
      %v5375 = vadd.f32 %v5214, %v5374
      %v5376 = vpop.f32.mrf.mxu0
      %5377 = vmatprep.mubr.bf16.mxu0 %v2672
      %5378 = vmatmul.mubr.bf16.gmra.mxu0 %v2671
      %v5379 = vpop.f32.mrf.mxu0
      %v5380 = vadd.f32 %v5219, %v5379
      %v5381 = vpop.f32.mrf.mxu0
      %v5382 = vpop.f32.mrf.mxu0
      %v5383 = vadd.f32 %v5222, %v5382
      %v5384 = vpop.f32.mrf.mxu0
      %5385 = vmatprep.mubr.bf16.mxu0 %v2691
      %5386 = vmatmul.mubr.bf16.gmra.mxu0 %v2690
      %v5387 = vpop.f32.mrf.mxu0
      %v5388 = vadd.f32 %v5227, %v5387
      %v5389 = vpop.f32.mrf.mxu0
      %v5390 = vpop.f32.mrf.mxu0
      %v5391 = vadd.f32 %v5230, %v5390
      %v5392 = vpop.f32.mrf.mxu0
      %5393 = vmatprep.mubr.bf16.mxu0 %v2710
      %5394 = vmatmul.mubr.bf16.gmra.mxu0 %v2709
      %v5395 = vpop.f32.mrf.mxu0
      %v5396 = vadd.f32 %v5235, %v5395
      %v5397 = vpop.f32.mrf.mxu0
      %v5398 = vpop.f32.mrf.mxu0
      %v5399 = vadd.f32 %v5238, %v5398
      %v5400 = vpop.f32.mrf.mxu0
      %5401 = vmatprep.mubr.bf16.mxu0 %v2659
      %5402 = vmatmul.mubr.bf16.gmra.mxu0 %v2723
      %v5403 = vpop.f32.mrf.mxu0
      %v5404 = vadd.f32 %v5243, %v5403
      %v5405 = vpop.f32.mrf.mxu0
      %v5406 = vpop.f32.mrf.mxu0
      %v5407 = vadd.f32 %v5246, %v5406
      %v5408 = vpop.f32.mrf.mxu0
      %5409 = vmatprep.mubr.bf16.mxu0 %v2678
      %5410 = vmatmul.mubr.bf16.gmra.mxu0 %v2736
      %v5411 = vpop.f32.mrf.mxu0
      %v5412 = vadd.f32 %v5251, %v5411
      %v5413 = vpop.f32.mrf.mxu0
      %v5414 = vpop.f32.mrf.mxu0
      %v5415 = vadd.f32 %v5254, %v5414
      %v5416 = vpop.f32.mrf.mxu0
      %5417 = vmatprep.mubr.bf16.mxu0 %v2697
      %5418 = vmatmul.mubr.bf16.gmra.mxu0 %v2746
      %v5419 = vpop.f32.mrf.mxu0
      %v5420 = vadd.f32 %v5259, %v5419
      %v5421 = vpop.f32.mrf.mxu0
      %v5422 = vpop.f32.mrf.mxu0
      %v5423 = vadd.f32 %v5262, %v5422
      %v5424 = vpop.f32.mrf.mxu0
      %5425 = vmatprep.mubr.bf16.mxu0 %v2716
      %5426 = vmatmul.mubr.bf16.gmra.mxu0 %v2757
      %v5427 = vpop.f32.mrf.mxu0
      %v5428 = vadd.f32 %v5267, %v5427
      %v5429 = vpop.f32.mrf.mxu0
      %v5430 = vpop.f32.mrf.mxu0
      %v5431 = vadd.f32 %v5270, %v5430
      %v5432 = vpop.f32.mrf.mxu0
      %5433 = vmatprep.mubr.bf16.mxu0 %v2730
      %5434 = vmatmul.mubr.bf16.gmra.mxu0 %v2768
      %v5435 = vpop.f32.mrf.mxu0
      %v5436 = vadd.f32 %v5275, %v5435
      %v5437 = vpop.f32.mrf.mxu0
      %v5438 = vpop.f32.mrf.mxu0
      %v5439 = vadd.f32 %v5278, %v5438
      %v5440 = vpop.f32.mrf.mxu0
      %5441 = vmatprep.mubr.bf16.mxu0 %v2740
      %5442 = vmatmul.mubr.bf16.gmra.mxu0 %v2781
      %v5443 = vpop.f32.mrf.mxu0
      %v5444 = vadd.f32 %v5283, %v5443
      %v5445 = vpop.f32.mrf.mxu0
      %v5446 = vpop.f32.mrf.mxu0
      %v5447 = vadd.f32 %v5286, %v5446
      %v5448 = vpop.f32.mrf.mxu0
      %5449 = vmatprep.mubr.bf16.mxu0 %v2750
      %5450 = vmatmul.mubr.bf16.gmra.mxu0 %v2791
      %v5451 = vpop.f32.mrf.mxu0
      %v5452 = vadd.f32 %v5291, %v5451
      %v5453 = vpop.f32.mrf.mxu0
      %v5454 = vpop.f32.mrf.mxu0
      %v5455 = vadd.f32 %v5294, %v5454
      %v5456 = vpop.f32.mrf.mxu0
      %5457 = vmatprep.mubr.bf16.mxu0 %v2761
      %5458 = vmatmul.mubr.bf16.gmra.mxu0 %v2802
      %v5459 = vpop.f32.mrf.mxu0
      %v5460 = vadd.f32 %v5299, %v5459
      %v5461 = vpop.f32.mrf.mxu0
      %v5462 = vpop.f32.mrf.mxu0
      %v5463 = vadd.f32 %v5302, %v5462
      %v5464 = vpop.f32.mrf.mxu0
      %5465 = vmatprep.mubr.bf16.mxu0 %v2775
      %5466 = vmatmul.mubr.bf16.gmra.mxu0 %v2813
      %v5467 = vpop.f32.mrf.mxu0
      %v5468 = vadd.f32 %v5307, %v5467
      %v5469 = vpop.f32.mrf.mxu0
      %v5470 = vpop.f32.mrf.mxu0
      %v5471 = vadd.f32 %v5310, %v5470
      %v5472 = vpop.f32.mrf.mxu0
      %5473 = vmatprep.mubr.bf16.mxu0 %v2785
      %5474 = vmatmul.mubr.bf16.gmra.mxu0 %v2826
      %v5475 = vpop.f32.mrf.mxu0
      %v5476 = vadd.f32 %v5315, %v5475
      %v5477 = vpop.f32.mrf.mxu0
      %v5478 = vpop.f32.mrf.mxu0
      %v5479 = vadd.f32 %v5318, %v5478
      %v5480 = vpop.f32.mrf.mxu0
      %5481 = vmatprep.mubr.bf16.mxu0 %v2795
      %5482 = vmatmul.mubr.bf16.gmra.mxu0 %v2836
      %v5483 = vpop.f32.mrf.mxu0
      %v5484 = vadd.f32 %v5323, %v5483
      %v5485 = vpop.f32.mrf.mxu0
      %v5486 = vpop.f32.mrf.mxu0
      %v5487 = vadd.f32 %v5326, %v5486
      %v5488 = vpop.f32.mrf.mxu0
      %5489 = vmatprep.mubr.bf16.mxu0 %v2806
      %5490 = vmatmul.mubr.bf16.gmra.mxu0 %v2847
      %v5491 = vpop.f32.mrf.mxu0
      %v5492 = vadd.f32 %v5331, %v5491
      %v5493 = vpop.f32.mrf.mxu0
      %v5494 = vpop.f32.mrf.mxu0
      %v5495 = vadd.f32 %v5334, %v5494
      %v5496 = vpop.f32.mrf.mxu0
      %5497 = vdwg.mxu0
      %5498 = vmatprep.subr.bf16.mxu0 0
      %5499 = vmatpush1.bf16.msra.mxu0 %v4058
      %5500 = vmatprep.subr.bf16.mxu0 0
      %5501 = vmatpush1.bf16.msra.mxu0 %v4057
      %5502 = vmatprep.subr.bf16.mxu0 0
      %5503 = vmatpush1.bf16.msra.mxu0 %v4056
      %5504 = vmatprep.subr.bf16.mxu0 0
      %5505 = vmatpush1.bf16.msra.mxu0 %v4055
      %5506 = vmatprep.subr.bf16.mxu0 0
      %5507 = vmatpush1.bf16.msra.mxu0 %v4054
      %5508 = vmatprep.subr.bf16.mxu0 0
      %5509 = vmatpush1.bf16.msra.mxu0 %v4053
      %5510 = vmatprep.subr.bf16.mxu0 0
      %5511 = vmatpush1.bf16.msra.mxu0 %v4052
      %5512 = vmatprep.subr.bf16.mxu0 0
      %5513 = vmatpush1.bf16.msra.mxu0 %v4051
      %5514 = vmatprep.subr.bf16.mxu0 0
      %5515 = vmatpush2.bf16.msra.mxu0 %v4066
      %5516 = vmatprep.subr.bf16.mxu0 0
      %5517 = vmatpush2.bf16.msra.mxu0 %v4065
      %5518 = vmatprep.subr.bf16.mxu0 0
      %5519 = vmatpush2.bf16.msra.mxu0 %v4064
      %5520 = vmatprep.subr.bf16.mxu0 0
      %5521 = vmatpush2.bf16.msra.mxu0 %v4063
      %5522 = vmatprep.subr.bf16.mxu0 0
      %5523 = vmatpush2.bf16.msra.mxu0 %v4062
      %5524 = vmatprep.subr.bf16.mxu0 0
      %5525 = vmatpush2.bf16.msra.mxu0 %v4061
      %5526 = vmatprep.subr.bf16.mxu0 0
      %5527 = vmatpush2.bf16.msra.mxu0 %v4060
      %5528 = vmatprep.subr.bf16.mxu0 0
      %5529 = vmatpush2.bf16.msra.mxu0 %v4059
      %5530 = vmatprep.mubr.bf16.mxu0 %v2652
      %5531 = vmatmul.mubr.bf16.gmra.mxu0 %v2651
      %v5532 = vpop.f32.mrf.mxu0
      %v5533 = vadd.f32 %v5372, %v5532
      %v5534 = vpop.f32.mrf.mxu0
      %v5535 = vpop.f32.mrf.mxu0
      %v5536 = vadd.f32 %v5375, %v5535
      %v5537 = vpop.f32.mrf.mxu0
      %5538 = vmatprep.mubr.bf16.mxu0 %v2674
      %5539 = vmatmul.mubr.bf16.gmra.mxu0 %v2673
      %v5540 = vpop.f32.mrf.mxu0
      %v5541 = vadd.f32 %v5380, %v5540
      %v5542 = vpop.f32.mrf.mxu0
      %v5543 = vpop.f32.mrf.mxu0
      %v5544 = vadd.f32 %v5383, %v5543
      %v5545 = vpop.f32.mrf.mxu0
      %5546 = vmatprep.mubr.bf16.mxu0 %v2693
      %5547 = vmatmul.mubr.bf16.gmra.mxu0 %v2692
      %v5548 = vpop.f32.mrf.mxu0
      %v5549 = vadd.f32 %v5388, %v5548
      %v5550 = vpop.f32.mrf.mxu0
      %v5551 = vpop.f32.mrf.mxu0
      %v5552 = vadd.f32 %v5391, %v5551
      %v5553 = vpop.f32.mrf.mxu0
      %5554 = vmatprep.mubr.bf16.mxu0 %v2712
      %5555 = vmatmul.mubr.bf16.gmra.mxu0 %v2711
      %v5556 = vpop.f32.mrf.mxu0
      %v5557 = vadd.f32 %v5396, %v5556
      %v5558 = vpop.f32.mrf.mxu0
      %v5559 = vpop.f32.mrf.mxu0
      %v5560 = vadd.f32 %v5399, %v5559
      %v5561 = vpop.f32.mrf.mxu0
      %5562 = vmatprep.mubr.bf16.mxu0 %v2725
      %5563 = vmatmul.mubr.bf16.gmra.mxu0 %v2724
      %v5564 = vpop.f32.mrf.mxu0
      %v5565 = vadd.f32 %v5404, %v5564
      %v5566 = vpop.f32.mrf.mxu0
      %v5567 = vpop.f32.mrf.mxu0
      %v5568 = vadd.f32 %v5407, %v5567
      %v5569 = vpop.f32.mrf.mxu0
      %5570 = vmatprep.mubr.bf16.mxu0 %v2738
      %5571 = vmatmul.mubr.bf16.gmra.mxu0 %v2737
      %v5572 = vpop.f32.mrf.mxu0
      %v5573 = vadd.f32 %v5412, %v5572
      %v5574 = vpop.f32.mrf.mxu0
      %v5575 = vpop.f32.mrf.mxu0
      %v5576 = vadd.f32 %v5415, %v5575
      %v5577 = vpop.f32.mrf.mxu0
      %5578 = vmatprep.mubr.bf16.mxu0 %v2748
      %5579 = vmatmul.mubr.bf16.gmra.mxu0 %v2747
      %v5580 = vpop.f32.mrf.mxu0
      %v5581 = vadd.f32 %v5420, %v5580
      %v5582 = vpop.f32.mrf.mxu0
      %v5583 = vpop.f32.mrf.mxu0
      %v5584 = vadd.f32 %v5423, %v5583
      %v5585 = vpop.f32.mrf.mxu0
      %5586 = vmatprep.mubr.bf16.mxu0 %v2759
      %5587 = vmatmul.mubr.bf16.gmra.mxu0 %v2758
      %v5588 = vpop.f32.mrf.mxu0
      %v5589 = vadd.f32 %v5428, %v5588
      %v5590 = vpop.f32.mrf.mxu0
      %v5591 = vpop.f32.mrf.mxu0
      %v5592 = vadd.f32 %v5431, %v5591
      %v5593 = vpop.f32.mrf.mxu0
      %5594 = vmatprep.mubr.bf16.mxu0 %v2770
      %5595 = vmatmul.mubr.bf16.gmra.mxu0 %v2769
      %v5596 = vpop.f32.mrf.mxu0
      %v5597 = vadd.f32 %v5436, %v5596
      %v5598 = vpop.f32.mrf.mxu0
      %v5599 = vpop.f32.mrf.mxu0
      %v5600 = vadd.f32 %v5439, %v5599
      %v5601 = vpop.f32.mrf.mxu0
      %5602 = vmatprep.mubr.bf16.mxu0 %v2783
      %5603 = vmatmul.mubr.bf16.gmra.mxu0 %v2782
      %v5604 = vpop.f32.mrf.mxu0
      %v5605 = vadd.f32 %v5444, %v5604
      %v5606 = vpop.f32.mrf.mxu0
      %v5607 = vpop.f32.mrf.mxu0
      %v5608 = vadd.f32 %v5447, %v5607
      %v5609 = vpop.f32.mrf.mxu0
      %5610 = vmatprep.mubr.bf16.mxu0 %v2793
      %5611 = vmatmul.mubr.bf16.gmra.mxu0 %v2792
      %v5612 = vpop.f32.mrf.mxu0
      %v5613 = vadd.f32 %v5452, %v5612
      %v5614 = vpop.f32.mrf.mxu0
      %v5615 = vpop.f32.mrf.mxu0
      %v5616 = vadd.f32 %v5455, %v5615
      %v5617 = vpop.f32.mrf.mxu0
      %5618 = vmatprep.mubr.bf16.mxu0 %v2804
      %5619 = vmatmul.mubr.bf16.gmra.mxu0 %v2803
      %v5620 = vpop.f32.mrf.mxu0
      %v5621 = vadd.f32 %v5460, %v5620
      %v5622 = vpop.f32.mrf.mxu0
      %v5623 = vpop.f32.mrf.mxu0
      %v5624 = vadd.f32 %v5463, %v5623
      %v5625 = vpop.f32.mrf.mxu0
      %5626 = vmatprep.mubr.bf16.mxu0 %v2815
      %5627 = vmatmul.mubr.bf16.gmra.mxu0 %v2814
      %v5628 = vpop.f32.mrf.mxu0
      %v5629 = vadd.f32 %v5468, %v5628
      %v5630 = vpop.f32.mrf.mxu0
      %v5631 = vpop.f32.mrf.mxu0
      %v5632 = vadd.f32 %v5471, %v5631
      %v5633 = vpop.f32.mrf.mxu0
      %5634 = vmatprep.mubr.bf16.mxu0 %v2828
      %5635 = vmatmul.mubr.bf16.gmra.mxu0 %v2827
      %v5636 = vpop.f32.mrf.mxu0
      %v5637 = vadd.f32 %v5476, %v5636
      %v5638 = vpop.f32.mrf.mxu0
      %v5639 = vpop.f32.mrf.mxu0
      %v5640 = vadd.f32 %v5479, %v5639
      %v5641 = vpop.f32.mrf.mxu0
      %5642 = vmatprep.mubr.bf16.mxu0 %v2838
      %5643 = vmatmul.mubr.bf16.gmra.mxu0 %v2837
      %v5644 = vpop.f32.mrf.mxu0
      %v5645 = vadd.f32 %v5484, %v5644
      %v5646 = vpop.f32.mrf.mxu0
      %v5647 = vpop.f32.mrf.mxu0
      %v5648 = vadd.f32 %v5487, %v5647
      %v5649 = vpop.f32.mrf.mxu0
      %5650 = vmatprep.mubr.bf16.mxu0 %v2849
      %5651 = vmatmul.mubr.bf16.gmra.mxu0 %v2848
      %v5652 = vpop.f32.mrf.mxu0
      %v5653 = vadd.f32 %v5492, %v5652
      %v5654 = vpop.f32.mrf.mxu0
      %v5655 = vpop.f32.mrf.mxu0
      %v5656 = vadd.f32 %v5495, %v5655
      %v5657 = vpop.f32.mrf.mxu0
      %5658 = vdwg.mxu0
      %5659 = vmatprep.subr.bf16.mxu0 0
      %5660 = vmatpush1.bf16.msra.mxu0 %v4074
      %5661 = vmatprep.subr.bf16.mxu0 0
      %5662 = vmatpush1.bf16.msra.mxu0 %v4073
      %5663 = vmatprep.subr.bf16.mxu0 0
      %5664 = vmatpush1.bf16.msra.mxu0 %v4072
      %5665 = vmatprep.subr.bf16.mxu0 0
      %5666 = vmatpush1.bf16.msra.mxu0 %v4071
      %5667 = vmatprep.subr.bf16.mxu0 0
      %5668 = vmatpush1.bf16.msra.mxu0 %v4070
      %5669 = vmatprep.subr.bf16.mxu0 0
      %5670 = vmatpush1.bf16.msra.mxu0 %v4069
      %5671 = vmatprep.subr.bf16.mxu0 0
      %5672 = vmatpush1.bf16.msra.mxu0 %v4068
      %5673 = vmatprep.subr.bf16.mxu0 0
      %5674 = vmatpush1.bf16.msra.mxu0 %v4067
      %5675 = vmatprep.subr.bf16.mxu0 0
      %5676 = vmatpush2.bf16.msra.mxu0 %v4082
      %5677 = vmatprep.subr.bf16.mxu0 0
      %5678 = vmatpush2.bf16.msra.mxu0 %v4081
      %5679 = vmatprep.subr.bf16.mxu0 0
      %5680 = vmatpush2.bf16.msra.mxu0 %v4080
      %5681 = vmatprep.subr.bf16.mxu0 0
      %5682 = vmatpush2.bf16.msra.mxu0 %v4079
      %5683 = vmatprep.subr.bf16.mxu0 0
      %5684 = vmatpush2.bf16.msra.mxu0 %v4078
      %5685 = vmatprep.subr.bf16.mxu0 0
      %5686 = vmatpush2.bf16.msra.mxu0 %v4077
      %5687 = vmatprep.subr.bf16.mxu0 0
      %5688 = vmatpush2.bf16.msra.mxu0 %v4076
      %5689 = vmatprep.subr.bf16.mxu0 0
      %5690 = vmatpush2.bf16.msra.mxu0 %v4075
      %5691 = vmatprep.mubr.bf16.mxu0 %v2654
      %5692 = vmatmul.mubr.bf16.gmra.mxu0 %v2653
      %v5693 = vpop.f32.mrf.mxu0
      %v5694 = vadd.f32 %v5533, %v5693
      %v5695 = vpop.f32.mrf.mxu0
      %v5696 = vpop.f32.mrf.mxu0
      %v5697 = vadd.f32 %v5536, %v5696
      %v5698 = vpop.f32.mrf.mxu0
      %5699 = vmatprep.mubr.bf16.mxu0 %v2676
      %5700 = vmatmul.mubr.bf16.gmra.mxu0 %v2675
      %v5701 = vpop.f32.mrf.mxu0
      %v5702 = vadd.f32 %v5541, %v5701
      %v5703 = vpop.f32.mrf.mxu0
      %v5704 = vpop.f32.mrf.mxu0
      %v5705 = vadd.f32 %v5544, %v5704
      %v5706 = vpop.f32.mrf.mxu0
      %5707 = vmatprep.mubr.bf16.mxu0 %v2695
      %5708 = vmatmul.mubr.bf16.gmra.mxu0 %v2694
      %v5709 = vpop.f32.mrf.mxu0
      %v5710 = vadd.f32 %v5549, %v5709
      %v5711 = vpop.f32.mrf.mxu0
      %v5712 = vpop.f32.mrf.mxu0
      %v5713 = vadd.f32 %v5552, %v5712
      %v5714 = vpop.f32.mrf.mxu0
      %5715 = vmatprep.mubr.bf16.mxu0 %v2714
      %5716 = vmatmul.mubr.bf16.gmra.mxu0 %v2713
      %v5717 = vpop.f32.mrf.mxu0
      %v5718 = vadd.f32 %v5557, %v5717
      %v5719 = vpop.f32.mrf.mxu0
      %v5720 = vpop.f32.mrf.mxu0
      %v5721 = vadd.f32 %v5560, %v5720
      %v5722 = vpop.f32.mrf.mxu0
      %5723 = vmatprep.mubr.bf16.mxu0 %v2663
      %5724 = vmatmul.mubr.bf16.gmra.mxu0 %v2662
      %v5725 = vpop.f32.mrf.mxu0
      %v5726 = vadd.f32 %v5565, %v5725
      %v5727 = vpop.f32.mrf.mxu0
      %v5728 = vpop.f32.mrf.mxu0
      %v5729 = vadd.f32 %v5568, %v5728
      %v5730 = vpop.f32.mrf.mxu0
      %5731 = vmatprep.mubr.bf16.mxu0 %v2682
      %5732 = vmatmul.mubr.bf16.gmra.mxu0 %v2681
      %v5733 = vpop.f32.mrf.mxu0
      %v5734 = vadd.f32 %v5573, %v5733
      %v5735 = vpop.f32.mrf.mxu0
      %v5736 = vpop.f32.mrf.mxu0
      %v5737 = vadd.f32 %v5576, %v5736
      %v5738 = vpop.f32.mrf.mxu0
      %5739 = vmatprep.mubr.bf16.mxu0 %v2701
      %5740 = vmatmul.mubr.bf16.gmra.mxu0 %v2700
      %v5741 = vpop.f32.mrf.mxu0
      %v5742 = vadd.f32 %v5581, %v5741
      %v5743 = vpop.f32.mrf.mxu0
      %v5744 = vpop.f32.mrf.mxu0
      %v5745 = vadd.f32 %v5584, %v5744
      %v5746 = vpop.f32.mrf.mxu0
      %5747 = vmatprep.mubr.bf16.mxu0 %v2720
      %5748 = vmatmul.mubr.bf16.gmra.mxu0 %v2719
      %v5749 = vpop.f32.mrf.mxu0
      %v5750 = vadd.f32 %v5589, %v5749
      %v5751 = vpop.f32.mrf.mxu0
      %v5752 = vpop.f32.mrf.mxu0
      %v5753 = vadd.f32 %v5592, %v5752
      %v5754 = vpop.f32.mrf.mxu0
      %5755 = vmatprep.mubr.bf16.mxu0 %v2734
      %5756 = vmatmul.mubr.bf16.gmra.mxu0 %v2733
      %v5757 = vpop.f32.mrf.mxu0
      %v5758 = vadd.f32 %v5597, %v5757
      %v5759 = vpop.f32.mrf.mxu0
      %v5760 = vpop.f32.mrf.mxu0
      %v5761 = vadd.f32 %v5600, %v5760
      %v5762 = vpop.f32.mrf.mxu0
      %5763 = vmatprep.mubr.bf16.mxu0 %v2744
      %5764 = vmatmul.mubr.bf16.gmra.mxu0 %v2743
      %v5765 = vpop.f32.mrf.mxu0
      %v5766 = vadd.f32 %v5605, %v5765
      %v5767 = vpop.f32.mrf.mxu0
      %v5768 = vpop.f32.mrf.mxu0
      %v5769 = vadd.f32 %v5608, %v5768
      %v5770 = vpop.f32.mrf.mxu0
      %5771 = vmatprep.mubr.bf16.mxu0 %v2754
      %5772 = vmatmul.mubr.bf16.gmra.mxu0 %v2753
      %v5773 = vpop.f32.mrf.mxu0
      %v5774 = vadd.f32 %v5613, %v5773
      %v5775 = vpop.f32.mrf.mxu0
      %v5776 = vpop.f32.mrf.mxu0
      %v5777 = vadd.f32 %v5616, %v5776
      %v5778 = vpop.f32.mrf.mxu0
      %5779 = vmatprep.mubr.bf16.mxu0 %v2765
      %5780 = vmatmul.mubr.bf16.gmra.mxu0 %v2764
      %v5781 = vpop.f32.mrf.mxu0
      %v5782 = vadd.f32 %v5621, %v5781
      %v5783 = vpop.f32.mrf.mxu0
      %v5784 = vpop.f32.mrf.mxu0
      %v5785 = vadd.f32 %v5624, %v5784
      %v5786 = vpop.f32.mrf.mxu0
      %5787 = vmatprep.mubr.bf16.mxu0 %v2779
      %5788 = vmatmul.mubr.bf16.gmra.mxu0 %v2778
      %v5789 = vpop.f32.mrf.mxu0
      %v5790 = vadd.f32 %v5629, %v5789
      %v5791 = vpop.f32.mrf.mxu0
      %v5792 = vpop.f32.mrf.mxu0
      %v5793 = vadd.f32 %v5632, %v5792
      %v5794 = vpop.f32.mrf.mxu0
      %5795 = vmatprep.mubr.bf16.mxu0 %v2789
      %5796 = vmatmul.mubr.bf16.gmra.mxu0 %v2788
      %v5797 = vpop.f32.mrf.mxu0
      %v5798 = vadd.f32 %v5637, %v5797
      %v5799 = vpop.f32.mrf.mxu0
      %v5800 = vpop.f32.mrf.mxu0
      %v5801 = vadd.f32 %v5640, %v5800
      %v5802 = vpop.f32.mrf.mxu0
      %5803 = vmatprep.mubr.bf16.mxu0 %v2799
      %5804 = vmatmul.mubr.bf16.gmra.mxu0 %v2798
      %v5805 = vpop.f32.mrf.mxu0
      %v5806 = vadd.f32 %v5645, %v5805
      %v5807 = vpop.f32.mrf.mxu0
      %v5808 = vpop.f32.mrf.mxu0
      %v5809 = vadd.f32 %v5648, %v5808
      %v5810 = vpop.f32.mrf.mxu0
      %5811 = vmatprep.mubr.bf16.mxu0 %v2810
      %5812 = vmatmul.mubr.bf16.gmra.mxu0 %v2809
      %v5813 = vpop.f32.mrf.mxu0
      %v5814 = vadd.f32 %v5653, %v5813
      %v5815 = vpop.f32.mrf.mxu0
      %v5816 = vpop.f32.mrf.mxu0
      %v5817 = vadd.f32 %v5656, %v5816
      %v5818 = vpop.f32.mrf.mxu0
      %5819 = vdwg.mxu0
      %5820 = vmatprep.subr.bf16.mxu0 0
      %5821 = vmatpush1.bf16.msra.mxu0 %v4090
      %5822 = vmatprep.subr.bf16.mxu0 0
      %5823 = vmatpush1.bf16.msra.mxu0 %v4089
      %5824 = vmatprep.subr.bf16.mxu0 0
      %5825 = vmatpush1.bf16.msra.mxu0 %v4088
      %5826 = vmatprep.subr.bf16.mxu0 0
      %5827 = vmatpush1.bf16.msra.mxu0 %v4087
      %5828 = vmatprep.subr.bf16.mxu0 0
      %5829 = vmatpush1.bf16.msra.mxu0 %v4086
      %5830 = vmatprep.subr.bf16.mxu0 0
      %5831 = vmatpush1.bf16.msra.mxu0 %v4085
      %5832 = vmatprep.subr.bf16.mxu0 0
      %5833 = vmatpush1.bf16.msra.mxu0 %v4084
      %5834 = vmatprep.subr.bf16.mxu0 0
      %5835 = vmatpush1.bf16.msra.mxu0 %v4083
      %5836 = vmatprep.subr.bf16.mxu0 0
      %5837 = vmatpush2.bf16.msra.mxu0 %v4098
      %5838 = vmatprep.subr.bf16.mxu0 0
      %5839 = vmatpush2.bf16.msra.mxu0 %v4097
      %5840 = vmatprep.subr.bf16.mxu0 0
      %5841 = vmatpush2.bf16.msra.mxu0 %v4096
      %5842 = vmatprep.subr.bf16.mxu0 0
      %5843 = vmatpush2.bf16.msra.mxu0 %v4095
      %5844 = vmatprep.subr.bf16.mxu0 0
      %5845 = vmatpush2.bf16.msra.mxu0 %v4094
      %5846 = vmatprep.subr.bf16.mxu0 0
      %5847 = vmatpush2.bf16.msra.mxu0 %v4093
      %5848 = vmatprep.subr.bf16.mxu0 0
      %5849 = vmatpush2.bf16.msra.mxu0 %v4092
      %5850 = vmatprep.subr.bf16.mxu0 0
      %5851 = vmatpush2.bf16.msra.mxu0 %v4091
      %5852 = vmatprep.mubr.bf16.mxu0 %v2656
      %5853 = vmatmul.mubr.bf16.gmra.mxu0 %v2655
      %v5854 = vpop.f32.mrf.mxu0
      %v5855 = vadd.f32 %v5694, %v5854
      %v5856 = vpop.f32.mrf.mxu0
      %v5857 = vpop.f32.mrf.mxu0
      %v5858 = vadd.f32 %v5697, %v5857
      %v5859 = vpop.f32.mrf.mxu0
      %5860 = vmatprep.mubr.bf16.mxu0 %v2662
      %5861 = vmatmul.mubr.bf16.gmra.mxu0 %v2661
      %v5862 = vpop.f32.mrf.mxu0
      %v5863 = vadd.f32 %v5702, %v5862
      %v5864 = vpop.f32.mrf.mxu0
      %v5865 = vpop.f32.mrf.mxu0
      %v5866 = vadd.f32 %v5705, %v5865
      %v5867 = vpop.f32.mrf.mxu0
      %5868 = vmatprep.mubr.bf16.mxu0 %v2681
      %5869 = vmatmul.mubr.bf16.gmra.mxu0 %v2680
      %v5870 = vpop.f32.mrf.mxu0
      %v5871 = vadd.f32 %v5710, %v5870
      %v5872 = vpop.f32.mrf.mxu0
      %v5873 = vpop.f32.mrf.mxu0
      %v5874 = vadd.f32 %v5713, %v5873
      %v5875 = vpop.f32.mrf.mxu0
      %5876 = vmatprep.mubr.bf16.mxu0 %v2700
      %5877 = vmatmul.mubr.bf16.gmra.mxu0 %v2699
      %v5878 = vpop.f32.mrf.mxu0
      %v5879 = vadd.f32 %v5718, %v5878
      %v5880 = vpop.f32.mrf.mxu0
      %v5881 = vpop.f32.mrf.mxu0
      %v5882 = vadd.f32 %v5721, %v5881
      %v5883 = vpop.f32.mrf.mxu0
      %5884 = vmatprep.mubr.bf16.mxu0 %v2727
      %5885 = vmatmul.mubr.bf16.gmra.mxu0 %v2726
      %v5886 = vpop.f32.mrf.mxu0
      %v5887 = vadd.f32 %v5726, %v5886
      %v5888 = vpop.f32.mrf.mxu0
      %v5889 = vpop.f32.mrf.mxu0
      %v5890 = vadd.f32 %v5729, %v5889
      %v5891 = vpop.f32.mrf.mxu0
      %5892 = vmatprep.mubr.bf16.mxu0 %v2733
      %5893 = vmatmul.mubr.bf16.gmra.mxu0 %v2732
      %v5894 = vpop.f32.mrf.mxu0
      %v5895 = vadd.f32 %v5734, %v5894
      %v5896 = vpop.f32.mrf.mxu0
      %v5897 = vpop.f32.mrf.mxu0
      %v5898 = vadd.f32 %v5737, %v5897
      %v5899 = vpop.f32.mrf.mxu0
      %5900 = vmatprep.mubr.bf16.mxu0 %v2743
      %5901 = vmatmul.mubr.bf16.gmra.mxu0 %v2742
      %v5902 = vpop.f32.mrf.mxu0
      %v5903 = vadd.f32 %v5742, %v5902
      %v5904 = vpop.f32.mrf.mxu0
      %v5905 = vpop.f32.mrf.mxu0
      %v5906 = vadd.f32 %v5745, %v5905
      %v5907 = vpop.f32.mrf.mxu0
      %5908 = vmatprep.mubr.bf16.mxu0 %v2753
      %5909 = vmatmul.mubr.bf16.gmra.mxu0 %v2752
      %v5910 = vpop.f32.mrf.mxu0
      %v5911 = vadd.f32 %v5750, %v5910
      %v5912 = vpop.f32.mrf.mxu0
      %v5913 = vpop.f32.mrf.mxu0
      %v5914 = vadd.f32 %v5753, %v5913
      %v5915 = vpop.f32.mrf.mxu0
      %5916 = vmatprep.mubr.bf16.mxu0 %v2772
      %5917 = vmatmul.mubr.bf16.gmra.mxu0 %v2771
      %v5918 = vpop.f32.mrf.mxu0
      %v5919 = vadd.f32 %v5758, %v5918
      %v5920 = vpop.f32.mrf.mxu0
      %v5921 = vpop.f32.mrf.mxu0
      %v5922 = vadd.f32 %v5761, %v5921
      %v5923 = vpop.f32.mrf.mxu0
      %5924 = vmatprep.mubr.bf16.mxu0 %v2778
      %5925 = vmatmul.mubr.bf16.gmra.mxu0 %v2777
      %v5926 = vpop.f32.mrf.mxu0
      %v5927 = vadd.f32 %v5766, %v5926
      %v5928 = vpop.f32.mrf.mxu0
      %v5929 = vpop.f32.mrf.mxu0
      %v5930 = vadd.f32 %v5769, %v5929
      %v5931 = vpop.f32.mrf.mxu0
      %5932 = vmatprep.mubr.bf16.mxu0 %v2788
      %5933 = vmatmul.mubr.bf16.gmra.mxu0 %v2787
      %v5934 = vpop.f32.mrf.mxu0
      %v5935 = vadd.f32 %v5774, %v5934
      %v5936 = vpop.f32.mrf.mxu0
      %v5937 = vpop.f32.mrf.mxu0
      %v5938 = vadd.f32 %v5777, %v5937
      %v5939 = vpop.f32.mrf.mxu0
      %5940 = vmatprep.mubr.bf16.mxu0 %v2798
      %5941 = vmatmul.mubr.bf16.gmra.mxu0 %v2797
      %v5942 = vpop.f32.mrf.mxu0
      %v5943 = vadd.f32 %v5782, %v5942
      %v5944 = vpop.f32.mrf.mxu0
      %v5945 = vpop.f32.mrf.mxu0
      %v5946 = vadd.f32 %v5785, %v5945
      %v5947 = vpop.f32.mrf.mxu0
      %5948 = vmatprep.mubr.bf16.mxu0 %v2817
      %5949 = vmatmul.mubr.bf16.gmra.mxu0 %v2816
      %v5950 = vpop.f32.mrf.mxu0
      %v5951 = vadd.f32 %v5790, %v5950
      %v5952 = vpop.f32.mrf.mxu0
      %v5953 = vpop.f32.mrf.mxu0
      %v5954 = vadd.f32 %v5793, %v5953
      %v5955 = vpop.f32.mrf.mxu0
      %5956 = vmatprep.mubr.bf16.mxu0 %v2823
      %5957 = vmatmul.mubr.bf16.gmra.mxu0 %v2822
      %v5958 = vpop.f32.mrf.mxu0
      %v5959 = vadd.f32 %v5798, %v5958
      %v5960 = vpop.f32.mrf.mxu0
      %v5961 = vpop.f32.mrf.mxu0
      %v5962 = vadd.f32 %v5801, %v5961
      %v5963 = vpop.f32.mrf.mxu0
      %5964 = vmatprep.mubr.bf16.mxu0 %v2833
      %5965 = vmatmul.mubr.bf16.gmra.mxu0 %v2832
      %v5966 = vpop.f32.mrf.mxu0
      %v5967 = vadd.f32 %v5806, %v5966
      %v5968 = vpop.f32.mrf.mxu0
      %v5969 = vpop.f32.mrf.mxu0
      %v5970 = vadd.f32 %v5809, %v5969
      %v5971 = vpop.f32.mrf.mxu0
      %5972 = vmatprep.mubr.bf16.mxu0 %v2843
      %5973 = vmatmul.mubr.bf16.gmra.mxu0 %v2842
      %v5974 = vpop.f32.mrf.mxu0
      %v5975 = vadd.f32 %v5814, %v5974
      %v5976 = vpop.f32.mrf.mxu0
      %v5977 = vpop.f32.mrf.mxu0
      %v5978 = vadd.f32 %v5817, %v5977
      %v5979 = vpop.f32.mrf.mxu0
      %5980 = vdwg.mxu0
      %5981 = vmatprep.subr.bf16.mxu0 0
      %5982 = vmatpush1.bf16.msra.mxu0 %v4106
      %5983 = vmatprep.subr.bf16.mxu0 0
      %5984 = vmatpush1.bf16.msra.mxu0 %v4105
      %5985 = vmatprep.subr.bf16.mxu0 0
      %5986 = vmatpush1.bf16.msra.mxu0 %v4104
      %5987 = vmatprep.subr.bf16.mxu0 0
      %5988 = vmatpush1.bf16.msra.mxu0 %v4103
      %5989 = vmatprep.subr.bf16.mxu0 0
      %5990 = vmatpush1.bf16.msra.mxu0 %v4102
      %5991 = vmatprep.subr.bf16.mxu0 0
      %5992 = vmatpush1.bf16.msra.mxu0 %v4101
      %5993 = vmatprep.subr.bf16.mxu0 0
      %5994 = vmatpush1.bf16.msra.mxu0 %v4100
      %5995 = vmatprep.subr.bf16.mxu0 0
      %5996 = vmatpush1.bf16.msra.mxu0 %v4099
      %5997 = vmatprep.subr.bf16.mxu0 0
      %5998 = vmatpush2.bf16.msra.mxu0 %v4114
      %5999 = vmatprep.subr.bf16.mxu0 0
      %6000 = vmatpush2.bf16.msra.mxu0 %v4113
      %6001 = vmatprep.subr.bf16.mxu0 0
      %6002 = vmatpush2.bf16.msra.mxu0 %v4112
      %6003 = vmatprep.subr.bf16.mxu0 0
      %6004 = vmatpush2.bf16.msra.mxu0 %v4111
      %6005 = vmatprep.subr.bf16.mxu0 0
      %6006 = vmatpush2.bf16.msra.mxu0 %v4110
      %6007 = vmatprep.subr.bf16.mxu0 0
      %6008 = vmatpush2.bf16.msra.mxu0 %v4109
      %6009 = vmatprep.subr.bf16.mxu0 0
      %6010 = vmatpush2.bf16.msra.mxu0 %v4108
      %6011 = vmatprep.subr.bf16.mxu0 0
      %6012 = vmatpush2.bf16.msra.mxu0 %v4107
      %6013 = vmatprep.mubr.bf16.mxu0 %v2658
      %6014 = vmatmul.mubr.bf16.gmra.mxu0 %v2657
      %v6015 = vpop.f32.mrf.mxu0
      %v6016 = vadd.f32 %v5855, %v6015
      %v6017 = vpop.f32.mrf.mxu0
      %v6018 = vpop.f32.mrf.mxu0
      %v6019 = vadd.f32 %v5858, %v6018
      %v6020 = vpop.f32.mrf.mxu0
      %6021 = vmatprep.mubr.bf16.mxu0 %v2677
      %6022 = vmatmul.mubr.bf16.gmra.mxu0 %v2663
      %v6023 = vpop.f32.mrf.mxu0
      %v6024 = vadd.f32 %v5863, %v6023
      %v6025 = vpop.f32.mrf.mxu0
      %v6026 = vpop.f32.mrf.mxu0
      %v6027 = vadd.f32 %v5866, %v6026
      %v6028 = vpop.f32.mrf.mxu0
      %6029 = vmatprep.mubr.bf16.mxu0 %v2696
      %6030 = vmatmul.mubr.bf16.gmra.mxu0 %v2682
      %v6031 = vpop.f32.mrf.mxu0
      %v6032 = vadd.f32 %v5871, %v6031
      %v6033 = vpop.f32.mrf.mxu0
      %v6034 = vpop.f32.mrf.mxu0
      %v6035 = vadd.f32 %v5874, %v6034
      %v6036 = vpop.f32.mrf.mxu0
      %6037 = vmatprep.mubr.bf16.mxu0 %v2715
      %6038 = vmatmul.mubr.bf16.gmra.mxu0 %v2701
      %v6039 = vpop.f32.mrf.mxu0
      %v6040 = vadd.f32 %v5879, %v6039
      %v6041 = vpop.f32.mrf.mxu0
      %v6042 = vpop.f32.mrf.mxu0
      %v6043 = vadd.f32 %v5882, %v6042
      %v6044 = vpop.f32.mrf.mxu0
      %6045 = vmatprep.mubr.bf16.mxu0 %v2729
      %6046 = vmatmul.mubr.bf16.gmra.mxu0 %v2728
      %v6047 = vpop.f32.mrf.mxu0
      %v6048 = vadd.f32 %v5887, %v6047
      %v6049 = vpop.f32.mrf.mxu0
      %v6050 = vpop.f32.mrf.mxu0
      %v6051 = vadd.f32 %v5890, %v6050
      %v6052 = vpop.f32.mrf.mxu0
      %6053 = vmatprep.mubr.bf16.mxu0 %v2739
      %6054 = vmatmul.mubr.bf16.gmra.mxu0 %v2734
      %v6055 = vpop.f32.mrf.mxu0
      %v6056 = vadd.f32 %v5895, %v6055
      %v6057 = vpop.f32.mrf.mxu0
      %v6058 = vpop.f32.mrf.mxu0
      %v6059 = vadd.f32 %v5898, %v6058
      %v6060 = vpop.f32.mrf.mxu0
      %6061 = vmatprep.mubr.bf16.mxu0 %v2749
      %6062 = vmatmul.mubr.bf16.gmra.mxu0 %v2744
      %v6063 = vpop.f32.mrf.mxu0
      %v6064 = vadd.f32 %v5903, %v6063
      %v6065 = vpop.f32.mrf.mxu0
      %v6066 = vpop.f32.mrf.mxu0
      %v6067 = vadd.f32 %v5906, %v6066
      %v6068 = vpop.f32.mrf.mxu0
      %6069 = vmatprep.mubr.bf16.mxu0 %v2760
      %6070 = vmatmul.mubr.bf16.gmra.mxu0 %v2754
      %v6071 = vpop.f32.mrf.mxu0
      %v6072 = vadd.f32 %v5911, %v6071
      %v6073 = vpop.f32.mrf.mxu0
      %v6074 = vpop.f32.mrf.mxu0
      %v6075 = vadd.f32 %v5914, %v6074
      %v6076 = vpop.f32.mrf.mxu0
      %6077 = vmatprep.mubr.bf16.mxu0 %v2774
      %6078 = vmatmul.mubr.bf16.gmra.mxu0 %v2773
      %v6079 = vpop.f32.mrf.mxu0
      %v6080 = vadd.f32 %v5919, %v6079
      %v6081 = vpop.f32.mrf.mxu0
      %v6082 = vpop.f32.mrf.mxu0
      %v6083 = vadd.f32 %v5922, %v6082
      %v6084 = vpop.f32.mrf.mxu0
      %6085 = vmatprep.mubr.bf16.mxu0 %v2784
      %6086 = vmatmul.mubr.bf16.gmra.mxu0 %v2779
      %v6087 = vpop.f32.mrf.mxu0
      %v6088 = vadd.f32 %v5927, %v6087
      %v6089 = vpop.f32.mrf.mxu0
      %v6090 = vpop.f32.mrf.mxu0
      %v6091 = vadd.f32 %v5930, %v6090
      %v6092 = vpop.f32.mrf.mxu0
      %6093 = vmatprep.mubr.bf16.mxu0 %v2794
      %6094 = vmatmul.mubr.bf16.gmra.mxu0 %v2789
      %v6095 = vpop.f32.mrf.mxu0
      %v6096 = vadd.f32 %v5935, %v6095
      %v6097 = vpop.f32.mrf.mxu0
      %v6098 = vpop.f32.mrf.mxu0
      %v6099 = vadd.f32 %v5938, %v6098
      %v6100 = vpop.f32.mrf.mxu0
      %6101 = vmatprep.mubr.bf16.mxu0 %v2805
      %6102 = vmatmul.mubr.bf16.gmra.mxu0 %v2799
      %v6103 = vpop.f32.mrf.mxu0
      %v6104 = vadd.f32 %v5943, %v6103
      %v6105 = vpop.f32.mrf.mxu0
      %v6106 = vpop.f32.mrf.mxu0
      %v6107 = vadd.f32 %v5946, %v6106
      %v6108 = vpop.f32.mrf.mxu0
      %6109 = vmatprep.mubr.bf16.mxu0 %v2819
      %6110 = vmatmul.mubr.bf16.gmra.mxu0 %v2818
      %v6111 = vpop.f32.mrf.mxu0
      %v6112 = vadd.f32 %v5951, %v6111
      %v6113 = vpop.f32.mrf.mxu0
      %v6114 = vpop.f32.mrf.mxu0
      %v6115 = vadd.f32 %v5954, %v6114
      %v6116 = vpop.f32.mrf.mxu0
      %6117 = vmatprep.mubr.bf16.mxu0 %v2829
      %6118 = vmatmul.mubr.bf16.gmra.mxu0 %v2824
      %v6119 = vpop.f32.mrf.mxu0
      %v6120 = vadd.f32 %v5959, %v6119
      %v6121 = vpop.f32.mrf.mxu0
      %v6122 = vpop.f32.mrf.mxu0
      %v6123 = vadd.f32 %v5962, %v6122
      %v6124 = vpop.f32.mrf.mxu0
      %6125 = vmatprep.mubr.bf16.mxu0 %v2839
      %6126 = vmatmul.mubr.bf16.gmra.mxu0 %v2834
      %v6127 = vpop.f32.mrf.mxu0
      %v6128 = vadd.f32 %v5967, %v6127
      %v6129 = vpop.f32.mrf.mxu0
      %v6130 = vpop.f32.mrf.mxu0
      %v6131 = vadd.f32 %v5970, %v6130
      %v6132 = vpop.f32.mrf.mxu0
      %6133 = vmatprep.mubr.bf16.mxu0 %v2850
      %6134 = vmatmul.mubr.bf16.gmra.mxu0 %v2844
      %v6135 = vpop.f32.mrf.mxu0
      %v6136 = vadd.f32 %v5975, %v6135
      %v6137 = vpop.f32.mrf.mxu0
      %v6138 = vpop.f32.mrf.mxu0
      %v6139 = vadd.f32 %v5978, %v6138
      %v6140 = vpop.f32.mrf.mxu0
      %6141 = vdwg.mxu0
      %6142 = vmatprep.subr.bf16.mxu0 0
      %6143 = vmatpush1.bf16.msra.mxu0 %v4122
      %6144 = vmatprep.subr.bf16.mxu0 0
      %6145 = vmatpush1.bf16.msra.mxu0 %v4121
      %6146 = vmatprep.subr.bf16.mxu0 0
      %6147 = vmatpush1.bf16.msra.mxu0 %v4120
      %6148 = vmatprep.subr.bf16.mxu0 0
      %6149 = vmatpush1.bf16.msra.mxu0 %v4119
      %6150 = vmatprep.subr.bf16.mxu0 0
      %6151 = vmatpush1.bf16.msra.mxu0 %v4118
      %6152 = vmatprep.subr.bf16.mxu0 0
      %6153 = vmatpush1.bf16.msra.mxu0 %v4117
      %6154 = vmatprep.subr.bf16.mxu0 0
      %6155 = vmatpush1.bf16.msra.mxu0 %v4116
      %6156 = vmatprep.subr.bf16.mxu0 0
      %6157 = vmatpush1.bf16.msra.mxu0 %v4115
      %6158 = vmatprep.subr.bf16.mxu0 0
      %6159 = vmatpush2.bf16.msra.mxu0 %v4130
      %6160 = vmatprep.subr.bf16.mxu0 0
      %6161 = vmatpush2.bf16.msra.mxu0 %v4129
      %6162 = vmatprep.subr.bf16.mxu0 0
      %6163 = vmatpush2.bf16.msra.mxu0 %v4128
      %6164 = vmatprep.subr.bf16.mxu0 0
      %6165 = vmatpush2.bf16.msra.mxu0 %v4127
      %6166 = vmatprep.subr.bf16.mxu0 0
      %6167 = vmatpush2.bf16.msra.mxu0 %v4126
      %6168 = vmatprep.subr.bf16.mxu0 0
      %6169 = vmatpush2.bf16.msra.mxu0 %v4125
      %6170 = vmatprep.subr.bf16.mxu0 0
      %6171 = vmatpush2.bf16.msra.mxu0 %v4124
      %6172 = vmatprep.subr.bf16.mxu0 0
      %6173 = vmatpush2.bf16.msra.mxu0 %v4123
      %6174 = vmatprep.mubr.bf16.mxu0 %v2660
      %6175 = vmatmul.mubr.bf16.gmra.mxu0 %v2659
      %v6176 = vpop.f32.mrf.mxu0
      %v6177 = vadd.f32 %v6016, %v6176
      %v6178 = vpop.f32.mrf.mxu0
      %v6179 = vpop.f32.mrf.mxu0
      %v6180 = vadd.f32 %v6019, %v6179
      %v6181 = vpop.f32.mrf.mxu0
      %6182 = vmatprep.mubr.bf16.mxu0 %v2679
      %6183 = vmatmul.mubr.bf16.gmra.mxu0 %v2678
      %v6184 = vpop.f32.mrf.mxu0
      %v6185 = vadd.f32 %v6024, %v6184
      %v6186 = vpop.f32.mrf.mxu0
      %v6187 = vpop.f32.mrf.mxu0
      %v6188 = vadd.f32 %v6027, %v6187
      %v6189 = vpop.f32.mrf.mxu0
      %6190 = vmatprep.mubr.bf16.mxu0 %v2698
      %6191 = vmatmul.mubr.bf16.gmra.mxu0 %v2697
      %v6192 = vpop.f32.mrf.mxu0
      %v6193 = vadd.f32 %v6032, %v6192
      %v6194 = vpop.f32.mrf.mxu0
      %v6195 = vpop.f32.mrf.mxu0
      %v6196 = vadd.f32 %v6035, %v6195
      %v6197 = vpop.f32.mrf.mxu0
      %6198 = vmatprep.mubr.bf16.mxu0 %v2717
      %6199 = vmatmul.mubr.bf16.gmra.mxu0 %v2716
      %v6200 = vpop.f32.mrf.mxu0
      %v6201 = vadd.f32 %v6040, %v6200
      %v6202 = vpop.f32.mrf.mxu0
      %v6203 = vpop.f32.mrf.mxu0
      %v6204 = vadd.f32 %v6043, %v6203
      %v6205 = vpop.f32.mrf.mxu0
      %6206 = vmatprep.mubr.bf16.mxu0 %v2731
      %6207 = vmatmul.mubr.bf16.gmra.mxu0 %v2730
      %v6208 = vpop.f32.mrf.mxu0
      %v6209 = vadd.f32 %v6048, %v6208
      %v6210 = vpop.f32.mrf.mxu0
      %v6211 = vpop.f32.mrf.mxu0
      %v6212 = vadd.f32 %v6051, %v6211
      %v6213 = vpop.f32.mrf.mxu0
      %6214 = vmatprep.mubr.bf16.mxu0 %v2741
      %6215 = vmatmul.mubr.bf16.gmra.mxu0 %v2740
      %v6216 = vpop.f32.mrf.mxu0
      %v6217 = vadd.f32 %v6056, %v6216
      %v6218 = vpop.f32.mrf.mxu0
      %v6219 = vpop.f32.mrf.mxu0
      %v6220 = vadd.f32 %v6059, %v6219
      %v6221 = vpop.f32.mrf.mxu0
      %6222 = vmatprep.mubr.bf16.mxu0 %v2751
      %6223 = vmatmul.mubr.bf16.gmra.mxu0 %v2750
      %v6224 = vpop.f32.mrf.mxu0
      %v6225 = vadd.f32 %v6064, %v6224
      %v6226 = vpop.f32.mrf.mxu0
      %v6227 = vpop.f32.mrf.mxu0
      %v6228 = vadd.f32 %v6067, %v6227
      %v6229 = vpop.f32.mrf.mxu0
      %6230 = vmatprep.mubr.bf16.mxu0 %v2762
      %6231 = vmatmul.mubr.bf16.gmra.mxu0 %v2761
      %v6232 = vpop.f32.mrf.mxu0
      %v6233 = vadd.f32 %v6072, %v6232
      %v6234 = vpop.f32.mrf.mxu0
      %v6235 = vpop.f32.mrf.mxu0
      %v6236 = vadd.f32 %v6075, %v6235
      %v6237 = vpop.f32.mrf.mxu0
      %6238 = vmatprep.mubr.bf16.mxu0 %v2776
      %6239 = vmatmul.mubr.bf16.gmra.mxu0 %v2775
      %v6240 = vpop.f32.mrf.mxu0
      %v6241 = vadd.f32 %v6080, %v6240
      %v6242 = vpop.f32.mrf.mxu0
      %v6243 = vpop.f32.mrf.mxu0
      %v6244 = vadd.f32 %v6083, %v6243
      %v6245 = vpop.f32.mrf.mxu0
      %6246 = vmatprep.mubr.bf16.mxu0 %v2786
      %6247 = vmatmul.mubr.bf16.gmra.mxu0 %v2785
      %v6248 = vpop.f32.mrf.mxu0
      %v6249 = vadd.f32 %v6088, %v6248
      %v6250 = vpop.f32.mrf.mxu0
      %v6251 = vpop.f32.mrf.mxu0
      %v6252 = vadd.f32 %v6091, %v6251
      %v6253 = vpop.f32.mrf.mxu0
      %6254 = vmatprep.mubr.bf16.mxu0 %v2796
      %6255 = vmatmul.mubr.bf16.gmra.mxu0 %v2795
      %v6256 = vpop.f32.mrf.mxu0
      %v6257 = vadd.f32 %v6096, %v6256
      %v6258 = vpop.f32.mrf.mxu0
      %v6259 = vpop.f32.mrf.mxu0
      %v6260 = vadd.f32 %v6099, %v6259
      %v6261 = vpop.f32.mrf.mxu0
      %6262 = vmatprep.mubr.bf16.mxu0 %v2807
      %6263 = vmatmul.mubr.bf16.gmra.mxu0 %v2806
      %v6264 = vpop.f32.mrf.mxu0
      %v6265 = vadd.f32 %v6104, %v6264
      %v6266 = vpop.f32.mrf.mxu0
      %v6267 = vpop.f32.mrf.mxu0
      %v6268 = vadd.f32 %v6107, %v6267
      %v6269 = vpop.f32.mrf.mxu0
      %6270 = vmatprep.mubr.bf16.mxu0 %v2821
      %6271 = vmatmul.mubr.bf16.gmra.mxu0 %v2820
      %v6272 = vpop.f32.mrf.mxu0
      %v6273 = vadd.f32 %v6112, %v6272
      %v6274 = vpop.f32.mrf.mxu0
      %v6275 = vpop.f32.mrf.mxu0
      %v6276 = vadd.f32 %v6115, %v6275
      %v6277 = vpop.f32.mrf.mxu0
      %6278 = vmatprep.mubr.bf16.mxu0 %v2831
      %6279 = vmatmul.mubr.bf16.gmra.mxu0 %v2830
      %v6280 = vpop.f32.mrf.mxu0
      %v6281 = vadd.f32 %v6120, %v6280
      %v6282 = vpop.f32.mrf.mxu0
      %v6283 = vpop.f32.mrf.mxu0
      %v6284 = vadd.f32 %v6123, %v6283
      %v6285 = vpop.f32.mrf.mxu0
      %6286 = vmatprep.mubr.bf16.mxu0 %v2841
      %6287 = vmatmul.mubr.bf16.gmra.mxu0 %v2840
      %v6288 = vpop.f32.mrf.mxu0
      %v6289 = vadd.f32 %v6128, %v6288
      %v6290 = vpop.f32.mrf.mxu0
      %v6291 = vpop.f32.mrf.mxu0
      %v6292 = vadd.f32 %v6131, %v6291
      %v6293 = vpop.f32.mrf.mxu0
      %6294 = vmatprep.mubr.bf16.mxu0 %v2852
      %6295 = vmatmul.mubr.bf16.gmra.mxu0 %v2851
      %v6296 = vpop.f32.mrf.mxu0
      %v6297 = vadd.f32 %v6136, %v6296
      %v6298 = vpop.f32.mrf.mxu0
      %v6299 = vpop.f32.mrf.mxu0
      %v6300 = vadd.f32 %v6139, %v6299
      %v6301 = vpop.f32.mrf.mxu0
      %6302 = vdwg.mxu0
      %6303 = vmatprep.subr.bf16.mxu0 0
      %6304 = vmatpush1.bf16.msra.mxu0 %v4138
      %6305 = vmatprep.subr.bf16.mxu0 0
      %6306 = vmatpush1.bf16.msra.mxu0 %v4137
      %6307 = vmatprep.subr.bf16.mxu0 0
      %6308 = vmatpush1.bf16.msra.mxu0 %v4136
      %6309 = vmatprep.subr.bf16.mxu0 0
      %6310 = vmatpush1.bf16.msra.mxu0 %v4135
      %6311 = vmatprep.subr.bf16.mxu0 0
      %6312 = vmatpush1.bf16.msra.mxu0 %v4134
      %6313 = vmatprep.subr.bf16.mxu0 0
      %6314 = vmatpush1.bf16.msra.mxu0 %v4133
      %6315 = vmatprep.subr.bf16.mxu0 0
      %6316 = vmatpush1.bf16.msra.mxu0 %v4132
      %6317 = vmatprep.subr.bf16.mxu0 0
      %6318 = vmatpush1.bf16.msra.mxu0 %v4131
      %6319 = vmatprep.subr.bf16.mxu0 0
      %6320 = vmatpush2.bf16.msra.mxu0 %v4146
      %6321 = vmatprep.subr.bf16.mxu0 0
      %6322 = vmatpush2.bf16.msra.mxu0 %v4145
      %6323 = vmatprep.subr.bf16.mxu0 0
      %6324 = vmatpush2.bf16.msra.mxu0 %v4144
      %6325 = vmatprep.subr.bf16.mxu0 0
      %6326 = vmatpush2.bf16.msra.mxu0 %v4143
      %6327 = vmatprep.subr.bf16.mxu0 0
      %6328 = vmatpush2.bf16.msra.mxu0 %v4142
      %6329 = vmatprep.subr.bf16.mxu0 0
      %6330 = vmatpush2.bf16.msra.mxu0 %v4141
      %6331 = vmatprep.subr.bf16.mxu0 0
      %6332 = vmatpush2.bf16.msra.mxu0 %v4140
      %6333 = vmatprep.subr.bf16.mxu0 0
      %6334 = vmatpush2.bf16.msra.mxu0 %v4139
      %6335 = vmatprep.mubr.bf16.mxu0 %v2662
      %6336 = vmatmul.mubr.bf16.gmra.mxu0 %v2661
      %v6337 = vpop.f32.mrf.mxu0
      %v6338 = vadd.f32 %v6177, %v6337
      %v6339 = vpop.f32.mrf.mxu0
      %v6340 = vpop.f32.mrf.mxu0
      %v6341 = vadd.f32 %v6180, %v6340
      %v6342 = vpop.f32.mrf.mxu0
      %6343 = vmatprep.mubr.bf16.mxu0 %v2681
      %6344 = vmatmul.mubr.bf16.gmra.mxu0 %v2680
      %v6345 = vpop.f32.mrf.mxu0
      %v6346 = vadd.f32 %v6185, %v6345
      %v6347 = vpop.f32.mrf.mxu0
      %v6348 = vpop.f32.mrf.mxu0
      %v6349 = vadd.f32 %v6188, %v6348
      %v6350 = vpop.f32.mrf.mxu0
      %6351 = vmatprep.mubr.bf16.mxu0 %v2700
      %6352 = vmatmul.mubr.bf16.gmra.mxu0 %v2699
      %v6353 = vpop.f32.mrf.mxu0
      %v6354 = vadd.f32 %v6193, %v6353
      %v6355 = vpop.f32.mrf.mxu0
      %v6356 = vpop.f32.mrf.mxu0
      %v6357 = vadd.f32 %v6196, %v6356
      %v6358 = vpop.f32.mrf.mxu0
      %6359 = vmatprep.mubr.bf16.mxu0 %v2719
      %6360 = vmatmul.mubr.bf16.gmra.mxu0 %v2718
      %v6361 = vpop.f32.mrf.mxu0
      %v6362 = vadd.f32 %v6201, %v6361
      %v6363 = vpop.f32.mrf.mxu0
      %v6364 = vpop.f32.mrf.mxu0
      %v6365 = vadd.f32 %v6204, %v6364
      %v6366 = vpop.f32.mrf.mxu0
      %6367 = vmatprep.mubr.bf16.mxu0 %v2733
      %6368 = vmatmul.mubr.bf16.gmra.mxu0 %v2732
      %v6369 = vpop.f32.mrf.mxu0
      %v6370 = vadd.f32 %v6209, %v6369
      %v6371 = vpop.f32.mrf.mxu0
      %v6372 = vpop.f32.mrf.mxu0
      %v6373 = vadd.f32 %v6212, %v6372
      %v6374 = vpop.f32.mrf.mxu0
      %6375 = vmatprep.mubr.bf16.mxu0 %v2743
      %6376 = vmatmul.mubr.bf16.gmra.mxu0 %v2742
      %v6377 = vpop.f32.mrf.mxu0
      %v6378 = vadd.f32 %v6217, %v6377
      %v6379 = vpop.f32.mrf.mxu0
      %v6380 = vpop.f32.mrf.mxu0
      %v6381 = vadd.f32 %v6220, %v6380
      %v6382 = vpop.f32.mrf.mxu0
      %6383 = vmatprep.mubr.bf16.mxu0 %v2753
      %6384 = vmatmul.mubr.bf16.gmra.mxu0 %v2752
      %v6385 = vpop.f32.mrf.mxu0
      %v6386 = vadd.f32 %v6225, %v6385
      %v6387 = vpop.f32.mrf.mxu0
      %v6388 = vpop.f32.mrf.mxu0
      %v6389 = vadd.f32 %v6228, %v6388
      %v6390 = vpop.f32.mrf.mxu0
      %6391 = vmatprep.mubr.bf16.mxu0 %v2764
      %6392 = vmatmul.mubr.bf16.gmra.mxu0 %v2763
      %v6393 = vpop.f32.mrf.mxu0
      %v6394 = vadd.f32 %v6233, %v6393
      %v6395 = vpop.f32.mrf.mxu0
      %v6396 = vpop.f32.mrf.mxu0
      %v6397 = vadd.f32 %v6236, %v6396
      %v6398 = vpop.f32.mrf.mxu0
      %6399 = vmatprep.mubr.bf16.mxu0 %v2778
      %6400 = vmatmul.mubr.bf16.gmra.mxu0 %v2777
      %v6401 = vpop.f32.mrf.mxu0
      %v6402 = vadd.f32 %v6241, %v6401
      %v6403 = vpop.f32.mrf.mxu0
      %v6404 = vpop.f32.mrf.mxu0
      %v6405 = vadd.f32 %v6244, %v6404
      %v6406 = vpop.f32.mrf.mxu0
      %6407 = vmatprep.mubr.bf16.mxu0 %v2788
      %6408 = vmatmul.mubr.bf16.gmra.mxu0 %v2787
      %v6409 = vpop.f32.mrf.mxu0
      %v6410 = vadd.f32 %v6249, %v6409
      %v6411 = vpop.f32.mrf.mxu0
      %v6412 = vpop.f32.mrf.mxu0
      %v6413 = vadd.f32 %v6252, %v6412
      %v6414 = vpop.f32.mrf.mxu0
      %6415 = vmatprep.mubr.bf16.mxu0 %v2798
      %6416 = vmatmul.mubr.bf16.gmra.mxu0 %v2797
      %v6417 = vpop.f32.mrf.mxu0
      %v6418 = vadd.f32 %v6257, %v6417
      %v6419 = vpop.f32.mrf.mxu0
      %v6420 = vpop.f32.mrf.mxu0
      %v6421 = vadd.f32 %v6260, %v6420
      %v6422 = vpop.f32.mrf.mxu0
      %6423 = vmatprep.mubr.bf16.mxu0 %v2809
      %6424 = vmatmul.mubr.bf16.gmra.mxu0 %v2808
      %v6425 = vpop.f32.mrf.mxu0
      %v6426 = vadd.f32 %v6265, %v6425
      %v6427 = vpop.f32.mrf.mxu0
      %v6428 = vpop.f32.mrf.mxu0
      %v6429 = vadd.f32 %v6268, %v6428
      %v6430 = vpop.f32.mrf.mxu0
      %6431 = vmatprep.mubr.bf16.mxu0 %v2823
      %6432 = vmatmul.mubr.bf16.gmra.mxu0 %v2822
      %v6433 = vpop.f32.mrf.mxu0
      %v6434 = vadd.f32 %v6273, %v6433
      %v6435 = vpop.f32.mrf.mxu0
      %v6436 = vpop.f32.mrf.mxu0
      %v6437 = vadd.f32 %v6276, %v6436
      %v6438 = vpop.f32.mrf.mxu0
      %6439 = vmatprep.mubr.bf16.mxu0 %v2833
      %6440 = vmatmul.mubr.bf16.gmra.mxu0 %v2832
      %v6441 = vpop.f32.mrf.mxu0
      %v6442 = vadd.f32 %v6281, %v6441
      %v6443 = vpop.f32.mrf.mxu0
      %v6444 = vpop.f32.mrf.mxu0
      %v6445 = vadd.f32 %v6284, %v6444
      %v6446 = vpop.f32.mrf.mxu0
      %6447 = vmatprep.mubr.bf16.mxu0 %v2843
      %6448 = vmatmul.mubr.bf16.gmra.mxu0 %v2842
      %v6449 = vpop.f32.mrf.mxu0
      %v6450 = vadd.f32 %v6289, %v6449
      %v6451 = vpop.f32.mrf.mxu0
      %v6452 = vpop.f32.mrf.mxu0
      %v6453 = vadd.f32 %v6292, %v6452
      %v6454 = vpop.f32.mrf.mxu0
      %6455 = vmatprep.mubr.bf16.mxu0 %v2854
      %6456 = vmatmul.mubr.bf16.gmra.mxu0 %v2853
      %v6457 = vpop.f32.mrf.mxu0
      %v6458 = vadd.f32 %v6297, %v6457
      %v6459 = vpop.f32.mrf.mxu0
      %v6460 = vpop.f32.mrf.mxu0
      %v6461 = vadd.f32 %v6300, %v6460
      %v6462 = vpop.f32.mrf.mxu0
      %6463 = vdwg.mxu0
      %6464 = vmatprep.subr.bf16.mxu0 0
      %6465 = vmatpush1.bf16.msra.mxu0 %v4154
      %6466 = vmatprep.subr.bf16.mxu0 0
      %6467 = vmatpush1.bf16.msra.mxu0 %v4153
      %6468 = vmatprep.subr.bf16.mxu0 0
      %6469 = vmatpush1.bf16.msra.mxu0 %v4152
      %6470 = vmatprep.subr.bf16.mxu0 0
      %6471 = vmatpush1.bf16.msra.mxu0 %v4151
      %6472 = vmatprep.subr.bf16.mxu0 0
      %6473 = vmatpush1.bf16.msra.mxu0 %v4150
      %6474 = vmatprep.subr.bf16.mxu0 0
      %6475 = vmatpush1.bf16.msra.mxu0 %v4149
      %6476 = vmatprep.subr.bf16.mxu0 0
      %6477 = vmatpush1.bf16.msra.mxu0 %v4148
      %6478 = vmatprep.subr.bf16.mxu0 0
      %6479 = vmatpush1.bf16.msra.mxu0 %v4147
      %6480 = vmatprep.subr.bf16.mxu0 0
      %6481 = vmatpush2.bf16.msra.mxu0 0
      %6482 = vmatprep.subr.bf16.mxu0 0
      %6483 = vmatpush2.bf16.msra.mxu0 0
      %6484 = vmatprep.subr.bf16.mxu0 0
      %6485 = vmatpush2.bf16.msra.mxu0 0
      %6486 = vmatprep.subr.bf16.mxu0 0
      %6487 = vmatpush2.bf16.msra.mxu0 0
      %6488 = vmatprep.subr.bf16.mxu0 0
      %6489 = vmatpush2.bf16.msra.mxu0 0
      %6490 = vmatprep.subr.bf16.mxu0 0
      %6491 = vmatpush2.bf16.msra.mxu0 0
      %6492 = vmatprep.subr.bf16.mxu0 0
      %6493 = vmatpush2.bf16.msra.mxu0 0
      %6494 = vmatprep.subr.bf16.mxu0 0
      %6495 = vmatpush2.bf16.msra.mxu0 0
      %6496 = vmatprep.mubr.bf16.mxu0 0
      %6497 = vmatmul.mubr.bf16.gmra.mxu0 %v2663
      %v6498 = vpop.f32.mrf.mxu0
      %v6499 = vadd.f32 %v6338, %v6498
      %v6500 = vpop.f32.mrf.mxu0
      %v6501 = vpop.f32.mrf.mxu0
      %v6502 = vadd.f32 %v6341, %v6501
      %v6503 = vpop.f32.mrf.mxu0
      %6504 = vmatprep.mubr.bf16.mxu0 0
      %6505 = vmatmul.mubr.bf16.gmra.mxu0 %v2682
      %v6506 = vpop.f32.mrf.mxu0
      %v6507 = vadd.f32 %v6346, %v6506
      %v6508 = vpop.f32.mrf.mxu0
      %v6509 = vpop.f32.mrf.mxu0
      %v6510 = vadd.f32 %v6349, %v6509
      %v6511 = vpop.f32.mrf.mxu0
      %6512 = vmatprep.mubr.bf16.mxu0 0
      %6513 = vmatmul.mubr.bf16.gmra.mxu0 %v2701
      %v6514 = vpop.f32.mrf.mxu0
      %v6515 = vadd.f32 %v6354, %v6514
      %v6516 = vpop.f32.mrf.mxu0
      %v6517 = vpop.f32.mrf.mxu0
      %v6518 = vadd.f32 %v6357, %v6517
      %v6519 = vpop.f32.mrf.mxu0
      %6520 = vmatprep.mubr.bf16.mxu0 0
      %6521 = vmatmul.mubr.bf16.gmra.mxu0 %v2720
      %v6522 = vpop.f32.mrf.mxu0
      %v6523 = vadd.f32 %v6362, %v6522
      %v6524 = vpop.f32.mrf.mxu0
      %v6525 = vpop.f32.mrf.mxu0
      %v6526 = vadd.f32 %v6365, %v6525
      %v6527 = vpop.f32.mrf.mxu0
      %6528 = vmatprep.mubr.bf16.mxu0 0
      %6529 = vmatmul.mubr.bf16.gmra.mxu0 %v2734
      %v6530 = vpop.f32.mrf.mxu0
      %v6531 = vadd.f32 %v6370, %v6530
      %v6532 = vpop.f32.mrf.mxu0
      %v6533 = vpop.f32.mrf.mxu0
      %v6534 = vadd.f32 %v6373, %v6533
      %v6535 = vpop.f32.mrf.mxu0
      %6536 = vmatprep.mubr.bf16.mxu0 0
      %6537 = vmatmul.mubr.bf16.gmra.mxu0 %v2744
      %v6538 = vpop.f32.mrf.mxu0
      %v6539 = vadd.f32 %v6378, %v6538
      %v6540 = vpop.f32.mrf.mxu0
      %v6541 = vpop.f32.mrf.mxu0
      %v6542 = vadd.f32 %v6381, %v6541
      %v6543 = vpop.f32.mrf.mxu0
      %6544 = vmatprep.mubr.bf16.mxu0 0
      %6545 = vmatmul.mubr.bf16.gmra.mxu0 %v2754
      %v6546 = vpop.f32.mrf.mxu0
      %v6547 = vadd.f32 %v6386, %v6546
      %v6548 = vpop.f32.mrf.mxu0
      %v6549 = vpop.f32.mrf.mxu0
      %v6550 = vadd.f32 %v6389, %v6549
      %v6551 = vpop.f32.mrf.mxu0
      %6552 = vmatprep.mubr.bf16.mxu0 0
      %6553 = vmatmul.mubr.bf16.gmra.mxu0 %v2765
      %v6554 = vpop.f32.mrf.mxu0
      %v6555 = vadd.f32 %v6394, %v6554
      %v6556 = vpop.f32.mrf.mxu0
      %v6557 = vpop.f32.mrf.mxu0
      %v6558 = vadd.f32 %v6397, %v6557
      %v6559 = vpop.f32.mrf.mxu0
      %6560 = vmatprep.mubr.bf16.mxu0 0
      %6561 = vmatmul.mubr.bf16.gmra.mxu0 %v2779
      %v6562 = vpop.f32.mrf.mxu0
      %v6563 = vadd.f32 %v6402, %v6562
      %v6564 = vpop.f32.mrf.mxu0
      %v6565 = vpop.f32.mrf.mxu0
      %v6566 = vadd.f32 %v6405, %v6565
      %v6567 = vpop.f32.mrf.mxu0
      %6568 = vmatprep.mubr.bf16.mxu0 0
      %6569 = vmatmul.mubr.bf16.gmra.mxu0 %v2789
      %v6570 = vpop.f32.mrf.mxu0
      %v6571 = vadd.f32 %v6410, %v6570
      %v6572 = vpop.f32.mrf.mxu0
      %v6573 = vpop.f32.mrf.mxu0
      %v6574 = vadd.f32 %v6413, %v6573
      %v6575 = vpop.f32.mrf.mxu0
      %6576 = vmatprep.mubr.bf16.mxu0 0
      %6577 = vmatmul.mubr.bf16.gmra.mxu0 %v2799
      %v6578 = vpop.f32.mrf.mxu0
      %v6579 = vadd.f32 %v6418, %v6578
      %v6580 = vpop.f32.mrf.mxu0
      %v6581 = vpop.f32.mrf.mxu0
      %v6582 = vadd.f32 %v6421, %v6581
      %v6583 = vpop.f32.mrf.mxu0
      %6584 = vmatprep.mubr.bf16.mxu0 0
      %6585 = vmatmul.mubr.bf16.gmra.mxu0 %v2810
      %v6586 = vpop.f32.mrf.mxu0
      %v6587 = vadd.f32 %v6426, %v6586
      %v6588 = vpop.f32.mrf.mxu0
      %v6589 = vpop.f32.mrf.mxu0
      %v6590 = vadd.f32 %v6429, %v6589
      %v6591 = vpop.f32.mrf.mxu0
      %6592 = vmatprep.mubr.bf16.mxu0 0
      %6593 = vmatmul.mubr.bf16.gmra.mxu0 %v2824
      %v6594 = vpop.f32.mrf.mxu0
      %v6595 = vadd.f32 %v6434, %v6594
      %v6596 = vpop.f32.mrf.mxu0
      %v6597 = vpop.f32.mrf.mxu0
      %v6598 = vadd.f32 %v6437, %v6597
      %v6599 = vpop.f32.mrf.mxu0
      %6600 = vmatprep.mubr.bf16.mxu0 0
      %6601 = vmatmul.mubr.bf16.gmra.mxu0 %v2834
      %v6602 = vpop.f32.mrf.mxu0
      %v6603 = vadd.f32 %v6442, %v6602
      %v6604 = vpop.f32.mrf.mxu0
      %v6605 = vpop.f32.mrf.mxu0
      %v6606 = vadd.f32 %v6445, %v6605
      %v6607 = vpop.f32.mrf.mxu0
      %6608 = vmatprep.mubr.bf16.mxu0 0
      %6609 = vmatmul.mubr.bf16.gmra.mxu0 %v2844
      %v6610 = vpop.f32.mrf.mxu0
      %v6611 = vadd.f32 %v6450, %v6610
      %v6612 = vpop.f32.mrf.mxu0
      %v6613 = vpop.f32.mrf.mxu0
      %v6614 = vadd.f32 %v6453, %v6613
      %v6615 = vpop.f32.mrf.mxu0
      %6616 = vmatprep.mubr.bf16.mxu0 0
      %6617 = vmatmul.mubr.bf16.gmra.mxu0 %v2855
      %v6618 = vpop.f32.mrf.mxu0
      %v6619 = vadd.f32 %v6458, %v6618
      %v6620 = vpop.f32.mrf.mxu0
      %v6621 = vpop.f32.mrf.mxu0
      %v6622 = vadd.f32 %v6461, %v6621
      %v6623 = vpop.f32.mrf.mxu0
      %6624 = vdwg.mxu0
      %6625 = vst [vmem:[%s177] sm:$0xff] %v6499
      %6626 = vst [vmem:[%s177 + $0x8] sm:$0xff] %v6502
      %6627 = vst [vmem:[%s177 + $0x10] sm:$0xff] %v6507
      %6628 = vst [vmem:[%s177 + $0x18] sm:$0xff] %v6510
      %6629 = vst [vmem:[%s177 + $0x20] sm:$0xff] %v6515
      %6630 = vst [vmem:[%s177 + $0x28] sm:$0xff] %v6518
      %6631 = vst [vmem:[%s177 + $0x30] sm:$0xff] %v6523
      %6632 = vst [vmem:[%s177 + $0x38] sm:$0xff] %v6526
      %6633 = vst [vmem:[%s177 + $0x40] sm:$0xff] %v6531
      %6634 = vst [vmem:[%s177 + $0x48] sm:$0xff] %v6534
      %6635 = vst [vmem:[%s177 + $0x50] sm:$0xff] %v6539
      %6636 = vst [vmem:[%s177 + $0x58] sm:$0xff] %v6542
      %6637 = vst [vmem:[%s177 + $0x60] sm:$0xff] %v6547
      %6638 = vst [vmem:[%s177 + $0x68] sm:$0xff] %v6550
      %6639 = vst [vmem:[%s177 + $0x70] sm:$0xff] %v6555
      %6640 = vst [vmem:[%s177 + $0x78] sm:$0xff] %v6558
      %6641 = vst [vmem:[%s177 + $0x80] sm:$0xff] %v6563
      %6642 = vst [vmem:[%s177 + $0x88] sm:$0xff] %v6566
      %6643 = vst [vmem:[%s177 + $0x90] sm:$0xff] %v6571
      %6644 = vst [vmem:[%s177 + $0x98] sm:$0xff] %v6574
      %6645 = vst [vmem:[%s177 + $0xa0] sm:$0xff] %v6579
      %6646 = vst [vmem:[%s177 + $0xa8] sm:$0xff] %v6582
      %6647 = vst [vmem:[%s177 + $0xb0] sm:$0xff] %v6587
      %6648 = vst [vmem:[%s177 + $0xb8] sm:$0xff] %v6590
      %6649 = vst [vmem:[%s177 + $0xc0] sm:$0xff] %v6595
      %6650 = vst [vmem:[%s177 + $0xc8] sm:$0xff] %v6598
      %6651 = vst [vmem:[%s177 + $0xd0] sm:$0xff] %v6603
      %6652 = vst [vmem:[%s177 + $0xd8] sm:$0xff] %v6606
      %6653 = vst [vmem:[%s177 + $0xe0] sm:$0xff] %v6611
      %6654 = vst [vmem:[%s177 + $0xe8] sm:$0xff] %v6614
      %6655 = vst [vmem:[%s177 + $0xf0] sm:$0xff] %v6619
      %6656 = vst [vmem:[%s177 + $0xf8] sm:$0xff] %v6622
      %v6657 = vadd.f32 %v6499, %v6502
      %v6658 = vadd.f32 %v6657, %v6507
      %v6659 = vadd.f32 %v6658, %v6510
      %v6660 = vadd.f32 %v6659, %v6515
      %v6661 = vadd.f32 %v6660, %v6518
      %v6662 = vadd.f32 %v6661, %v6523
      %v6663 = vadd.f32 %v6662, %v6526
      %v6664 = vadd.f32 %v6663, %v6531
      %v6665 = vadd.f32 %v6664, %v6534
      %v6666 = vadd.f32 %v6665, %v6539
      %v6667 = vadd.f32 %v6666, %v6542
      %v6668 = vadd.f32 %v6667, %v6547
      %v6669 = vadd.f32 %v6668, %v6550
      %v6670 = vadd.f32 %v6669, %v6555
      %v6671 = vadd.f32 %v6670, %v6558
      %v6672 = vadd.f32 %v6671, %v6563
      %v6673 = vadd.f32 %v6672, %v6566
      %v6674 = vadd.f32 %v6673, %v6571
      %v6675 = vadd.f32 %v6674, %v6574
      %v6676 = vadd.f32 %v6675, %v6579
      %v6677 = vadd.f32 %v6676, %v6582
      %v6678 = vadd.f32 %v6677, %v6587
      %v6679 = vadd.f32 %v6678, %v6590
      %v6680 = vadd.f32 %v6679, %v6595
      %v6681 = vadd.f32 %v6680, %v6598
      %v6682 = vadd.f32 %v6681, %v6603
      %v6683 = vadd.f32 %v6682, %v6606
      %v6684 = vadd.f32 %v6683, %v6611
      %v6685 = vadd.f32 %v6684, %v6614
      %v6686 = vadd.f32 %v6685, %v6619
      %v6687 = vadd.f32 %v6686, %v6622
      %v6688 = vrot.slane %v6687, 4
      %v6689 = vadd.f32 %v6687, %v6688
      %v6690 = vrot.slane %v6689, 2
      %v6691 = vadd.f32 %v6689, %v6690
      %v6692 = vrot.slane %v6691, 1
      %v6693 = vadd.f32 %v6691, %v6692
      %6694 = vst [vmem:[%s181] sm:$0x1] %v6693
      %v6695 = vmul.f32 %v6499, %v6499
      %v6696 = vmul.f32 %v6502, %v6502
      %v6697 = vmul.f32 %v6507, %v6507
      %v6698 = vmul.f32 %v6510, %v6510
      %v6699 = vmul.f32 %v6515, %v6515
      %v6700 = vmul.f32 %v6518, %v6518
      %v6701 = vmul.f32 %v6523, %v6523
      %v6702 = vmul.f32 %v6526, %v6526
      %v6703 = vmul.f32 %v6531, %v6531
      %v6704 = vmul.f32 %v6534, %v6534
      %v6705 = vmul.f32 %v6539, %v6539
      %v6706 = vmul.f32 %v6542, %v6542
      %v6707 = vmul.f32 %v6547, %v6547
      %v6708 = vmul.f32 %v6550, %v6550
      %v6709 = vmul.f32 %v6555, %v6555
      %v6710 = vmul.f32 %v6558, %v6558
      %v6711 = vmul.f32 %v6563, %v6563
      %v6712 = vmul.f32 %v6566, %v6566
      %v6713 = vmul.f32 %v6571, %v6571
      %v6714 = vmul.f32 %v6574, %v6574
      %v6715 = vmul.f32 %v6579, %v6579
      %v6716 = vmul.f32 %v6582, %v6582
      %v6717 = vmul.f32 %v6587, %v6587
      %v6718 = vmul.f32 %v6590, %v6590
      %v6719 = vmul.f32 %v6595, %v6595
      %v6720 = vmul.f32 %v6598, %v6598
      %v6721 = vmul.f32 %v6603, %v6603
      %v6722 = vmul.f32 %v6606, %v6606
      %v6723 = vmul.f32 %v6611, %v6611
      %v6724 = vmul.f32 %v6614, %v6614
      %v6725 = vmul.f32 %v6619, %v6619
      %v6726 = vmul.f32 %v6622, %v6622
      %v6727 = vadd.f32 %v6695, %v6696
      %v6728 = vadd.f32 %v6727, %v6697
      %v6729 = vadd.f32 %v6728, %v6698
      %v6730 = vadd.f32 %v6729, %v6699
      %v6731 = vadd.f32 %v6730, %v6700
      %v6732 = vadd.f32 %v6731, %v6701
      %v6733 = vadd.f32 %v6732, %v6702
      %v6734 = vadd.f32 %v6733, %v6703
      %v6735 = vadd.f32 %v6734, %v6704
      %v6736 = vadd.f32 %v6735, %v6705
      %v6737 = vadd.f32 %v6736, %v6706
      %v6738 = vadd.f32 %v6737, %v6707
      %v6739 = vadd.f32 %v6738, %v6708
      %v6740 = vadd.f32 %v6739, %v6709
      %v6741 = vadd.f32 %v6740, %v6710
      %v6742 = vadd.f32 %v6741, %v6711
      %v6743 = vadd.f32 %v6742, %v6712
      %v6744 = vadd.f32 %v6743, %v6713
      %v6745 = vadd.f32 %v6744, %v6714
      %v6746 = vadd.f32 %v6745, %v6715
      %v6747 = vadd.f32 %v6746, %v6716
      %v6748 = vadd.f32 %v6747, %v6717
      %v6749 = vadd.f32 %v6748, %v6718
      %v6750 = vadd.f32 %v6749, %v6719
      %v6751 = vadd.f32 %v6750, %v6720
      %v6752 = vadd.f32 %v6751, %v6721
      %v6753 = vadd.f32 %v6752, %v6722
      %v6754 = vadd.f32 %v6753, %v6723
      %v6755 = vadd.f32 %v6754, %v6724
      %v6756 = vadd.f32 %v6755, %v6725
      %v6757 = vadd.f32 %v6756, %v6726
      %v6758 = vrot.slane %v6757, 4
      %v6759 = vadd.f32 %v6757, %v6758
      %v6760 = vrot.slane %v6759, 2
      %v6761 = vadd.f32 %v6759, %v6760
      %v6762 = vrot.slane %v6761, 1
      %v6763 = vadd.f32 %v6761, %v6762
      %6764 = vst [vmem:[%s181 + $0x1] sm:$0x1] %v6763
      %p6765 = scmp.lt.s32.totalorder %s15, 1
      %s6766 = scalar_select %p6765, %s15, 1
      %s6767 = smul.addr %s6766, 32
      %s6768 = smul.addr %s6767, 8
      %s6769 = scalar_lea.vmem %s2, %s6768
      %p6770 = scmp.lt.s32.totalorder %s15, 1
      %s6771 = scalar_select %p6770, %s15, 1
      %s6772 = smul.addr %s6771, 2
      %s6773 = scalar_lea.vmem %s3, %s6772
      // Predicated region
      $region29: #{basic_transform_pallas.3} parent=27 // pred_check
        %p6774 = pneg %p80
      $region30: #{basic_transform_pallas.3} parent=27 // pred_check_branch
        %6776 = sbr.rel (%p6774) target = $region32
      $region31: #{basic_transform_pallas.3} parent=27 // pred_region
        _
      $region32: #{basic_transform_pallas.3} parent=27 // pred_fallthru
        _
      // Predicated region
      $region33: #{basic_transform_pallas.3} parent=27 // pred_check
        %p6777 = pneg %p106
      $region34: #{basic_transform_pallas.3} parent=27 // pred_check_branch
        %6779 = sbr.rel (%p6777) target = $region36
      $region35: #{basic_transform_pallas.3} parent=27 // pred_region
        _
      $region36: #{basic_transform_pallas.3} parent=27 // pred_fallthru
        _
    $region28: #{basic_transform_pallas.3} parent=5 // pred_fallthru
      _
    %p6780 = scmp.le.s32.totalorder 2, %s10
    // Predicated region
    $region37: #{basic_transform_pallas.3} parent=5 // pred_check
      %p6781 = pneg %p6780
    $region38: #{basic_transform_pallas.3} parent=5 // pred_check_branch
      %6783 = sbr.rel (%p6781) target = $region40
    $region39: #{basic_transform_pallas.3} parent=5 // pred_region
      %s6784 = ssub.s32 %s10, 2
      // Predicated region
      $region41: #{basic_transform_pallas.3} parent=39 // pred_check
        %p6785 = pneg %p86
      $region42: #{basic_transform_pallas.3} parent=39 // pred_check_branch
        %6787 = sbr.rel (%p6785) target = $region44
      $region43: #{basic_transform_pallas.3} parent=39 // pred_region
        %p6788 = scmp.lt.s32.totalorder %s16, 1
        %s6789 = scalar_select %p6788, %s16, 1
        %s6790 = smul.addr %s6789, 32
        %s6791 = smul.addr %s6790, 8
        %s6792 = scalar_lea.vmem %s2, %s6791
      $region44: #{basic_transform_pallas.3} parent=39 // pred_fallthru
        _
      // Predicated region
      $region45: #{basic_transform_pallas.3} parent=39 // pred_check
        %p6793 = pneg %p112
      $region46: #{basic_transform_pallas.3} parent=39 // pred_check_branch
        %6795 = sbr.rel (%p6793) target = $region48
      $region47: #{basic_transform_pallas.3} parent=39 // pred_region
        %p6796 = scmp.lt.s32.totalorder %s16, 1
        %s6797 = scalar_select %p6796, %s16, 1
        %s6798 = smul.addr %s6797, 2
        %s6799 = scalar_lea.vmem %s3, %s6798
      $region48: #{basic_transform_pallas.3} parent=39 // pred_fallthru
        _
    $region40: #{basic_transform_pallas.3} parent=5 // pred_fallthru
      _
  $region6: #{basic_transform_pallas.3} parent=0 // loop_footer
    %s14 = sadd.s32 1, %s10
  $region7: #{basic_transform_pallas.3} parent=0 // loop_footer_branch
    %9 = sbr.rel target = $region3
  $region8: #{basic_transform_pallas.3} parent=0 // loop_exit
    _

</llo_original>
